<compile_context>
chip_gen: v6e
topology: v6e:2x2x1
jax: 0.10.0
libtpu: 0.0.40
codegen_flags: <defaults>
</compile_context>

<pallas_src>
import functools
import math

import jax
import jax.numpy as jnp
from jax.experimental import pallas as pl
from jax.experimental.pallas import tpu as pltpu


# ---------------- small config (mirrors TIPAEConfig, scaled down) ----------------
class CFG:
    img_width = 16
    img_height = 16
    channels = 3
    emb_size = 32
    num_layers = 2
    num_heads = 2
    patch_count = 4
    mlp_dim = 64
    dim_head = 8
    text_emb_size = 16
    vocab_size = 32
    block_size = 8
    dropout = 0.1            # eval-mode => identity (see TODO below)
    image_latent_size = 32
    patch_width = img_width // patch_count
    patch_height = img_height // patch_count


VMEM = pl.BlockSpec(memory_space=pltpu.MemorySpace.VMEM)


# ------------------------- in-kernel math helpers (pure jnp on values) -------------------------
def _mm(a, b):
    # MXU matmul: bf16 operands, f32 accumulate.
    return jnp.dot(a.astype(jnp.bfloat16), b.astype(jnp.bfloat16),
                   preferred_element_type=jnp.float32)


def _mm_nt(a, b):
    # a @ b.T without materializing the transpose (contract last dims of both).
    return jax.lax.dot_general(a.astype(jnp.bfloat16), b.astype(jnp.bfloat16),
                               (((1,), (1,)), ((), ())),
                               preferred_element_type=jnp.float32)


def _ln(x, g, b, eps=1e-5):
    mean = jnp.mean(x, axis=-1, keepdims=True)
    xc = x - mean
    var = jnp.mean(xc * xc, axis=-1, keepdims=True)
    return xc * jax.lax.rsqrt(var + eps) * g + b


def _gelu(x):
    # TODO(synk): tanh-form GELU (EUP); PyTorch nn.GELU default is exact erf (|diff| < 1e-3).
    c = math.sqrt(2.0 / math.pi)
    return 0.5 * x * (1.0 + jnp.tanh(c * (x + 0.044715 * x * x * x)))


def _transformer_flat(xf, bblk, n_tok, lnab, w_qkv, w_out, w1, w2, b12,
                      heads, dim_head):
    """All transformer layers on the batch-folded token matrix xf: (bblk*n_tok, D).

    Per-layer refs (leading dim = depth):
      lnab : (depth, 4, D)   rows = [attn_ln_g, attn_ln_b, ff_ln_g, ff_ln_b]
      b12  : (depth, 2, max(mlp, D))  rows = [b1 (first mlp lanes), b2 (first D lanes)]
      w_qkv/w_out/w1/w2 : bf16 weight stacks.
    """
    depth, _, d_model = lnab.shape
    mlp = w1.shape[2]
    inner = heads * dim_head
    scale = dim_head ** -0.5
    m_rows = bblk * n_tok
    for l in range(depth):
        ln = lnab[l]                                        # (4, D)
        # ---- attention sub-block ----
        xn = _ln(xf, ln[0:1, :], ln[1:2, :])
        qkv = _mm(xn, w_qkv[l])                             # (M, 3*inner) f32: [q | k | v]
        qkv3 = qkv.reshape(bblk, n_tok, 3 * inner)
        # stack heads into the leading (batch) axis -> ONE score matmul / softmax / PV matmul
        q = jnp.concatenate([qkv3[:, :, h * dim_head:(h + 1) * dim_head]
                             for h in range(heads)], axis=0)
        k = jnp.concatenate([qkv3[:, :, inner + h * dim_head: inner + (h + 1) * dim_head]
                             for h in range(heads)], axis=0)
        v = jnp.concatenate([qkv3[:, :, 2 * inner + h * dim_head: 2 * inner + (h + 1) * dim_head]
                             for h in range(heads)], axis=0)
        s = jnp.einsum('bqd,bkd->bqk',
                       (q * scale).astype(jnp.bfloat16), k.astype(jnp.bfloat16),
                       preferred_element_type=jnp.float32)  # (heads*bblk, N, N)
        s = s - jnp.max(s, axis=-1, keepdims=True)
        p = jnp.exp(s)
        p = p * pl.reciprocal(jnp.sum(p, axis=-1, keepdims=True), approx=True)
        o = jnp.einsum('bqk,bkd->bqd',
                       p.astype(jnp.bfloat16), v.astype(jnp.bfloat16),
                       preferred_element_type=jnp.float32)  # (heads*bblk, N, dh)
        # fold the head-concat into the out-projection (avoids a minor-dim concat)
        wo = w_out[l]
        proj = None
        for h in range(heads):
            c_h = _mm(o[h * bblk:(h + 1) * bblk].reshape(m_rows, dim_head),
                      wo[h * dim_head:(h + 1) * dim_head, :])
            proj = c_h if proj is None else proj + c_h
        xf = xf + proj
        # ---- feed-forward sub-block ----
        xn = _ln(xf, ln[2:3, :], ln[3:4, :])
        b_l = b12[l]                                        # (2, bmax)
        h1 = _gelu(_mm(xn, w1[l]) + b_l[0:1, :mlp])
        xf = xf + _mm(h1, w2[l]) + b_l[1:2, :d_model]
    return xf


# ------------------------------- fused branch kernels -------------------------------
def _img_enc_kernel(x_ref, pos_ref, p_ln1, patch_w, p_head_d,
                    lnab, w_qkv, w_out, w1, w2, b12, fnorm, o_ref, *, heads, dim_head):
    # whole batch block per program: x_ref (Bblk, N, patch_dim)
    bblk, n_tok, patch_dim = x_ref.shape
    d_model = patch_w.shape[1]
    m_rows = bblk * n_tok
    x = x_ref[...].astype(jnp.float32).reshape(m_rows, patch_dim)
    ln1 = p_ln1[...]
    x = _ln(x, ln1[0:1, :], ln1[1:2, :])
    hd = p_head_d[...]                                      # rows: [linear bias, ln2_g, ln2_b]
    x = _mm(x, patch_w[...]) + hd[0:1, :]
    x = _ln(x, hd[1:2, :], hd[2:3, :])
    x = (x.reshape(bblk, n_tok, d_model)
         + pos_ref[...].astype(jnp.float32)[None]).reshape(m_rows, d_model)
    x = _transformer_flat(x, bblk, n_tok, lnab, w_qkv, w_out, w1, w2, b12, heads, dim_head)
    fn = fnorm[...]
    x = _ln(x, fn[0:1, :], fn[1:2, :])
    o_ref[...] = x.reshape(bblk, n_tok, d_model).astype(o_ref.dtype)


def _text_enc_kernel(x_ref, lnab, w_qkv, w_out, w1, w2, b12, fnorm, o_ref, *, heads, dim_head):
    bblk, n_tok, d_model = x_ref.shape
    x = x_ref[...].astype(jnp.float32).reshape(bblk * n_tok, d_model)
    x = _transformer_flat(x, bblk, n_tok, lnab, w_qkv, w_out, w1, w2, b12, heads, dim_head)
    fn = fnorm[...]
    x = _ln(x, fn[0:1, :], fn[1:2, :])
    o_ref[...] = x.reshape(bblk, n_tok, d_model).astype(o_ref.dtype)


def _img_dec_kernel(x_ref, lnab, w_qkv, w_out, w1, w2, b12, fnorm,
                    fpe_d, fpe_w, fpe_pd, o_ref, *, heads, dim_head):
    bblk, n_tok, d_model = x_ref.shape
    patch_dim = fpe_w.shape[1]
    m_rows = bblk * n_tok
    x = x_ref[...].astype(jnp.float32).reshape(m_rows, d_model)
    x = _transformer_flat(x, bblk, n_tok, lnab, w_qkv, w_out, w1, w2, b12, heads, dim_head)
    fn = fnorm[...]
    x = _ln(x, fn[0:1, :], fn[1:2, :])
    # from_patch_embedding head: LN -> Linear -> LN
    fd = fpe_d[...]
    x = _ln(x, fd[0:1, :], fd[1:2, :])
    fp = fpe_pd[...]                                        # rows: [linear bias, ln2_g, ln2_b]
    y = _mm(x, fpe_w[...]) + fp[0:1, :]
    y = _ln(y, fp[1:2, :], fp[2:3, :])
    o_ref[...] = y.reshape(bblk, n_tok, patch_dim).astype(o_ref.dtype)


def _text_dec_kernel(x_ref, lnab, w_qkv, w_out, w1, w2, b12, fnorm,
                     emb_table, fc_b, o_ref, *, heads, dim_head):
    bblk, n_tok, d_model = x_ref.shape
    vocab = emb_table.shape[0]
    m_rows = bblk * n_tok
    x = x_ref[...].astype(jnp.float32).reshape(m_rows, d_model)
    x = _transformer_flat(x, bblk, n_tok, lnab, w_qkv, w_out, w1, w2, b12, heads, dim_head)
    fn = fnorm[...]
    x = _ln(x, fn[0:1, :], fn[1:2, :])
    # tied text_fc: logits = x @ E^T + b  (untransposed table, NT matmul in-kernel)
    logits = _mm_nt(x, emb_table[...]) + fc_b[...]
    o_ref[...] = logits.reshape(bblk, n_tok, vocab).astype(o_ref.dtype)


def _convt_sigmoid_kernel(p_ref, w_ref, b_ref, o_ref):
    # ConvTranspose2d(k=3,s=1,p=1)+sigmoid as one lane-dense matmul.
    # p_ref: (Ci*9, B*H*W) shifted-window patches; w_ref: (Co, Ci*9); b_ref: (Co, 1)
    acc = _mm(w_ref[...], p_ref[...]) + b_ref[...]          # (Co, B*H*W)
    o_ref[...] = (1.0 / (1.0 + jnp.exp(-acc))).astype(o_ref.dtype)


# ------------------------------- pallas_call plumbing -------------------------------
def _branch_call(kernel, batched_in, full_ins, out_shape):
    c = CFG
    B = batched_in.shape[0]
    # Whole batch in one program: folds B into the MXU M-dimension and removes the per-sample
    # grid/pipeline overhead (single-TC v5e/v6e).  On v7x with large B, split the batch into
    # two balanced blocks (grid=(2,), "parallel") so both TensorCores stay busy.
    bblk = B
    grid = (B // bblk,)

    def bspec(shape):
        nd = len(shape)
        return pl.BlockSpec((bblk,) + tuple(shape[1:]),
                            lambda i, _nd=nd: (i,) + (0,) * (_nd - 1))

    def fspec(shape):
        nd = len(shape)
        return pl.BlockSpec(tuple(shape), lambda i, _nd=nd: (0,) * _nd)

    return pl.pallas_call(
        functools.partial(kernel, heads=c.num_heads, dim_head=c.dim_head),
        grid=grid,
        out_shape=jax.ShapeDtypeStruct(out_shape, jnp.float32),
        in_specs=[bspec(batched_in.shape)] + [fspec(a.shape) for a in full_ins],
        out_specs=bspec(out_shape),
        compiler_params=pltpu.CompilerParams(
            dimension_semantics=("arbitrary",) if grid[0] == 1 else ("parallel",)),
    )(batched_in, *full_ins)


def conv_transpose_sigmoid(ximg, wt, bias):
    # ximg: (B, Ci, H, W); wt: (Ci, Co, 3, 3) torch ConvTranspose2d layout; bias: (Co,)
    B, Ci, H, W = ximg.shape
    Co = wt.shape[1]
    xpad = jnp.pad(ximg, ((0, 0), (0, 0), (1, 1), (1, 1)))
    # 9 shifted windows -> lane-dense RHS (Ci*9, B*H*W)
    slabs = [xpad[:, :, a:a + H, bb:bb + W] for a in range(3) for bb in range(3)]
    pat = jnp.stack(slabs, axis=2)                                  # (B, Ci, 9, H, W)
    pat = pat.transpose(1, 2, 0, 3, 4).reshape(Ci * 9, B * H * W)
    # flip spatially so the transposed conv becomes a plain correlation
    w_eff = wt[:, :, ::-1, ::-1].transpose(1, 0, 2, 3).reshape(Co, Ci * 9)
    out = pl.pallas_call(
        _convt_sigmoid_kernel,
        out_shape=jax.ShapeDtypeStruct((Co, B * H * W), ximg.dtype),
        in_specs=[VMEM, VMEM, VMEM],
        out_specs=VMEM,
    )(pat, w_eff, bias.reshape(Co, 1))
    return out.reshape(Co, B, H, W).transpose(1, 0, 2, 3)


# ------------------------------- model (glue + fused kernels) -------------------------------
def posemb_sincos_2d(h, w, dim, temperature=10000.0):
    y, x = jnp.meshgrid(jnp.arange(h), jnp.arange(w), indexing="ij")
    omega = jnp.arange(dim // 4) / (dim // 4 - 1)
    omega = 1.0 / (temperature ** omega)
    y = y.reshape(-1)[:, None] * omega[None, :]
    x = x.reshape(-1)[:, None] * omega[None, :]
    pe = jnp.concatenate([jnp.sin(x), jnp.cos(x), jnp.sin(y), jnp.cos(y)], axis=1)
    return pe.astype(jnp.float32)


def text_positional_encoding(seq_len, d_model):
    position = jnp.arange(seq_len)[:, None].astype(jnp.float32)
    div_term = jnp.exp(jnp.arange(0, d_model, 2).astype(jnp.float32)
                       * -(math.log(10000.0) / d_model))
    pe = jnp.zeros((seq_len, d_model), jnp.float32)
    pe = pe.at[:, 0::2].set(jnp.sin(position * div_term))
    pe = pe.at[:, 1::2].set(jnp.cos(position * div_term))
    return pe[None]


def _xf_ins(tp):
    return [tp["lnab"], tp["w_qkv"], tp["w_out"], tp["w1"], tp["w2"], tp["b12"], tp["fnorm"]]


def img_encode(img, P):
    c = CFG
    B, C, H, W = img.shape
    ph, pw = c.patch_height, c.patch_width
    hN, wN = H // ph, W // pw
    N, patch_dim = hN * wN, ph * pw * C
    # Rearrange 'b c (h p1) (w p2) -> b (h w) (p1 p2 c)'  (single XLA transpose, glue)
    x = img.reshape(B, C, hN, ph, wN, pw).transpose(0, 2, 4, 3, 5, 1).reshape(B, N, patch_dim)

    full_ins = ([P["img_pos"], P["patch_ln1"], P["patch_w"], P["patch_head_d"]]
                + _xf_ins(P["img_enc"]))
    h = _branch_call(_img_enc_kernel, x, full_ins, (B, N, c.emb_size))
    # fused (mean || logvar) flatten-projection: one batched XLA matmul (MXU-sized)
    zz = h.reshape(B, N * c.emb_size) @ P["img_proj_w"] + P["img_proj_b"]
    return zz[:, :c.image_latent_size], zz[:, c.image_latent_size:]


def text_encode(tokens, P):
    c = CFG
    B, T = tokens.shape
    emb = jnp.take(P["text_emb_table"], tokens, axis=0) + P["text_pos"][:, :T]
    # TODO(synk): nn.Dropout applied here in train mode; eval-mode identity is used.
    h = _branch_call(_text_enc_kernel, emb, _xf_ins(P["text_enc"]),
                     (B, T, c.text_emb_size))
    zz = h.reshape(B, T * c.text_emb_size) @ P["text_proj_w"] + P["text_proj_b"]
    return zz[:, :c.image_latent_size], zz[:, c.image_latent_size:]


def img_decode(z, P):
    c = CFG
    B = z.shape[0]
    N = c.patch_count ** 2
    patch_dim = c.channels * c.patch_height * c.patch_width
    # latent -> tokens: one batched XLA matmul (replaces the per-row in-kernel unprojection)
    tok = (z @ P["img_unproj_w"] + P["img_unproj_b"]).reshape(B, N, c.emb_size)
    full_ins = _xf_ins(P["img_dec"]) + [P["fpe_d"], P["fpe_w"], P["fpe_pd"]]
    pat = _branch_call(_img_dec_kernel, tok, full_ins, (B, N, patch_dim))
    # Rearrange 'b (h w) (p1 p2 c) -> b c (h p1) (w p2)'
    hN = wN = c.patch_count
    ph, pw, C = c.patch_height, c.patch_width, c.channels
    ximg = pat.reshape(B, hN, wN, ph, pw, C).transpose(0, 5, 1, 3, 2, 4)
    ximg = ximg.reshape(B, C, hN * ph, wN * pw)
    return conv_transpose_sigmoid(ximg, P["convt_w"], P["convt_b"])


def text_decode(z, P):
    c = CFG
    B = z.shape[0]
    tok = (z @ P["text_unproj_w"] + P["text_unproj_b"]).reshape(B, c.block_size,
                                                                c.text_emb_size)
    full_ins = _xf_ins(P["text_dec"]) + [P["text_emb_table"].astype(jnp.bfloat16),
                                         P["text_fc_b"]]
    return _branch_call(_text_dec_kernel, tok, full_ins,
                        (B, c.block_size, c.vocab_size))


def reparameterize(key, mean, log_var):
    eps = jax.random.normal(key, mean.shape, mean.dtype)   # torch.randn_like equivalent
    return mean + eps * jnp.exp(0.5 * log_var)


def tipae_forward(params, img, tokens, rng):
    img_z_mean, img_z_log_var = img_encode(img, params)
    text_z_mean, text_z_log_var = text_encode(tokens, params)
    k1, k2 = jax.random.split(rng)
    img_z = reparameterize(k1, img_z_mean, img_z_log_var)
    text_z = reparameterize(k2, text_z_mean, text_z_log_var)
    img_x = img_decode(img_z, params)
    text_x = text_decode(text_z, params)
    return img_x, text_x, img_z_mean, img_z_log_var, text_z_mean, text_z_log_var


# ------------------------------- deterministic init -------------------------------
class KeyGen:
    def __init__(self, key):
        self._key = key

    def __call__(self):
        self._key, sub = jax.random.split(self._key)
        return sub


def init_params(key):
    c = CFG
    kg = KeyGen(key)

    def w(shape, scale=0.02, dtype=jnp.bfloat16):
        # transformer / head weights stored in bf16 (removes per-matmul casts, halves DMA bytes)
        return (scale * jax.random.normal(kg(), shape)).astype(dtype)

    def zeros(shape):
        return jnp.zeros(shape, jnp.float32)

    def ones(shape):
        return jnp.ones(shape, jnp.float32)

    def xf(dim, depth, heads, dim_head, mlp_dim):
        inner = heads * dim_head
        bmax = max(mlp_dim, dim)
        return {
            # packed per-layer LN params: rows [attn_g, attn_b, ff_g, ff_b]
            "lnab": jnp.stack([ones((depth, dim)), zeros((depth, dim)),
                               ones((depth, dim)), zeros((depth, dim))], axis=1),
            "w_qkv": w((depth, dim, 3 * inner)),
            "w_out": w((depth, inner, dim)),
            "w1": w((depth, dim, mlp_dim)),
            "w2": w((depth, mlp_dim, dim)),
            # packed FF biases: row 0 -> b1 (first mlp lanes), row 1 -> b2 (first dim lanes)
            "b12": zeros((depth, 2, bmax)),
            # packed final LayerNorm: [gamma; beta]
            "fnorm": jnp.stack([ones((dim,)), zeros((dim,))], axis=0),
        }

    patch_dim = c.channels * c.patch_height * c.patch_width
    seq_img = c.patch_count ** 2
    latent = c.image_latent_size
    return {
        # ---- image patch-embed head (packed) ----
        "patch_ln1": jnp.stack([ones((patch_dim,)), zeros((patch_dim,))], axis=0),
        "patch_w": w((patch_dim, c.emb_size)),
        "patch_head_d": jnp.stack([zeros((c.emb_size,)),        # linear bias
                                   ones((c.emb_size,)),         # LN2 gamma
                                   zeros((c.emb_size,))], 0),   # LN2 beta
        "img_pos": posemb_sincos_2d(c.img_height // c.patch_height,
                                    c.img_width // c.patch_width, c.emb_size),
        "img_enc": xf(c.emb_size, c.num_layers, c.num_heads, c.dim_head, c.mlp_dim),
        # mean/logvar projections stored pre-concatenated (wrapper XLA matmul, f32)
        "img_proj_w": w((c.emb_size * seq_img, 2 * latent), dtype=jnp.float32),
        "img_proj_b": zeros((2 * latent,)),
        "img_unproj_w": w((latent, c.emb_size * seq_img), dtype=jnp.float32),
        "img_unproj_b": zeros((c.emb_size * seq_img,)),
        "img_dec": xf(c.emb_size, c.num_layers, c.num_heads, c.dim_head, c.mlp_dim),
        # from_patch_embedding head (packed)
        "fpe_d": jnp.stack([ones((c.emb_size,)), zeros((c.emb_size,))], axis=0),
        "fpe_w": w((c.emb_size, patch_dim)),
        "fpe_pd": jnp.stack([zeros((patch_dim,)),                # linear bias
                             ones((patch_dim,)),                 # LN2 gamma
                             zeros((patch_dim,))], 0),           # LN2 beta
        "convt_w": w((c.channels, c.channels, 3, 3), scale=0.1, dtype=jnp.float32),
        "convt_b": zeros((c.channels,)),
        # ---- text branch ----
        "text_emb_table": w((c.vocab_size, c.text_emb_size), dtype=jnp.float32),
        "text_pos": text_positional_encoding(c.block_size, c.text_emb_size),
        "text_enc": xf(c.text_emb_size, c.num_layers, c.num_heads, c.dim_head, c.mlp_dim),
        "text_proj_w": w((c.text_emb_size * c.block_size, 2 * latent), dtype=jnp.float32),
        "text_proj_b": zeros((2 * latent,)),
        "text_unproj_w": w((latent, c.text_emb_size * c.block_size), dtype=jnp.float32),
        "text_unproj_b": zeros((c.text_emb_size * c.block_size,)),
        "text_dec": xf(c.text_emb_size, c.num_layers, c.num_heads, c.dim_head, c.mlp_dim),
        "text_fc_b": zeros((1, c.vocab_size)),
    }


if __name__ == "__main__":
    root = jax.random.PRNGKey(0)
    k_param, k_img, k_tok, k_eps = jax.random.split(root, 4)
    params = init_params(k_param)
    img = jax.random.uniform(k_img, (2, CFG.channels, CFG.img_height, CFG.img_width),
                             dtype=jnp.float32)
    tokens = jax.random.randint(k_tok, (2, CFG.block_size), 0, CFG.vocab_size,
                                dtype=jnp.int32)

    fwd = jax.jit(tipae_forward)
    outs = jax.block_until_ready(fwd(params, img, tokens, k_eps))

    img_x, text_x, im_m, im_lv, tx_m, tx_lv = outs
    assert img_x.shape == (2, CFG.channels, CFG.img_height, CFG.img_width)
    assert text_x.shape == (2, CFG.block_size, CFG.vocab_size)
    assert im_m.shape == (2, CFG.image_latent_size) and im_lv.shape == (2, CFG.image_latent_size)
    assert tx_m.shape == (2, CFG.image_latent_size) and tx_lv.shape == (2, CFG.image_latent_size)
    print("KERNEL_OK")
</pallas_src>

<mosaic_0001>
module attributes {stable_mosaic.version = 11 : i64} {
  func.func @_text_enc_kernel(%arg0: i32, %arg1: memref<2x8x16xf32, #tpu.memory_space<vmem>>, %arg2: memref<2x4x16xf32, #tpu.memory_space<vmem>>, %arg3: memref<2x16x48xbf16, #tpu.memory_space<vmem>>, %arg4: memref<2x16x16xbf16, #tpu.memory_space<vmem>>, %arg5: memref<2x16x64xbf16, #tpu.memory_space<vmem>>, %arg6: memref<2x64x16xbf16, #tpu.memory_space<vmem>>, %arg7: memref<2x2x64xf32, #tpu.memory_space<vmem>>, %arg8: memref<2x16xf32, #tpu.memory_space<vmem>>, %arg9: memref<2x8x16xf32, #tpu.memory_space<vmem>>) attributes {dimension_semantics = [#tpu.dimension_semantics<arbitrary>], iteration_bounds = array<i64: 1>, scalar_prefetch = 0 : i64, scratch_operands = 0 : i64, tpu.core_type = #tpu.core_type<tc>, window_params = [{transform_indices = @transform_0, window_bounds = array<i64: 2, 8, 16>}, {pipeline_mode = #tpu.pipeline_mode<synchronous>, transform_indices = @transform_1, window_bounds = array<i64: 2, 4, 16>}, {pipeline_mode = #tpu.pipeline_mode<synchronous>, transform_indices = @transform_2, window_bounds = array<i64: 2, 16, 48>}, {pipeline_mode = #tpu.pipeline_mode<synchronous>, transform_indices = @transform_3, window_bounds = array<i64: 2, 16, 16>}, {pipeline_mode = #tpu.pipeline_mode<synchronous>, transform_indices = @transform_4, window_bounds = array<i64: 2, 16, 64>}, {pipeline_mode = #tpu.pipeline_mode<synchronous>, transform_indices = @transform_5, window_bounds = array<i64: 2, 64, 16>}, {pipeline_mode = #tpu.pipeline_mode<synchronous>, transform_indices = @transform_6, window_bounds = array<i64: 2, 2, 64>}, {pipeline_mode = #tpu.pipeline_mode<synchronous>, transform_indices = @transform_7, window_bounds = array<i64: 2, 16>}, {transform_indices = @transform_8, window_bounds = array<i64: 2, 8, 16>}]} {
    %c0 = arith.constant 0 : index
    %c0_0 = arith.constant 0 : index
    %c0_1 = arith.constant 0 : index
    %0 = vector.load %arg1[%c0, %c0_0, %c0_1] : memref<2x8x16xf32, #tpu.memory_space<vmem>>, vector<2x8x16xf32>
    %1 = vector.shape_cast %0 : vector<2x8x16xf32> to vector<16x16xf32>
    %c0_2 = arith.constant 0 : index
    %c0_3 = arith.constant 0 : index
    %c0_4 = arith.constant 0 : index
    %2 = vector.load %arg2[%c0_2, %c0_3, %c0_4] : memref<2x4x16xf32, #tpu.memory_space<vmem>>, vector<1x4x16xf32>
    %3 = vector.shape_cast %2 : vector<1x4x16xf32> to vector<4x16xf32>
    %4 = vector.extract_strided_slice %3 {offsets = [0, 0], sizes = [1, 16], strides = [1, 1]} : vector<4x16xf32> to vector<1x16xf32>
    %5 = vector.extract_strided_slice %3 {offsets = [1, 0], sizes = [1, 16], strides = [1, 1]} : vector<4x16xf32> to vector<1x16xf32>
    %cst = arith.constant dense<0.000000e+00> : vector<16xf32>
    %6 = vector.multi_reduction <add>, %1, %cst [1] : vector<16x16xf32> to vector<16xf32>
    %7 = vector.shape_cast %6 : vector<16xf32> to vector<16x1xf32>
    %cst_5 = arith.constant 1.600000e+01 : f32
    %8 = vector.broadcast %cst_5 : f32 to vector<16x1xf32>
    %9 = arith.divf %7, %8 : vector<16x1xf32>
    %10 = vector.broadcast %9 : vector<16x1xf32> to vector<16x16xf32>
    %11 = arith.subf %1, %10 : vector<16x16xf32>
    %12 = arith.mulf %11, %11 : vector<16x16xf32>
    %cst_6 = arith.constant dense<0.000000e+00> : vector<16xf32>
    %13 = vector.multi_reduction <add>, %12, %cst_6 [1] : vector<16x16xf32> to vector<16xf32>
    %14 = vector.shape_cast %13 : vector<16xf32> to vector<16x1xf32>
    %cst_7 = arith.constant 1.600000e+01 : f32
    %15 = vector.broadcast %cst_7 : f32 to vector<16x1xf32>
    %16 = arith.divf %14, %15 : vector<16x1xf32>
    %cst_8 = arith.constant 9.99999974E-6 : f32
    %17 = vector.broadcast %cst_8 : f32 to vector<16x1xf32>
    %18 = arith.addf %16, %17 : vector<16x1xf32>
    %19 = math.rsqrt %18 : vector<16x1xf32>
    %20 = vector.broadcast %19 : vector<16x1xf32> to vector<16x16xf32>
    %21 = arith.mulf %11, %20 : vector<16x16xf32>
    %22 = vector.broadcast %4 : vector<1x16xf32> to vector<16x16xf32>
    %23 = arith.mulf %21, %22 : vector<16x16xf32>
    %24 = vector.broadcast %5 : vector<1x16xf32> to vector<16x16xf32>
    %25 = arith.addf %23, %24 : vector<16x16xf32>
    %c0_9 = arith.constant 0 : index
    %c0_10 = arith.constant 0 : index
    %c0_11 = arith.constant 0 : index
    %26 = vector.load %arg3[%c0_9, %c0_10, %c0_11] : memref<2x16x48xbf16, #tpu.memory_space<vmem>>, vector<1x16x48xbf16>
    %27 = vector.shape_cast %26 : vector<1x16x48xbf16> to vector<16x48xbf16>
    %28 = arith.truncf %25 : vector<16x16xf32> to vector<16x16xbf16>
    %cst_12 = arith.constant dense<0.000000e+00> : vector<16x48xf32>
    %29 = tpu.matmul %28, %27, %cst_12 {dimension_numbers = #tpu.dot_dimension_numbers<[1], [0], [0], [1], [0, 0, 1, 1], [], []>} : vector<16x16xbf16>, vector<16x48xbf16>, vector<16x48xf32> -> vector<16x48xf32>
    %30 = vector.shape_cast %29 : vector<16x48xf32> to vector<2x8x48xf32>
    %31 = vector.extract_strided_slice %30 {offsets = [0, 0, 0], sizes = [2, 8, 8], strides = [1, 1, 1]} : vector<2x8x48xf32> to vector<2x8x8xf32>
    %32 = vector.extract_strided_slice %30 {offsets = [0, 0, 8], sizes = [2, 8, 8], strides = [1, 1, 1]} : vector<2x8x48xf32> to vector<2x8x8xf32>
    %33 = tpu.concatenate %31, %32 in 0 : vector<2x8x8xf32>, vector<2x8x8xf32> -> vector<4x8x8xf32>
    %34 = vector.extract_strided_slice %30 {offsets = [0, 0, 16], sizes = [2, 8, 8], strides = [1, 1, 1]} : vector<2x8x48xf32> to vector<2x8x8xf32>
    %35 = vector.extract_strided_slice %30 {offsets = [0, 0, 24], sizes = [2, 8, 8], strides = [1, 1, 1]} : vector<2x8x48xf32> to vector<2x8x8xf32>
    %36 = tpu.concatenate %34, %35 in 0 : vector<2x8x8xf32>, vector<2x8x8xf32> -> vector<4x8x8xf32>
    %37 = vector.extract_strided_slice %30 {offsets = [0, 0, 32], sizes = [2, 8, 8], strides = [1, 1, 1]} : vector<2x8x48xf32> to vector<2x8x8xf32>
    %38 = vector.extract_strided_slice %30 {offsets = [0, 0, 40], sizes = [2, 8, 8], strides = [1, 1, 1]} : vector<2x8x48xf32> to vector<2x8x8xf32>
    %39 = tpu.concatenate %37, %38 in 0 : vector<2x8x8xf32>, vector<2x8x8xf32> -> vector<4x8x8xf32>
    %cst_13 = arith.constant 0.353553385 : f32
    %40 = vector.broadcast %cst_13 : f32 to vector<4x8x8xf32>
    %41 = arith.mulf %33, %40 : vector<4x8x8xf32>
    %42 = arith.truncf %41 : vector<4x8x8xf32> to vector<4x8x8xbf16>
    %43 = arith.truncf %36 : vector<4x8x8xf32> to vector<4x8x8xbf16>
    "tpu.trace_start"() <{level = 10 : i32, message = "bqd,bkd->bqk"}> : () -> ()
    %cst_14 = arith.constant dense<0.000000e+00> : vector<4x8x8xf32>
    %44 = tpu.matmul %42, %43, %cst_14 {dimension_numbers = #tpu.dot_dimension_numbers<[2], [2], [1], [1], [0, 0, 0, 1, 1, 1], [0], [0]>} : vector<4x8x8xbf16>, vector<4x8x8xbf16>, vector<4x8x8xf32> -> vector<4x8x8xf32>
    "tpu.trace_stop"() : () -> ()
    %cst_15 = arith.constant dense<0xFF800000> : vector<4x8xf32>
    %45 = vector.multi_reduction <maximumf>, %44, %cst_15 [2] : vector<4x8x8xf32> to vector<4x8xf32>
    %46 = vector.shape_cast %45 : vector<4x8xf32> to vector<4x8x1xf32>
    %47 = vector.broadcast %46 : vector<4x8x1xf32> to vector<4x8x8xf32>
    %48 = arith.subf %44, %47 : vector<4x8x8xf32>
    %49 = math.exp %48 : vector<4x8x8xf32>
    %cst_16 = arith.constant dense<0.000000e+00> : vector<4x8xf32>
    %50 = vector.multi_reduction <add>, %49, %cst_16 [2] : vector<4x8x8xf32> to vector<4x8xf32>
    %51 = vector.shape_cast %50 : vector<4x8xf32> to vector<4x8x1xf32>
    %52 = tpu.reciprocal %51 {approx = true} : vector<4x8x1xf32> -> vector<4x8x1xf32>
    %53 = vector.broadcast %52 : vector<4x8x1xf32> to vector<4x8x8xf32>
    %54 = arith.mulf %49, %53 : vector<4x8x8xf32>
    %55 = arith.truncf %54 : vector<4x8x8xf32> to vector<4x8x8xbf16>
    %56 = arith.truncf %39 : vector<4x8x8xf32> to vector<4x8x8xbf16>
    "tpu.trace_start"() <{level = 10 : i32, message = "bqk,bkd->bqd"}> : () -> ()
    %cst_17 = arith.constant dense<0.000000e+00> : vector<4x8x8xf32>
    %57 = tpu.matmul %55, %56, %cst_17 {dimension_numbers = #tpu.dot_dimension_numbers<[2], [1], [1], [2], [0, 0, 0, 1, 1, 2], [0], [0]>} : vector<4x8x8xbf16>, vector<4x8x8xbf16>, vector<4x8x8xf32> -> vector<4x8x8xf32>
    "tpu.trace_stop"() : () -> ()
    %c0_18 = arith.constant 0 : index
    %c0_19 = arith.constant 0 : index
    %c0_20 = arith.constant 0 : index
    %58 = vector.load %arg4[%c0_18, %c0_19, %c0_20] : memref<2x16x16xbf16, #tpu.memory_space<vmem>>, vector<1x16x16xbf16>
    %59 = vector.shape_cast %58 : vector<1x16x16xbf16> to vector<16x16xbf16>
    %60 = vector.extract_strided_slice %57 {offsets = [0, 0, 0], sizes = [2, 8, 8], strides = [1, 1, 1]} : vector<4x8x8xf32> to vector<2x8x8xf32>
    %61 = vector.shape_cast %60 : vector<2x8x8xf32> to vector<16x8xf32>
    %62 = vector.extract_strided_slice %59 {offsets = [0, 0], sizes = [8, 16], strides = [1, 1]} : vector<16x16xbf16> to vector<8x16xbf16>
    %63 = arith.truncf %61 : vector<16x8xf32> to vector<16x8xbf16>
    %cst_21 = arith.constant dense<0.000000e+00> : vector<16x16xf32>
    %64 = tpu.matmul %63, %62, %cst_21 {dimension_numbers = #tpu.dot_dimension_numbers<[1], [0], [0], [1], [0, 0, 1, 1], [], []>} : vector<16x8xbf16>, vector<8x16xbf16>, vector<16x16xf32> -> vector<16x16xf32>
    %65 = vector.extract_strided_slice %57 {offsets = [2, 0, 0], sizes = [2, 8, 8], strides = [1, 1, 1]} : vector<4x8x8xf32> to vector<2x8x8xf32>
    %66 = vector.shape_cast %65 : vector<2x8x8xf32> to vector<16x8xf32>
    %67 = vector.extract_strided_slice %59 {offsets = [8, 0], sizes = [8, 16], strides = [1, 1]} : vector<16x16xbf16> to vector<8x16xbf16>
    %68 = arith.truncf %66 : vector<16x8xf32> to vector<16x8xbf16>
    %cst_22 = arith.constant dense<0.000000e+00> : vector<16x16xf32>
    %69 = tpu.matmul %68, %67, %cst_22 {dimension_numbers = #tpu.dot_dimension_numbers<[1], [0], [0], [1], [0, 0, 1, 1], [], []>} : vector<16x8xbf16>, vector<8x16xbf16>, vector<16x16xf32> -> vector<16x16xf32>
    %70 = arith.addf %64, %69 : vector<16x16xf32>
    %71 = arith.addf %1, %70 : vector<16x16xf32>
    %72 = vector.extract_strided_slice %3 {offsets = [2, 0], sizes = [1, 16], strides = [1, 1]} : vector<4x16xf32> to vector<1x16xf32>
    %73 = vector.extract_strided_slice %3 {offsets = [3, 0], sizes = [1, 16], strides = [1, 1]} : vector<4x16xf32> to vector<1x16xf32>
    %cst_23 = arith.constant dense<0.000000e+00> : vector<16xf32>
    %74 = vector.multi_reduction <add>, %71, %cst_23 [1] : vector<16x16xf32> to vector<16xf32>
    %75 = vector.shape_cast %74 : vector<16xf32> to vector<16x1xf32>
    %cst_24 = arith.constant 1.600000e+01 : f32
    %76 = vector.broadcast %cst_24 : f32 to vector<16x1xf32>
    %77 = arith.divf %75, %76 : vector<16x1xf32>
    %78 = vector.broadcast %77 : vector<16x1xf32> to vector<16x16xf32>
    %79 = arith.subf %71, %78 : vector<16x16xf32>
    %80 = arith.mulf %79, %79 : vector<16x16xf32>
    %cst_25 = arith.constant dense<0.000000e+00> : vector<16xf32>
    %81 = vector.multi_reduction <add>, %80, %cst_25 [1] : vector<16x16xf32> to vector<16xf32>
    %82 = vector.shape_cast %81 : vector<16xf32> to vector<16x1xf32>
    %cst_26 = arith.constant 1.600000e+01 : f32
    %83 = vector.broadcast %cst_26 : f32 to vector<16x1xf32>
    %84 = arith.divf %82, %83 : vector<16x1xf32>
    %cst_27 = arith.constant 9.99999974E-6 : f32
    %85 = vector.broadcast %cst_27 : f32 to vector<16x1xf32>
    %86 = arith.addf %84, %85 : vector<16x1xf32>
    %87 = math.rsqrt %86 : vector<16x1xf32>
    %88 = vector.broadcast %87 : vector<16x1xf32> to vector<16x16xf32>
    %89 = arith.mulf %79, %88 : vector<16x16xf32>
    %90 = vector.broadcast %72 : vector<1x16xf32> to vector<16x16xf32>
    %91 = arith.mulf %89, %90 : vector<16x16xf32>
    %92 = vector.broadcast %73 : vector<1x16xf32> to vector<16x16xf32>
    %93 = arith.addf %91, %92 : vector<16x16xf32>
    %c0_28 = arith.constant 0 : index
    %c0_29 = arith.constant 0 : index
    %c0_30 = arith.constant 0 : index
    %94 = vector.load %arg7[%c0_28, %c0_29, %c0_30] : memref<2x2x64xf32, #tpu.memory_space<vmem>>, vector<1x2x64xf32>
    %95 = vector.shape_cast %94 : vector<1x2x64xf32> to vector<2x64xf32>
    %c0_31 = arith.constant 0 : index
    %c0_32 = arith.constant 0 : index
    %c0_33 = arith.constant 0 : index
    %96 = vector.load %arg5[%c0_31, %c0_32, %c0_33] : memref<2x16x64xbf16, #tpu.memory_space<vmem>>, vector<1x16x64xbf16>
    %97 = vector.shape_cast %96 : vector<1x16x64xbf16> to vector<16x64xbf16>
    %98 = arith.truncf %93 : vector<16x16xf32> to vector<16x16xbf16>
    %cst_34 = arith.constant dense<0.000000e+00> : vector<16x64xf32>
    %99 = tpu.matmul %98, %97, %cst_34 {dimension_numbers = #tpu.dot_dimension_numbers<[1], [0], [0], [1], [0, 0, 1, 1], [], []>} : vector<16x16xbf16>, vector<16x64xbf16>, vector<16x64xf32> -> vector<16x64xf32>
    %100 = vector.extract_strided_slice %95 {offsets = [0, 0], sizes = [1, 64], strides = [1, 1]} : vector<2x64xf32> to vector<1x64xf32>
    %101 = vector.broadcast %100 : vector<1x64xf32> to vector<16x64xf32>
    %102 = arith.addf %99, %101 : vector<16x64xf32>
    %cst_35 = arith.constant 5.000000e-01 : f32
    %103 = vector.broadcast %cst_35 : f32 to vector<16x64xf32>
    %104 = arith.mulf %103, %102 : vector<16x64xf32>
    %cst_36 = arith.constant 4.471500e-02 : f32
    %105 = vector.broadcast %cst_36 : f32 to vector<16x64xf32>
    %106 = arith.mulf %105, %102 : vector<16x64xf32>
    %107 = arith.mulf %106, %102 : vector<16x64xf32>
    %108 = arith.mulf %107, %102 : vector<16x64xf32>
    %109 = arith.addf %102, %108 : vector<16x64xf32>
    %cst_37 = arith.constant 0.797884583 : f32
    %110 = vector.broadcast %cst_37 : f32 to vector<16x64xf32>
    %111 = arith.mulf %110, %109 : vector<16x64xf32>
    %112 = math.tanh %111 : vector<16x64xf32>
    %cst_38 = arith.constant 1.000000e+00 : f32
    %113 = vector.broadcast %cst_38 : f32 to vector<16x64xf32>
    %114 = arith.addf %113, %112 : vector<16x64xf32>
    %115 = arith.mulf %104, %114 : vector<16x64xf32>
    %c0_39 = arith.constant 0 : index
    %c0_40 = arith.constant 0 : index
    %c0_41 = arith.constant 0 : index
    %116 = vector.load %arg6[%c0_39, %c0_40, %c0_41] : memref<2x64x16xbf16, #tpu.memory_space<vmem>>, vector<1x64x16xbf16>
    %117 = vector.shape_cast %116 : vector<1x64x16xbf16> to vector<64x16xbf16>
    %118 = arith.truncf %115 : vector<16x64xf32> to vector<16x64xbf16>
    %cst_42 = arith.constant dense<0.000000e+00> : vector<16x16xf32>
    %119 = tpu.matmul %118, %117, %cst_42 {dimension_numbers = #tpu.dot_dimension_numbers<[1], [0], [0], [1], [0, 0, 1, 1], [], []>} : vector<16x64xbf16>, vector<64x16xbf16>, vector<16x16xf32> -> vector<16x16xf32>
    %120 = arith.addf %71, %119 : vector<16x16xf32>
    %121 = vector.extract_strided_slice %95 {offsets = [1, 0], sizes = [1, 16], strides = [1, 1]} : vector<2x64xf32> to vector<1x16xf32>
    %122 = vector.broadcast %121 : vector<1x16xf32> to vector<16x16xf32>
    %123 = arith.addf %120, %122 : vector<16x16xf32>
    %c1 = arith.constant 1 : index
    %c0_43 = arith.constant 0 : index
    %c0_44 = arith.constant 0 : index
    %124 = vector.load %arg2[%c1, %c0_43, %c0_44] : memref<2x4x16xf32, #tpu.memory_space<vmem>>, vector<1x4x16xf32>
    %125 = vector.shape_cast %124 : vector<1x4x16xf32> to vector<4x16xf32>
    %126 = vector.extract_strided_slice %125 {offsets = [0, 0], sizes = [1, 16], strides = [1, 1]} : vector<4x16xf32> to vector<1x16xf32>
    %127 = vector.extract_strided_slice %125 {offsets = [1, 0], sizes = [1, 16], strides = [1, 1]} : vector<4x16xf32> to vector<1x16xf32>
    %cst_45 = arith.constant dense<0.000000e+00> : vector<16xf32>
    %128 = vector.multi_reduction <add>, %123, %cst_45 [1] : vector<16x16xf32> to vector<16xf32>
    %129 = vector.shape_cast %128 : vector<16xf32> to vector<16x1xf32>
    %cst_46 = arith.constant 1.600000e+01 : f32
    %130 = vector.broadcast %cst_46 : f32 to vector<16x1xf32>
    %131 = arith.divf %129, %130 : vector<16x1xf32>
    %132 = vector.broadcast %131 : vector<16x1xf32> to vector<16x16xf32>
    %133 = arith.subf %123, %132 : vector<16x16xf32>
    %134 = arith.mulf %133, %133 : vector<16x16xf32>
    %cst_47 = arith.constant dense<0.000000e+00> : vector<16xf32>
    %135 = vector.multi_reduction <add>, %134, %cst_47 [1] : vector<16x16xf32> to vector<16xf32>
    %136 = vector.shape_cast %135 : vector<16xf32> to vector<16x1xf32>
    %cst_48 = arith.constant 1.600000e+01 : f32
    %137 = vector.broadcast %cst_48 : f32 to vector<16x1xf32>
    %138 = arith.divf %136, %137 : vector<16x1xf32>
    %cst_49 = arith.constant 9.99999974E-6 : f32
    %139 = vector.broadcast %cst_49 : f32 to vector<16x1xf32>
    %140 = arith.addf %138, %139 : vector<16x1xf32>
    %141 = math.rsqrt %140 : vector<16x1xf32>
    %142 = vector.broadcast %141 : vector<16x1xf32> to vector<16x16xf32>
    %143 = arith.mulf %133, %142 : vector<16x16xf32>
    %144 = vector.broadcast %126 : vector<1x16xf32> to vector<16x16xf32>
    %145 = arith.mulf %143, %144 : vector<16x16xf32>
    %146 = vector.broadcast %127 : vector<1x16xf32> to vector<16x16xf32>
    %147 = arith.addf %145, %146 : vector<16x16xf32>
    %c1_50 = arith.constant 1 : index
    %c0_51 = arith.constant 0 : index
    %c0_52 = arith.constant 0 : index
    %148 = vector.load %arg3[%c1_50, %c0_51, %c0_52] : memref<2x16x48xbf16, #tpu.memory_space<vmem>>, vector<1x16x48xbf16>
    %149 = vector.shape_cast %148 : vector<1x16x48xbf16> to vector<16x48xbf16>
    %150 = arith.truncf %147 : vector<16x16xf32> to vector<16x16xbf16>
    %cst_53 = arith.constant dense<0.000000e+00> : vector<16x48xf32>
    %151 = tpu.matmul %150, %149, %cst_53 {dimension_numbers = #tpu.dot_dimension_numbers<[1], [0], [0], [1], [0, 0, 1, 1], [], []>} : vector<16x16xbf16>, vector<16x48xbf16>, vector<16x48xf32> -> vector<16x48xf32>
    %152 = vector.shape_cast %151 : vector<16x48xf32> to vector<2x8x48xf32>
    %153 = vector.extract_strided_slice %152 {offsets = [0, 0, 0], sizes = [2, 8, 8], strides = [1, 1, 1]} : vector<2x8x48xf32> to vector<2x8x8xf32>
    %154 = vector.extract_strided_slice %152 {offsets = [0, 0, 8], sizes = [2, 8, 8], strides = [1, 1, 1]} : vector<2x8x48xf32> to vector<2x8x8xf32>
    %155 = tpu.concatenate %153, %154 in 0 : vector<2x8x8xf32>, vector<2x8x8xf32> -> vector<4x8x8xf32>
    %156 = vector.extract_strided_slice %152 {offsets = [0, 0, 16], sizes = [2, 8, 8], strides = [1, 1, 1]} : vector<2x8x48xf32> to vector<2x8x8xf32>
    %157 = vector.extract_strided_slice %152 {offsets = [0, 0, 24], sizes = [2, 8, 8], strides = [1, 1, 1]} : vector<2x8x48xf32> to vector<2x8x8xf32>
    %158 = tpu.concatenate %156, %157 in 0 : vector<2x8x8xf32>, vector<2x8x8xf32> -> vector<4x8x8xf32>
    %159 = vector.extract_strided_slice %152 {offsets = [0, 0, 32], sizes = [2, 8, 8], strides = [1, 1, 1]} : vector<2x8x48xf32> to vector<2x8x8xf32>
    %160 = vector.extract_strided_slice %152 {offsets = [0, 0, 40], sizes = [2, 8, 8], strides = [1, 1, 1]} : vector<2x8x48xf32> to vector<2x8x8xf32>
    %161 = tpu.concatenate %159, %160 in 0 : vector<2x8x8xf32>, vector<2x8x8xf32> -> vector<4x8x8xf32>
    %cst_54 = arith.constant 0.353553385 : f32
    %162 = vector.broadcast %cst_54 : f32 to vector<4x8x8xf32>
    %163 = arith.mulf %155, %162 : vector<4x8x8xf32>
    %164 = arith.truncf %163 : vector<4x8x8xf32> to vector<4x8x8xbf16>
    %165 = arith.truncf %158 : vector<4x8x8xf32> to vector<4x8x8xbf16>
    "tpu.trace_start"() <{level = 10 : i32, message = "bqd,bkd->bqk"}> : () -> ()
    %cst_55 = arith.constant dense<0.000000e+00> : vector<4x8x8xf32>
    %166 = tpu.matmul %164, %165, %cst_55 {dimension_numbers = #tpu.dot_dimension_numbers<[2], [2], [1], [1], [0, 0, 0, 1, 1, 1], [0], [0]>} : vector<4x8x8xbf16>, vector<4x8x8xbf16>, vector<4x8x8xf32> -> vector<4x8x8xf32>
    "tpu.trace_stop"() : () -> ()
    %cst_56 = arith.constant dense<0xFF800000> : vector<4x8xf32>
    %167 = vector.multi_reduction <maximumf>, %166, %cst_56 [2] : vector<4x8x8xf32> to vector<4x8xf32>
    %168 = vector.shape_cast %167 : vector<4x8xf32> to vector<4x8x1xf32>
    %169 = vector.broadcast %168 : vector<4x8x1xf32> to vector<4x8x8xf32>
    %170 = arith.subf %166, %169 : vector<4x8x8xf32>
    %171 = math.exp %170 : vector<4x8x8xf32>
    %cst_57 = arith.constant dense<0.000000e+00> : vector<4x8xf32>
    %172 = vector.multi_reduction <add>, %171, %cst_57 [2] : vector<4x8x8xf32> to vector<4x8xf32>
    %173 = vector.shape_cast %172 : vector<4x8xf32> to vector<4x8x1xf32>
    %174 = tpu.reciprocal %173 {approx = true} : vector<4x8x1xf32> -> vector<4x8x1xf32>
    %175 = vector.broadcast %174 : vector<4x8x1xf32> to vector<4x8x8xf32>
    %176 = arith.mulf %171, %175 : vector<4x8x8xf32>
    %177 = arith.truncf %176 : vector<4x8x8xf32> to vector<4x8x8xbf16>
    %178 = arith.truncf %161 : vector<4x8x8xf32> to vector<4x8x8xbf16>
    "tpu.trace_start"() <{level = 10 : i32, message = "bqk,bkd->bqd"}> : () -> ()
    %cst_58 = arith.constant dense<0.000000e+00> : vector<4x8x8xf32>
    %179 = tpu.matmul %177, %178, %cst_58 {dimension_numbers = #tpu.dot_dimension_numbers<[2], [1], [1], [2], [0, 0, 0, 1, 1, 2], [0], [0]>} : vector<4x8x8xbf16>, vector<4x8x8xbf16>, vector<4x8x8xf32> -> vector<4x8x8xf32>
    "tpu.trace_stop"() : () -> ()
    %c1_59 = arith.constant 1 : index
    %c0_60 = arith.constant 0 : index
    %c0_61 = arith.constant 0 : index
    %180 = vector.load %arg4[%c1_59, %c0_60, %c0_61] : memref<2x16x16xbf16, #tpu.memory_space<vmem>>, vector<1x16x16xbf16>
    %181 = vector.shape_cast %180 : vector<1x16x16xbf16> to vector<16x16xbf16>
    %182 = vector.extract_strided_slice %179 {offsets = [0, 0, 0], sizes = [2, 8, 8], strides = [1, 1, 1]} : vector<4x8x8xf32> to vector<2x8x8xf32>
    %183 = vector.shape_cast %182 : vector<2x8x8xf32> to vector<16x8xf32>
    %184 = vector.extract_strided_slice %181 {offsets = [0, 0], sizes = [8, 16], strides = [1, 1]} : vector<16x16xbf16> to vector<8x16xbf16>
    %185 = arith.truncf %183 : vector<16x8xf32> to vector<16x8xbf16>
    %cst_62 = arith.constant dense<0.000000e+00> : vector<16x16xf32>
    %186 = tpu.matmul %185, %184, %cst_62 {dimension_numbers = #tpu.dot_dimension_numbers<[1], [0], [0], [1], [0, 0, 1, 1], [], []>} : vector<16x8xbf16>, vector<8x16xbf16>, vector<16x16xf32> -> vector<16x16xf32>
    %187 = vector.extract_strided_slice %179 {offsets = [2, 0, 0], sizes = [2, 8, 8], strides = [1, 1, 1]} : vector<4x8x8xf32> to vector<2x8x8xf32>
    %188 = vector.shape_cast %187 : vector<2x8x8xf32> to vector<16x8xf32>
    %189 = vector.extract_strided_slice %181 {offsets = [8, 0], sizes = [8, 16], strides = [1, 1]} : vector<16x16xbf16> to vector<8x16xbf16>
    %190 = arith.truncf %188 : vector<16x8xf32> to vector<16x8xbf16>
    %cst_63 = arith.constant dense<0.000000e+00> : vector<16x16xf32>
    %191 = tpu.matmul %190, %189, %cst_63 {dimension_numbers = #tpu.dot_dimension_numbers<[1], [0], [0], [1], [0, 0, 1, 1], [], []>} : vector<16x8xbf16>, vector<8x16xbf16>, vector<16x16xf32> -> vector<16x16xf32>
    %192 = arith.addf %186, %191 : vector<16x16xf32>
    %193 = arith.addf %123, %192 : vector<16x16xf32>
    %194 = vector.extract_strided_slice %125 {offsets = [2, 0], sizes = [1, 16], strides = [1, 1]} : vector<4x16xf32> to vector<1x16xf32>
    %195 = vector.extract_strided_slice %125 {offsets = [3, 0], sizes = [1, 16], strides = [1, 1]} : vector<4x16xf32> to vector<1x16xf32>
    %cst_64 = arith.constant dense<0.000000e+00> : vector<16xf32>
    %196 = vector.multi_reduction <add>, %193, %cst_64 [1] : vector<16x16xf32> to vector<16xf32>
    %197 = vector.shape_cast %196 : vector<16xf32> to vector<16x1xf32>
    %cst_65 = arith.constant 1.600000e+01 : f32
    %198 = vector.broadcast %cst_65 : f32 to vector<16x1xf32>
    %199 = arith.divf %197, %198 : vector<16x1xf32>
    %200 = vector.broadcast %199 : vector<16x1xf32> to vector<16x16xf32>
    %201 = arith.subf %193, %200 : vector<16x16xf32>
    %202 = arith.mulf %201, %201 : vector<16x16xf32>
    %cst_66 = arith.constant dense<0.000000e+00> : vector<16xf32>
    %203 = vector.multi_reduction <add>, %202, %cst_66 [1] : vector<16x16xf32> to vector<16xf32>
    %204 = vector.shape_cast %203 : vector<16xf32> to vector<16x1xf32>
    %cst_67 = arith.constant 1.600000e+01 : f32
    %205 = vector.broadcast %cst_67 : f32 to vector<16x1xf32>
    %206 = arith.divf %204, %205 : vector<16x1xf32>
    %cst_68 = arith.constant 9.99999974E-6 : f32
    %207 = vector.broadcast %cst_68 : f32 to vector<16x1xf32>
    %208 = arith.addf %206, %207 : vector<16x1xf32>
    %209 = math.rsqrt %208 : vector<16x1xf32>
    %210 = vector.broadcast %209 : vector<16x1xf32> to vector<16x16xf32>
    %211 = arith.mulf %201, %210 : vector<16x16xf32>
    %212 = vector.broadcast %194 : vector<1x16xf32> to vector<16x16xf32>
    %213 = arith.mulf %211, %212 : vector<16x16xf32>
    %214 = vector.broadcast %195 : vector<1x16xf32> to vector<16x16xf32>
    %215 = arith.addf %213, %214 : vector<16x16xf32>
    %c1_69 = arith.constant 1 : index
    %c0_70 = arith.constant 0 : index
    %c0_71 = arith.constant 0 : index
    %216 = vector.load %arg7[%c1_69, %c0_70, %c0_71] : memref<2x2x64xf32, #tpu.memory_space<vmem>>, vector<1x2x64xf32>
    %217 = vector.shape_cast %216 : vector<1x2x64xf32> to vector<2x64xf32>
    %c1_72 = arith.constant 1 : index
    %c0_73 = arith.constant 0 : index
    %c0_74 = arith.constant 0 : index
    %218 = vector.load %arg5[%c1_72, %c0_73, %c0_74] : memref<2x16x64xbf16, #tpu.memory_space<vmem>>, vector<1x16x64xbf16>
    %219 = vector.shape_cast %218 : vector<1x16x64xbf16> to vector<16x64xbf16>
    %220 = arith.truncf %215 : vector<16x16xf32> to vector<16x16xbf16>
    %cst_75 = arith.constant dense<0.000000e+00> : vector<16x64xf32>
    %221 = tpu.matmul %220, %219, %cst_75 {dimension_numbers = #tpu.dot_dimension_numbers<[1], [0], [0], [1], [0, 0, 1, 1], [], []>} : vector<16x16xbf16>, vector<16x64xbf16>, vector<16x64xf32> -> vector<16x64xf32>
    %222 = vector.extract_strided_slice %217 {offsets = [0, 0], sizes = [1, 64], strides = [1, 1]} : vector<2x64xf32> to vector<1x64xf32>
    %223 = vector.broadcast %222 : vector<1x64xf32> to vector<16x64xf32>
    %224 = arith.addf %221, %223 : vector<16x64xf32>
    %cst_76 = arith.constant 5.000000e-01 : f32
    %225 = vector.broadcast %cst_76 : f32 to vector<16x64xf32>
    %226 = arith.mulf %225, %224 : vector<16x64xf32>
    %cst_77 = arith.constant 4.471500e-02 : f32
    %227 = vector.broadcast %cst_77 : f32 to vector<16x64xf32>
    %228 = arith.mulf %227, %224 : vector<16x64xf32>
    %229 = arith.mulf %228, %224 : vector<16x64xf32>
    %230 = arith.mulf %229, %224 : vector<16x64xf32>
    %231 = arith.addf %224, %230 : vector<16x64xf32>
    %cst_78 = arith.constant 0.797884583 : f32
    %232 = vector.broadcast %cst_78 : f32 to vector<16x64xf32>
    %233 = arith.mulf %232, %231 : vector<16x64xf32>
    %234 = math.tanh %233 : vector<16x64xf32>
    %cst_79 = arith.constant 1.000000e+00 : f32
    %235 = vector.broadcast %cst_79 : f32 to vector<16x64xf32>
    %236 = arith.addf %235, %234 : vector<16x64xf32>
    %237 = arith.mulf %226, %236 : vector<16x64xf32>
    %c1_80 = arith.constant 1 : index
    %c0_81 = arith.constant 0 : index
    %c0_82 = arith.constant 0 : index
    %238 = vector.load %arg6[%c1_80, %c0_81, %c0_82] : memref<2x64x16xbf16, #tpu.memory_space<vmem>>, vector<1x64x16xbf16>
    %239 = vector.shape_cast %238 : vector<1x64x16xbf16> to vector<64x16xbf16>
    %240 = arith.truncf %237 : vector<16x64xf32> to vector<16x64xbf16>
    %cst_83 = arith.constant dense<0.000000e+00> : vector<16x16xf32>
    %241 = tpu.matmul %240, %239, %cst_83 {dimension_numbers = #tpu.dot_dimension_numbers<[1], [0], [0], [1], [0, 0, 1, 1], [], []>} : vector<16x64xbf16>, vector<64x16xbf16>, vector<16x16xf32> -> vector<16x16xf32>
    %242 = arith.addf %193, %241 : vector<16x16xf32>
    %243 = vector.extract_strided_slice %217 {offsets = [1, 0], sizes = [1, 16], strides = [1, 1]} : vector<2x64xf32> to vector<1x16xf32>
    %244 = vector.broadcast %243 : vector<1x16xf32> to vector<16x16xf32>
    %245 = arith.addf %242, %244 : vector<16x16xf32>
    %c0_84 = arith.constant 0 : index
    %c0_85 = arith.constant 0 : index
    %246 = vector.load %arg8[%c0_84, %c0_85] : memref<2x16xf32, #tpu.memory_space<vmem>>, vector<2x16xf32>
    %247 = vector.extract_strided_slice %246 {offsets = [0, 0], sizes = [1, 16], strides = [1, 1]} : vector<2x16xf32> to vector<1x16xf32>
    %248 = vector.extract_strided_slice %246 {offsets = [1, 0], sizes = [1, 16], strides = [1, 1]} : vector<2x16xf32> to vector<1x16xf32>
    %cst_86 = arith.constant dense<0.000000e+00> : vector<16xf32>
    %249 = vector.multi_reduction <add>, %245, %cst_86 [1] : vector<16x16xf32> to vector<16xf32>
    %250 = vector.shape_cast %249 : vector<16xf32> to vector<16x1xf32>
    %cst_87 = arith.constant 1.600000e+01 : f32
    %251 = vector.broadcast %cst_87 : f32 to vector<16x1xf32>
    %252 = arith.divf %250, %251 : vector<16x1xf32>
    %253 = vector.broadcast %252 : vector<16x1xf32> to vector<16x16xf32>
    %254 = arith.subf %245, %253 : vector<16x16xf32>
    %255 = arith.mulf %254, %254 : vector<16x16xf32>
    %cst_88 = arith.constant dense<0.000000e+00> : vector<16xf32>
    %256 = vector.multi_reduction <add>, %255, %cst_88 [1] : vector<16x16xf32> to vector<16xf32>
    %257 = vector.shape_cast %256 : vector<16xf32> to vector<16x1xf32>
    %cst_89 = arith.constant 1.600000e+01 : f32
    %258 = vector.broadcast %cst_89 : f32 to vector<16x1xf32>
    %259 = arith.divf %257, %258 : vector<16x1xf32>
    %cst_90 = arith.constant 9.99999974E-6 : f32
    %260 = vector.broadcast %cst_90 : f32 to vector<16x1xf32>
    %261 = arith.addf %259, %260 : vector<16x1xf32>
    %262 = math.rsqrt %261 : vector<16x1xf32>
    %263 = vector.broadcast %262 : vector<16x1xf32> to vector<16x16xf32>
    %264 = arith.mulf %254, %263 : vector<16x16xf32>
    %265 = vector.broadcast %247 : vector<1x16xf32> to vector<16x16xf32>
    %266 = arith.mulf %264, %265 : vector<16x16xf32>
    %267 = vector.broadcast %248 : vector<1x16xf32> to vector<16x16xf32>
    %268 = arith.addf %266, %267 : vector<16x16xf32>
    %269 = vector.shape_cast %268 : vector<16x16xf32> to vector<2x8x16xf32>
    %c0_91 = arith.constant 0 : index
    %c0_92 = arith.constant 0 : index
    %c0_93 = arith.constant 0 : index
    %270 = vector.load %arg9[%c0_91, %c0_92, %c0_93] : memref<2x8x16xf32, #tpu.memory_space<vmem>>, vector<2x8x16xf32>
    tpu.vector_store %arg9[%c0_91, %c0_92, %c0_93], %269 {strides = array<i32>} : memref<2x8x16xf32, #tpu.memory_space<vmem>>, vector<2x8x16xf32>,
    return
  }
  func.func @transform_0(%arg0: i32) -> (i32, i32, i32) {
    %c0_i32 = arith.constant 0 : i32
    %c0_i32_0 = arith.constant 0 : i32
    %c0_i32_1 = arith.constant 0 : i32
    return %arg0, %c0_i32, %c0_i32_0 : i32, i32, i32
  }
  func.func @transform_1(%arg0: i32) -> (i32, i32, i32) {
    %c0_i32 = arith.constant 0 : i32
    %c0_i32_0 = arith.constant 0 : i32
    %c0_i32_1 = arith.constant 0 : i32
    %c0_i32_2 = arith.constant 0 : i32
    return %c0_i32, %c0_i32_0, %c0_i32_1 : i32, i32, i32
  }
  func.func @transform_2(%arg0: i32) -> (i32, i32, i32) {
    %c0_i32 = arith.constant 0 : i32
    %c0_i32_0 = arith.constant 0 : i32
    %c0_i32_1 = arith.constant 0 : i32
    %c0_i32_2 = arith.constant 0 : i32
    return %c0_i32, %c0_i32_0, %c0_i32_1 : i32, i32, i32
  }
  func.func @transform_3(%arg0: i32) -> (i32, i32, i32) {
    %c0_i32 = arith.constant 0 : i32
    %c0_i32_0 = arith.constant 0 : i32
    %c0_i32_1 = arith.constant 0 : i32
    %c0_i32_2 = arith.constant 0 : i32
    return %c0_i32, %c0_i32_0, %c0_i32_1 : i32, i32, i32
  }
  func.func @transform_4(%arg0: i32) -> (i32, i32, i32) {
    %c0_i32 = arith.constant 0 : i32
    %c0_i32_0 = arith.constant 0 : i32
    %c0_i32_1 = arith.constant 0 : i32
    %c0_i32_2 = arith.constant 0 : i32
    return %c0_i32, %c0_i32_0, %c0_i32_1 : i32, i32, i32
  }
  func.func @transform_5(%arg0: i32) -> (i32, i32, i32) {
    %c0_i32 = arith.constant 0 : i32
    %c0_i32_0 = arith.constant 0 : i32
    %c0_i32_1 = arith.constant 0 : i32
    %c0_i32_2 = arith.constant 0 : i32
    return %c0_i32, %c0_i32_0, %c0_i32_1 : i32, i32, i32
  }
  func.func @transform_6(%arg0: i32) -> (i32, i32, i32) {
    %c0_i32 = arith.constant 0 : i32
    %c0_i32_0 = arith.constant 0 : i32
    %c0_i32_1 = arith.constant 0 : i32
    %c0_i32_2 = arith.constant 0 : i32
    return %c0_i32, %c0_i32_0, %c0_i32_1 : i32, i32, i32
  }
  func.func @transform_7(%arg0: i32) -> (i32, i32) {
    %c0_i32 = arith.constant 0 : i32
    %c0_i32_0 = arith.constant 0 : i32
    %c0_i32_1 = arith.constant 0 : i32
    return %c0_i32, %c0_i32_0 : i32, i32
  }
  func.func @transform_8(%arg0: i32) -> (i32, i32, i32) {
    %c0_i32 = arith.constant 0 : i32
    %c0_i32_0 = arith.constant 0 : i32
    %c0_i32_1 = arith.constant 0 : i32
    return %arg0, %c0_i32, %c0_i32_0 : i32, i32, i32
  }
}

module attributes {stable_mosaic.version = 11 : i64} {
  func.func @_img_enc_kernel(%arg0: i32, %arg1: memref<2x16x48xf32, #tpu.memory_space<vmem>>, %arg2: memref<16x32xf32, #tpu.memory_space<vmem>>, %arg3: memref<2x48xf32, #tpu.memory_space<vmem>>, %arg4: memref<48x32xbf16, #tpu.memory_space<vmem>>, %arg5: memref<3x32xf32, #tpu.memory_space<vmem>>, %arg6: memref<2x4x32xf32, #tpu.memory_space<vmem>>, %arg7: memref<2x32x48xbf16, #tpu.memory_space<vmem>>, %arg8: memref<2x16x32xbf16, #tpu.memory_space<vmem>>, %arg9: memref<2x32x64xbf16, #tpu.memory_space<vmem>>, %arg10: memref<2x64x32xbf16, #tpu.memory_space<vmem>>, %arg11: memref<2x2x64xf32, #tpu.memory_space<vmem>>, %arg12: memref<2x32xf32, #tpu.memory_space<vmem>>, %arg13: memref<2x16x32xf32, #tpu.memory_space<vmem>>) attributes {dimension_semantics = [#tpu.dimension_semantics<arbitrary>], iteration_bounds = array<i64: 1>, scalar_prefetch = 0 : i64, scratch_operands = 0 : i64, tpu.core_type = #tpu.core_type<tc>, window_params = [{transform_indices = @transform_0, window_bounds = array<i64: 2, 16, 48>}, {pipeline_mode = #tpu.pipeline_mode<synchronous>, transform_indices = @transform_1, window_bounds = array<i64: 16, 32>}, {pipeline_mode = #tpu.pipeline_mode<synchronous>, transform_indices = @transform_2, window_bounds = array<i64: 2, 48>}, {pipeline_mode = #tpu.pipeline_mode<synchronous>, transform_indices = @transform_3, window_bounds = array<i64: 48, 32>}, {pipeline_mode = #tpu.pipeline_mode<synchronous>, transform_indices = @transform_4, window_bounds = array<i64: 3, 32>}, {pipeline_mode = #tpu.pipeline_mode<synchronous>, transform_indices = @transform_5, window_bounds = array<i64: 2, 4, 32>}, {pipeline_mode = #tpu.pipeline_mode<synchronous>, transform_indices = @transform_6, window_bounds = array<i64: 2, 32, 48>}, {pipeline_mode = #tpu.pipeline_mode<synchronous>, transform_indices = @transform_7, window_bounds = array<i64: 2, 16, 32>}, {pipeline_mode = #tpu.pipeline_mode<synchronous>, transform_indices = @transform_8, window_bounds = array<i64: 2, 32, 64>}, {pipeline_mode = #tpu.pipeline_mode<synchronous>, transform_indices = @transform_9, window_bounds = array<i64: 2, 64, 32>}, {pipeline_mode = #tpu.pipeline_mode<synchronous>, transform_indices = @transform_10, window_bounds = array<i64: 2, 2, 64>}, {pipeline_mode = #tpu.pipeline_mode<synchronous>, transform_indices = @transform_11, window_bounds = array<i64: 2, 32>}, {transform_indices = @transform_12, window_bounds = array<i64: 2, 16, 32>}]} {
    %c0 = arith.constant 0 : index
    %c0_0 = arith.constant 0 : index
    %c0_1 = arith.constant 0 : index
    %0 = vector.load %arg1[%c0, %c0_0, %c0_1] : memref<2x16x48xf32, #tpu.memory_space<vmem>>, vector<2x16x48xf32>
    %1 = vector.shape_cast %0 : vector<2x16x48xf32> to vector<32x48xf32>
    %c0_2 = arith.constant 0 : index
    %c0_3 = arith.constant 0 : index
    %2 = vector.load %arg3[%c0_2, %c0_3] : memref<2x48xf32, #tpu.memory_space<vmem>>, vector<2x48xf32>
    %3 = vector.extract_strided_slice %2 {offsets = [0, 0], sizes = [1, 48], strides = [1, 1]} : vector<2x48xf32> to vector<1x48xf32>
    %4 = vector.extract_strided_slice %2 {offsets = [1, 0], sizes = [1, 48], strides = [1, 1]} : vector<2x48xf32> to vector<1x48xf32>
    %cst = arith.constant dense<0.000000e+00> : vector<32xf32>
    %5 = vector.multi_reduction <add>, %1, %cst [1] : vector<32x48xf32> to vector<32xf32>
    %6 = vector.shape_cast %5 : vector<32xf32> to vector<32x1xf32>
    %cst_4 = arith.constant 4.800000e+01 : f32
    %7 = vector.broadcast %cst_4 : f32 to vector<32x1xf32>
    %8 = arith.divf %6, %7 : vector<32x1xf32>
    %9 = vector.broadcast %8 : vector<32x1xf32> to vector<32x48xf32>
    %10 = arith.subf %1, %9 : vector<32x48xf32>
    %11 = arith.mulf %10, %10 : vector<32x48xf32>
    %cst_5 = arith.constant dense<0.000000e+00> : vector<32xf32>
    %12 = vector.multi_reduction <add>, %11, %cst_5 [1] : vector<32x48xf32> to vector<32xf32>
    %13 = vector.shape_cast %12 : vector<32xf32> to vector<32x1xf32>
    %cst_6 = arith.constant 4.800000e+01 : f32
    %14 = vector.broadcast %cst_6 : f32 to vector<32x1xf32>
    %15 = arith.divf %13, %14 : vector<32x1xf32>
    %cst_7 = arith.constant 9.99999974E-6 : f32
    %16 = vector.broadcast %cst_7 : f32 to vector<32x1xf32>
    %17 = arith.addf %15, %16 : vector<32x1xf32>
    %18 = math.rsqrt %17 : vector<32x1xf32>
    %19 = vector.broadcast %18 : vector<32x1xf32> to vector<32x48xf32>
    %20 = arith.mulf %10, %19 : vector<32x48xf32>
    %21 = vector.broadcast %3 : vector<1x48xf32> to vector<32x48xf32>
    %22 = arith.mulf %20, %21 : vector<32x48xf32>
    %23 = vector.broadcast %4 : vector<1x48xf32> to vector<32x48xf32>
    %24 = arith.addf %22, %23 : vector<32x48xf32>
    %c0_8 = arith.constant 0 : index
    %c0_9 = arith.constant 0 : index
    %25 = vector.load %arg5[%c0_8, %c0_9] : memref<3x32xf32, #tpu.memory_space<vmem>>, vector<3x32xf32>
    %c0_10 = arith.constant 0 : index
    %c0_11 = arith.constant 0 : index
    %26 = vector.load %arg4[%c0_10, %c0_11] : memref<48x32xbf16, #tpu.memory_space<vmem>>, vector<48x32xbf16>
    %27 = arith.truncf %24 : vector<32x48xf32> to vector<32x48xbf16>
    %cst_12 = arith.constant dense<0.000000e+00> : vector<32x32xf32>
    %28 = tpu.matmul %27, %26, %cst_12 {dimension_numbers = #tpu.dot_dimension_numbers<[1], [0], [0], [1], [0, 0, 1, 1], [], []>} : vector<32x48xbf16>, vector<48x32xbf16>, vector<32x32xf32> -> vector<32x32xf32>
    %29 = vector.extract_strided_slice %25 {offsets = [0, 0], sizes = [1, 32], strides = [1, 1]} : vector<3x32xf32> to vector<1x32xf32>
    %30 = vector.broadcast %29 : vector<1x32xf32> to vector<32x32xf32>
    %31 = arith.addf %28, %30 : vector<32x32xf32>
    %32 = vector.extract_strided_slice %25 {offsets = [1, 0], sizes = [1, 32], strides = [1, 1]} : vector<3x32xf32> to vector<1x32xf32>
    %33 = vector.extract_strided_slice %25 {offsets = [2, 0], sizes = [1, 32], strides = [1, 1]} : vector<3x32xf32> to vector<1x32xf32>
    %cst_13 = arith.constant dense<0.000000e+00> : vector<32xf32>
    %34 = vector.multi_reduction <add>, %31, %cst_13 [1] : vector<32x32xf32> to vector<32xf32>
    %35 = vector.shape_cast %34 : vector<32xf32> to vector<32x1xf32>
    %cst_14 = arith.constant 3.200000e+01 : f32
    %36 = vector.broadcast %cst_14 : f32 to vector<32x1xf32>
    %37 = arith.divf %35, %36 : vector<32x1xf32>
    %38 = vector.broadcast %37 : vector<32x1xf32> to vector<32x32xf32>
    %39 = arith.subf %31, %38 : vector<32x32xf32>
    %40 = arith.mulf %39, %39 : vector<32x32xf32>
    %cst_15 = arith.constant dense<0.000000e+00> : vector<32xf32>
    %41 = vector.multi_reduction <add>, %40, %cst_15 [1] : vector<32x32xf32> to vector<32xf32>
    %42 = vector.shape_cast %41 : vector<32xf32> to vector<32x1xf32>
    %cst_16 = arith.constant 3.200000e+01 : f32
    %43 = vector.broadcast %cst_16 : f32 to vector<32x1xf32>
    %44 = arith.divf %42, %43 : vector<32x1xf32>
    %cst_17 = arith.constant 9.99999974E-6 : f32
    %45 = vector.broadcast %cst_17 : f32 to vector<32x1xf32>
    %46 = arith.addf %44, %45 : vector<32x1xf32>
    %47 = math.rsqrt %46 : vector<32x1xf32>
    %48 = vector.broadcast %47 : vector<32x1xf32> to vector<32x32xf32>
    %49 = arith.mulf %39, %48 : vector<32x32xf32>
    %50 = vector.broadcast %32 : vector<1x32xf32> to vector<32x32xf32>
    %51 = arith.mulf %49, %50 : vector<32x32xf32>
    %52 = vector.broadcast %33 : vector<1x32xf32> to vector<32x32xf32>
    %53 = arith.addf %51, %52 : vector<32x32xf32>
    %54 = vector.shape_cast %53 : vector<32x32xf32> to vector<2x16x32xf32>
    %c0_18 = arith.constant 0 : index
    %c0_19 = arith.constant 0 : index
    %55 = vector.load %arg2[%c0_18, %c0_19] : memref<16x32xf32, #tpu.memory_space<vmem>>, vector<16x32xf32>
    %56 = vector.shape_cast %55 : vector<16x32xf32> to vector<1x16x32xf32>
    %57 = vector.broadcast %56 : vector<1x16x32xf32> to vector<2x16x32xf32>
    %58 = arith.addf %54, %57 : vector<2x16x32xf32>
    %59 = vector.shape_cast %58 : vector<2x16x32xf32> to vector<32x32xf32>
    %c0_20 = arith.constant 0 : index
    %c0_21 = arith.constant 0 : index
    %c0_22 = arith.constant 0 : index
    %60 = vector.load %arg6[%c0_20, %c0_21, %c0_22] : memref<2x4x32xf32, #tpu.memory_space<vmem>>, vector<1x4x32xf32>
    %61 = vector.shape_cast %60 : vector<1x4x32xf32> to vector<4x32xf32>
    %62 = vector.extract_strided_slice %61 {offsets = [0, 0], sizes = [1, 32], strides = [1, 1]} : vector<4x32xf32> to vector<1x32xf32>
    %63 = vector.extract_strided_slice %61 {offsets = [1, 0], sizes = [1, 32], strides = [1, 1]} : vector<4x32xf32> to vector<1x32xf32>
    %cst_23 = arith.constant dense<0.000000e+00> : vector<32xf32>
    %64 = vector.multi_reduction <add>, %59, %cst_23 [1] : vector<32x32xf32> to vector<32xf32>
    %65 = vector.shape_cast %64 : vector<32xf32> to vector<32x1xf32>
    %cst_24 = arith.constant 3.200000e+01 : f32
    %66 = vector.broadcast %cst_24 : f32 to vector<32x1xf32>
    %67 = arith.divf %65, %66 : vector<32x1xf32>
    %68 = vector.broadcast %67 : vector<32x1xf32> to vector<32x32xf32>
    %69 = arith.subf %59, %68 : vector<32x32xf32>
    %70 = arith.mulf %69, %69 : vector<32x32xf32>
    %cst_25 = arith.constant dense<0.000000e+00> : vector<32xf32>
    %71 = vector.multi_reduction <add>, %70, %cst_25 [1] : vector<32x32xf32> to vector<32xf32>
    %72 = vector.shape_cast %71 : vector<32xf32> to vector<32x1xf32>
    %cst_26 = arith.constant 3.200000e+01 : f32
    %73 = vector.broadcast %cst_26 : f32 to vector<32x1xf32>
    %74 = arith.divf %72, %73 : vector<32x1xf32>
    %cst_27 = arith.constant 9.99999974E-6 : f32
    %75 = vector.broadcast %cst_27 : f32 to vector<32x1xf32>
    %76 = arith.addf %74, %75 : vector<32x1xf32>
    %77 = math.rsqrt %76 : vector<32x1xf32>
    %78 = vector.broadcast %77 : vector<32x1xf32> to vector<32x32xf32>
    %79 = arith.mulf %69, %78 : vector<32x32xf32>
    %80 = vector.broadcast %62 : vector<1x32xf32> to vector<32x32xf32>
    %81 = arith.mulf %79, %80 : vector<32x32xf32>
    %82 = vector.broadcast %63 : vector<1x32xf32> to vector<32x32xf32>
    %83 = arith.addf %81, %82 : vector<32x32xf32>
    %c0_28 = arith.constant 0 : index
    %c0_29 = arith.constant 0 : index
    %c0_30 = arith.constant 0 : index
    %84 = vector.load %arg7[%c0_28, %c0_29, %c0_30] : memref<2x32x48xbf16, #tpu.memory_space<vmem>>, vector<1x32x48xbf16>
    %85 = vector.shape_cast %84 : vector<1x32x48xbf16> to vector<32x48xbf16>
    %86 = arith.truncf %83 : vector<32x32xf32> to vector<32x32xbf16>
    %cst_31 = arith.constant dense<0.000000e+00> : vector<32x48xf32>
    %87 = tpu.matmul %86, %85, %cst_31 {dimension_numbers = #tpu.dot_dimension_numbers<[1], [0], [0], [1], [0, 0, 1, 1], [], []>} : vector<32x32xbf16>, vector<32x48xbf16>, vector<32x48xf32> -> vector<32x48xf32>
    %88 = vector.shape_cast %87 : vector<32x48xf32> to vector<2x16x48xf32>
    %89 = vector.extract_strided_slice %88 {offsets = [0, 0, 0], sizes = [2, 16, 8], strides = [1, 1, 1]} : vector<2x16x48xf32> to vector<2x16x8xf32>
    %90 = vector.extract_strided_slice %88 {offsets = [0, 0, 8], sizes = [2, 16, 8], strides = [1, 1, 1]} : vector<2x16x48xf32> to vector<2x16x8xf32>
    %91 = tpu.concatenate %89, %90 in 0 : vector<2x16x8xf32>, vector<2x16x8xf32> -> vector<4x16x8xf32>
    %92 = vector.extract_strided_slice %88 {offsets = [0, 0, 16], sizes = [2, 16, 8], strides = [1, 1, 1]} : vector<2x16x48xf32> to vector<2x16x8xf32>
    %93 = vector.extract_strided_slice %88 {offsets = [0, 0, 24], sizes = [2, 16, 8], strides = [1, 1, 1]} : vector<2x16x48xf32> to vector<2x16x8xf32>
    %94 = tpu.concatenate %92, %93 in 0 : vector<2x16x8xf32>, vector<2x16x8xf32> -> vector<4x16x8xf32>
    %95 = vector.extract_strided_slice %88 {offsets = [0, 0, 32], sizes = [2, 16, 8], strides = [1, 1, 1]} : vector<2x16x48xf32> to vector<2x16x8xf32>
    %96 = vector.extract_strided_slice %88 {offsets = [0, 0, 40], sizes = [2, 16, 8], strides = [1, 1, 1]} : vector<2x16x48xf32> to vector<2x16x8xf32>
    %97 = tpu.concatenate %95, %96 in 0 : vector<2x16x8xf32>, vector<2x16x8xf32> -> vector<4x16x8xf32>
    %cst_32 = arith.constant 0.353553385 : f32
    %98 = vector.broadcast %cst_32 : f32 to vector<4x16x8xf32>
    %99 = arith.mulf %91, %98 : vector<4x16x8xf32>
    %100 = arith.truncf %99 : vector<4x16x8xf32> to vector<4x16x8xbf16>
    %101 = arith.truncf %94 : vector<4x16x8xf32> to vector<4x16x8xbf16>
    "tpu.trace_start"() <{level = 10 : i32, message = "bqd,bkd->bqk"}> : () -> ()
    %cst_33 = arith.constant dense<0.000000e+00> : vector<4x16x16xf32>
    %102 = tpu.matmul %100, %101, %cst_33 {dimension_numbers = #tpu.dot_dimension_numbers<[2], [2], [1], [1], [0, 0, 0, 1, 1, 1], [0], [0]>} : vector<4x16x8xbf16>, vector<4x16x8xbf16>, vector<4x16x16xf32> -> vector<4x16x16xf32>
    "tpu.trace_stop"() : () -> ()
    %cst_34 = arith.constant dense<0xFF800000> : vector<4x16xf32>
    %103 = vector.multi_reduction <maximumf>, %102, %cst_34 [2] : vector<4x16x16xf32> to vector<4x16xf32>
    %104 = vector.shape_cast %103 : vector<4x16xf32> to vector<4x16x1xf32>
    %105 = vector.broadcast %104 : vector<4x16x1xf32> to vector<4x16x16xf32>
    %106 = arith.subf %102, %105 : vector<4x16x16xf32>
    %107 = math.exp %106 : vector<4x16x16xf32>
    %cst_35 = arith.constant dense<0.000000e+00> : vector<4x16xf32>
    %108 = vector.multi_reduction <add>, %107, %cst_35 [2] : vector<4x16x16xf32> to vector<4x16xf32>
    %109 = vector.shape_cast %108 : vector<4x16xf32> to vector<4x16x1xf32>
    %110 = tpu.reciprocal %109 {approx = true} : vector<4x16x1xf32> -> vector<4x16x1xf32>
    %111 = vector.broadcast %110 : vector<4x16x1xf32> to vector<4x16x16xf32>
    %112 = arith.mulf %107, %111 : vector<4x16x16xf32>
    %113 = arith.truncf %112 : vector<4x16x16xf32> to vector<4x16x16xbf16>
    %114 = arith.truncf %97 : vector<4x16x8xf32> to vector<4x16x8xbf16>
    "tpu.trace_start"() <{level = 10 : i32, message = "bqk,bkd->bqd"}> : () -> ()
    %cst_36 = arith.constant dense<0.000000e+00> : vector<4x16x8xf32>
    %115 = tpu.matmul %113, %114, %cst_36 {dimension_numbers = #tpu.dot_dimension_numbers<[2], [1], [1], [2], [0, 0, 0, 1, 1, 2], [0], [0]>} : vector<4x16x16xbf16>, vector<4x16x8xbf16>, vector<4x16x8xf32> -> vector<4x16x8xf32>
    "tpu.trace_stop"() : () -> ()
    %c0_37 = arith.constant 0 : index
    %c0_38 = arith.constant 0 : index
    %c0_39 = arith.constant 0 : index
    %116 = vector.load %arg8[%c0_37, %c0_38, %c0_39] : memref<2x16x32xbf16, #tpu.memory_space<vmem>>, vector<1x16x32xbf16>
    %117 = vector.shape_cast %116 : vector<1x16x32xbf16> to vector<16x32xbf16>
    %118 = vector.extract_strided_slice %115 {offsets = [0, 0, 0], sizes = [2, 16, 8], strides = [1, 1, 1]} : vector<4x16x8xf32> to vector<2x16x8xf32>
    %119 = vector.shape_cast %118 : vector<2x16x8xf32> to vector<32x8xf32>
    %120 = vector.extract_strided_slice %117 {offsets = [0, 0], sizes = [8, 32], strides = [1, 1]} : vector<16x32xbf16> to vector<8x32xbf16>
    %121 = arith.truncf %119 : vector<32x8xf32> to vector<32x8xbf16>
    %cst_40 = arith.constant dense<0.000000e+00> : vector<32x32xf32>
    %122 = tpu.matmul %121, %120, %cst_40 {dimension_numbers = #tpu.dot_dimension_numbers<[1], [0], [0], [1], [0, 0, 1, 1], [], []>} : vector<32x8xbf16>, vector<8x32xbf16>, vector<32x32xf32> -> vector<32x32xf32>
    %123 = vector.extract_strided_slice %115 {offsets = [2, 0, 0], sizes = [2, 16, 8], strides = [1, 1, 1]} : vector<4x16x8xf32> to vector<2x16x8xf32>
    %124 = vector.shape_cast %123 : vector<2x16x8xf32> to vector<32x8xf32>
    %125 = vector.extract_strided_slice %117 {offsets = [8, 0], sizes = [8, 32], strides = [1, 1]} : vector<16x32xbf16> to vector<8x32xbf16>
    %126 = arith.truncf %124 : vector<32x8xf32> to vector<32x8xbf16>
    %cst_41 = arith.constant dense<0.000000e+00> : vector<32x32xf32>
    %127 = tpu.matmul %126, %125, %cst_41 {dimension_numbers = #tpu.dot_dimension_numbers<[1], [0], [0], [1], [0, 0, 1, 1], [], []>} : vector<32x8xbf16>, vector<8x32xbf16>, vector<32x32xf32> -> vector<32x32xf32>
    %128 = arith.addf %122, %127 : vector<32x32xf32>
    %129 = arith.addf %59, %128 : vector<32x32xf32>
    %130 = vector.extract_strided_slice %61 {offsets = [2, 0], sizes = [1, 32], strides = [1, 1]} : vector<4x32xf32> to vector<1x32xf32>
    %131 = vector.extract_strided_slice %61 {offsets = [3, 0], sizes = [1, 32], strides = [1, 1]} : vector<4x32xf32> to vector<1x32xf32>
    %cst_42 = arith.constant dense<0.000000e+00> : vector<32xf32>
    %132 = vector.multi_reduction <add>, %129, %cst_42 [1] : vector<32x32xf32> to vector<32xf32>
    %133 = vector.shape_cast %132 : vector<32xf32> to vector<32x1xf32>
    %cst_43 = arith.constant 3.200000e+01 : f32
    %134 = vector.broadcast %cst_43 : f32 to vector<32x1xf32>
    %135 = arith.divf %133, %134 : vector<32x1xf32>
    %136 = vector.broadcast %135 : vector<32x1xf32> to vector<32x32xf32>
    %137 = arith.subf %129, %136 : vector<32x32xf32>
    %138 = arith.mulf %137, %137 : vector<32x32xf32>
    %cst_44 = arith.constant dense<0.000000e+00> : vector<32xf32>
    %139 = vector.multi_reduction <add>, %138, %cst_44 [1] : vector<32x32xf32> to vector<32xf32>
    %140 = vector.shape_cast %139 : vector<32xf32> to vector<32x1xf32>
    %cst_45 = arith.constant 3.200000e+01 : f32
    %141 = vector.broadcast %cst_45 : f32 to vector<32x1xf32>
    %142 = arith.divf %140, %141 : vector<32x1xf32>
    %cst_46 = arith.constant 9.99999974E-6 : f32
    %143 = vector.broadcast %cst_46 : f32 to vector<32x1xf32>
    %144 = arith.addf %142, %143 : vector<32x1xf32>
    %145 = math.rsqrt %144 : vector<32x1xf32>
    %146 = vector.broadcast %145 : vector<32x1xf32> to vector<32x32xf32>
    %147 = arith.mulf %137, %146 : vector<32x32xf32>
    %148 = vector.broadcast %130 : vector<1x32xf32> to vector<32x32xf32>
    %149 = arith.mulf %147, %148 : vector<32x32xf32>
    %150 = vector.broadcast %131 : vector<1x32xf32> to vector<32x32xf32>
    %151 = arith.addf %149, %150 : vector<32x32xf32>
    %c0_47 = arith.constant 0 : index
    %c0_48 = arith.constant 0 : index
    %c0_49 = arith.constant 0 : index
    %152 = vector.load %arg11[%c0_47, %c0_48, %c0_49] : memref<2x2x64xf32, #tpu.memory_space<vmem>>, vector<1x2x64xf32>
    %153 = vector.shape_cast %152 : vector<1x2x64xf32> to vector<2x64xf32>
    %c0_50 = arith.constant 0 : index
    %c0_51 = arith.constant 0 : index
    %c0_52 = arith.constant 0 : index
    %154 = vector.load %arg9[%c0_50, %c0_51, %c0_52] : memref<2x32x64xbf16, #tpu.memory_space<vmem>>, vector<1x32x64xbf16>
    %155 = vector.shape_cast %154 : vector<1x32x64xbf16> to vector<32x64xbf16>
    %156 = arith.truncf %151 : vector<32x32xf32> to vector<32x32xbf16>
    %cst_53 = arith.constant dense<0.000000e+00> : vector<32x64xf32>
    %157 = tpu.matmul %156, %155, %cst_53 {dimension_numbers = #tpu.dot_dimension_numbers<[1], [0], [0], [1], [0, 0, 1, 1], [], []>} : vector<32x32xbf16>, vector<32x64xbf16>, vector<32x64xf32> -> vector<32x64xf32>
    %158 = vector.extract_strided_slice %153 {offsets = [0, 0], sizes = [1, 64], strides = [1, 1]} : vector<2x64xf32> to vector<1x64xf32>
    %159 = vector.broadcast %158 : vector<1x64xf32> to vector<32x64xf32>
    %160 = arith.addf %157, %159 : vector<32x64xf32>
    %cst_54 = arith.constant 5.000000e-01 : f32
    %161 = vector.broadcast %cst_54 : f32 to vector<32x64xf32>
    %162 = arith.mulf %161, %160 : vector<32x64xf32>
    %cst_55 = arith.constant 4.471500e-02 : f32
    %163 = vector.broadcast %cst_55 : f32 to vector<32x64xf32>
    %164 = arith.mulf %163, %160 : vector<32x64xf32>
    %165 = arith.mulf %164, %160 : vector<32x64xf32>
    %166 = arith.mulf %165, %160 : vector<32x64xf32>
    %167 = arith.addf %160, %166 : vector<32x64xf32>
    %cst_56 = arith.constant 0.797884583 : f32
    %168 = vector.broadcast %cst_56 : f32 to vector<32x64xf32>
    %169 = arith.mulf %168, %167 : vector<32x64xf32>
    %170 = math.tanh %169 : vector<32x64xf32>
    %cst_57 = arith.constant 1.000000e+00 : f32
    %171 = vector.broadcast %cst_57 : f32 to vector<32x64xf32>
    %172 = arith.addf %171, %170 : vector<32x64xf32>
    %173 = arith.mulf %162, %172 : vector<32x64xf32>
    %c0_58 = arith.constant 0 : index
    %c0_59 = arith.constant 0 : index
    %c0_60 = arith.constant 0 : index
    %174 = vector.load %arg10[%c0_58, %c0_59, %c0_60] : memref<2x64x32xbf16, #tpu.memory_space<vmem>>, vector<1x64x32xbf16>
    %175 = vector.shape_cast %174 : vector<1x64x32xbf16> to vector<64x32xbf16>
    %176 = arith.truncf %173 : vector<32x64xf32> to vector<32x64xbf16>
    %cst_61 = arith.constant dense<0.000000e+00> : vector<32x32xf32>
    %177 = tpu.matmul %176, %175, %cst_61 {dimension_numbers = #tpu.dot_dimension_numbers<[1], [0], [0], [1], [0, 0, 1, 1], [], []>} : vector<32x64xbf16>, vector<64x32xbf16>, vector<32x32xf32> -> vector<32x32xf32>
    %178 = arith.addf %129, %177 : vector<32x32xf32>
    %179 = vector.extract_strided_slice %153 {offsets = [1, 0], sizes = [1, 32], strides = [1, 1]} : vector<2x64xf32> to vector<1x32xf32>
    %180 = vector.broadcast %179 : vector<1x32xf32> to vector<32x32xf32>
    %181 = arith.addf %178, %180 : vector<32x32xf32>
    %c1 = arith.constant 1 : index
    %c0_62 = arith.constant 0 : index
    %c0_63 = arith.constant 0 : index
    %182 = vector.load %arg6[%c1, %c0_62, %c0_63] : memref<2x4x32xf32, #tpu.memory_space<vmem>>, vector<1x4x32xf32>
    %183 = vector.shape_cast %182 : vector<1x4x32xf32> to vector<4x32xf32>
    %184 = vector.extract_strided_slice %183 {offsets = [0, 0], sizes = [1, 32], strides = [1, 1]} : vector<4x32xf32> to vector<1x32xf32>
    %185 = vector.extract_strided_slice %183 {offsets = [1, 0], sizes = [1, 32], strides = [1, 1]} : vector<4x32xf32> to vector<1x32xf32>
    %cst_64 = arith.constant dense<0.000000e+00> : vector<32xf32>
    %186 = vector.multi_reduction <add>, %181, %cst_64 [1] : vector<32x32xf32> to vector<32xf32>
    %187 = vector.shape_cast %186 : vector<32xf32> to vector<32x1xf32>
    %cst_65 = arith.constant 3.200000e+01 : f32
    %188 = vector.broadcast %cst_65 : f32 to vector<32x1xf32>
    %189 = arith.divf %187, %188 : vector<32x1xf32>
    %190 = vector.broadcast %189 : vector<32x1xf32> to vector<32x32xf32>
    %191 = arith.subf %181, %190 : vector<32x32xf32>
    %192 = arith.mulf %191, %191 : vector<32x32xf32>
    %cst_66 = arith.constant dense<0.000000e+00> : vector<32xf32>
    %193 = vector.multi_reduction <add>, %192, %cst_66 [1] : vector<32x32xf32> to vector<32xf32>
    %194 = vector.shape_cast %193 : vector<32xf32> to vector<32x1xf32>
    %cst_67 = arith.constant 3.200000e+01 : f32
    %195 = vector.broadcast %cst_67 : f32 to vector<32x1xf32>
    %196 = arith.divf %194, %195 : vector<32x1xf32>
    %cst_68 = arith.constant 9.99999974E-6 : f32
    %197 = vector.broadcast %cst_68 : f32 to vector<32x1xf32>
    %198 = arith.addf %196, %197 : vector<32x1xf32>
    %199 = math.rsqrt %198 : vector<32x1xf32>
    %200 = vector.broadcast %199 : vector<32x1xf32> to vector<32x32xf32>
    %201 = arith.mulf %191, %200 : vector<32x32xf32>
    %202 = vector.broadcast %184 : vector<1x32xf32> to vector<32x32xf32>
    %203 = arith.mulf %201, %202 : vector<32x32xf32>
    %204 = vector.broadcast %185 : vector<1x32xf32> to vector<32x32xf32>
    %205 = arith.addf %203, %204 : vector<32x32xf32>
    %c1_69 = arith.constant 1 : index
    %c0_70 = arith.constant 0 : index
    %c0_71 = arith.constant 0 : index
    %206 = vector.load %arg7[%c1_69, %c0_70, %c0_71] : memref<2x32x48xbf16, #tpu.memory_space<vmem>>, vector<1x32x48xbf16>
    %207 = vector.shape_cast %206 : vector<1x32x48xbf16> to vector<32x48xbf16>
    %208 = arith.truncf %205 : vector<32x32xf32> to vector<32x32xbf16>
    %cst_72 = arith.constant dense<0.000000e+00> : vector<32x48xf32>
    %209 = tpu.matmul %208, %207, %cst_72 {dimension_numbers = #tpu.dot_dimension_numbers<[1], [0], [0], [1], [0, 0, 1, 1], [], []>} : vector<32x32xbf16>, vector<32x48xbf16>, vector<32x48xf32> -> vector<32x48xf32>
    %210 = vector.shape_cast %209 : vector<32x48xf32> to vector<2x16x48xf32>
    %211 = vector.extract_strided_slice %210 {offsets = [0, 0, 0], sizes = [2, 16, 8], strides = [1, 1, 1]} : vector<2x16x48xf32> to vector<2x16x8xf32>
    %212 = vector.extract_strided_slice %210 {offsets = [0, 0, 8], sizes = [2, 16, 8], strides = [1, 1, 1]} : vector<2x16x48xf32> to vector<2x16x8xf32>
    %213 = tpu.concatenate %211, %212 in 0 : vector<2x16x8xf32>, vector<2x16x8xf32> -> vector<4x16x8xf32>
    %214 = vector.extract_strided_slice %210 {offsets = [0, 0, 16], sizes = [2, 16, 8], strides = [1, 1, 1]} : vector<2x16x48xf32> to vector<2x16x8xf32>
    %215 = vector.extract_strided_slice %210 {offsets = [0, 0, 24], sizes = [2, 16, 8], strides = [1, 1, 1]} : vector<2x16x48xf32> to vector<2x16x8xf32>
    %216 = tpu.concatenate %214, %215 in 0 : vector<2x16x8xf32>, vector<2x16x8xf32> -> vector<4x16x8xf32>
    %217 = vector.extract_strided_slice %210 {offsets = [0, 0, 32], sizes = [2, 16, 8], strides = [1, 1, 1]} : vector<2x16x48xf32> to vector<2x16x8xf32>
    %218 = vector.extract_strided_slice %210 {offsets = [0, 0, 40], sizes = [2, 16, 8], strides = [1, 1, 1]} : vector<2x16x48xf32> to vector<2x16x8xf32>
    %219 = tpu.concatenate %217, %218 in 0 : vector<2x16x8xf32>, vector<2x16x8xf32> -> vector<4x16x8xf32>
    %cst_73 = arith.constant 0.353553385 : f32
    %220 = vector.broadcast %cst_73 : f32 to vector<4x16x8xf32>
    %221 = arith.mulf %213, %220 : vector<4x16x8xf32>
    %222 = arith.truncf %221 : vector<4x16x8xf32> to vector<4x16x8xbf16>
    %223 = arith.truncf %216 : vector<4x16x8xf32> to vector<4x16x8xbf16>
    "tpu.trace_start"() <{level = 10 : i32, message = "bqd,bkd->bqk"}> : () -> ()
    %cst_74 = arith.constant dense<0.000000e+00> : vector<4x16x16xf32>
    %224 = tpu.matmul %222, %223, %cst_74 {dimension_numbers = #tpu.dot_dimension_numbers<[2], [2], [1], [1], [0, 0, 0, 1, 1, 1], [0], [0]>} : vector<4x16x8xbf16>, vector<4x16x8xbf16>, vector<4x16x16xf32> -> vector<4x16x16xf32>
    "tpu.trace_stop"() : () -> ()
    %cst_75 = arith.constant dense<0xFF800000> : vector<4x16xf32>
    %225 = vector.multi_reduction <maximumf>, %224, %cst_75 [2] : vector<4x16x16xf32> to vector<4x16xf32>
    %226 = vector.shape_cast %225 : vector<4x16xf32> to vector<4x16x1xf32>
    %227 = vector.broadcast %226 : vector<4x16x1xf32> to vector<4x16x16xf32>
    %228 = arith.subf %224, %227 : vector<4x16x16xf32>
    %229 = math.exp %228 : vector<4x16x16xf32>
    %cst_76 = arith.constant dense<0.000000e+00> : vector<4x16xf32>
    %230 = vector.multi_reduction <add>, %229, %cst_76 [2] : vector<4x16x16xf32> to vector<4x16xf32>
    %231 = vector.shape_cast %230 : vector<4x16xf32> to vector<4x16x1xf32>
    %232 = tpu.reciprocal %231 {approx = true} : vector<4x16x1xf32> -> vector<4x16x1xf32>
    %233 = vector.broadcast %232 : vector<4x16x1xf32> to vector<4x16x16xf32>
    %234 = arith.mulf %229, %233 : vector<4x16x16xf32>
    %235 = arith.truncf %234 : vector<4x16x16xf32> to vector<4x16x16xbf16>
    %236 = arith.truncf %219 : vector<4x16x8xf32> to vector<4x16x8xbf16>
    "tpu.trace_start"() <{level = 10 : i32, message = "bqk,bkd->bqd"}> : () -> ()
    %cst_77 = arith.constant dense<0.000000e+00> : vector<4x16x8xf32>
    %237 = tpu.matmul %235, %236, %cst_77 {dimension_numbers = #tpu.dot_dimension_numbers<[2], [1], [1], [2], [0, 0, 0, 1, 1, 2], [0], [0]>} : vector<4x16x16xbf16>, vector<4x16x8xbf16>, vector<4x16x8xf32> -> vector<4x16x8xf32>
    "tpu.trace_stop"() : () -> ()
    %c1_78 = arith.constant 1 : index
    %c0_79 = arith.constant 0 : index
    %c0_80 = arith.constant 0 : index
    %238 = vector.load %arg8[%c1_78, %c0_79, %c0_80] : memref<2x16x32xbf16, #tpu.memory_space<vmem>>, vector<1x16x32xbf16>
    %239 = vector.shape_cast %238 : vector<1x16x32xbf16> to vector<16x32xbf16>
    %240 = vector.extract_strided_slice %237 {offsets = [0, 0, 0], sizes = [2, 16, 8], strides = [1, 1, 1]} : vector<4x16x8xf32> to vector<2x16x8xf32>
    %241 = vector.shape_cast %240 : vector<2x16x8xf32> to vector<32x8xf32>
    %242 = vector.extract_strided_slice %239 {offsets = [0, 0], sizes = [8, 32], strides = [1, 1]} : vector<16x32xbf16> to vector<8x32xbf16>
    %243 = arith.truncf %241 : vector<32x8xf32> to vector<32x8xbf16>
    %cst_81 = arith.constant dense<0.000000e+00> : vector<32x32xf32>
    %244 = tpu.matmul %243, %242, %cst_81 {dimension_numbers = #tpu.dot_dimension_numbers<[1], [0], [0], [1], [0, 0, 1, 1], [], []>} : vector<32x8xbf16>, vector<8x32xbf16>, vector<32x32xf32> -> vector<32x32xf32>
    %245 = vector.extract_strided_slice %237 {offsets = [2, 0, 0], sizes = [2, 16, 8], strides = [1, 1, 1]} : vector<4x16x8xf32> to vector<2x16x8xf32>
    %246 = vector.shape_cast %245 : vector<2x16x8xf32> to vector<32x8xf32>
    %247 = vector.extract_strided_slice %239 {offsets = [8, 0], sizes = [8, 32], strides = [1, 1]} : vector<16x32xbf16> to vector<8x32xbf16>
    %248 = arith.truncf %246 : vector<32x8xf32> to vector<32x8xbf16>
    %cst_82 = arith.constant dense<0.000000e+00> : vector<32x32xf32>
    %249 = tpu.matmul %248, %247, %cst_82 {dimension_numbers = #tpu.dot_dimension_numbers<[1], [0], [0], [1], [0, 0, 1, 1], [], []>} : vector<32x8xbf16>, vector<8x32xbf16>, vector<32x32xf32> -> vector<32x32xf32>
    %250 = arith.addf %244, %249 : vector<32x32xf32>
    %251 = arith.addf %181, %250 : vector<32x32xf32>
    %252 = vector.extract_strided_slice %183 {offsets = [2, 0], sizes = [1, 32], strides = [1, 1]} : vector<4x32xf32> to vector<1x32xf32>
    %253 = vector.extract_strided_slice %183 {offsets = [3, 0], sizes = [1, 32], strides = [1, 1]} : vector<4x32xf32> to vector<1x32xf32>
    %cst_83 = arith.constant dense<0.000000e+00> : vector<32xf32>
    %254 = vector.multi_reduction <add>, %251, %cst_83 [1] : vector<32x32xf32> to vector<32xf32>
    %255 = vector.shape_cast %254 : vector<32xf32> to vector<32x1xf32>
    %cst_84 = arith.constant 3.200000e+01 : f32
    %256 = vector.broadcast %cst_84 : f32 to vector<32x1xf32>
    %257 = arith.divf %255, %256 : vector<32x1xf32>
    %258 = vector.broadcast %257 : vector<32x1xf32> to vector<32x32xf32>
    %259 = arith.subf %251, %258 : vector<32x32xf32>
    %260 = arith.mulf %259, %259 : vector<32x32xf32>
    %cst_85 = arith.constant dense<0.000000e+00> : vector<32xf32>
    %261 = vector.multi_reduction <add>, %260, %cst_85 [1] : vector<32x32xf32> to vector<32xf32>
    %262 = vector.shape_cast %261 : vector<32xf32> to vector<32x1xf32>
    %cst_86 = arith.constant 3.200000e+01 : f32
    %263 = vector.broadcast %cst_86 : f32 to vector<32x1xf32>
    %264 = arith.divf %262, %263 : vector<32x1xf32>
    %cst_87 = arith.constant 9.99999974E-6 : f32
    %265 = vector.broadcast %cst_87 : f32 to vector<32x1xf32>
    %266 = arith.addf %264, %265 : vector<32x1xf32>
    %267 = math.rsqrt %266 : vector<32x1xf32>
    %268 = vector.broadcast %267 : vector<32x1xf32> to vector<32x32xf32>
    %269 = arith.mulf %259, %268 : vector<32x32xf32>
    %270 = vector.broadcast %252 : vector<1x32xf32> to vector<32x32xf32>
    %271 = arith.mulf %269, %270 : vector<32x32xf32>
    %272 = vector.broadcast %253 : vector<1x32xf32> to vector<32x32xf32>
    %273 = arith.addf %271, %272 : vector<32x32xf32>
    %c1_88 = arith.constant 1 : index
    %c0_89 = arith.constant 0 : index
    %c0_90 = arith.constant 0 : index
    %274 = vector.load %arg11[%c1_88, %c0_89, %c0_90] : memref<2x2x64xf32, #tpu.memory_space<vmem>>, vector<1x2x64xf32>
    %275 = vector.shape_cast %274 : vector<1x2x64xf32> to vector<2x64xf32>
    %c1_91 = arith.constant 1 : index
    %c0_92 = arith.constant 0 : index
    %c0_93 = arith.constant 0 : index
    %276 = vector.load %arg9[%c1_91, %c0_92, %c0_93] : memref<2x32x64xbf16, #tpu.memory_space<vmem>>, vector<1x32x64xbf16>
    %277 = vector.shape_cast %276 : vector<1x32x64xbf16> to vector<32x64xbf16>
    %278 = arith.truncf %273 : vector<32x32xf32> to vector<32x32xbf16>
    %cst_94 = arith.constant dense<0.000000e+00> : vector<32x64xf32>
    %279 = tpu.matmul %278, %277, %cst_94 {dimension_numbers = #tpu.dot_dimension_numbers<[1], [0], [0], [1], [0, 0, 1, 1], [], []>} : vector<32x32xbf16>, vector<32x64xbf16>, vector<32x64xf32> -> vector<32x64xf32>
    %280 = vector.extract_strided_slice %275 {offsets = [0, 0], sizes = [1, 64], strides = [1, 1]} : vector<2x64xf32> to vector<1x64xf32>
    %281 = vector.broadcast %280 : vector<1x64xf32> to vector<32x64xf32>
    %282 = arith.addf %279, %281 : vector<32x64xf32>
    %cst_95 = arith.constant 5.000000e-01 : f32
    %283 = vector.broadcast %cst_95 : f32 to vector<32x64xf32>
    %284 = arith.mulf %283, %282 : vector<32x64xf32>
    %cst_96 = arith.constant 4.471500e-02 : f32
    %285 = vector.broadcast %cst_96 : f32 to vector<32x64xf32>
    %286 = arith.mulf %285, %282 : vector<32x64xf32>
    %287 = arith.mulf %286, %282 : vector<32x64xf32>
    %288 = arith.mulf %287, %282 : vector<32x64xf32>
    %289 = arith.addf %282, %288 : vector<32x64xf32>
    %cst_97 = arith.constant 0.797884583 : f32
    %290 = vector.broadcast %cst_97 : f32 to vector<32x64xf32>
    %291 = arith.mulf %290, %289 : vector<32x64xf32>
    %292 = math.tanh %291 : vector<32x64xf32>
    %cst_98 = arith.constant 1.000000e+00 : f32
    %293 = vector.broadcast %cst_98 : f32 to vector<32x64xf32>
    %294 = arith.addf %293, %292 : vector<32x64xf32>
    %295 = arith.mulf %284, %294 : vector<32x64xf32>
    %c1_99 = arith.constant 1 : index
    %c0_100 = arith.constant 0 : index
    %c0_101 = arith.constant 0 : index
    %296 = vector.load %arg10[%c1_99, %c0_100, %c0_101] : memref<2x64x32xbf16, #tpu.memory_space<vmem>>, vector<1x64x32xbf16>
    %297 = vector.shape_cast %296 : vector<1x64x32xbf16> to vector<64x32xbf16>
    %298 = arith.truncf %295 : vector<32x64xf32> to vector<32x64xbf16>
    %cst_102 = arith.constant dense<0.000000e+00> : vector<32x32xf32>
    %299 = tpu.matmul %298, %297, %cst_102 {dimension_numbers = #tpu.dot_dimension_numbers<[1], [0], [0], [1], [0, 0, 1, 1], [], []>} : vector<32x64xbf16>, vector<64x32xbf16>, vector<32x32xf32> -> vector<32x32xf32>
    %300 = arith.addf %251, %299 : vector<32x32xf32>
    %301 = vector.extract_strided_slice %275 {offsets = [1, 0], sizes = [1, 32], strides = [1, 1]} : vector<2x64xf32> to vector<1x32xf32>
    %302 = vector.broadcast %301 : vector<1x32xf32> to vector<32x32xf32>
    %303 = arith.addf %300, %302 : vector<32x32xf32>
    %c0_103 = arith.constant 0 : index
    %c0_104 = arith.constant 0 : index
    %304 = vector.load %arg12[%c0_103, %c0_104] : memref<2x32xf32, #tpu.memory_space<vmem>>, vector<2x32xf32>
    %305 = vector.extract_strided_slice %304 {offsets = [0, 0], sizes = [1, 32], strides = [1, 1]} : vector<2x32xf32> to vector<1x32xf32>
    %306 = vector.extract_strided_slice %304 {offsets = [1, 0], sizes = [1, 32], strides = [1, 1]} : vector<2x32xf32> to vector<1x32xf32>
    %cst_105 = arith.constant dense<0.000000e+00> : vector<32xf32>
    %307 = vector.multi_reduction <add>, %303, %cst_105 [1] : vector<32x32xf32> to vector<32xf32>
    %308 = vector.shape_cast %307 : vector<32xf32> to vector<32x1xf32>
    %cst_106 = arith.constant 3.200000e+01 : f32
    %309 = vector.broadcast %cst_106 : f32 to vector<32x1xf32>
    %310 = arith.divf %308, %309 : vector<32x1xf32>
    %311 = vector.broadcast %310 : vector<32x1xf32> to vector<32x32xf32>
    %312 = arith.subf %303, %311 : vector<32x32xf32>
    %313 = arith.mulf %312, %312 : vector<32x32xf32>
    %cst_107 = arith.constant dense<0.000000e+00> : vector<32xf32>
    %314 = vector.multi_reduction <add>, %313, %cst_107 [1] : vector<32x32xf32> to vector<32xf32>
    %315 = vector.shape_cast %314 : vector<32xf32> to vector<32x1xf32>
    %cst_108 = arith.constant 3.200000e+01 : f32
    %316 = vector.broadcast %cst_108 : f32 to vector<32x1xf32>
    %317 = arith.divf %315, %316 : vector<32x1xf32>
    %cst_109 = arith.constant 9.99999974E-6 : f32
    %318 = vector.broadcast %cst_109 : f32 to vector<32x1xf32>
    %319 = arith.addf %317, %318 : vector<32x1xf32>
    %320 = math.rsqrt %319 : vector<32x1xf32>
    %321 = vector.broadcast %320 : vector<32x1xf32> to vector<32x32xf32>
    %322 = arith.mulf %312, %321 : vector<32x32xf32>
    %323 = vector.broadcast %305 : vector<1x32xf32> to vector<32x32xf32>
    %324 = arith.mulf %322, %323 : vector<32x32xf32>
    %325 = vector.broadcast %306 : vector<1x32xf32> to vector<32x32xf32>
    %326 = arith.addf %324, %325 : vector<32x32xf32>
    %327 = vector.shape_cast %326 : vector<32x32xf32> to vector<2x16x32xf32>
    %c0_110 = arith.constant 0 : index
    %c0_111 = arith.constant 0 : index
    %c0_112 = arith.constant 0 : index
    %328 = vector.load %arg13[%c0_110, %c0_111, %c0_112] : memref<2x16x32xf32, #tpu.memory_space<vmem>>, vector<2x16x32xf32>
    tpu.vector_store %arg13[%c0_110, %c0_111, %c0_112], %327 {strides = array<i32>} : memref<2x16x32xf32, #tpu.memory_space<vmem>>, vector<2x16x32xf32>,
    return
  }
  func.func @transform_0(%arg0: i32) -> (i32, i32, i32) {
    %c0_i32 = arith.constant 0 : i32
    %c0_i32_0 = arith.constant 0 : i32
    %c0_i32_1 = arith.constant 0 : i32
    return %arg0, %c0_i32, %c0_i32_0 : i32, i32, i32
  }
  func.func @transform_1(%arg0: i32) -> (i32, i32) {
    %c0_i32 = arith.constant 0 : i32
    %c0_i32_0 = arith.constant 0 : i32
    %c0_i32_1 = arith.constant 0 : i32
    return %c0_i32, %c0_i32_0 : i32, i32
  }
  func.func @transform_2(%arg0: i32) -> (i32, i32) {
    %c0_i32 = arith.constant 0 : i32
    %c0_i32_0 = arith.constant 0 : i32
    %c0_i32_1 = arith.constant 0 : i32
    return %c0_i32, %c0_i32_0 : i32, i32
  }
  func.func @transform_3(%arg0: i32) -> (i32, i32) {
    %c0_i32 = arith.constant 0 : i32
    %c0_i32_0 = arith.constant 0 : i32
    %c0_i32_1 = arith.constant 0 : i32
    return %c0_i32, %c0_i32_0 : i32, i32
  }
  func.func @transform_4(%arg0: i32) -> (i32, i32) {
    %c0_i32 = arith.constant 0 : i32
    %c0_i32_0 = arith.constant 0 : i32
    %c0_i32_1 = arith.constant 0 : i32
    return %c0_i32, %c0_i32_0 : i32, i32
  }
  func.func @transform_5(%arg0: i32) -> (i32, i32, i32) {
    %c0_i32 = arith.constant 0 : i32
    %c0_i32_0 = arith.constant 0 : i32
    %c0_i32_1 = arith.constant 0 : i32
    %c0_i32_2 = arith.constant 0 : i32
    return %c0_i32, %c0_i32_0, %c0_i32_1 : i32, i32, i32
  }
  func.func @transform_6(%arg0: i32) -> (i32, i32, i32) {
    %c0_i32 = arith.constant 0 : i32
    %c0_i32_0 = arith.constant 0 : i32
    %c0_i32_1 = arith.constant 0 : i32
    %c0_i32_2 = arith.constant 0 : i32
    return %c0_i32, %c0_i32_0, %c0_i32_1 : i32, i32, i32
  }
  func.func @transform_7(%arg0: i32) -> (i32, i32, i32) {
    %c0_i32 = arith.constant 0 : i32
    %c0_i32_0 = arith.constant 0 : i32
    %c0_i32_1 = arith.constant 0 : i32
    %c0_i32_2 = arith.constant 0 : i32
    return %c0_i32, %c0_i32_0, %c0_i32_1 : i32, i32, i32
  }
  func.func @transform_8(%arg0: i32) -> (i32, i32, i32) {
    %c0_i32 = arith.constant 0 : i32
    %c0_i32_0 = arith.constant 0 : i32
    %c0_i32_1 = arith.constant 0 : i32
    %c0_i32_2 = arith.constant 0 : i32
    return %c0_i32, %c0_i32_0, %c0_i32_1 : i32, i32, i32
  }
  func.func @transform_9(%arg0: i32) -> (i32, i32, i32) {
    %c0_i32 = arith.constant 0 : i32
    %c0_i32_0 = arith.constant 0 : i32
    %c0_i32_1 = arith.constant 0 : i32
    %c0_i32_2 = arith.constant 0 : i32
    return %c0_i32, %c0_i32_0, %c0_i32_1 : i32, i32, i32
  }
  func.func @transform_10(%arg0: i32) -> (i32, i32, i32) {
    %c0_i32 = arith.constant 0 : i32
    %c0_i32_0 = arith.constant 0 : i32
    %c0_i32_1 = arith.constant 0 : i32
    %c0_i32_2 = arith.constant 0 : i32
    return %c0_i32, %c0_i32_0, %c0_i32_1 : i32, i32, i32
  }
  func.func @transform_11(%arg0: i32) -> (i32, i32) {
    %c0_i32 = arith.constant 0 : i32
    %c0_i32_0 = arith.constant 0 : i32
    %c0_i32_1 = arith.constant 0 : i32
    return %c0_i32, %c0_i32_0 : i32, i32
  }
  func.func @transform_12(%arg0: i32) -> (i32, i32, i32) {
    %c0_i32 = arith.constant 0 : i32
    %c0_i32_0 = arith.constant 0 : i32
    %c0_i32_1 = arith.constant 0 : i32
    return %arg0, %c0_i32, %c0_i32_0 : i32, i32, i32
  }
}

module attributes {stable_mosaic.version = 11 : i64} {
  func.func @_img_dec_kernel(%arg0: i32, %arg1: memref<2x16x32xf32, #tpu.memory_space<vmem>>, %arg2: memref<2x4x32xf32, #tpu.memory_space<vmem>>, %arg3: memref<2x32x48xbf16, #tpu.memory_space<vmem>>, %arg4: memref<2x16x32xbf16, #tpu.memory_space<vmem>>, %arg5: memref<2x32x64xbf16, #tpu.memory_space<vmem>>, %arg6: memref<2x64x32xbf16, #tpu.memory_space<vmem>>, %arg7: memref<2x2x64xf32, #tpu.memory_space<vmem>>, %arg8: memref<2x32xf32, #tpu.memory_space<vmem>>, %arg9: memref<2x32xf32, #tpu.memory_space<vmem>>, %arg10: memref<32x48xbf16, #tpu.memory_space<vmem>>, %arg11: memref<3x48xf32, #tpu.memory_space<vmem>>, %arg12: memref<2x16x48xf32, #tpu.memory_space<vmem>>) attributes {dimension_semantics = [#tpu.dimension_semantics<arbitrary>], iteration_bounds = array<i64: 1>, scalar_prefetch = 0 : i64, scratch_operands = 0 : i64, tpu.core_type = #tpu.core_type<tc>, window_params = [{transform_indices = @transform_0, window_bounds = array<i64: 2, 16, 32>}, {pipeline_mode = #tpu.pipeline_mode<synchronous>, transform_indices = @transform_1, window_bounds = array<i64: 2, 4, 32>}, {pipeline_mode = #tpu.pipeline_mode<synchronous>, transform_indices = @transform_2, window_bounds = array<i64: 2, 32, 48>}, {pipeline_mode = #tpu.pipeline_mode<synchronous>, transform_indices = @transform_3, window_bounds = array<i64: 2, 16, 32>}, {pipeline_mode = #tpu.pipeline_mode<synchronous>, transform_indices = @transform_4, window_bounds = array<i64: 2, 32, 64>}, {pipeline_mode = #tpu.pipeline_mode<synchronous>, transform_indices = @transform_5, window_bounds = array<i64: 2, 64, 32>}, {pipeline_mode = #tpu.pipeline_mode<synchronous>, transform_indices = @transform_6, window_bounds = array<i64: 2, 2, 64>}, {pipeline_mode = #tpu.pipeline_mode<synchronous>, transform_indices = @transform_7, window_bounds = array<i64: 2, 32>}, {pipeline_mode = #tpu.pipeline_mode<synchronous>, transform_indices = @transform_8, window_bounds = array<i64: 2, 32>}, {pipeline_mode = #tpu.pipeline_mode<synchronous>, transform_indices = @transform_9, window_bounds = array<i64: 32, 48>}, {pipeline_mode = #tpu.pipeline_mode<synchronous>, transform_indices = @transform_10, window_bounds = array<i64: 3, 48>}, {transform_indices = @transform_11, window_bounds = array<i64: 2, 16, 48>}]} {
    %c0 = arith.constant 0 : index
    %c0_0 = arith.constant 0 : index
    %c0_1 = arith.constant 0 : index
    %0 = vector.load %arg1[%c0, %c0_0, %c0_1] : memref<2x16x32xf32, #tpu.memory_space<vmem>>, vector<2x16x32xf32>
    %1 = vector.shape_cast %0 : vector<2x16x32xf32> to vector<32x32xf32>
    %c0_2 = arith.constant 0 : index
    %c0_3 = arith.constant 0 : index
    %c0_4 = arith.constant 0 : index
    %2 = vector.load %arg2[%c0_2, %c0_3, %c0_4] : memref<2x4x32xf32, #tpu.memory_space<vmem>>, vector<1x4x32xf32>
    %3 = vector.shape_cast %2 : vector<1x4x32xf32> to vector<4x32xf32>
    %4 = vector.extract_strided_slice %3 {offsets = [0, 0], sizes = [1, 32], strides = [1, 1]} : vector<4x32xf32> to vector<1x32xf32>
    %5 = vector.extract_strided_slice %3 {offsets = [1, 0], sizes = [1, 32], strides = [1, 1]} : vector<4x32xf32> to vector<1x32xf32>
    %cst = arith.constant dense<0.000000e+00> : vector<32xf32>
    %6 = vector.multi_reduction <add>, %1, %cst [1] : vector<32x32xf32> to vector<32xf32>
    %7 = vector.shape_cast %6 : vector<32xf32> to vector<32x1xf32>
    %cst_5 = arith.constant 3.200000e+01 : f32
    %8 = vector.broadcast %cst_5 : f32 to vector<32x1xf32>
    %9 = arith.divf %7, %8 : vector<32x1xf32>
    %10 = vector.broadcast %9 : vector<32x1xf32> to vector<32x32xf32>
    %11 = arith.subf %1, %10 : vector<32x32xf32>
    %12 = arith.mulf %11, %11 : vector<32x32xf32>
    %cst_6 = arith.constant dense<0.000000e+00> : vector<32xf32>
    %13 = vector.multi_reduction <add>, %12, %cst_6 [1] : vector<32x32xf32> to vector<32xf32>
    %14 = vector.shape_cast %13 : vector<32xf32> to vector<32x1xf32>
    %cst_7 = arith.constant 3.200000e+01 : f32
    %15 = vector.broadcast %cst_7 : f32 to vector<32x1xf32>
    %16 = arith.divf %14, %15 : vector<32x1xf32>
    %cst_8 = arith.constant 9.99999974E-6 : f32
    %17 = vector.broadcast %cst_8 : f32 to vector<32x1xf32>
    %18 = arith.addf %16, %17 : vector<32x1xf32>
    %19 = math.rsqrt %18 : vector<32x1xf32>
    %20 = vector.broadcast %19 : vector<32x1xf32> to vector<32x32xf32>
    %21 = arith.mulf %11, %20 : vector<32x32xf32>
    %22 = vector.broadcast %4 : vector<1x32xf32> to vector<32x32xf32>
    %23 = arith.mulf %21, %22 : vector<32x32xf32>
    %24 = vector.broadcast %5 : vector<1x32xf32> to vector<32x32xf32>
    %25 = arith.addf %23, %24 : vector<32x32xf32>
    %c0_9 = arith.constant 0 : index
    %c0_10 = arith.constant 0 : index
    %c0_11 = arith.constant 0 : index
    %26 = vector.load %arg3[%c0_9, %c0_10, %c0_11] : memref<2x32x48xbf16, #tpu.memory_space<vmem>>, vector<1x32x48xbf16>
    %27 = vector.shape_cast %26 : vector<1x32x48xbf16> to vector<32x48xbf16>
    %28 = arith.truncf %25 : vector<32x32xf32> to vector<32x32xbf16>
    %cst_12 = arith.constant dense<0.000000e+00> : vector<32x48xf32>
    %29 = tpu.matmul %28, %27, %cst_12 {dimension_numbers = #tpu.dot_dimension_numbers<[1], [0], [0], [1], [0, 0, 1, 1], [], []>} : vector<32x32xbf16>, vector<32x48xbf16>, vector<32x48xf32> -> vector<32x48xf32>
    %30 = vector.shape_cast %29 : vector<32x48xf32> to vector<2x16x48xf32>
    %31 = vector.extract_strided_slice %30 {offsets = [0, 0, 0], sizes = [2, 16, 8], strides = [1, 1, 1]} : vector<2x16x48xf32> to vector<2x16x8xf32>
    %32 = vector.extract_strided_slice %30 {offsets = [0, 0, 8], sizes = [2, 16, 8], strides = [1, 1, 1]} : vector<2x16x48xf32> to vector<2x16x8xf32>
    %33 = tpu.concatenate %31, %32 in 0 : vector<2x16x8xf32>, vector<2x16x8xf32> -> vector<4x16x8xf32>
    %34 = vector.extract_strided_slice %30 {offsets = [0, 0, 16], sizes = [2, 16, 8], strides = [1, 1, 1]} : vector<2x16x48xf32> to vector<2x16x8xf32>
    %35 = vector.extract_strided_slice %30 {offsets = [0, 0, 24], sizes = [2, 16, 8], strides = [1, 1, 1]} : vector<2x16x48xf32> to vector<2x16x8xf32>
    %36 = tpu.concatenate %34, %35 in 0 : vector<2x16x8xf32>, vector<2x16x8xf32> -> vector<4x16x8xf32>
    %37 = vector.extract_strided_slice %30 {offsets = [0, 0, 32], sizes = [2, 16, 8], strides = [1, 1, 1]} : vector<2x16x48xf32> to vector<2x16x8xf32>
    %38 = vector.extract_strided_slice %30 {offsets = [0, 0, 40], sizes = [2, 16, 8], strides = [1, 1, 1]} : vector<2x16x48xf32> to vector<2x16x8xf32>
    %39 = tpu.concatenate %37, %38 in 0 : vector<2x16x8xf32>, vector<2x16x8xf32> -> vector<4x16x8xf32>
    %cst_13 = arith.constant 0.353553385 : f32
    %40 = vector.broadcast %cst_13 : f32 to vector<4x16x8xf32>
    %41 = arith.mulf %33, %40 : vector<4x16x8xf32>
    %42 = arith.truncf %41 : vector<4x16x8xf32> to vector<4x16x8xbf16>
    %43 = arith.truncf %36 : vector<4x16x8xf32> to vector<4x16x8xbf16>
    "tpu.trace_start"() <{level = 10 : i32, message = "bqd,bkd->bqk"}> : () -> ()
    %cst_14 = arith.constant dense<0.000000e+00> : vector<4x16x16xf32>
    %44 = tpu.matmul %42, %43, %cst_14 {dimension_numbers = #tpu.dot_dimension_numbers<[2], [2], [1], [1], [0, 0, 0, 1, 1, 1], [0], [0]>} : vector<4x16x8xbf16>, vector<4x16x8xbf16>, vector<4x16x16xf32> -> vector<4x16x16xf32>
    "tpu.trace_stop"() : () -> ()
    %cst_15 = arith.constant dense<0xFF800000> : vector<4x16xf32>
    %45 = vector.multi_reduction <maximumf>, %44, %cst_15 [2] : vector<4x16x16xf32> to vector<4x16xf32>
    %46 = vector.shape_cast %45 : vector<4x16xf32> to vector<4x16x1xf32>
    %47 = vector.broadcast %46 : vector<4x16x1xf32> to vector<4x16x16xf32>
    %48 = arith.subf %44, %47 : vector<4x16x16xf32>
    %49 = math.exp %48 : vector<4x16x16xf32>
    %cst_16 = arith.constant dense<0.000000e+00> : vector<4x16xf32>
    %50 = vector.multi_reduction <add>, %49, %cst_16 [2] : vector<4x16x16xf32> to vector<4x16xf32>
    %51 = vector.shape_cast %50 : vector<4x16xf32> to vector<4x16x1xf32>
    %52 = tpu.reciprocal %51 {approx = true} : vector<4x16x1xf32> -> vector<4x16x1xf32>
    %53 = vector.broadcast %52 : vector<4x16x1xf32> to vector<4x16x16xf32>
    %54 = arith.mulf %49, %53 : vector<4x16x16xf32>
    %55 = arith.truncf %54 : vector<4x16x16xf32> to vector<4x16x16xbf16>
    %56 = arith.truncf %39 : vector<4x16x8xf32> to vector<4x16x8xbf16>
    "tpu.trace_start"() <{level = 10 : i32, message = "bqk,bkd->bqd"}> : () -> ()
    %cst_17 = arith.constant dense<0.000000e+00> : vector<4x16x8xf32>
    %57 = tpu.matmul %55, %56, %cst_17 {dimension_numbers = #tpu.dot_dimension_numbers<[2], [1], [1], [2], [0, 0, 0, 1, 1, 2], [0], [0]>} : vector<4x16x16xbf16>, vector<4x16x8xbf16>, vector<4x16x8xf32> -> vector<4x16x8xf32>
    "tpu.trace_stop"() : () -> ()
    %c0_18 = arith.constant 0 : index
    %c0_19 = arith.constant 0 : index
    %c0_20 = arith.constant 0 : index
    %58 = vector.load %arg4[%c0_18, %c0_19, %c0_20] : memref<2x16x32xbf16, #tpu.memory_space<vmem>>, vector<1x16x32xbf16>
    %59 = vector.shape_cast %58 : vector<1x16x32xbf16> to vector<16x32xbf16>
    %60 = vector.extract_strided_slice %57 {offsets = [0, 0, 0], sizes = [2, 16, 8], strides = [1, 1, 1]} : vector<4x16x8xf32> to vector<2x16x8xf32>
    %61 = vector.shape_cast %60 : vector<2x16x8xf32> to vector<32x8xf32>
    %62 = vector.extract_strided_slice %59 {offsets = [0, 0], sizes = [8, 32], strides = [1, 1]} : vector<16x32xbf16> to vector<8x32xbf16>
    %63 = arith.truncf %61 : vector<32x8xf32> to vector<32x8xbf16>
    %cst_21 = arith.constant dense<0.000000e+00> : vector<32x32xf32>
    %64 = tpu.matmul %63, %62, %cst_21 {dimension_numbers = #tpu.dot_dimension_numbers<[1], [0], [0], [1], [0, 0, 1, 1], [], []>} : vector<32x8xbf16>, vector<8x32xbf16>, vector<32x32xf32> -> vector<32x32xf32>
    %65 = vector.extract_strided_slice %57 {offsets = [2, 0, 0], sizes = [2, 16, 8], strides = [1, 1, 1]} : vector<4x16x8xf32> to vector<2x16x8xf32>
    %66 = vector.shape_cast %65 : vector<2x16x8xf32> to vector<32x8xf32>
    %67 = vector.extract_strided_slice %59 {offsets = [8, 0], sizes = [8, 32], strides = [1, 1]} : vector<16x32xbf16> to vector<8x32xbf16>
    %68 = arith.truncf %66 : vector<32x8xf32> to vector<32x8xbf16>
    %cst_22 = arith.constant dense<0.000000e+00> : vector<32x32xf32>
    %69 = tpu.matmul %68, %67, %cst_22 {dimension_numbers = #tpu.dot_dimension_numbers<[1], [0], [0], [1], [0, 0, 1, 1], [], []>} : vector<32x8xbf16>, vector<8x32xbf16>, vector<32x32xf32> -> vector<32x32xf32>
    %70 = arith.addf %64, %69 : vector<32x32xf32>
    %71 = arith.addf %1, %70 : vector<32x32xf32>
    %72 = vector.extract_strided_slice %3 {offsets = [2, 0], sizes = [1, 32], strides = [1, 1]} : vector<4x32xf32> to vector<1x32xf32>
    %73 = vector.extract_strided_slice %3 {offsets = [3, 0], sizes = [1, 32], strides = [1, 1]} : vector<4x32xf32> to vector<1x32xf32>
    %cst_23 = arith.constant dense<0.000000e+00> : vector<32xf32>
    %74 = vector.multi_reduction <add>, %71, %cst_23 [1] : vector<32x32xf32> to vector<32xf32>
    %75 = vector.shape_cast %74 : vector<32xf32> to vector<32x1xf32>
    %cst_24 = arith.constant 3.200000e+01 : f32
    %76 = vector.broadcast %cst_24 : f32 to vector<32x1xf32>
    %77 = arith.divf %75, %76 : vector<32x1xf32>
    %78 = vector.broadcast %77 : vector<32x1xf32> to vector<32x32xf32>
    %79 = arith.subf %71, %78 : vector<32x32xf32>
    %80 = arith.mulf %79, %79 : vector<32x32xf32>
    %cst_25 = arith.constant dense<0.000000e+00> : vector<32xf32>
    %81 = vector.multi_reduction <add>, %80, %cst_25 [1] : vector<32x32xf32> to vector<32xf32>
    %82 = vector.shape_cast %81 : vector<32xf32> to vector<32x1xf32>
    %cst_26 = arith.constant 3.200000e+01 : f32
    %83 = vector.broadcast %cst_26 : f32 to vector<32x1xf32>
    %84 = arith.divf %82, %83 : vector<32x1xf32>
    %cst_27 = arith.constant 9.99999974E-6 : f32
    %85 = vector.broadcast %cst_27 : f32 to vector<32x1xf32>
    %86 = arith.addf %84, %85 : vector<32x1xf32>
    %87 = math.rsqrt %86 : vector<32x1xf32>
    %88 = vector.broadcast %87 : vector<32x1xf32> to vector<32x32xf32>
    %89 = arith.mulf %79, %88 : vector<32x32xf32>
    %90 = vector.broadcast %72 : vector<1x32xf32> to vector<32x32xf32>
    %91 = arith.mulf %89, %90 : vector<32x32xf32>
    %92 = vector.broadcast %73 : vector<1x32xf32> to vector<32x32xf32>
    %93 = arith.addf %91, %92 : vector<32x32xf32>
    %c0_28 = arith.constant 0 : index
    %c0_29 = arith.constant 0 : index
    %c0_30 = arith.constant 0 : index
    %94 = vector.load %arg7[%c0_28, %c0_29, %c0_30] : memref<2x2x64xf32, #tpu.memory_space<vmem>>, vector<1x2x64xf32>
    %95 = vector.shape_cast %94 : vector<1x2x64xf32> to vector<2x64xf32>
    %c0_31 = arith.constant 0 : index
    %c0_32 = arith.constant 0 : index
    %c0_33 = arith.constant 0 : index
    %96 = vector.load %arg5[%c0_31, %c0_32, %c0_33] : memref<2x32x64xbf16, #tpu.memory_space<vmem>>, vector<1x32x64xbf16>
    %97 = vector.shape_cast %96 : vector<1x32x64xbf16> to vector<32x64xbf16>
    %98 = arith.truncf %93 : vector<32x32xf32> to vector<32x32xbf16>
    %cst_34 = arith.constant dense<0.000000e+00> : vector<32x64xf32>
    %99 = tpu.matmul %98, %97, %cst_34 {dimension_numbers = #tpu.dot_dimension_numbers<[1], [0], [0], [1], [0, 0, 1, 1], [], []>} : vector<32x32xbf16>, vector<32x64xbf16>, vector<32x64xf32> -> vector<32x64xf32>
    %100 = vector.extract_strided_slice %95 {offsets = [0, 0], sizes = [1, 64], strides = [1, 1]} : vector<2x64xf32> to vector<1x64xf32>
    %101 = vector.broadcast %100 : vector<1x64xf32> to vector<32x64xf32>
    %102 = arith.addf %99, %101 : vector<32x64xf32>
    %cst_35 = arith.constant 5.000000e-01 : f32
    %103 = vector.broadcast %cst_35 : f32 to vector<32x64xf32>
    %104 = arith.mulf %103, %102 : vector<32x64xf32>
    %cst_36 = arith.constant 4.471500e-02 : f32
    %105 = vector.broadcast %cst_36 : f32 to vector<32x64xf32>
    %106 = arith.mulf %105, %102 : vector<32x64xf32>
    %107 = arith.mulf %106, %102 : vector<32x64xf32>
    %108 = arith.mulf %107, %102 : vector<32x64xf32>
    %109 = arith.addf %102, %108 : vector<32x64xf32>
    %cst_37 = arith.constant 0.797884583 : f32
    %110 = vector.broadcast %cst_37 : f32 to vector<32x64xf32>
    %111 = arith.mulf %110, %109 : vector<32x64xf32>
    %112 = math.tanh %111 : vector<32x64xf32>
    %cst_38 = arith.constant 1.000000e+00 : f32
    %113 = vector.broadcast %cst_38 : f32 to vector<32x64xf32>
    %114 = arith.addf %113, %112 : vector<32x64xf32>
    %115 = arith.mulf %104, %114 : vector<32x64xf32>
    %c0_39 = arith.constant 0 : index
    %c0_40 = arith.constant 0 : index
    %c0_41 = arith.constant 0 : index
    %116 = vector.load %arg6[%c0_39, %c0_40, %c0_41] : memref<2x64x32xbf16, #tpu.memory_space<vmem>>, vector<1x64x32xbf16>
    %117 = vector.shape_cast %116 : vector<1x64x32xbf16> to vector<64x32xbf16>
    %118 = arith.truncf %115 : vector<32x64xf32> to vector<32x64xbf16>
    %cst_42 = arith.constant dense<0.000000e+00> : vector<32x32xf32>
    %119 = tpu.matmul %118, %117, %cst_42 {dimension_numbers = #tpu.dot_dimension_numbers<[1], [0], [0], [1], [0, 0, 1, 1], [], []>} : vector<32x64xbf16>, vector<64x32xbf16>, vector<32x32xf32> -> vector<32x32xf32>
    %120 = arith.addf %71, %119 : vector<32x32xf32>
    %121 = vector.extract_strided_slice %95 {offsets = [1, 0], sizes = [1, 32], strides = [1, 1]} : vector<2x64xf32> to vector<1x32xf32>
    %122 = vector.broadcast %121 : vector<1x32xf32> to vector<32x32xf32>
    %123 = arith.addf %120, %122 : vector<32x32xf32>
    %c1 = arith.constant 1 : index
    %c0_43 = arith.constant 0 : index
    %c0_44 = arith.constant 0 : index
    %124 = vector.load %arg2[%c1, %c0_43, %c0_44] : memref<2x4x32xf32, #tpu.memory_space<vmem>>, vector<1x4x32xf32>
    %125 = vector.shape_cast %124 : vector<1x4x32xf32> to vector<4x32xf32>
    %126 = vector.extract_strided_slice %125 {offsets = [0, 0], sizes = [1, 32], strides = [1, 1]} : vector<4x32xf32> to vector<1x32xf32>
    %127 = vector.extract_strided_slice %125 {offsets = [1, 0], sizes = [1, 32], strides = [1, 1]} : vector<4x32xf32> to vector<1x32xf32>
    %cst_45 = arith.constant dense<0.000000e+00> : vector<32xf32>
    %128 = vector.multi_reduction <add>, %123, %cst_45 [1] : vector<32x32xf32> to vector<32xf32>
    %129 = vector.shape_cast %128 : vector<32xf32> to vector<32x1xf32>
    %cst_46 = arith.constant 3.200000e+01 : f32
    %130 = vector.broadcast %cst_46 : f32 to vector<32x1xf32>
    %131 = arith.divf %129, %130 : vector<32x1xf32>
    %132 = vector.broadcast %131 : vector<32x1xf32> to vector<32x32xf32>
    %133 = arith.subf %123, %132 : vector<32x32xf32>
    %134 = arith.mulf %133, %133 : vector<32x32xf32>
    %cst_47 = arith.constant dense<0.000000e+00> : vector<32xf32>
    %135 = vector.multi_reduction <add>, %134, %cst_47 [1] : vector<32x32xf32> to vector<32xf32>
    %136 = vector.shape_cast %135 : vector<32xf32> to vector<32x1xf32>
    %cst_48 = arith.constant 3.200000e+01 : f32
    %137 = vector.broadcast %cst_48 : f32 to vector<32x1xf32>
    %138 = arith.divf %136, %137 : vector<32x1xf32>
    %cst_49 = arith.constant 9.99999974E-6 : f32
    %139 = vector.broadcast %cst_49 : f32 to vector<32x1xf32>
    %140 = arith.addf %138, %139 : vector<32x1xf32>
    %141 = math.rsqrt %140 : vector<32x1xf32>
    %142 = vector.broadcast %141 : vector<32x1xf32> to vector<32x32xf32>
    %143 = arith.mulf %133, %142 : vector<32x32xf32>
    %144 = vector.broadcast %126 : vector<1x32xf32> to vector<32x32xf32>
    %145 = arith.mulf %143, %144 : vector<32x32xf32>
    %146 = vector.broadcast %127 : vector<1x32xf32> to vector<32x32xf32>
    %147 = arith.addf %145, %146 : vector<32x32xf32>
    %c1_50 = arith.constant 1 : index
    %c0_51 = arith.constant 0 : index
    %c0_52 = arith.constant 0 : index
    %148 = vector.load %arg3[%c1_50, %c0_51, %c0_52] : memref<2x32x48xbf16, #tpu.memory_space<vmem>>, vector<1x32x48xbf16>
    %149 = vector.shape_cast %148 : vector<1x32x48xbf16> to vector<32x48xbf16>
    %150 = arith.truncf %147 : vector<32x32xf32> to vector<32x32xbf16>
    %cst_53 = arith.constant dense<0.000000e+00> : vector<32x48xf32>
    %151 = tpu.matmul %150, %149, %cst_53 {dimension_numbers = #tpu.dot_dimension_numbers<[1], [0], [0], [1], [0, 0, 1, 1], [], []>} : vector<32x32xbf16>, vector<32x48xbf16>, vector<32x48xf32> -> vector<32x48xf32>
    %152 = vector.shape_cast %151 : vector<32x48xf32> to vector<2x16x48xf32>
    %153 = vector.extract_strided_slice %152 {offsets = [0, 0, 0], sizes = [2, 16, 8], strides = [1, 1, 1]} : vector<2x16x48xf32> to vector<2x16x8xf32>
    %154 = vector.extract_strided_slice %152 {offsets = [0, 0, 8], sizes = [2, 16, 8], strides = [1, 1, 1]} : vector<2x16x48xf32> to vector<2x16x8xf32>
    %155 = tpu.concatenate %153, %154 in 0 : vector<2x16x8xf32>, vector<2x16x8xf32> -> vector<4x16x8xf32>
    %156 = vector.extract_strided_slice %152 {offsets = [0, 0, 16], sizes = [2, 16, 8], strides = [1, 1, 1]} : vector<2x16x48xf32> to vector<2x16x8xf32>
    %157 = vector.extract_strided_slice %152 {offsets = [0, 0, 24], sizes = [2, 16, 8], strides = [1, 1, 1]} : vector<2x16x48xf32> to vector<2x16x8xf32>
    %158 = tpu.concatenate %156, %157 in 0 : vector<2x16x8xf32>, vector<2x16x8xf32> -> vector<4x16x8xf32>
    %159 = vector.extract_strided_slice %152 {offsets = [0, 0, 32], sizes = [2, 16, 8], strides = [1, 1, 1]} : vector<2x16x48xf32> to vector<2x16x8xf32>
    %160 = vector.extract_strided_slice %152 {offsets = [0, 0, 40], sizes = [2, 16, 8], strides = [1, 1, 1]} : vector<2x16x48xf32> to vector<2x16x8xf32>
    %161 = tpu.concatenate %159, %160 in 0 : vector<2x16x8xf32>, vector<2x16x8xf32> -> vector<4x16x8xf32>
    %cst_54 = arith.constant 0.353553385 : f32
    %162 = vector.broadcast %cst_54 : f32 to vector<4x16x8xf32>
    %163 = arith.mulf %155, %162 : vector<4x16x8xf32>
    %164 = arith.truncf %163 : vector<4x16x8xf32> to vector<4x16x8xbf16>
    %165 = arith.truncf %158 : vector<4x16x8xf32> to vector<4x16x8xbf16>
    "tpu.trace_start"() <{level = 10 : i32, message = "bqd,bkd->bqk"}> : () -> ()
    %cst_55 = arith.constant dense<0.000000e+00> : vector<4x16x16xf32>
    %166 = tpu.matmul %164, %165, %cst_55 {dimension_numbers = #tpu.dot_dimension_numbers<[2], [2], [1], [1], [0, 0, 0, 1, 1, 1], [0], [0]>} : vector<4x16x8xbf16>, vector<4x16x8xbf16>, vector<4x16x16xf32> -> vector<4x16x16xf32>
    "tpu.trace_stop"() : () -> ()
    %cst_56 = arith.constant dense<0xFF800000> : vector<4x16xf32>
    %167 = vector.multi_reduction <maximumf>, %166, %cst_56 [2] : vector<4x16x16xf32> to vector<4x16xf32>
    %168 = vector.shape_cast %167 : vector<4x16xf32> to vector<4x16x1xf32>
    %169 = vector.broadcast %168 : vector<4x16x1xf32> to vector<4x16x16xf32>
    %170 = arith.subf %166, %169 : vector<4x16x16xf32>
    %171 = math.exp %170 : vector<4x16x16xf32>
    %cst_57 = arith.constant dense<0.000000e+00> : vector<4x16xf32>
    %172 = vector.multi_reduction <add>, %171, %cst_57 [2] : vector<4x16x16xf32> to vector<4x16xf32>
    %173 = vector.shape_cast %172 : vector<4x16xf32> to vector<4x16x1xf32>
    %174 = tpu.reciprocal %173 {approx = true} : vector<4x16x1xf32> -> vector<4x16x1xf32>
    %175 = vector.broadcast %174 : vector<4x16x1xf32> to vector<4x16x16xf32>
    %176 = arith.mulf %171, %175 : vector<4x16x16xf32>
    %177 = arith.truncf %176 : vector<4x16x16xf32> to vector<4x16x16xbf16>
    %178 = arith.truncf %161 : vector<4x16x8xf32> to vector<4x16x8xbf16>
    "tpu.trace_start"() <{level = 10 : i32, message = "bqk,bkd->bqd"}> : () -> ()
    %cst_58 = arith.constant dense<0.000000e+00> : vector<4x16x8xf32>
    %179 = tpu.matmul %177, %178, %cst_58 {dimension_numbers = #tpu.dot_dimension_numbers<[2], [1], [1], [2], [0, 0, 0, 1, 1, 2], [0], [0]>} : vector<4x16x16xbf16>, vector<4x16x8xbf16>, vector<4x16x8xf32> -> vector<4x16x8xf32>
    "tpu.trace_stop"() : () -> ()
    %c1_59 = arith.constant 1 : index
    %c0_60 = arith.constant 0 : index
    %c0_61 = arith.constant 0 : index
    %180 = vector.load %arg4[%c1_59, %c0_60, %c0_61] : memref<2x16x32xbf16, #tpu.memory_space<vmem>>, vector<1x16x32xbf16>
    %181 = vector.shape_cast %180 : vector<1x16x32xbf16> to vector<16x32xbf16>
    %182 = vector.extract_strided_slice %179 {offsets = [0, 0, 0], sizes = [2, 16, 8], strides = [1, 1, 1]} : vector<4x16x8xf32> to vector<2x16x8xf32>
    %183 = vector.shape_cast %182 : vector<2x16x8xf32> to vector<32x8xf32>
    %184 = vector.extract_strided_slice %181 {offsets = [0, 0], sizes = [8, 32], strides = [1, 1]} : vector<16x32xbf16> to vector<8x32xbf16>
    %185 = arith.truncf %183 : vector<32x8xf32> to vector<32x8xbf16>
    %cst_62 = arith.constant dense<0.000000e+00> : vector<32x32xf32>
    %186 = tpu.matmul %185, %184, %cst_62 {dimension_numbers = #tpu.dot_dimension_numbers<[1], [0], [0], [1], [0, 0, 1, 1], [], []>} : vector<32x8xbf16>, vector<8x32xbf16>, vector<32x32xf32> -> vector<32x32xf32>
    %187 = vector.extract_strided_slice %179 {offsets = [2, 0, 0], sizes = [2, 16, 8], strides = [1, 1, 1]} : vector<4x16x8xf32> to vector<2x16x8xf32>
    %188 = vector.shape_cast %187 : vector<2x16x8xf32> to vector<32x8xf32>
    %189 = vector.extract_strided_slice %181 {offsets = [8, 0], sizes = [8, 32], strides = [1, 1]} : vector<16x32xbf16> to vector<8x32xbf16>
    %190 = arith.truncf %188 : vector<32x8xf32> to vector<32x8xbf16>
    %cst_63 = arith.constant dense<0.000000e+00> : vector<32x32xf32>
    %191 = tpu.matmul %190, %189, %cst_63 {dimension_numbers = #tpu.dot_dimension_numbers<[1], [0], [0], [1], [0, 0, 1, 1], [], []>} : vector<32x8xbf16>, vector<8x32xbf16>, vector<32x32xf32> -> vector<32x32xf32>
    %192 = arith.addf %186, %191 : vector<32x32xf32>
    %193 = arith.addf %123, %192 : vector<32x32xf32>
    %194 = vector.extract_strided_slice %125 {offsets = [2, 0], sizes = [1, 32], strides = [1, 1]} : vector<4x32xf32> to vector<1x32xf32>
    %195 = vector.extract_strided_slice %125 {offsets = [3, 0], sizes = [1, 32], strides = [1, 1]} : vector<4x32xf32> to vector<1x32xf32>
    %cst_64 = arith.constant dense<0.000000e+00> : vector<32xf32>
    %196 = vector.multi_reduction <add>, %193, %cst_64 [1] : vector<32x32xf32> to vector<32xf32>
    %197 = vector.shape_cast %196 : vector<32xf32> to vector<32x1xf32>
    %cst_65 = arith.constant 3.200000e+01 : f32
    %198 = vector.broadcast %cst_65 : f32 to vector<32x1xf32>
    %199 = arith.divf %197, %198 : vector<32x1xf32>
    %200 = vector.broadcast %199 : vector<32x1xf32> to vector<32x32xf32>
    %201 = arith.subf %193, %200 : vector<32x32xf32>
    %202 = arith.mulf %201, %201 : vector<32x32xf32>
    %cst_66 = arith.constant dense<0.000000e+00> : vector<32xf32>
    %203 = vector.multi_reduction <add>, %202, %cst_66 [1] : vector<32x32xf32> to vector<32xf32>
    %204 = vector.shape_cast %203 : vector<32xf32> to vector<32x1xf32>
    %cst_67 = arith.constant 3.200000e+01 : f32
    %205 = vector.broadcast %cst_67 : f32 to vector<32x1xf32>
    %206 = arith.divf %204, %205 : vector<32x1xf32>
    %cst_68 = arith.constant 9.99999974E-6 : f32
    %207 = vector.broadcast %cst_68 : f32 to vector<32x1xf32>
    %208 = arith.addf %206, %207 : vector<32x1xf32>
    %209 = math.rsqrt %208 : vector<32x1xf32>
    %210 = vector.broadcast %209 : vector<32x1xf32> to vector<32x32xf32>
    %211 = arith.mulf %201, %210 : vector<32x32xf32>
    %212 = vector.broadcast %194 : vector<1x32xf32> to vector<32x32xf32>
    %213 = arith.mulf %211, %212 : vector<32x32xf32>
    %214 = vector.broadcast %195 : vector<1x32xf32> to vector<32x32xf32>
    %215 = arith.addf %213, %214 : vector<32x32xf32>
    %c1_69 = arith.constant 1 : index
    %c0_70 = arith.constant 0 : index
    %c0_71 = arith.constant 0 : index
    %216 = vector.load %arg7[%c1_69, %c0_70, %c0_71] : memref<2x2x64xf32, #tpu.memory_space<vmem>>, vector<1x2x64xf32>
    %217 = vector.shape_cast %216 : vector<1x2x64xf32> to vector<2x64xf32>
    %c1_72 = arith.constant 1 : index
    %c0_73 = arith.constant 0 : index
    %c0_74 = arith.constant 0 : index
    %218 = vector.load %arg5[%c1_72, %c0_73, %c0_74] : memref<2x32x64xbf16, #tpu.memory_space<vmem>>, vector<1x32x64xbf16>
    %219 = vector.shape_cast %218 : vector<1x32x64xbf16> to vector<32x64xbf16>
    %220 = arith.truncf %215 : vector<32x32xf32> to vector<32x32xbf16>
    %cst_75 = arith.constant dense<0.000000e+00> : vector<32x64xf32>
    %221 = tpu.matmul %220, %219, %cst_75 {dimension_numbers = #tpu.dot_dimension_numbers<[1], [0], [0], [1], [0, 0, 1, 1], [], []>} : vector<32x32xbf16>, vector<32x64xbf16>, vector<32x64xf32> -> vector<32x64xf32>
    %222 = vector.extract_strided_slice %217 {offsets = [0, 0], sizes = [1, 64], strides = [1, 1]} : vector<2x64xf32> to vector<1x64xf32>
    %223 = vector.broadcast %222 : vector<1x64xf32> to vector<32x64xf32>
    %224 = arith.addf %221, %223 : vector<32x64xf32>
    %cst_76 = arith.constant 5.000000e-01 : f32
    %225 = vector.broadcast %cst_76 : f32 to vector<32x64xf32>
    %226 = arith.mulf %225, %224 : vector<32x64xf32>
    %cst_77 = arith.constant 4.471500e-02 : f32
    %227 = vector.broadcast %cst_77 : f32 to vector<32x64xf32>
    %228 = arith.mulf %227, %224 : vector<32x64xf32>
    %229 = arith.mulf %228, %224 : vector<32x64xf32>
    %230 = arith.mulf %229, %224 : vector<32x64xf32>
    %231 = arith.addf %224, %230 : vector<32x64xf32>
    %cst_78 = arith.constant 0.797884583 : f32
    %232 = vector.broadcast %cst_78 : f32 to vector<32x64xf32>
    %233 = arith.mulf %232, %231 : vector<32x64xf32>
    %234 = math.tanh %233 : vector<32x64xf32>
    %cst_79 = arith.constant 1.000000e+00 : f32
    %235 = vector.broadcast %cst_79 : f32 to vector<32x64xf32>
    %236 = arith.addf %235, %234 : vector<32x64xf32>
    %237 = arith.mulf %226, %236 : vector<32x64xf32>
    %c1_80 = arith.constant 1 : index
    %c0_81 = arith.constant 0 : index
    %c0_82 = arith.constant 0 : index
    %238 = vector.load %arg6[%c1_80, %c0_81, %c0_82] : memref<2x64x32xbf16, #tpu.memory_space<vmem>>, vector<1x64x32xbf16>
    %239 = vector.shape_cast %238 : vector<1x64x32xbf16> to vector<64x32xbf16>
    %240 = arith.truncf %237 : vector<32x64xf32> to vector<32x64xbf16>
    %cst_83 = arith.constant dense<0.000000e+00> : vector<32x32xf32>
    %241 = tpu.matmul %240, %239, %cst_83 {dimension_numbers = #tpu.dot_dimension_numbers<[1], [0], [0], [1], [0, 0, 1, 1], [], []>} : vector<32x64xbf16>, vector<64x32xbf16>, vector<32x32xf32> -> vector<32x32xf32>
    %242 = arith.addf %193, %241 : vector<32x32xf32>
    %243 = vector.extract_strided_slice %217 {offsets = [1, 0], sizes = [1, 32], strides = [1, 1]} : vector<2x64xf32> to vector<1x32xf32>
    %244 = vector.broadcast %243 : vector<1x32xf32> to vector<32x32xf32>
    %245 = arith.addf %242, %244 : vector<32x32xf32>
    %c0_84 = arith.constant 0 : index
    %c0_85 = arith.constant 0 : index
    %246 = vector.load %arg8[%c0_84, %c0_85] : memref<2x32xf32, #tpu.memory_space<vmem>>, vector<2x32xf32>
    %247 = vector.extract_strided_slice %246 {offsets = [0, 0], sizes = [1, 32], strides = [1, 1]} : vector<2x32xf32> to vector<1x32xf32>
    %248 = vector.extract_strided_slice %246 {offsets = [1, 0], sizes = [1, 32], strides = [1, 1]} : vector<2x32xf32> to vector<1x32xf32>
    %cst_86 = arith.constant dense<0.000000e+00> : vector<32xf32>
    %249 = vector.multi_reduction <add>, %245, %cst_86 [1] : vector<32x32xf32> to vector<32xf32>
    %250 = vector.shape_cast %249 : vector<32xf32> to vector<32x1xf32>
    %cst_87 = arith.constant 3.200000e+01 : f32
    %251 = vector.broadcast %cst_87 : f32 to vector<32x1xf32>
    %252 = arith.divf %250, %251 : vector<32x1xf32>
    %253 = vector.broadcast %252 : vector<32x1xf32> to vector<32x32xf32>
    %254 = arith.subf %245, %253 : vector<32x32xf32>
    %255 = arith.mulf %254, %254 : vector<32x32xf32>
    %cst_88 = arith.constant dense<0.000000e+00> : vector<32xf32>
    %256 = vector.multi_reduction <add>, %255, %cst_88 [1] : vector<32x32xf32> to vector<32xf32>
    %257 = vector.shape_cast %256 : vector<32xf32> to vector<32x1xf32>
    %cst_89 = arith.constant 3.200000e+01 : f32
    %258 = vector.broadcast %cst_89 : f32 to vector<32x1xf32>
    %259 = arith.divf %257, %258 : vector<32x1xf32>
    %cst_90 = arith.constant 9.99999974E-6 : f32
    %260 = vector.broadcast %cst_90 : f32 to vector<32x1xf32>
    %261 = arith.addf %259, %260 : vector<32x1xf32>
    %262 = math.rsqrt %261 : vector<32x1xf32>
    %263 = vector.broadcast %262 : vector<32x1xf32> to vector<32x32xf32>
    %264 = arith.mulf %254, %263 : vector<32x32xf32>
    %265 = vector.broadcast %247 : vector<1x32xf32> to vector<32x32xf32>
    %266 = arith.mulf %264, %265 : vector<32x32xf32>
    %267 = vector.broadcast %248 : vector<1x32xf32> to vector<32x32xf32>
    %268 = arith.addf %266, %267 : vector<32x32xf32>
    %c0_91 = arith.constant 0 : index
    %c0_92 = arith.constant 0 : index
    %269 = vector.load %arg9[%c0_91, %c0_92] : memref<2x32xf32, #tpu.memory_space<vmem>>, vector<2x32xf32>
    %270 = vector.extract_strided_slice %269 {offsets = [0, 0], sizes = [1, 32], strides = [1, 1]} : vector<2x32xf32> to vector<1x32xf32>
    %271 = vector.extract_strided_slice %269 {offsets = [1, 0], sizes = [1, 32], strides = [1, 1]} : vector<2x32xf32> to vector<1x32xf32>
    %cst_93 = arith.constant dense<0.000000e+00> : vector<32xf32>
    %272 = vector.multi_reduction <add>, %268, %cst_93 [1] : vector<32x32xf32> to vector<32xf32>
    %273 = vector.shape_cast %272 : vector<32xf32> to vector<32x1xf32>
    %cst_94 = arith.constant 3.200000e+01 : f32
    %274 = vector.broadcast %cst_94 : f32 to vector<32x1xf32>
    %275 = arith.divf %273, %274 : vector<32x1xf32>
    %276 = vector.broadcast %275 : vector<32x1xf32> to vector<32x32xf32>
    %277 = arith.subf %268, %276 : vector<32x32xf32>
    %278 = arith.mulf %277, %277 : vector<32x32xf32>
    %cst_95 = arith.constant dense<0.000000e+00> : vector<32xf32>
    %279 = vector.multi_reduction <add>, %278, %cst_95 [1] : vector<32x32xf32> to vector<32xf32>
    %280 = vector.shape_cast %279 : vector<32xf32> to vector<32x1xf32>
    %cst_96 = arith.constant 3.200000e+01 : f32
    %281 = vector.broadcast %cst_96 : f32 to vector<32x1xf32>
    %282 = arith.divf %280, %281 : vector<32x1xf32>
    %cst_97 = arith.constant 9.99999974E-6 : f32
    %283 = vector.broadcast %cst_97 : f32 to vector<32x1xf32>
    %284 = arith.addf %282, %283 : vector<32x1xf32>
    %285 = math.rsqrt %284 : vector<32x1xf32>
    %286 = vector.broadcast %285 : vector<32x1xf32> to vector<32x32xf32>
    %287 = arith.mulf %277, %286 : vector<32x32xf32>
    %288 = vector.broadcast %270 : vector<1x32xf32> to vector<32x32xf32>
    %289 = arith.mulf %287, %288 : vector<32x32xf32>
    %290 = vector.broadcast %271 : vector<1x32xf32> to vector<32x32xf32>
    %291 = arith.addf %289, %290 : vector<32x32xf32>
    %c0_98 = arith.constant 0 : index
    %c0_99 = arith.constant 0 : index
    %292 = vector.load %arg11[%c0_98, %c0_99] : memref<3x48xf32, #tpu.memory_space<vmem>>, vector<3x48xf32>
    %c0_100 = arith.constant 0 : index
    %c0_101 = arith.constant 0 : index
    %293 = vector.load %arg10[%c0_100, %c0_101] : memref<32x48xbf16, #tpu.memory_space<vmem>>, vector<32x48xbf16>
    %294 = arith.truncf %291 : vector<32x32xf32> to vector<32x32xbf16>
    %cst_102 = arith.constant dense<0.000000e+00> : vector<32x48xf32>
    %295 = tpu.matmul %294, %293, %cst_102 {dimension_numbers = #tpu.dot_dimension_numbers<[1], [0], [0], [1], [0, 0, 1, 1], [], []>} : vector<32x32xbf16>, vector<32x48xbf16>, vector<32x48xf32> -> vector<32x48xf32>
    %296 = vector.extract_strided_slice %292 {offsets = [0, 0], sizes = [1, 48], strides = [1, 1]} : vector<3x48xf32> to vector<1x48xf32>
    %297 = vector.broadcast %296 : vector<1x48xf32> to vector<32x48xf32>
    %298 = arith.addf %295, %297 : vector<32x48xf32>
    %299 = vector.extract_strided_slice %292 {offsets = [1, 0], sizes = [1, 48], strides = [1, 1]} : vector<3x48xf32> to vector<1x48xf32>
    %300 = vector.extract_strided_slice %292 {offsets = [2, 0], sizes = [1, 48], strides = [1, 1]} : vector<3x48xf32> to vector<1x48xf32>
    %cst_103 = arith.constant dense<0.000000e+00> : vector<32xf32>
    %301 = vector.multi_reduction <add>, %298, %cst_103 [1] : vector<32x48xf32> to vector<32xf32>
    %302 = vector.shape_cast %301 : vector<32xf32> to vector<32x1xf32>
    %cst_104 = arith.constant 4.800000e+01 : f32
    %303 = vector.broadcast %cst_104 : f32 to vector<32x1xf32>
    %304 = arith.divf %302, %303 : vector<32x1xf32>
    %305 = vector.broadcast %304 : vector<32x1xf32> to vector<32x48xf32>
    %306 = arith.subf %298, %305 : vector<32x48xf32>
    %307 = arith.mulf %306, %306 : vector<32x48xf32>
    %cst_105 = arith.constant dense<0.000000e+00> : vector<32xf32>
    %308 = vector.multi_reduction <add>, %307, %cst_105 [1] : vector<32x48xf32> to vector<32xf32>
    %309 = vector.shape_cast %308 : vector<32xf32> to vector<32x1xf32>
    %cst_106 = arith.constant 4.800000e+01 : f32
    %310 = vector.broadcast %cst_106 : f32 to vector<32x1xf32>
    %311 = arith.divf %309, %310 : vector<32x1xf32>
    %cst_107 = arith.constant 9.99999974E-6 : f32
    %312 = vector.broadcast %cst_107 : f32 to vector<32x1xf32>
    %313 = arith.addf %311, %312 : vector<32x1xf32>
    %314 = math.rsqrt %313 : vector<32x1xf32>
    %315 = vector.broadcast %314 : vector<32x1xf32> to vector<32x48xf32>
    %316 = arith.mulf %306, %315 : vector<32x48xf32>
    %317 = vector.broadcast %299 : vector<1x48xf32> to vector<32x48xf32>
    %318 = arith.mulf %316, %317 : vector<32x48xf32>
    %319 = vector.broadcast %300 : vector<1x48xf32> to vector<32x48xf32>
    %320 = arith.addf %318, %319 : vector<32x48xf32>
    %321 = vector.shape_cast %320 : vector<32x48xf32> to vector<2x16x48xf32>
    %c0_108 = arith.constant 0 : index
    %c0_109 = arith.constant 0 : index
    %c0_110 = arith.constant 0 : index
    %322 = vector.load %arg12[%c0_108, %c0_109, %c0_110] : memref<2x16x48xf32, #tpu.memory_space<vmem>>, vector<2x16x48xf32>
    tpu.vector_store %arg12[%c0_108, %c0_109, %c0_110], %321 {strides = array<i32>} : memref<2x16x48xf32, #tpu.memory_space<vmem>>, vector<2x16x48xf32>,
    return
  }
  func.func @transform_0(%arg0: i32) -> (i32, i32, i32) {
    %c0_i32 = arith.constant 0 : i32
    %c0_i32_0 = arith.constant 0 : i32
    %c0_i32_1 = arith.constant 0 : i32
    return %arg0, %c0_i32, %c0_i32_0 : i32, i32, i32
  }
  func.func @transform_1(%arg0: i32) -> (i32, i32, i32) {
    %c0_i32 = arith.constant 0 : i32
    %c0_i32_0 = arith.constant 0 : i32
    %c0_i32_1 = arith.constant 0 : i32
    %c0_i32_2 = arith.constant 0 : i32
    return %c0_i32, %c0_i32_0, %c0_i32_1 : i32, i32, i32
  }
  func.func @transform_2(%arg0: i32) -> (i32, i32, i32) {
    %c0_i32 = arith.constant 0 : i32
    %c0_i32_0 = arith.constant 0 : i32
    %c0_i32_1 = arith.constant 0 : i32
    %c0_i32_2 = arith.constant 0 : i32
    return %c0_i32, %c0_i32_0, %c0_i32_1 : i32, i32, i32
  }
  func.func @transform_3(%arg0: i32) -> (i32, i32, i32) {
    %c0_i32 = arith.constant 0 : i32
    %c0_i32_0 = arith.constant 0 : i32
    %c0_i32_1 = arith.constant 0 : i32
    %c0_i32_2 = arith.constant 0 : i32
    return %c0_i32, %c0_i32_0, %c0_i32_1 : i32, i32, i32
  }
  func.func @transform_4(%arg0: i32) -> (i32, i32, i32) {
    %c0_i32 = arith.constant 0 : i32
    %c0_i32_0 = arith.constant 0 : i32
    %c0_i32_1 = arith.constant 0 : i32
    %c0_i32_2 = arith.constant 0 : i32
    return %c0_i32, %c0_i32_0, %c0_i32_1 : i32, i32, i32
  }
  func.func @transform_5(%arg0: i32) -> (i32, i32, i32) {
    %c0_i32 = arith.constant 0 : i32
    %c0_i32_0 = arith.constant 0 : i32
    %c0_i32_1 = arith.constant 0 : i32
    %c0_i32_2 = arith.constant 0 : i32
    return %c0_i32, %c0_i32_0, %c0_i32_1 : i32, i32, i32
  }
  func.func @transform_6(%arg0: i32) -> (i32, i32, i32) {
    %c0_i32 = arith.constant 0 : i32
    %c0_i32_0 = arith.constant 0 : i32
    %c0_i32_1 = arith.constant 0 : i32
    %c0_i32_2 = arith.constant 0 : i32
    return %c0_i32, %c0_i32_0, %c0_i32_1 : i32, i32, i32
  }
  func.func @transform_7(%arg0: i32) -> (i32, i32) {
    %c0_i32 = arith.constant 0 : i32
    %c0_i32_0 = arith.constant 0 : i32
    %c0_i32_1 = arith.constant 0 : i32
    return %c0_i32, %c0_i32_0 : i32, i32
  }
  func.func @transform_8(%arg0: i32) -> (i32, i32) {
    %c0_i32 = arith.constant 0 : i32
    %c0_i32_0 = arith.constant 0 : i32
    %c0_i32_1 = arith.constant 0 : i32
    return %c0_i32, %c0_i32_0 : i32, i32
  }
  func.func @transform_9(%arg0: i32) -> (i32, i32) {
    %c0_i32 = arith.constant 0 : i32
    %c0_i32_0 = arith.constant 0 : i32
    %c0_i32_1 = arith.constant 0 : i32
    return %c0_i32, %c0_i32_0 : i32, i32
  }
  func.func @transform_10(%arg0: i32) -> (i32, i32) {
    %c0_i32 = arith.constant 0 : i32
    %c0_i32_0 = arith.constant 0 : i32
    %c0_i32_1 = arith.constant 0 : i32
    return %c0_i32, %c0_i32_0 : i32, i32
  }
  func.func @transform_11(%arg0: i32) -> (i32, i32, i32) {
    %c0_i32 = arith.constant 0 : i32
    %c0_i32_0 = arith.constant 0 : i32
    %c0_i32_1 = arith.constant 0 : i32
    return %arg0, %c0_i32, %c0_i32_0 : i32, i32, i32
  }
}

module attributes {stable_mosaic.version = 11 : i64} {
  func.func @_text_dec_kernel(%arg0: i32, %arg1: memref<2x8x16xf32, #tpu.memory_space<vmem>>, %arg2: memref<2x4x16xf32, #tpu.memory_space<vmem>>, %arg3: memref<2x16x48xbf16, #tpu.memory_space<vmem>>, %arg4: memref<2x16x16xbf16, #tpu.memory_space<vmem>>, %arg5: memref<2x16x64xbf16, #tpu.memory_space<vmem>>, %arg6: memref<2x64x16xbf16, #tpu.memory_space<vmem>>, %arg7: memref<2x2x64xf32, #tpu.memory_space<vmem>>, %arg8: memref<2x16xf32, #tpu.memory_space<vmem>>, %arg9: memref<32x16xbf16, #tpu.memory_space<vmem>>, %arg10: memref<1x32xf32, #tpu.memory_space<vmem>>, %arg11: memref<2x8x32xf32, #tpu.memory_space<vmem>>) attributes {dimension_semantics = [#tpu.dimension_semantics<arbitrary>], iteration_bounds = array<i64: 1>, scalar_prefetch = 0 : i64, scratch_operands = 0 : i64, tpu.core_type = #tpu.core_type<tc>, window_params = [{transform_indices = @transform_0, window_bounds = array<i64: 2, 8, 16>}, {pipeline_mode = #tpu.pipeline_mode<synchronous>, transform_indices = @transform_1, window_bounds = array<i64: 2, 4, 16>}, {pipeline_mode = #tpu.pipeline_mode<synchronous>, transform_indices = @transform_2, window_bounds = array<i64: 2, 16, 48>}, {pipeline_mode = #tpu.pipeline_mode<synchronous>, transform_indices = @transform_3, window_bounds = array<i64: 2, 16, 16>}, {pipeline_mode = #tpu.pipeline_mode<synchronous>, transform_indices = @transform_4, window_bounds = array<i64: 2, 16, 64>}, {pipeline_mode = #tpu.pipeline_mode<synchronous>, transform_indices = @transform_5, window_bounds = array<i64: 2, 64, 16>}, {pipeline_mode = #tpu.pipeline_mode<synchronous>, transform_indices = @transform_6, window_bounds = array<i64: 2, 2, 64>}, {pipeline_mode = #tpu.pipeline_mode<synchronous>, transform_indices = @transform_7, window_bounds = array<i64: 2, 16>}, {pipeline_mode = #tpu.pipeline_mode<synchronous>, transform_indices = @transform_8, window_bounds = array<i64: 32, 16>}, {pipeline_mode = #tpu.pipeline_mode<synchronous>, transform_indices = @transform_9, window_bounds = array<i64: 1, 32>}, {transform_indices = @transform_10, window_bounds = array<i64: 2, 8, 32>}]} {
    %c0 = arith.constant 0 : index
    %c0_0 = arith.constant 0 : index
    %c0_1 = arith.constant 0 : index
    %0 = vector.load %arg1[%c0, %c0_0, %c0_1] : memref<2x8x16xf32, #tpu.memory_space<vmem>>, vector<2x8x16xf32>
    %1 = vector.shape_cast %0 : vector<2x8x16xf32> to vector<16x16xf32>
    %c0_2 = arith.constant 0 : index
    %c0_3 = arith.constant 0 : index
    %c0_4 = arith.constant 0 : index
    %2 = vector.load %arg2[%c0_2, %c0_3, %c0_4] : memref<2x4x16xf32, #tpu.memory_space<vmem>>, vector<1x4x16xf32>
    %3 = vector.shape_cast %2 : vector<1x4x16xf32> to vector<4x16xf32>
    %4 = vector.extract_strided_slice %3 {offsets = [0, 0], sizes = [1, 16], strides = [1, 1]} : vector<4x16xf32> to vector<1x16xf32>
    %5 = vector.extract_strided_slice %3 {offsets = [1, 0], sizes = [1, 16], strides = [1, 1]} : vector<4x16xf32> to vector<1x16xf32>
    %cst = arith.constant dense<0.000000e+00> : vector<16xf32>
    %6 = vector.multi_reduction <add>, %1, %cst [1] : vector<16x16xf32> to vector<16xf32>
    %7 = vector.shape_cast %6 : vector<16xf32> to vector<16x1xf32>
    %cst_5 = arith.constant 1.600000e+01 : f32
    %8 = vector.broadcast %cst_5 : f32 to vector<16x1xf32>
    %9 = arith.divf %7, %8 : vector<16x1xf32>
    %10 = vector.broadcast %9 : vector<16x1xf32> to vector<16x16xf32>
    %11 = arith.subf %1, %10 : vector<16x16xf32>
    %12 = arith.mulf %11, %11 : vector<16x16xf32>
    %cst_6 = arith.constant dense<0.000000e+00> : vector<16xf32>
    %13 = vector.multi_reduction <add>, %12, %cst_6 [1] : vector<16x16xf32> to vector<16xf32>
    %14 = vector.shape_cast %13 : vector<16xf32> to vector<16x1xf32>
    %cst_7 = arith.constant 1.600000e+01 : f32
    %15 = vector.broadcast %cst_7 : f32 to vector<16x1xf32>
    %16 = arith.divf %14, %15 : vector<16x1xf32>
    %cst_8 = arith.constant 9.99999974E-6 : f32
    %17 = vector.broadcast %cst_8 : f32 to vector<16x1xf32>
    %18 = arith.addf %16, %17 : vector<16x1xf32>
    %19 = math.rsqrt %18 : vector<16x1xf32>
    %20 = vector.broadcast %19 : vector<16x1xf32> to vector<16x16xf32>
    %21 = arith.mulf %11, %20 : vector<16x16xf32>
    %22 = vector.broadcast %4 : vector<1x16xf32> to vector<16x16xf32>
    %23 = arith.mulf %21, %22 : vector<16x16xf32>
    %24 = vector.broadcast %5 : vector<1x16xf32> to vector<16x16xf32>
    %25 = arith.addf %23, %24 : vector<16x16xf32>
    %c0_9 = arith.constant 0 : index
    %c0_10 = arith.constant 0 : index
    %c0_11 = arith.constant 0 : index
    %26 = vector.load %arg3[%c0_9, %c0_10, %c0_11] : memref<2x16x48xbf16, #tpu.memory_space<vmem>>, vector<1x16x48xbf16>
    %27 = vector.shape_cast %26 : vector<1x16x48xbf16> to vector<16x48xbf16>
    %28 = arith.truncf %25 : vector<16x16xf32> to vector<16x16xbf16>
    %cst_12 = arith.constant dense<0.000000e+00> : vector<16x48xf32>
    %29 = tpu.matmul %28, %27, %cst_12 {dimension_numbers = #tpu.dot_dimension_numbers<[1], [0], [0], [1], [0, 0, 1, 1], [], []>} : vector<16x16xbf16>, vector<16x48xbf16>, vector<16x48xf32> -> vector<16x48xf32>
    %30 = vector.shape_cast %29 : vector<16x48xf32> to vector<2x8x48xf32>
    %31 = vector.extract_strided_slice %30 {offsets = [0, 0, 0], sizes = [2, 8, 8], strides = [1, 1, 1]} : vector<2x8x48xf32> to vector<2x8x8xf32>
    %32 = vector.extract_strided_slice %30 {offsets = [0, 0, 8], sizes = [2, 8, 8], strides = [1, 1, 1]} : vector<2x8x48xf32> to vector<2x8x8xf32>
    %33 = tpu.concatenate %31, %32 in 0 : vector<2x8x8xf32>, vector<2x8x8xf32> -> vector<4x8x8xf32>
    %34 = vector.extract_strided_slice %30 {offsets = [0, 0, 16], sizes = [2, 8, 8], strides = [1, 1, 1]} : vector<2x8x48xf32> to vector<2x8x8xf32>
    %35 = vector.extract_strided_slice %30 {offsets = [0, 0, 24], sizes = [2, 8, 8], strides = [1, 1, 1]} : vector<2x8x48xf32> to vector<2x8x8xf32>
    %36 = tpu.concatenate %34, %35 in 0 : vector<2x8x8xf32>, vector<2x8x8xf32> -> vector<4x8x8xf32>
    %37 = vector.extract_strided_slice %30 {offsets = [0, 0, 32], sizes = [2, 8, 8], strides = [1, 1, 1]} : vector<2x8x48xf32> to vector<2x8x8xf32>
    %38 = vector.extract_strided_slice %30 {offsets = [0, 0, 40], sizes = [2, 8, 8], strides = [1, 1, 1]} : vector<2x8x48xf32> to vector<2x8x8xf32>
    %39 = tpu.concatenate %37, %38 in 0 : vector<2x8x8xf32>, vector<2x8x8xf32> -> vector<4x8x8xf32>
    %cst_13 = arith.constant 0.353553385 : f32
    %40 = vector.broadcast %cst_13 : f32 to vector<4x8x8xf32>
    %41 = arith.mulf %33, %40 : vector<4x8x8xf32>
    %42 = arith.truncf %41 : vector<4x8x8xf32> to vector<4x8x8xbf16>
    %43 = arith.truncf %36 : vector<4x8x8xf32> to vector<4x8x8xbf16>
    "tpu.trace_start"() <{level = 10 : i32, message = "bqd,bkd->bqk"}> : () -> ()
    %cst_14 = arith.constant dense<0.000000e+00> : vector<4x8x8xf32>
    %44 = tpu.matmul %42, %43, %cst_14 {dimension_numbers = #tpu.dot_dimension_numbers<[2], [2], [1], [1], [0, 0, 0, 1, 1, 1], [0], [0]>} : vector<4x8x8xbf16>, vector<4x8x8xbf16>, vector<4x8x8xf32> -> vector<4x8x8xf32>
    "tpu.trace_stop"() : () -> ()
    %cst_15 = arith.constant dense<0xFF800000> : vector<4x8xf32>
    %45 = vector.multi_reduction <maximumf>, %44, %cst_15 [2] : vector<4x8x8xf32> to vector<4x8xf32>
    %46 = vector.shape_cast %45 : vector<4x8xf32> to vector<4x8x1xf32>
    %47 = vector.broadcast %46 : vector<4x8x1xf32> to vector<4x8x8xf32>
    %48 = arith.subf %44, %47 : vector<4x8x8xf32>
    %49 = math.exp %48 : vector<4x8x8xf32>
    %cst_16 = arith.constant dense<0.000000e+00> : vector<4x8xf32>
    %50 = vector.multi_reduction <add>, %49, %cst_16 [2] : vector<4x8x8xf32> to vector<4x8xf32>
    %51 = vector.shape_cast %50 : vector<4x8xf32> to vector<4x8x1xf32>
    %52 = tpu.reciprocal %51 {approx = true} : vector<4x8x1xf32> -> vector<4x8x1xf32>
    %53 = vector.broadcast %52 : vector<4x8x1xf32> to vector<4x8x8xf32>
    %54 = arith.mulf %49, %53 : vector<4x8x8xf32>
    %55 = arith.truncf %54 : vector<4x8x8xf32> to vector<4x8x8xbf16>
    %56 = arith.truncf %39 : vector<4x8x8xf32> to vector<4x8x8xbf16>
    "tpu.trace_start"() <{level = 10 : i32, message = "bqk,bkd->bqd"}> : () -> ()
    %cst_17 = arith.constant dense<0.000000e+00> : vector<4x8x8xf32>
    %57 = tpu.matmul %55, %56, %cst_17 {dimension_numbers = #tpu.dot_dimension_numbers<[2], [1], [1], [2], [0, 0, 0, 1, 1, 2], [0], [0]>} : vector<4x8x8xbf16>, vector<4x8x8xbf16>, vector<4x8x8xf32> -> vector<4x8x8xf32>
    "tpu.trace_stop"() : () -> ()
    %c0_18 = arith.constant 0 : index
    %c0_19 = arith.constant 0 : index
    %c0_20 = arith.constant 0 : index
    %58 = vector.load %arg4[%c0_18, %c0_19, %c0_20] : memref<2x16x16xbf16, #tpu.memory_space<vmem>>, vector<1x16x16xbf16>
    %59 = vector.shape_cast %58 : vector<1x16x16xbf16> to vector<16x16xbf16>
    %60 = vector.extract_strided_slice %57 {offsets = [0, 0, 0], sizes = [2, 8, 8], strides = [1, 1, 1]} : vector<4x8x8xf32> to vector<2x8x8xf32>
    %61 = vector.shape_cast %60 : vector<2x8x8xf32> to vector<16x8xf32>
    %62 = vector.extract_strided_slice %59 {offsets = [0, 0], sizes = [8, 16], strides = [1, 1]} : vector<16x16xbf16> to vector<8x16xbf16>
    %63 = arith.truncf %61 : vector<16x8xf32> to vector<16x8xbf16>
    %cst_21 = arith.constant dense<0.000000e+00> : vector<16x16xf32>
    %64 = tpu.matmul %63, %62, %cst_21 {dimension_numbers = #tpu.dot_dimension_numbers<[1], [0], [0], [1], [0, 0, 1, 1], [], []>} : vector<16x8xbf16>, vector<8x16xbf16>, vector<16x16xf32> -> vector<16x16xf32>
    %65 = vector.extract_strided_slice %57 {offsets = [2, 0, 0], sizes = [2, 8, 8], strides = [1, 1, 1]} : vector<4x8x8xf32> to vector<2x8x8xf32>
    %66 = vector.shape_cast %65 : vector<2x8x8xf32> to vector<16x8xf32>
    %67 = vector.extract_strided_slice %59 {offsets = [8, 0], sizes = [8, 16], strides = [1, 1]} : vector<16x16xbf16> to vector<8x16xbf16>
    %68 = arith.truncf %66 : vector<16x8xf32> to vector<16x8xbf16>
    %cst_22 = arith.constant dense<0.000000e+00> : vector<16x16xf32>
    %69 = tpu.matmul %68, %67, %cst_22 {dimension_numbers = #tpu.dot_dimension_numbers<[1], [0], [0], [1], [0, 0, 1, 1], [], []>} : vector<16x8xbf16>, vector<8x16xbf16>, vector<16x16xf32> -> vector<16x16xf32>
    %70 = arith.addf %64, %69 : vector<16x16xf32>
    %71 = arith.addf %1, %70 : vector<16x16xf32>
    %72 = vector.extract_strided_slice %3 {offsets = [2, 0], sizes = [1, 16], strides = [1, 1]} : vector<4x16xf32> to vector<1x16xf32>
    %73 = vector.extract_strided_slice %3 {offsets = [3, 0], sizes = [1, 16], strides = [1, 1]} : vector<4x16xf32> to vector<1x16xf32>
    %cst_23 = arith.constant dense<0.000000e+00> : vector<16xf32>
    %74 = vector.multi_reduction <add>, %71, %cst_23 [1] : vector<16x16xf32> to vector<16xf32>
    %75 = vector.shape_cast %74 : vector<16xf32> to vector<16x1xf32>
    %cst_24 = arith.constant 1.600000e+01 : f32
    %76 = vector.broadcast %cst_24 : f32 to vector<16x1xf32>
    %77 = arith.divf %75, %76 : vector<16x1xf32>
    %78 = vector.broadcast %77 : vector<16x1xf32> to vector<16x16xf32>
    %79 = arith.subf %71, %78 : vector<16x16xf32>
    %80 = arith.mulf %79, %79 : vector<16x16xf32>
    %cst_25 = arith.constant dense<0.000000e+00> : vector<16xf32>
    %81 = vector.multi_reduction <add>, %80, %cst_25 [1] : vector<16x16xf32> to vector<16xf32>
    %82 = vector.shape_cast %81 : vector<16xf32> to vector<16x1xf32>
    %cst_26 = arith.constant 1.600000e+01 : f32
    %83 = vector.broadcast %cst_26 : f32 to vector<16x1xf32>
    %84 = arith.divf %82, %83 : vector<16x1xf32>
    %cst_27 = arith.constant 9.99999974E-6 : f32
    %85 = vector.broadcast %cst_27 : f32 to vector<16x1xf32>
    %86 = arith.addf %84, %85 : vector<16x1xf32>
    %87 = math.rsqrt %86 : vector<16x1xf32>
    %88 = vector.broadcast %87 : vector<16x1xf32> to vector<16x16xf32>
    %89 = arith.mulf %79, %88 : vector<16x16xf32>
    %90 = vector.broadcast %72 : vector<1x16xf32> to vector<16x16xf32>
    %91 = arith.mulf %89, %90 : vector<16x16xf32>
    %92 = vector.broadcast %73 : vector<1x16xf32> to vector<16x16xf32>
    %93 = arith.addf %91, %92 : vector<16x16xf32>
    %c0_28 = arith.constant 0 : index
    %c0_29 = arith.constant 0 : index
    %c0_30 = arith.constant 0 : index
    %94 = vector.load %arg7[%c0_28, %c0_29, %c0_30] : memref<2x2x64xf32, #tpu.memory_space<vmem>>, vector<1x2x64xf32>
    %95 = vector.shape_cast %94 : vector<1x2x64xf32> to vector<2x64xf32>
    %c0_31 = arith.constant 0 : index
    %c0_32 = arith.constant 0 : index
    %c0_33 = arith.constant 0 : index
    %96 = vector.load %arg5[%c0_31, %c0_32, %c0_33] : memref<2x16x64xbf16, #tpu.memory_space<vmem>>, vector<1x16x64xbf16>
    %97 = vector.shape_cast %96 : vector<1x16x64xbf16> to vector<16x64xbf16>
    %98 = arith.truncf %93 : vector<16x16xf32> to vector<16x16xbf16>
    %cst_34 = arith.constant dense<0.000000e+00> : vector<16x64xf32>
    %99 = tpu.matmul %98, %97, %cst_34 {dimension_numbers = #tpu.dot_dimension_numbers<[1], [0], [0], [1], [0, 0, 1, 1], [], []>} : vector<16x16xbf16>, vector<16x64xbf16>, vector<16x64xf32> -> vector<16x64xf32>
    %100 = vector.extract_strided_slice %95 {offsets = [0, 0], sizes = [1, 64], strides = [1, 1]} : vector<2x64xf32> to vector<1x64xf32>
    %101 = vector.broadcast %100 : vector<1x64xf32> to vector<16x64xf32>
    %102 = arith.addf %99, %101 : vector<16x64xf32>
    %cst_35 = arith.constant 5.000000e-01 : f32
    %103 = vector.broadcast %cst_35 : f32 to vector<16x64xf32>
    %104 = arith.mulf %103, %102 : vector<16x64xf32>
    %cst_36 = arith.constant 4.471500e-02 : f32
    %105 = vector.broadcast %cst_36 : f32 to vector<16x64xf32>
    %106 = arith.mulf %105, %102 : vector<16x64xf32>
    %107 = arith.mulf %106, %102 : vector<16x64xf32>
    %108 = arith.mulf %107, %102 : vector<16x64xf32>
    %109 = arith.addf %102, %108 : vector<16x64xf32>
    %cst_37 = arith.constant 0.797884583 : f32
    %110 = vector.broadcast %cst_37 : f32 to vector<16x64xf32>
    %111 = arith.mulf %110, %109 : vector<16x64xf32>
    %112 = math.tanh %111 : vector<16x64xf32>
    %cst_38 = arith.constant 1.000000e+00 : f32
    %113 = vector.broadcast %cst_38 : f32 to vector<16x64xf32>
    %114 = arith.addf %113, %112 : vector<16x64xf32>
    %115 = arith.mulf %104, %114 : vector<16x64xf32>
    %c0_39 = arith.constant 0 : index
    %c0_40 = arith.constant 0 : index
    %c0_41 = arith.constant 0 : index
    %116 = vector.load %arg6[%c0_39, %c0_40, %c0_41] : memref<2x64x16xbf16, #tpu.memory_space<vmem>>, vector<1x64x16xbf16>
    %117 = vector.shape_cast %116 : vector<1x64x16xbf16> to vector<64x16xbf16>
    %118 = arith.truncf %115 : vector<16x64xf32> to vector<16x64xbf16>
    %cst_42 = arith.constant dense<0.000000e+00> : vector<16x16xf32>
    %119 = tpu.matmul %118, %117, %cst_42 {dimension_numbers = #tpu.dot_dimension_numbers<[1], [0], [0], [1], [0, 0, 1, 1], [], []>} : vector<16x64xbf16>, vector<64x16xbf16>, vector<16x16xf32> -> vector<16x16xf32>
    %120 = arith.addf %71, %119 : vector<16x16xf32>
    %121 = vector.extract_strided_slice %95 {offsets = [1, 0], sizes = [1, 16], strides = [1, 1]} : vector<2x64xf32> to vector<1x16xf32>
    %122 = vector.broadcast %121 : vector<1x16xf32> to vector<16x16xf32>
    %123 = arith.addf %120, %122 : vector<16x16xf32>
    %c1 = arith.constant 1 : index
    %c0_43 = arith.constant 0 : index
    %c0_44 = arith.constant 0 : index
    %124 = vector.load %arg2[%c1, %c0_43, %c0_44] : memref<2x4x16xf32, #tpu.memory_space<vmem>>, vector<1x4x16xf32>
    %125 = vector.shape_cast %124 : vector<1x4x16xf32> to vector<4x16xf32>
    %126 = vector.extract_strided_slice %125 {offsets = [0, 0], sizes = [1, 16], strides = [1, 1]} : vector<4x16xf32> to vector<1x16xf32>
    %127 = vector.extract_strided_slice %125 {offsets = [1, 0], sizes = [1, 16], strides = [1, 1]} : vector<4x16xf32> to vector<1x16xf32>
    %cst_45 = arith.constant dense<0.000000e+00> : vector<16xf32>
    %128 = vector.multi_reduction <add>, %123, %cst_45 [1] : vector<16x16xf32> to vector<16xf32>
    %129 = vector.shape_cast %128 : vector<16xf32> to vector<16x1xf32>
    %cst_46 = arith.constant 1.600000e+01 : f32
    %130 = vector.broadcast %cst_46 : f32 to vector<16x1xf32>
    %131 = arith.divf %129, %130 : vector<16x1xf32>
    %132 = vector.broadcast %131 : vector<16x1xf32> to vector<16x16xf32>
    %133 = arith.subf %123, %132 : vector<16x16xf32>
    %134 = arith.mulf %133, %133 : vector<16x16xf32>
    %cst_47 = arith.constant dense<0.000000e+00> : vector<16xf32>
    %135 = vector.multi_reduction <add>, %134, %cst_47 [1] : vector<16x16xf32> to vector<16xf32>
    %136 = vector.shape_cast %135 : vector<16xf32> to vector<16x1xf32>
    %cst_48 = arith.constant 1.600000e+01 : f32
    %137 = vector.broadcast %cst_48 : f32 to vector<16x1xf32>
    %138 = arith.divf %136, %137 : vector<16x1xf32>
    %cst_49 = arith.constant 9.99999974E-6 : f32
    %139 = vector.broadcast %cst_49 : f32 to vector<16x1xf32>
    %140 = arith.addf %138, %139 : vector<16x1xf32>
    %141 = math.rsqrt %140 : vector<16x1xf32>
    %142 = vector.broadcast %141 : vector<16x1xf32> to vector<16x16xf32>
    %143 = arith.mulf %133, %142 : vector<16x16xf32>
    %144 = vector.broadcast %126 : vector<1x16xf32> to vector<16x16xf32>
    %145 = arith.mulf %143, %144 : vector<16x16xf32>
    %146 = vector.broadcast %127 : vector<1x16xf32> to vector<16x16xf32>
    %147 = arith.addf %145, %146 : vector<16x16xf32>
    %c1_50 = arith.constant 1 : index
    %c0_51 = arith.constant 0 : index
    %c0_52 = arith.constant 0 : index
    %148 = vector.load %arg3[%c1_50, %c0_51, %c0_52] : memref<2x16x48xbf16, #tpu.memory_space<vmem>>, vector<1x16x48xbf16>
    %149 = vector.shape_cast %148 : vector<1x16x48xbf16> to vector<16x48xbf16>
    %150 = arith.truncf %147 : vector<16x16xf32> to vector<16x16xbf16>
    %cst_53 = arith.constant dense<0.000000e+00> : vector<16x48xf32>
    %151 = tpu.matmul %150, %149, %cst_53 {dimension_numbers = #tpu.dot_dimension_numbers<[1], [0], [0], [1], [0, 0, 1, 1], [], []>} : vector<16x16xbf16>, vector<16x48xbf16>, vector<16x48xf32> -> vector<16x48xf32>
    %152 = vector.shape_cast %151 : vector<16x48xf32> to vector<2x8x48xf32>
    %153 = vector.extract_strided_slice %152 {offsets = [0, 0, 0], sizes = [2, 8, 8], strides = [1, 1, 1]} : vector<2x8x48xf32> to vector<2x8x8xf32>
    %154 = vector.extract_strided_slice %152 {offsets = [0, 0, 8], sizes = [2, 8, 8], strides = [1, 1, 1]} : vector<2x8x48xf32> to vector<2x8x8xf32>
    %155 = tpu.concatenate %153, %154 in 0 : vector<2x8x8xf32>, vector<2x8x8xf32> -> vector<4x8x8xf32>
    %156 = vector.extract_strided_slice %152 {offsets = [0, 0, 16], sizes = [2, 8, 8], strides = [1, 1, 1]} : vector<2x8x48xf32> to vector<2x8x8xf32>
    %157 = vector.extract_strided_slice %152 {offsets = [0, 0, 24], sizes = [2, 8, 8], strides = [1, 1, 1]} : vector<2x8x48xf32> to vector<2x8x8xf32>
    %158 = tpu.concatenate %156, %157 in 0 : vector<2x8x8xf32>, vector<2x8x8xf32> -> vector<4x8x8xf32>
    %159 = vector.extract_strided_slice %152 {offsets = [0, 0, 32], sizes = [2, 8, 8], strides = [1, 1, 1]} : vector<2x8x48xf32> to vector<2x8x8xf32>
    %160 = vector.extract_strided_slice %152 {offsets = [0, 0, 40], sizes = [2, 8, 8], strides = [1, 1, 1]} : vector<2x8x48xf32> to vector<2x8x8xf32>
    %161 = tpu.concatenate %159, %160 in 0 : vector<2x8x8xf32>, vector<2x8x8xf32> -> vector<4x8x8xf32>
    %cst_54 = arith.constant 0.353553385 : f32
    %162 = vector.broadcast %cst_54 : f32 to vector<4x8x8xf32>
    %163 = arith.mulf %155, %162 : vector<4x8x8xf32>
    %164 = arith.truncf %163 : vector<4x8x8xf32> to vector<4x8x8xbf16>
    %165 = arith.truncf %158 : vector<4x8x8xf32> to vector<4x8x8xbf16>
    "tpu.trace_start"() <{level = 10 : i32, message = "bqd,bkd->bqk"}> : () -> ()
    %cst_55 = arith.constant dense<0.000000e+00> : vector<4x8x8xf32>
    %166 = tpu.matmul %164, %165, %cst_55 {dimension_numbers = #tpu.dot_dimension_numbers<[2], [2], [1], [1], [0, 0, 0, 1, 1, 1], [0], [0]>} : vector<4x8x8xbf16>, vector<4x8x8xbf16>, vector<4x8x8xf32> -> vector<4x8x8xf32>
    "tpu.trace_stop"() : () -> ()
    %cst_56 = arith.constant dense<0xFF800000> : vector<4x8xf32>
    %167 = vector.multi_reduction <maximumf>, %166, %cst_56 [2] : vector<4x8x8xf32> to vector<4x8xf32>
    %168 = vector.shape_cast %167 : vector<4x8xf32> to vector<4x8x1xf32>
    %169 = vector.broadcast %168 : vector<4x8x1xf32> to vector<4x8x8xf32>
    %170 = arith.subf %166, %169 : vector<4x8x8xf32>
    %171 = math.exp %170 : vector<4x8x8xf32>
    %cst_57 = arith.constant dense<0.000000e+00> : vector<4x8xf32>
    %172 = vector.multi_reduction <add>, %171, %cst_57 [2] : vector<4x8x8xf32> to vector<4x8xf32>
    %173 = vector.shape_cast %172 : vector<4x8xf32> to vector<4x8x1xf32>
    %174 = tpu.reciprocal %173 {approx = true} : vector<4x8x1xf32> -> vector<4x8x1xf32>
    %175 = vector.broadcast %174 : vector<4x8x1xf32> to vector<4x8x8xf32>
    %176 = arith.mulf %171, %175 : vector<4x8x8xf32>
    %177 = arith.truncf %176 : vector<4x8x8xf32> to vector<4x8x8xbf16>
    %178 = arith.truncf %161 : vector<4x8x8xf32> to vector<4x8x8xbf16>
    "tpu.trace_start"() <{level = 10 : i32, message = "bqk,bkd->bqd"}> : () -> ()
    %cst_58 = arith.constant dense<0.000000e+00> : vector<4x8x8xf32>
    %179 = tpu.matmul %177, %178, %cst_58 {dimension_numbers = #tpu.dot_dimension_numbers<[2], [1], [1], [2], [0, 0, 0, 1, 1, 2], [0], [0]>} : vector<4x8x8xbf16>, vector<4x8x8xbf16>, vector<4x8x8xf32> -> vector<4x8x8xf32>
    "tpu.trace_stop"() : () -> ()
    %c1_59 = arith.constant 1 : index
    %c0_60 = arith.constant 0 : index
    %c0_61 = arith.constant 0 : index
    %180 = vector.load %arg4[%c1_59, %c0_60, %c0_61] : memref<2x16x16xbf16, #tpu.memory_space<vmem>>, vector<1x16x16xbf16>
    %181 = vector.shape_cast %180 : vector<1x16x16xbf16> to vector<16x16xbf16>
    %182 = vector.extract_strided_slice %179 {offsets = [0, 0, 0], sizes = [2, 8, 8], strides = [1, 1, 1]} : vector<4x8x8xf32> to vector<2x8x8xf32>
    %183 = vector.shape_cast %182 : vector<2x8x8xf32> to vector<16x8xf32>
    %184 = vector.extract_strided_slice %181 {offsets = [0, 0], sizes = [8, 16], strides = [1, 1]} : vector<16x16xbf16> to vector<8x16xbf16>
    %185 = arith.truncf %183 : vector<16x8xf32> to vector<16x8xbf16>
    %cst_62 = arith.constant dense<0.000000e+00> : vector<16x16xf32>
    %186 = tpu.matmul %185, %184, %cst_62 {dimension_numbers = #tpu.dot_dimension_numbers<[1], [0], [0], [1], [0, 0, 1, 1], [], []>} : vector<16x8xbf16>, vector<8x16xbf16>, vector<16x16xf32> -> vector<16x16xf32>
    %187 = vector.extract_strided_slice %179 {offsets = [2, 0, 0], sizes = [2, 8, 8], strides = [1, 1, 1]} : vector<4x8x8xf32> to vector<2x8x8xf32>
    %188 = vector.shape_cast %187 : vector<2x8x8xf32> to vector<16x8xf32>
    %189 = vector.extract_strided_slice %181 {offsets = [8, 0], sizes = [8, 16], strides = [1, 1]} : vector<16x16xbf16> to vector<8x16xbf16>
    %190 = arith.truncf %188 : vector<16x8xf32> to vector<16x8xbf16>
    %cst_63 = arith.constant dense<0.000000e+00> : vector<16x16xf32>
    %191 = tpu.matmul %190, %189, %cst_63 {dimension_numbers = #tpu.dot_dimension_numbers<[1], [0], [0], [1], [0, 0, 1, 1], [], []>} : vector<16x8xbf16>, vector<8x16xbf16>, vector<16x16xf32> -> vector<16x16xf32>
    %192 = arith.addf %186, %191 : vector<16x16xf32>
    %193 = arith.addf %123, %192 : vector<16x16xf32>
    %194 = vector.extract_strided_slice %125 {offsets = [2, 0], sizes = [1, 16], strides = [1, 1]} : vector<4x16xf32> to vector<1x16xf32>
    %195 = vector.extract_strided_slice %125 {offsets = [3, 0], sizes = [1, 16], strides = [1, 1]} : vector<4x16xf32> to vector<1x16xf32>
    %cst_64 = arith.constant dense<0.000000e+00> : vector<16xf32>
    %196 = vector.multi_reduction <add>, %193, %cst_64 [1] : vector<16x16xf32> to vector<16xf32>
    %197 = vector.shape_cast %196 : vector<16xf32> to vector<16x1xf32>
    %cst_65 = arith.constant 1.600000e+01 : f32
    %198 = vector.broadcast %cst_65 : f32 to vector<16x1xf32>
    %199 = arith.divf %197, %198 : vector<16x1xf32>
    %200 = vector.broadcast %199 : vector<16x1xf32> to vector<16x16xf32>
    %201 = arith.subf %193, %200 : vector<16x16xf32>
    %202 = arith.mulf %201, %201 : vector<16x16xf32>
    %cst_66 = arith.constant dense<0.000000e+00> : vector<16xf32>
    %203 = vector.multi_reduction <add>, %202, %cst_66 [1] : vector<16x16xf32> to vector<16xf32>
    %204 = vector.shape_cast %203 : vector<16xf32> to vector<16x1xf32>
    %cst_67 = arith.constant 1.600000e+01 : f32
    %205 = vector.broadcast %cst_67 : f32 to vector<16x1xf32>
    %206 = arith.divf %204, %205 : vector<16x1xf32>
    %cst_68 = arith.constant 9.99999974E-6 : f32
    %207 = vector.broadcast %cst_68 : f32 to vector<16x1xf32>
    %208 = arith.addf %206, %207 : vector<16x1xf32>
    %209 = math.rsqrt %208 : vector<16x1xf32>
    %210 = vector.broadcast %209 : vector<16x1xf32> to vector<16x16xf32>
    %211 = arith.mulf %201, %210 : vector<16x16xf32>
    %212 = vector.broadcast %194 : vector<1x16xf32> to vector<16x16xf32>
    %213 = arith.mulf %211, %212 : vector<16x16xf32>
    %214 = vector.broadcast %195 : vector<1x16xf32> to vector<16x16xf32>
    %215 = arith.addf %213, %214 : vector<16x16xf32>
    %c1_69 = arith.constant 1 : index
    %c0_70 = arith.constant 0 : index
    %c0_71 = arith.constant 0 : index
    %216 = vector.load %arg7[%c1_69, %c0_70, %c0_71] : memref<2x2x64xf32, #tpu.memory_space<vmem>>, vector<1x2x64xf32>
    %217 = vector.shape_cast %216 : vector<1x2x64xf32> to vector<2x64xf32>
    %c1_72 = arith.constant 1 : index
    %c0_73 = arith.constant 0 : index
    %c0_74 = arith.constant 0 : index
    %218 = vector.load %arg5[%c1_72, %c0_73, %c0_74] : memref<2x16x64xbf16, #tpu.memory_space<vmem>>, vector<1x16x64xbf16>
    %219 = vector.shape_cast %218 : vector<1x16x64xbf16> to vector<16x64xbf16>
    %220 = arith.truncf %215 : vector<16x16xf32> to vector<16x16xbf16>
    %cst_75 = arith.constant dense<0.000000e+00> : vector<16x64xf32>
    %221 = tpu.matmul %220, %219, %cst_75 {dimension_numbers = #tpu.dot_dimension_numbers<[1], [0], [0], [1], [0, 0, 1, 1], [], []>} : vector<16x16xbf16>, vector<16x64xbf16>, vector<16x64xf32> -> vector<16x64xf32>
    %222 = vector.extract_strided_slice %217 {offsets = [0, 0], sizes = [1, 64], strides = [1, 1]} : vector<2x64xf32> to vector<1x64xf32>
    %223 = vector.broadcast %222 : vector<1x64xf32> to vector<16x64xf32>
    %224 = arith.addf %221, %223 : vector<16x64xf32>
    %cst_76 = arith.constant 5.000000e-01 : f32
    %225 = vector.broadcast %cst_76 : f32 to vector<16x64xf32>
    %226 = arith.mulf %225, %224 : vector<16x64xf32>
    %cst_77 = arith.constant 4.471500e-02 : f32
    %227 = vector.broadcast %cst_77 : f32 to vector<16x64xf32>
    %228 = arith.mulf %227, %224 : vector<16x64xf32>
    %229 = arith.mulf %228, %224 : vector<16x64xf32>
    %230 = arith.mulf %229, %224 : vector<16x64xf32>
    %231 = arith.addf %224, %230 : vector<16x64xf32>
    %cst_78 = arith.constant 0.797884583 : f32
    %232 = vector.broadcast %cst_78 : f32 to vector<16x64xf32>
    %233 = arith.mulf %232, %231 : vector<16x64xf32>
    %234 = math.tanh %233 : vector<16x64xf32>
    %cst_79 = arith.constant 1.000000e+00 : f32
    %235 = vector.broadcast %cst_79 : f32 to vector<16x64xf32>
    %236 = arith.addf %235, %234 : vector<16x64xf32>
    %237 = arith.mulf %226, %236 : vector<16x64xf32>
    %c1_80 = arith.constant 1 : index
    %c0_81 = arith.constant 0 : index
    %c0_82 = arith.constant 0 : index
    %238 = vector.load %arg6[%c1_80, %c0_81, %c0_82] : memref<2x64x16xbf16, #tpu.memory_space<vmem>>, vector<1x64x16xbf16>
    %239 = vector.shape_cast %238 : vector<1x64x16xbf16> to vector<64x16xbf16>
    %240 = arith.truncf %237 : vector<16x64xf32> to vector<16x64xbf16>
    %cst_83 = arith.constant dense<0.000000e+00> : vector<16x16xf32>
    %241 = tpu.matmul %240, %239, %cst_83 {dimension_numbers = #tpu.dot_dimension_numbers<[1], [0], [0], [1], [0, 0, 1, 1], [], []>} : vector<16x64xbf16>, vector<64x16xbf16>, vector<16x16xf32> -> vector<16x16xf32>
    %242 = arith.addf %193, %241 : vector<16x16xf32>
    %243 = vector.extract_strided_slice %217 {offsets = [1, 0], sizes = [1, 16], strides = [1, 1]} : vector<2x64xf32> to vector<1x16xf32>
    %244 = vector.broadcast %243 : vector<1x16xf32> to vector<16x16xf32>
    %245 = arith.addf %242, %244 : vector<16x16xf32>
    %c0_84 = arith.constant 0 : index
    %c0_85 = arith.constant 0 : index
    %246 = vector.load %arg8[%c0_84, %c0_85] : memref<2x16xf32, #tpu.memory_space<vmem>>, vector<2x16xf32>
    %247 = vector.extract_strided_slice %246 {offsets = [0, 0], sizes = [1, 16], strides = [1, 1]} : vector<2x16xf32> to vector<1x16xf32>
    %248 = vector.extract_strided_slice %246 {offsets = [1, 0], sizes = [1, 16], strides = [1, 1]} : vector<2x16xf32> to vector<1x16xf32>
    %cst_86 = arith.constant dense<0.000000e+00> : vector<16xf32>
    %249 = vector.multi_reduction <add>, %245, %cst_86 [1] : vector<16x16xf32> to vector<16xf32>
    %250 = vector.shape_cast %249 : vector<16xf32> to vector<16x1xf32>
    %cst_87 = arith.constant 1.600000e+01 : f32
    %251 = vector.broadcast %cst_87 : f32 to vector<16x1xf32>
    %252 = arith.divf %250, %251 : vector<16x1xf32>
    %253 = vector.broadcast %252 : vector<16x1xf32> to vector<16x16xf32>
    %254 = arith.subf %245, %253 : vector<16x16xf32>
    %255 = arith.mulf %254, %254 : vector<16x16xf32>
    %cst_88 = arith.constant dense<0.000000e+00> : vector<16xf32>
    %256 = vector.multi_reduction <add>, %255, %cst_88 [1] : vector<16x16xf32> to vector<16xf32>
    %257 = vector.shape_cast %256 : vector<16xf32> to vector<16x1xf32>
    %cst_89 = arith.constant 1.600000e+01 : f32
    %258 = vector.broadcast %cst_89 : f32 to vector<16x1xf32>
    %259 = arith.divf %257, %258 : vector<16x1xf32>
    %cst_90 = arith.constant 9.99999974E-6 : f32
    %260 = vector.broadcast %cst_90 : f32 to vector<16x1xf32>
    %261 = arith.addf %259, %260 : vector<16x1xf32>
    %262 = math.rsqrt %261 : vector<16x1xf32>
    %263 = vector.broadcast %262 : vector<16x1xf32> to vector<16x16xf32>
    %264 = arith.mulf %254, %263 : vector<16x16xf32>
    %265 = vector.broadcast %247 : vector<1x16xf32> to vector<16x16xf32>
    %266 = arith.mulf %264, %265 : vector<16x16xf32>
    %267 = vector.broadcast %248 : vector<1x16xf32> to vector<16x16xf32>
    %268 = arith.addf %266, %267 : vector<16x16xf32>
    %c0_91 = arith.constant 0 : index
    %c0_92 = arith.constant 0 : index
    %269 = vector.load %arg9[%c0_91, %c0_92] : memref<32x16xbf16, #tpu.memory_space<vmem>>, vector<32x16xbf16>
    %270 = arith.truncf %268 : vector<16x16xf32> to vector<16x16xbf16>
    %cst_93 = arith.constant dense<0.000000e+00> : vector<16x32xf32>
    %271 = tpu.matmul %270, %269, %cst_93 {dimension_numbers = #tpu.dot_dimension_numbers<[1], [1], [0], [0], [0, 0, 1, 0], [], []>} : vector<16x16xbf16>, vector<32x16xbf16>, vector<16x32xf32> -> vector<16x32xf32>
    %c0_94 = arith.constant 0 : index
    %c0_95 = arith.constant 0 : index
    %272 = vector.load %arg10[%c0_94, %c0_95] : memref<1x32xf32, #tpu.memory_space<vmem>>, vector<1x32xf32>
    %273 = vector.broadcast %272 : vector<1x32xf32> to vector<16x32xf32>
    %274 = arith.addf %271, %273 : vector<16x32xf32>
    %275 = vector.shape_cast %274 : vector<16x32xf32> to vector<2x8x32xf32>
    %c0_96 = arith.constant 0 : index
    %c0_97 = arith.constant 0 : index
    %c0_98 = arith.constant 0 : index
    %276 = vector.load %arg11[%c0_96, %c0_97, %c0_98] : memref<2x8x32xf32, #tpu.memory_space<vmem>>, vector<2x8x32xf32>
    tpu.vector_store %arg11[%c0_96, %c0_97, %c0_98], %275 {strides = array<i32>} : memref<2x8x32xf32, #tpu.memory_space<vmem>>, vector<2x8x32xf32>,
    return
  }
  func.func @transform_0(%arg0: i32) -> (i32, i32, i32) {
    %c0_i32 = arith.constant 0 : i32
    %c0_i32_0 = arith.constant 0 : i32
    %c0_i32_1 = arith.constant 0 : i32
    return %arg0, %c0_i32, %c0_i32_0 : i32, i32, i32
  }
  func.func @transform_1(%arg0: i32) -> (i32, i32, i32) {
    %c0_i32 = arith.constant 0 : i32
    %c0_i32_0 = arith.constant 0 : i32
    %c0_i32_1 = arith.constant 0 : i32
    %c0_i32_2 = arith.constant 0 : i32
    return %c0_i32, %c0_i32_0, %c0_i32_1 : i32, i32, i32
  }
  func.func @transform_2(%arg0: i32) -> (i32, i32, i32) {
    %c0_i32 = arith.constant 0 : i32
    %c0_i32_0 = arith.constant 0 : i32
    %c0_i32_1 = arith.constant 0 : i32
    %c0_i32_2 = arith.constant 0 : i32
    return %c0_i32, %c0_i32_0, %c0_i32_1 : i32, i32, i32
  }
  func.func @transform_3(%arg0: i32) -> (i32, i32, i32) {
    %c0_i32 = arith.constant 0 : i32
    %c0_i32_0 = arith.constant 0 : i32
    %c0_i32_1 = arith.constant 0 : i32
    %c0_i32_2 = arith.constant 0 : i32
    return %c0_i32, %c0_i32_0, %c0_i32_1 : i32, i32, i32
  }
  func.func @transform_4(%arg0: i32) -> (i32, i32, i32) {
    %c0_i32 = arith.constant 0 : i32
    %c0_i32_0 = arith.constant 0 : i32
    %c0_i32_1 = arith.constant 0 : i32
    %c0_i32_2 = arith.constant 0 : i32
    return %c0_i32, %c0_i32_0, %c0_i32_1 : i32, i32, i32
  }
  func.func @transform_5(%arg0: i32) -> (i32, i32, i32) {
    %c0_i32 = arith.constant 0 : i32
    %c0_i32_0 = arith.constant 0 : i32
    %c0_i32_1 = arith.constant 0 : i32
    %c0_i32_2 = arith.constant 0 : i32
    return %c0_i32, %c0_i32_0, %c0_i32_1 : i32, i32, i32
  }
  func.func @transform_6(%arg0: i32) -> (i32, i32, i32) {
    %c0_i32 = arith.constant 0 : i32
    %c0_i32_0 = arith.constant 0 : i32
    %c0_i32_1 = arith.constant 0 : i32
    %c0_i32_2 = arith.constant 0 : i32
    return %c0_i32, %c0_i32_0, %c0_i32_1 : i32, i32, i32
  }
  func.func @transform_7(%arg0: i32) -> (i32, i32) {
    %c0_i32 = arith.constant 0 : i32
    %c0_i32_0 = arith.constant 0 : i32
    %c0_i32_1 = arith.constant 0 : i32
    return %c0_i32, %c0_i32_0 : i32, i32
  }
  func.func @transform_8(%arg0: i32) -> (i32, i32) {
    %c0_i32 = arith.constant 0 : i32
    %c0_i32_0 = arith.constant 0 : i32
    %c0_i32_1 = arith.constant 0 : i32
    return %c0_i32, %c0_i32_0 : i32, i32
  }
  func.func @transform_9(%arg0: i32) -> (i32, i32) {
    %c0_i32 = arith.constant 0 : i32
    %c0_i32_0 = arith.constant 0 : i32
    %c0_i32_1 = arith.constant 0 : i32
    return %c0_i32, %c0_i32_0 : i32, i32
  }
  func.func @transform_10(%arg0: i32) -> (i32, i32, i32) {
    %c0_i32 = arith.constant 0 : i32
    %c0_i32_0 = arith.constant 0 : i32
    %c0_i32_1 = arith.constant 0 : i32
    return %arg0, %c0_i32, %c0_i32_0 : i32, i32, i32
  }
}

module attributes {stable_mosaic.version = 11 : i64} {
  func.func @_convt_sigmoid_kernel(%arg0: memref<27x512xf32, #tpu.memory_space<vmem>>, %arg1: memref<3x27xf32, #tpu.memory_space<vmem>>, %arg2: memref<3x1xf32, #tpu.memory_space<vmem>>, %arg3: memref<3x512xf32, #tpu.memory_space<vmem>>) attributes {dimension_semantics = [], scalar_prefetch = 0 : i64, scratch_operands = 0 : i64, tpu.core_type = #tpu.core_type<tc>} {
    %c0 = arith.constant 0 : index
    %c0_0 = arith.constant 0 : index
    %0 = vector.load %arg1[%c0, %c0_0] : memref<3x27xf32, #tpu.memory_space<vmem>>, vector<3x27xf32>
    %c0_1 = arith.constant 0 : index
    %c0_2 = arith.constant 0 : index
    %1 = vector.load %arg0[%c0_1, %c0_2] : memref<27x512xf32, #tpu.memory_space<vmem>>, vector<27x512xf32>
    %2 = arith.truncf %0 : vector<3x27xf32> to vector<3x27xbf16>
    %3 = arith.truncf %1 : vector<27x512xf32> to vector<27x512xbf16>
    %cst = arith.constant dense<0.000000e+00> : vector<3x512xf32>
    %4 = tpu.matmul %2, %3, %cst {dimension_numbers = #tpu.dot_dimension_numbers<[1], [0], [0], [1], [0, 0, 1, 1], [], []>} : vector<3x27xbf16>, vector<27x512xbf16>, vector<3x512xf32> -> vector<3x512xf32>
    %c0_3 = arith.constant 0 : index
    %c0_4 = arith.constant 0 : index
    %5 = vector.load %arg2[%c0_3, %c0_4] : memref<3x1xf32, #tpu.memory_space<vmem>>, vector<3x1xf32>
    %6 = vector.broadcast %5 : vector<3x1xf32> to vector<3x512xf32>
    %7 = arith.addf %4, %6 : vector<3x512xf32>
    %cst_5 = arith.constant 0.000000e+00 : f32
    %8 = vector.broadcast %cst_5 : f32 to vector<3x512xf32>
    %9 = arith.subf %8, %7 : vector<3x512xf32>
    %10 = math.exp %9 : vector<3x512xf32>
    %cst_6 = arith.constant 1.000000e+00 : f32
    %11 = vector.broadcast %cst_6 : f32 to vector<3x512xf32>
    %12 = arith.addf %11, %10 : vector<3x512xf32>
    %cst_7 = arith.constant 1.000000e+00 : f32
    %13 = vector.broadcast %cst_7 : f32 to vector<3x512xf32>
    %14 = arith.divf %13, %12 : vector<3x512xf32>
    %c0_8 = arith.constant 0 : index
    %c0_9 = arith.constant 0 : index
    %15 = vector.load %arg3[%c0_8, %c0_9] : memref<3x512xf32, #tpu.memory_space<vmem>>, vector<3x512xf32>
    tpu.vector_store %arg3[%c0_8, %c0_9], %14 {strides = array<i32>} : memref<3x512xf32, #tpu.memory_space<vmem>>, vector<3x512xf32>,
    return
  }
}

</mosaic_0001>

<llo_original>
// kernel: tipae_forward.8
$region0: #{tipae_forward.8}
  #allocation0 [shape = 'u32[]', space=smem, size = 0x4, offset = 0x4, fixed_abs, tag = 'smem constant byte address 0x4 - core index']
  #allocation1 [shape = 'u32[144,128]{1,0:T(1,128)}', space=vmem, size = 0x12000, scoped, tag = 'internal scratch']
  %s0 = inlined_call_operand.vmem [shape: f32[2,8,16], index: 0, kind: input, shape index: {}]
  %s1 = inlined_call_operand.vmem [shape: f32[2,4,16], index: 1, kind: input, shape index: {}]
  %s2 = inlined_call_operand.vmem [shape: bf16[2,16,48], index: 2, kind: input, shape index: {}]
  %s3 = inlined_call_operand.vmem [shape: bf16[2,16,16], index: 3, kind: input, shape index: {}]
  %s4 = inlined_call_operand.vmem [shape: bf16[2,16,64], index: 4, kind: input, shape index: {}]
  %s5 = inlined_call_operand.vmem [shape: bf16[2,64,16], index: 5, kind: input, shape index: {}]
  %s6 = inlined_call_operand.vmem [shape: f32[2,2,64], index: 6, kind: input, shape index: {}]
  %s7 = inlined_call_operand.vmem [shape: f32[2,16], index: 7, kind: input, shape index: {}]
  %s8 = inlined_call_operand.vmem [shape: f32[2,8,16], index: 8, kind: output, shape index: {}]
  %s9 = sld [smem:[#allocation0]]
  $region42: #{tipae_forward.8} parent=0
    _
  %s11 = ssub.s32 1, %s9
  %s12 = scalar_select 0, %s11, %s9
  // Predicated region
  $region2: #{tipae_forward.8} parent=0 // pred_check
    _
  $region3: #{tipae_forward.8} parent=0 // pred_check_branch
    %14 = sbr.rel (0) target = $region5
  $region4: #{tipae_forward.8} parent=0 // pred_region
    _
  $region5: #{tipae_forward.8} parent=0 // pred_fallthru
    _
  // Predicated region
  $region6: #{tipae_forward.8} parent=0 // pred_check
    _
  $region7: #{tipae_forward.8} parent=0 // pred_check_branch
    %16 = sbr.rel (0) target = $region9
  $region8: #{tipae_forward.8} parent=0 // pred_region
    _
  $region9: #{tipae_forward.8} parent=0 // pred_fallthru
    _
  // Predicated region
  $region10: #{tipae_forward.8} parent=0 // pred_check
    _
  $region11: #{tipae_forward.8} parent=0 // pred_check_branch
    %18 = sbr.rel (0) target = $region13
  $region12: #{tipae_forward.8} parent=0 // pred_region
    _
  $region13: #{tipae_forward.8} parent=0 // pred_fallthru
    _
  // Predicated region
  $region14: #{tipae_forward.8} parent=0 // pred_check
    _
  $region15: #{tipae_forward.8} parent=0 // pred_check_branch
    %20 = sbr.rel (0) target = $region17
  $region16: #{tipae_forward.8} parent=0 // pred_region
    _
  $region17: #{tipae_forward.8} parent=0 // pred_fallthru
    _
  // Predicated region
  $region18: #{tipae_forward.8} parent=0 // pred_check
    _
  $region19: #{tipae_forward.8} parent=0 // pred_check_branch
    %22 = sbr.rel (0) target = $region21
  $region20: #{tipae_forward.8} parent=0 // pred_region
    _
  $region21: #{tipae_forward.8} parent=0 // pred_fallthru
    _
  // Predicated region
  $region22: #{tipae_forward.8} parent=0 // pred_check
    _
  $region23: #{tipae_forward.8} parent=0 // pred_check_branch
    %24 = sbr.rel (0) target = $region25
  $region24: #{tipae_forward.8} parent=0 // pred_region
    _
  $region25: #{tipae_forward.8} parent=0 // pred_fallthru
    _
  // Predicated region
  $region26: #{tipae_forward.8} parent=0 // pred_check
    _
  $region27: #{tipae_forward.8} parent=0 // pred_check_branch
    %26 = sbr.rel (0) target = $region29
  $region28: #{tipae_forward.8} parent=0 // pred_region
    _
  $region29: #{tipae_forward.8} parent=0 // pred_fallthru
    _
  // Predicated region
  $region30: #{tipae_forward.8} parent=0 // pred_check
    _
  $region31: #{tipae_forward.8} parent=0 // pred_check_branch
    %28 = sbr.rel (0) target = $region33
  $region32: #{tipae_forward.8} parent=0 // pred_region
    _
  $region33: #{tipae_forward.8} parent=0 // pred_fallthru
    _
  %v30 = vld [vmem:[%s0] sm:$0xff]
  %v31 = vld [vmem:[%s0 + $0x8] sm:$0xff]
  %v32 = vld [vmem:[%s1] sm:$0xf]
  %vm33 = vcmask 130048
  %v34 = vsel %vm33, %v30, 0.0
  %35 = vadd.xlane.f32.xlu0 %v34
  %v36 = vpop.xlane.xlu0 %35
  %v37 = vsel %vm33, %v31, 0.0
  %38 = vadd.xlane.f32.xlu0 %v37
  %v39 = vpop.xlane.xlu0 %38
  %v40 = vrcp.pop 16.0
  %v41 = vmul.f32 %v36, %v40
  %v42 = vmul.f32 %v39, %v40
  %v43 = vsub.f32 %v30, %v41
  %v44 = vsub.f32 %v31, %v42
  %v45 = vmul.f32 %v43, %v43
  %v46 = vmul.f32 %v44, %v44
  %v47 = vsel %vm33, %v45, 0.0
  %48 = vadd.xlane.f32.xlu0 %v47
  %v49 = vpop.xlane.xlu0 %48
  %v50 = vsel %vm33, %v46, 0.0
  %51 = vadd.xlane.f32.xlu0 %v50
  %v52 = vpop.xlane.xlu0 %51
  %v53 = vmul.f32 %v49, %v40
  %v54 = vmul.f32 %v52, %v40
  %v55 = vadd.f32 %v53, 1e-05
  %v56 = vadd.f32 %v54, 1e-05
  %v57 = vrsqrt.pop %v55
  %v58 = vrsqrt.pop %v56
  %v59 = vmul.f32 %v43, %v57
  %v60 = vmul.f32 %v44, %v58
  %v61 = vlaneseq
  %v62 = vshrl.u32 %v61, 7
  %v63 = vsub.s32 0, %v62
  %v64 = vrot.slane %v32, %v63
  %v65 = vmul.f32 %v59, %v64
  %v66 = vmul.f32 %v60, %v64
  %v67 = vlaneseq
  %v68 = vshrl.u32 %v67, 7
  %v69 = vsub.s32 1, %v68
  %v70 = vrot.slane %v32, %v69
  %v71 = vadd.f32 %v65, %v70
  %v72 = vadd.f32 %v66, %v70
  %v73 = vld [vmem:[%s2] sm:$0xf]
  %v74 = vld [vmem:[%s2 + $0x4] sm:$0xf]
  %v75 = vpack.c.bf16 %v72, %v71
  %v78 = vunpack.c.l.b16 %v73
  %v79 = vunpack.c.l.b16 %v74
  %v80 = vpack.c.b16 %v79, %v78
  %v83 = vsel %vm33, %v75, 0
  %85 = vmatprep.subr.bf16.mxu0 0
  %86 = vmatpush1.bf16.msra.mxu0 0
  %87 = vmatprep.subr.bf16.mxu0 0
  %88 = vmatpush1.bf16.msra.mxu0 0
  %89 = vmatprep.subr.bf16.mxu0 0
  %90 = vmatpush1.bf16.msra.mxu0 0
  %91 = vmatprep.subr.bf16.mxu0 0
  %92 = vmatpush1.bf16.msra.mxu0 0
  %93 = vmatprep.subr.bf16.mxu0 0
  %94 = vmatpush1.bf16.msra.mxu0 0
  %95 = vmatprep.subr.bf16.mxu0 0
  %96 = vmatpush1.bf16.msra.mxu0 0
  %97 = vmatprep.subr.bf16.mxu0 0
  %98 = vmatpush1.bf16.msra.mxu0 0
  %99 = vmatprep.subr.bf16.mxu0 0
  %100 = vmatpush1.bf16.msra.mxu0 %v80
  %101 = vmatprep.subr.bf16.mxu0 0
  %102 = vmatpush2.bf16.msra.mxu0 0
  %103 = vmatprep.subr.bf16.mxu0 0
  %104 = vmatpush2.bf16.msra.mxu0 0
  %105 = vmatprep.subr.bf16.mxu0 0
  %106 = vmatpush2.bf16.msra.mxu0 0
  %107 = vmatprep.subr.bf16.mxu0 0
  %108 = vmatpush2.bf16.msra.mxu0 0
  %109 = vmatprep.subr.bf16.mxu0 0
  %110 = vmatpush2.bf16.msra.mxu0 0
  %111 = vmatprep.subr.bf16.mxu0 0
  %112 = vmatpush2.bf16.msra.mxu0 0
  %113 = vmatprep.subr.bf16.mxu0 0
  %114 = vmatpush2.bf16.msra.mxu0 0
  %115 = vmatprep.subr.bf16.mxu0 0
  %116 = vmatpush2.bf16.msra.mxu0 0
  %117 = vmatprep.mubr.bf16.mxu0 0
  %118 = vmatmul.mubr.bf16.gmra.mxu0 %v83
  %v119 = vpop.f32.mrf.mxu0
  %v120 = vadd.f32 0.0, %v119
  %v121 = vpop.f32.mrf.mxu0
  %v122 = vpop.f32.mrf.mxu0
  %v123 = vadd.f32 0.0, %v122
  %v124 = vpop.f32.mrf.mxu0
  %125 = vdwg.mxu0
  %128 = vrot.lane.b32.xlu0 %v120, 120
  %v129 = vpop.permute.xlu0 %128
  %130 = vrot.lane.b32.xlu0 %v123, 120
  %v131 = vpop.permute.xlu0 %130
  %v134 = vmul.f32 %v120, 0.35355338
  %v135 = vmul.f32 %v123, 0.35355338
  %v136 = vmul.f32 %v129, 0.35355338
  %v137 = vmul.f32 %v131, 0.35355338
  %v138 = vpack.c.bf16 %v134, %v134
  %v139 = vpack.c.bf16 %v135, %v135
  %v140 = vpack.c.bf16 %v136, %v136
  %v141 = vpack.c.bf16 %v137, %v137
  %v142 = vpack.c.bf16 %v120, %v120
  %v143 = vpack.c.bf16 %v123, %v123
  %v144 = vpack.c.bf16 %v129, %v129
  %v145 = vpack.c.bf16 %v131, %v131
  %147 = vrot.lane.b32.xlu0 %v142, 112
  %v148 = vpop.permute.xlu0 %147
  %vm149 = vcmask 64512
  %v151 = vsel %vm149, %v138, 0
  %v154 = vsel %vm149, %v148, 0
  %156 = vmatprep.subr.bf16.mxu0 0
  %157 = vmatpush1.bf16.xpose.msra.mxu0 0
  %158 = vmatprep.subr.bf16.mxu0 0
  %159 = vmatpush1.bf16.xpose.msra.mxu0 0
  %160 = vmatprep.subr.bf16.mxu0 0
  %161 = vmatpush1.bf16.xpose.msra.mxu0 0
  %162 = vmatprep.subr.bf16.mxu0 0
  %163 = vmatpush1.bf16.xpose.msra.mxu0 0
  %164 = vmatprep.subr.bf16.mxu0 0
  %165 = vmatpush1.bf16.xpose.msra.mxu0 0
  %166 = vmatprep.subr.bf16.mxu0 0
  %167 = vmatpush1.bf16.xpose.msra.mxu0 0
  %168 = vmatprep.subr.bf16.mxu0 0
  %169 = vmatpush1.bf16.xpose.msra.mxu0 0
  %170 = vmatprep.subr.bf16.mxu0 0
  %171 = vmatpush1.bf16.xpose.msra.mxu0 %v154
  %172 = vmatprep.subr.bf16.mxu0 0
  %173 = vmatpush2.bf16.xpose.msra.mxu0 0
  %174 = vmatprep.subr.bf16.mxu0 0
  %175 = vmatpush2.bf16.xpose.msra.mxu0 0
  %176 = vmatprep.subr.bf16.mxu0 0
  %177 = vmatpush2.bf16.xpose.msra.mxu0 0
  %178 = vmatprep.subr.bf16.mxu0 0
  %179 = vmatpush2.bf16.xpose.msra.mxu0 0
  %180 = vmatprep.subr.bf16.mxu0 0
  %181 = vmatpush2.bf16.xpose.msra.mxu0 0
  %182 = vmatprep.subr.bf16.mxu0 0
  %183 = vmatpush2.bf16.xpose.msra.mxu0 0
  %184 = vmatprep.subr.bf16.mxu0 0
  %185 = vmatpush2.bf16.xpose.msra.mxu0 0
  %186 = vmatprep.subr.bf16.mxu0 0
  %187 = vmatpush2.bf16.xpose.msra.mxu0 0
  %188 = vmatprep.mubr.bf16.mxu0 0
  %189 = vmatmul.mubr.bf16.gmra.mxu0 %v151
  %v190 = vpop.f32.mrf.mxu0
  %v191 = vadd.f32 0.0, %v190
  %v192 = vpop.f32.mrf.mxu0
  %v193 = vpop.f32.mrf.mxu0
  %v194 = vpop.f32.mrf.mxu0
  %195 = vdwg.mxu0
  %197 = vrot.lane.b32.xlu0 %v143, 112
  %v198 = vpop.permute.xlu0 %197
  %v200 = vsel %vm149, %v139, 0
  %v203 = vsel %vm149, %v198, 0
  %205 = vmatprep.subr.bf16.mxu0 0
  %206 = vmatpush1.bf16.xpose.msra.mxu0 0
  %207 = vmatprep.subr.bf16.mxu0 0
  %208 = vmatpush1.bf16.xpose.msra.mxu0 0
  %209 = vmatprep.subr.bf16.mxu0 0
  %210 = vmatpush1.bf16.xpose.msra.mxu0 0
  %211 = vmatprep.subr.bf16.mxu0 0
  %212 = vmatpush1.bf16.xpose.msra.mxu0 0
  %213 = vmatprep.subr.bf16.mxu0 0
  %214 = vmatpush1.bf16.xpose.msra.mxu0 0
  %215 = vmatprep.subr.bf16.mxu0 0
  %216 = vmatpush1.bf16.xpose.msra.mxu0 0
  %217 = vmatprep.subr.bf16.mxu0 0
  %218 = vmatpush1.bf16.xpose.msra.mxu0 0
  %219 = vmatprep.subr.bf16.mxu0 0
  %220 = vmatpush1.bf16.xpose.msra.mxu0 %v203
  %221 = vmatprep.subr.bf16.mxu0 0
  %222 = vmatpush2.bf16.xpose.msra.mxu0 0
  %223 = vmatprep.subr.bf16.mxu0 0
  %224 = vmatpush2.bf16.xpose.msra.mxu0 0
  %225 = vmatprep.subr.bf16.mxu0 0
  %226 = vmatpush2.bf16.xpose.msra.mxu0 0
  %227 = vmatprep.subr.bf16.mxu0 0
  %228 = vmatpush2.bf16.xpose.msra.mxu0 0
  %229 = vmatprep.subr.bf16.mxu0 0
  %230 = vmatpush2.bf16.xpose.msra.mxu0 0
  %231 = vmatprep.subr.bf16.mxu0 0
  %232 = vmatpush2.bf16.xpose.msra.mxu0 0
  %233 = vmatprep.subr.bf16.mxu0 0
  %234 = vmatpush2.bf16.xpose.msra.mxu0 0
  %235 = vmatprep.subr.bf16.mxu0 0
  %236 = vmatpush2.bf16.xpose.msra.mxu0 0
  %237 = vmatprep.mubr.bf16.mxu0 0
  %238 = vmatmul.mubr.bf16.gmra.mxu0 %v200
  %v239 = vpop.f32.mrf.mxu0
  %v240 = vadd.f32 0.0, %v239
  %v241 = vpop.f32.mrf.mxu0
  %v242 = vpop.f32.mrf.mxu0
  %v243 = vpop.f32.mrf.mxu0
  %244 = vdwg.mxu0
  %246 = vrot.lane.b32.xlu0 %v144, 112
  %v247 = vpop.permute.xlu0 %246
  %v249 = vsel %vm149, %v140, 0
  %v252 = vsel %vm149, %v247, 0
  %254 = vmatprep.subr.bf16.mxu0 0
  %255 = vmatpush1.bf16.xpose.msra.mxu0 0
  %256 = vmatprep.subr.bf16.mxu0 0
  %257 = vmatpush1.bf16.xpose.msra.mxu0 0
  %258 = vmatprep.subr.bf16.mxu0 0
  %259 = vmatpush1.bf16.xpose.msra.mxu0 0
  %260 = vmatprep.subr.bf16.mxu0 0
  %261 = vmatpush1.bf16.xpose.msra.mxu0 0
  %262 = vmatprep.subr.bf16.mxu0 0
  %263 = vmatpush1.bf16.xpose.msra.mxu0 0
  %264 = vmatprep.subr.bf16.mxu0 0
  %265 = vmatpush1.bf16.xpose.msra.mxu0 0
  %266 = vmatprep.subr.bf16.mxu0 0
  %267 = vmatpush1.bf16.xpose.msra.mxu0 0
  %268 = vmatprep.subr.bf16.mxu0 0
  %269 = vmatpush1.bf16.xpose.msra.mxu0 %v252
  %270 = vmatprep.subr.bf16.mxu0 0
  %271 = vmatpush2.bf16.xpose.msra.mxu0 0
  %272 = vmatprep.subr.bf16.mxu0 0
  %273 = vmatpush2.bf16.xpose.msra.mxu0 0
  %274 = vmatprep.subr.bf16.mxu0 0
  %275 = vmatpush2.bf16.xpose.msra.mxu0 0
  %276 = vmatprep.subr.bf16.mxu0 0
  %277 = vmatpush2.bf16.xpose.msra.mxu0 0
  %278 = vmatprep.subr.bf16.mxu0 0
  %279 = vmatpush2.bf16.xpose.msra.mxu0 0
  %280 = vmatprep.subr.bf16.mxu0 0
  %281 = vmatpush2.bf16.xpose.msra.mxu0 0
  %282 = vmatprep.subr.bf16.mxu0 0
  %283 = vmatpush2.bf16.xpose.msra.mxu0 0
  %284 = vmatprep.subr.bf16.mxu0 0
  %285 = vmatpush2.bf16.xpose.msra.mxu0 0
  %286 = vmatprep.mubr.bf16.mxu0 0
  %287 = vmatmul.mubr.bf16.gmra.mxu0 %v249
  %v288 = vpop.f32.mrf.mxu0
  %v289 = vadd.f32 0.0, %v288
  %v290 = vpop.f32.mrf.mxu0
  %v291 = vpop.f32.mrf.mxu0
  %v292 = vpop.f32.mrf.mxu0
  %293 = vdwg.mxu0
  %295 = vrot.lane.b32.xlu0 %v145, 112
  %v296 = vpop.permute.xlu0 %295
  %v298 = vsel %vm149, %v141, 0
  %v301 = vsel %vm149, %v296, 0
  %303 = vmatprep.subr.bf16.mxu0 0
  %304 = vmatpush1.bf16.xpose.msra.mxu0 0
  %305 = vmatprep.subr.bf16.mxu0 0
  %306 = vmatpush1.bf16.xpose.msra.mxu0 0
  %307 = vmatprep.subr.bf16.mxu0 0
  %308 = vmatpush1.bf16.xpose.msra.mxu0 0
  %309 = vmatprep.subr.bf16.mxu0 0
  %310 = vmatpush1.bf16.xpose.msra.mxu0 0
  %311 = vmatprep.subr.bf16.mxu0 0
  %312 = vmatpush1.bf16.xpose.msra.mxu0 0
  %313 = vmatprep.subr.bf16.mxu0 0
  %314 = vmatpush1.bf16.xpose.msra.mxu0 0
  %315 = vmatprep.subr.bf16.mxu0 0
  %316 = vmatpush1.bf16.xpose.msra.mxu0 0
  %317 = vmatprep.subr.bf16.mxu0 0
  %318 = vmatpush1.bf16.xpose.msra.mxu0 %v301
  %319 = vmatprep.subr.bf16.mxu0 0
  %320 = vmatpush2.bf16.xpose.msra.mxu0 0
  %321 = vmatprep.subr.bf16.mxu0 0
  %322 = vmatpush2.bf16.xpose.msra.mxu0 0
  %323 = vmatprep.subr.bf16.mxu0 0
  %324 = vmatpush2.bf16.xpose.msra.mxu0 0
  %325 = vmatprep.subr.bf16.mxu0 0
  %326 = vmatpush2.bf16.xpose.msra.mxu0 0
  %327 = vmatprep.subr.bf16.mxu0 0
  %328 = vmatpush2.bf16.xpose.msra.mxu0 0
  %329 = vmatprep.subr.bf16.mxu0 0
  %330 = vmatpush2.bf16.xpose.msra.mxu0 0
  %331 = vmatprep.subr.bf16.mxu0 0
  %332 = vmatpush2.bf16.xpose.msra.mxu0 0
  %333 = vmatprep.subr.bf16.mxu0 0
  %334 = vmatpush2.bf16.xpose.msra.mxu0 0
  %335 = vmatprep.mubr.bf16.mxu0 0
  %336 = vmatmul.mubr.bf16.gmra.mxu0 %v298
  %v337 = vpop.f32.mrf.mxu0
  %v338 = vadd.f32 0.0, %v337
  %v339 = vpop.f32.mrf.mxu0
  %v340 = vpop.f32.mrf.mxu0
  %v341 = vpop.f32.mrf.mxu0
  %342 = vdwg.mxu0
  %v343 = vsel %vm149, %v191, -inf
  %344 = vmax.xlane.f32.xlu0 %v343
  %v345 = vpop.xlane.xlu0 %344
  %v346 = vsel %vm149, %v240, -inf
  %347 = vmax.xlane.f32.xlu0 %v346
  %v348 = vpop.xlane.xlu0 %347
  %v349 = vsel %vm149, %v289, -inf
  %350 = vmax.xlane.f32.xlu0 %v349
  %v351 = vpop.xlane.xlu0 %350
  %v352 = vsel %vm149, %v338, -inf
  %353 = vmax.xlane.f32.xlu0 %v352
  %v354 = vpop.xlane.xlu0 %353
  %v355 = vsub.f32 %v191, %v345
  %v356 = vsub.f32 %v240, %v348
  %v357 = vsub.f32 %v289, %v351
  %v358 = vsub.f32 %v338, %v354
  %v359 = vmul.f32 %v355, 1.442695
  %v360 = vpow.pop %v359
  %v361 = vmul.f32 %v356, 1.442695
  %v362 = vpow.pop %v361
  %v363 = vmul.f32 %v357, 1.442695
  %v364 = vpow.pop %v363
  %v365 = vmul.f32 %v358, 1.442695
  %v366 = vpow.pop %v365
  %v367 = vsel %vm149, %v360, 0.0
  %368 = vadd.xlane.f32.xlu0 %v367
  %v369 = vpop.xlane.xlu0 %368
  %v370 = vsel %vm149, %v362, 0.0
  %371 = vadd.xlane.f32.xlu0 %v370
  %v372 = vpop.xlane.xlu0 %371
  %v373 = vsel %vm149, %v364, 0.0
  %374 = vadd.xlane.f32.xlu0 %v373
  %v375 = vpop.xlane.xlu0 %374
  %v376 = vsel %vm149, %v366, 0.0
  %377 = vadd.xlane.f32.xlu0 %v376
  %v378 = vpop.xlane.xlu0 %377
  %v379 = vrcp.pop %v369
  %v380 = vrcp.pop %v372
  %v381 = vrcp.pop %v375
  %v382 = vrcp.pop %v378
  %v383 = vmul.f32 %v360, %v379
  %v384 = vmul.f32 %v362, %v380
  %v385 = vmul.f32 %v364, %v381
  %v386 = vmul.f32 %v366, %v382
  %v387 = vpack.c.bf16 %v383, %v383
  %v388 = vpack.c.bf16 %v384, %v384
  %v389 = vpack.c.bf16 %v385, %v385
  %v390 = vpack.c.bf16 %v386, %v386
  %391 = vrot.lane.b32.xlu0 %v142, 96
  %v392 = vpop.permute.xlu0 %391
  %v394 = vsel %vm149, %v387, 0
  %vm396 = vcmask 1043456
  %v398 = vsel %vm396, %v392, 0
  %400 = vmatprep.subr.bf16.mxu0 0
  %401 = vmatpush1.bf16.msra.mxu0 0
  %402 = vmatprep.subr.bf16.mxu0 0
  %403 = vmatpush1.bf16.msra.mxu0 0
  %404 = vmatprep.subr.bf16.mxu0 0
  %405 = vmatpush1.bf16.msra.mxu0 0
  %406 = vmatprep.subr.bf16.mxu0 0
  %407 = vmatpush1.bf16.msra.mxu0 0
  %408 = vmatprep.subr.bf16.mxu0 0
  %409 = vmatpush1.bf16.msra.mxu0 0
  %410 = vmatprep.subr.bf16.mxu0 0
  %411 = vmatpush1.bf16.msra.mxu0 0
  %412 = vmatprep.subr.bf16.mxu0 0
  %413 = vmatpush1.bf16.msra.mxu0 0
  %414 = vmatprep.subr.bf16.mxu0 0
  %415 = vmatpush1.bf16.msra.mxu0 %v398
  %416 = vmatprep.subr.bf16.mxu0 0
  %417 = vmatpush2.bf16.msra.mxu0 0
  %418 = vmatprep.subr.bf16.mxu0 0
  %419 = vmatpush2.bf16.msra.mxu0 0
  %420 = vmatprep.subr.bf16.mxu0 0
  %421 = vmatpush2.bf16.msra.mxu0 0
  %422 = vmatprep.subr.bf16.mxu0 0
  %423 = vmatpush2.bf16.msra.mxu0 0
  %424 = vmatprep.subr.bf16.mxu0 0
  %425 = vmatpush2.bf16.msra.mxu0 0
  %426 = vmatprep.subr.bf16.mxu0 0
  %427 = vmatpush2.bf16.msra.mxu0 0
  %428 = vmatprep.subr.bf16.mxu0 0
  %429 = vmatpush2.bf16.msra.mxu0 0
  %430 = vmatprep.subr.bf16.mxu0 0
  %431 = vmatpush2.bf16.msra.mxu0 0
  %432 = vmatprep.mubr.bf16.mxu0 0
  %433 = vmatmul.mubr.bf16.gmra.mxu0 %v394
  %v434 = vpop.f32.mrf.mxu0
  %v435 = vadd.f32 0.0, %v434
  %v436 = vpop.f32.mrf.mxu0
  %v437 = vpop.f32.mrf.mxu0
  %v438 = vpop.f32.mrf.mxu0
  %439 = vdwg.mxu0
  %440 = vrot.lane.b32.xlu0 %v143, 96
  %v441 = vpop.permute.xlu0 %440
  %v443 = vsel %vm149, %v388, 0
  %v446 = vsel %vm396, %v441, 0
  %448 = vmatprep.subr.bf16.mxu0 0
  %449 = vmatpush1.bf16.msra.mxu0 0
  %450 = vmatprep.subr.bf16.mxu0 0
  %451 = vmatpush1.bf16.msra.mxu0 0
  %452 = vmatprep.subr.bf16.mxu0 0
  %453 = vmatpush1.bf16.msra.mxu0 0
  %454 = vmatprep.subr.bf16.mxu0 0
  %455 = vmatpush1.bf16.msra.mxu0 0
  %456 = vmatprep.subr.bf16.mxu0 0
  %457 = vmatpush1.bf16.msra.mxu0 0
  %458 = vmatprep.subr.bf16.mxu0 0
  %459 = vmatpush1.bf16.msra.mxu0 0
  %460 = vmatprep.subr.bf16.mxu0 0
  %461 = vmatpush1.bf16.msra.mxu0 0
  %462 = vmatprep.subr.bf16.mxu0 0
  %463 = vmatpush1.bf16.msra.mxu0 %v446
  %464 = vmatprep.subr.bf16.mxu0 0
  %465 = vmatpush2.bf16.msra.mxu0 0
  %466 = vmatprep.subr.bf16.mxu0 0
  %467 = vmatpush2.bf16.msra.mxu0 0
  %468 = vmatprep.subr.bf16.mxu0 0
  %469 = vmatpush2.bf16.msra.mxu0 0
  %470 = vmatprep.subr.bf16.mxu0 0
  %471 = vmatpush2.bf16.msra.mxu0 0
  %472 = vmatprep.subr.bf16.mxu0 0
  %473 = vmatpush2.bf16.msra.mxu0 0
  %474 = vmatprep.subr.bf16.mxu0 0
  %475 = vmatpush2.bf16.msra.mxu0 0
  %476 = vmatprep.subr.bf16.mxu0 0
  %477 = vmatpush2.bf16.msra.mxu0 0
  %478 = vmatprep.subr.bf16.mxu0 0
  %479 = vmatpush2.bf16.msra.mxu0 0
  %480 = vmatprep.mubr.bf16.mxu0 0
  %481 = vmatmul.mubr.bf16.gmra.mxu0 %v443
  %v482 = vpop.f32.mrf.mxu0
  %v483 = vadd.f32 0.0, %v482
  %v484 = vpop.f32.mrf.mxu0
  %v485 = vpop.f32.mrf.mxu0
  %v486 = vpop.f32.mrf.mxu0
  %487 = vdwg.mxu0
  %488 = vrot.lane.b32.xlu0 %v144, 96
  %v489 = vpop.permute.xlu0 %488
  %v491 = vsel %vm149, %v389, 0
  %v494 = vsel %vm396, %v489, 0
  %496 = vmatprep.subr.bf16.mxu0 0
  %497 = vmatpush1.bf16.msra.mxu0 0
  %498 = vmatprep.subr.bf16.mxu0 0
  %499 = vmatpush1.bf16.msra.mxu0 0
  %500 = vmatprep.subr.bf16.mxu0 0
  %501 = vmatpush1.bf16.msra.mxu0 0
  %502 = vmatprep.subr.bf16.mxu0 0
  %503 = vmatpush1.bf16.msra.mxu0 0
  %504 = vmatprep.subr.bf16.mxu0 0
  %505 = vmatpush1.bf16.msra.mxu0 0
  %506 = vmatprep.subr.bf16.mxu0 0
  %507 = vmatpush1.bf16.msra.mxu0 0
  %508 = vmatprep.subr.bf16.mxu0 0
  %509 = vmatpush1.bf16.msra.mxu0 0
  %510 = vmatprep.subr.bf16.mxu0 0
  %511 = vmatpush1.bf16.msra.mxu0 %v494
  %512 = vmatprep.subr.bf16.mxu0 0
  %513 = vmatpush2.bf16.msra.mxu0 0
  %514 = vmatprep.subr.bf16.mxu0 0
  %515 = vmatpush2.bf16.msra.mxu0 0
  %516 = vmatprep.subr.bf16.mxu0 0
  %517 = vmatpush2.bf16.msra.mxu0 0
  %518 = vmatprep.subr.bf16.mxu0 0
  %519 = vmatpush2.bf16.msra.mxu0 0
  %520 = vmatprep.subr.bf16.mxu0 0
  %521 = vmatpush2.bf16.msra.mxu0 0
  %522 = vmatprep.subr.bf16.mxu0 0
  %523 = vmatpush2.bf16.msra.mxu0 0
  %524 = vmatprep.subr.bf16.mxu0 0
  %525 = vmatpush2.bf16.msra.mxu0 0
  %526 = vmatprep.subr.bf16.mxu0 0
  %527 = vmatpush2.bf16.msra.mxu0 0
  %528 = vmatprep.mubr.bf16.mxu0 0
  %529 = vmatmul.mubr.bf16.gmra.mxu0 %v491
  %v530 = vpop.f32.mrf.mxu0
  %v531 = vadd.f32 0.0, %v530
  %v532 = vpop.f32.mrf.mxu0
  %v533 = vpop.f32.mrf.mxu0
  %v534 = vpop.f32.mrf.mxu0
  %535 = vdwg.mxu0
  %536 = vrot.lane.b32.xlu0 %v145, 96
  %v537 = vpop.permute.xlu0 %536
  %v539 = vsel %vm149, %v390, 0
  %v542 = vsel %vm396, %v537, 0
  %544 = vmatprep.subr.bf16.mxu0 0
  %545 = vmatpush1.bf16.msra.mxu0 0
  %546 = vmatprep.subr.bf16.mxu0 0
  %547 = vmatpush1.bf16.msra.mxu0 0
  %548 = vmatprep.subr.bf16.mxu0 0
  %549 = vmatpush1.bf16.msra.mxu0 0
  %550 = vmatprep.subr.bf16.mxu0 0
  %551 = vmatpush1.bf16.msra.mxu0 0
  %552 = vmatprep.subr.bf16.mxu0 0
  %553 = vmatpush1.bf16.msra.mxu0 0
  %554 = vmatprep.subr.bf16.mxu0 0
  %555 = vmatpush1.bf16.msra.mxu0 0
  %556 = vmatprep.subr.bf16.mxu0 0
  %557 = vmatpush1.bf16.msra.mxu0 0
  %558 = vmatprep.subr.bf16.mxu0 0
  %559 = vmatpush1.bf16.msra.mxu0 %v542
  %560 = vmatprep.subr.bf16.mxu0 0
  %561 = vmatpush2.bf16.msra.mxu0 0
  %562 = vmatprep.subr.bf16.mxu0 0
  %563 = vmatpush2.bf16.msra.mxu0 0
  %564 = vmatprep.subr.bf16.mxu0 0
  %565 = vmatpush2.bf16.msra.mxu0 0
  %566 = vmatprep.subr.bf16.mxu0 0
  %567 = vmatpush2.bf16.msra.mxu0 0
  %568 = vmatprep.subr.bf16.mxu0 0
  %569 = vmatpush2.bf16.msra.mxu0 0
  %570 = vmatprep.subr.bf16.mxu0 0
  %571 = vmatpush2.bf16.msra.mxu0 0
  %572 = vmatprep.subr.bf16.mxu0 0
  %573 = vmatpush2.bf16.msra.mxu0 0
  %574 = vmatprep.subr.bf16.mxu0 0
  %575 = vmatpush2.bf16.msra.mxu0 0
  %576 = vmatprep.mubr.bf16.mxu0 0
  %577 = vmatmul.mubr.bf16.gmra.mxu0 %v539
  %v578 = vpop.f32.mrf.mxu0
  %v579 = vadd.f32 0.0, %v578
  %v580 = vpop.f32.mrf.mxu0
  %v581 = vpop.f32.mrf.mxu0
  %v582 = vpop.f32.mrf.mxu0
  %583 = vdwg.mxu0
  %v584 = vld [vmem:[%s3] sm:$0xf]
  %v585 = vld [vmem:[%s3 + $0x4] sm:$0xf]
  %v586 = vpack.c.bf16 %v483, %v435
  %v587 = vpack.c.bf16 %v579, %v531
  %v589 = vsel %vm149, %v587, 0
  %v592 = vsel %vm396, %v585, 0
  %594 = vmatprep.subr.bf16.mxu0 0
  %595 = vmatpush1.bf16.msra.mxu0 0
  %596 = vmatprep.subr.bf16.mxu0 0
  %597 = vmatpush1.bf16.msra.mxu0 0
  %598 = vmatprep.subr.bf16.mxu0 0
  %599 = vmatpush1.bf16.msra.mxu0 0
  %600 = vmatprep.subr.bf16.mxu0 0
  %601 = vmatpush1.bf16.msra.mxu0 0
  %602 = vmatprep.subr.bf16.mxu0 0
  %603 = vmatpush1.bf16.msra.mxu0 0
  %604 = vmatprep.subr.bf16.mxu0 0
  %605 = vmatpush1.bf16.msra.mxu0 0
  %606 = vmatprep.subr.bf16.mxu0 0
  %607 = vmatpush1.bf16.msra.mxu0 0
  %608 = vmatprep.subr.bf16.mxu0 0
  %609 = vmatpush1.bf16.msra.mxu0 %v592
  %610 = vmatprep.subr.bf16.mxu0 0
  %611 = vmatpush2.bf16.msra.mxu0 0
  %612 = vmatprep.subr.bf16.mxu0 0
  %613 = vmatpush2.bf16.msra.mxu0 0
  %614 = vmatprep.subr.bf16.mxu0 0
  %615 = vmatpush2.bf16.msra.mxu0 0
  %616 = vmatprep.subr.bf16.mxu0 0
  %617 = vmatpush2.bf16.msra.mxu0 0
  %618 = vmatprep.subr.bf16.mxu0 0
  %619 = vmatpush2.bf16.msra.mxu0 0
  %620 = vmatprep.subr.bf16.mxu0 0
  %621 = vmatpush2.bf16.msra.mxu0 0
  %622 = vmatprep.subr.bf16.mxu0 0
  %623 = vmatpush2.bf16.msra.mxu0 0
  %624 = vmatprep.subr.bf16.mxu0 0
  %625 = vmatpush2.bf16.msra.mxu0 0
  %626 = vmatprep.mubr.bf16.mxu0 0
  %627 = vmatmul.mubr.bf16.gmra.mxu0 %v589
  %v628 = vpop.f32.mrf.mxu0
  %v629 = vadd.f32 0.0, %v628
  %v630 = vpop.f32.mrf.mxu0
  %v631 = vpop.f32.mrf.mxu0
  %v632 = vadd.f32 0.0, %v631
  %v633 = vpop.f32.mrf.mxu0
  %634 = vdwg.mxu0
  %v636 = vsel %vm149, %v586, 0
  %v639 = vsel %vm396, %v584, 0
  %641 = vmatprep.subr.bf16.mxu0 0
  %642 = vmatpush1.bf16.msra.mxu0 0
  %643 = vmatprep.subr.bf16.mxu0 0
  %644 = vmatpush1.bf16.msra.mxu0 0
  %645 = vmatprep.subr.bf16.mxu0 0
  %646 = vmatpush1.bf16.msra.mxu0 0
  %647 = vmatprep.subr.bf16.mxu0 0
  %648 = vmatpush1.bf16.msra.mxu0 0
  %649 = vmatprep.subr.bf16.mxu0 0
  %650 = vmatpush1.bf16.msra.mxu0 0
  %651 = vmatprep.subr.bf16.mxu0 0
  %652 = vmatpush1.bf16.msra.mxu0 0
  %653 = vmatprep.subr.bf16.mxu0 0
  %654 = vmatpush1.bf16.msra.mxu0 0
  %655 = vmatprep.subr.bf16.mxu0 0
  %656 = vmatpush1.bf16.msra.mxu0 %v639
  %657 = vmatprep.subr.bf16.mxu0 0
  %658 = vmatpush2.bf16.msra.mxu0 0
  %659 = vmatprep.subr.bf16.mxu0 0
  %660 = vmatpush2.bf16.msra.mxu0 0
  %661 = vmatprep.subr.bf16.mxu0 0
  %662 = vmatpush2.bf16.msra.mxu0 0
  %663 = vmatprep.subr.bf16.mxu0 0
  %664 = vmatpush2.bf16.msra.mxu0 0
  %665 = vmatprep.subr.bf16.mxu0 0
  %666 = vmatpush2.bf16.msra.mxu0 0
  %667 = vmatprep.subr.bf16.mxu0 0
  %668 = vmatpush2.bf16.msra.mxu0 0
  %669 = vmatprep.subr.bf16.mxu0 0
  %670 = vmatpush2.bf16.msra.mxu0 0
  %671 = vmatprep.subr.bf16.mxu0 0
  %672 = vmatpush2.bf16.msra.mxu0 0
  %673 = vmatprep.mubr.bf16.mxu0 0
  %674 = vmatmul.mubr.bf16.gmra.mxu0 %v636
  %v675 = vpop.f32.mrf.mxu0
  %v676 = vadd.f32 %v629, %v675
  %v677 = vpop.f32.mrf.mxu0
  %v678 = vpop.f32.mrf.mxu0
  %v679 = vadd.f32 %v632, %v678
  %v680 = vpop.f32.mrf.mxu0
  %681 = vdwg.mxu0
  %v682 = vadd.f32 %v30, %v676
  %v683 = vadd.f32 %v31, %v679
  %v684 = vsel %vm33, %v682, 0.0
  %685 = vadd.xlane.f32.xlu0 %v684
  %v686 = vpop.xlane.xlu0 %685
  %v687 = vsel %vm33, %v683, 0.0
  %688 = vadd.xlane.f32.xlu0 %v687
  %v689 = vpop.xlane.xlu0 %688
  %v690 = vmul.f32 %v686, %v40
  %v691 = vmul.f32 %v689, %v40
  %v692 = vsub.f32 %v682, %v690
  %v693 = vsub.f32 %v683, %v691
  %v694 = vmul.f32 %v692, %v692
  %v695 = vmul.f32 %v693, %v693
  %v696 = vsel %vm33, %v694, 0.0
  %697 = vadd.xlane.f32.xlu0 %v696
  %v698 = vpop.xlane.xlu0 %697
  %v699 = vsel %vm33, %v695, 0.0
  %700 = vadd.xlane.f32.xlu0 %v699
  %v701 = vpop.xlane.xlu0 %700
  %v702 = vmul.f32 %v698, %v40
  %v703 = vmul.f32 %v701, %v40
  %v704 = vadd.f32 %v702, 1e-05
  %v705 = vadd.f32 %v703, 1e-05
  %v706 = vrsqrt.pop %v704
  %v707 = vrsqrt.pop %v705
  %v708 = vmul.f32 %v692, %v706
  %v709 = vmul.f32 %v693, %v707
  %v710 = vlaneseq
  %v711 = vshrl.u32 %v710, 7
  %v712 = vsub.s32 2, %v711
  %v713 = vrot.slane %v32, %v712
  %v714 = vmul.f32 %v708, %v713
  %v715 = vmul.f32 %v709, %v713
  %v716 = vlaneseq
  %v717 = vshrl.u32 %v716, 7
  %v718 = vsub.s32 3, %v717
  %v719 = vrot.slane %v32, %v718
  %v720 = vadd.f32 %v714, %v719
  %v721 = vadd.f32 %v715, %v719
  %v722 = vld [vmem:[%s6] sm:$0x3]
  %v723 = vld [vmem:[%s4] sm:$0xf]
  %v724 = vld [vmem:[%s4 + $0x4] sm:$0xf]
  %v725 = vpack.c.bf16 %v721, %v720
  %v726 = vlaneseq
  %v727 = vshrl.u32 %v726, 7
  %v728 = vsub.s32 0, %v727
  %v729 = vrot.slane %v722, %v728
  %v732 = vunpack.c.l.b16 %v723
  %v733 = vunpack.c.l.b16 %v724
  %v734 = vpack.c.b16 %v733, %v732
  %v737 = vsel %vm33, %v725, 0
  %739 = vmatprep.subr.bf16.mxu0 0
  %740 = vmatpush1.bf16.msra.mxu0 0
  %741 = vmatprep.subr.bf16.mxu0 0
  %742 = vmatpush1.bf16.msra.mxu0 0
  %743 = vmatprep.subr.bf16.mxu0 0
  %744 = vmatpush1.bf16.msra.mxu0 0
  %745 = vmatprep.subr.bf16.mxu0 0
  %746 = vmatpush1.bf16.msra.mxu0 0
  %747 = vmatprep.subr.bf16.mxu0 0
  %748 = vmatpush1.bf16.msra.mxu0 0
  %749 = vmatprep.subr.bf16.mxu0 0
  %750 = vmatpush1.bf16.msra.mxu0 0
  %751 = vmatprep.subr.bf16.mxu0 0
  %752 = vmatpush1.bf16.msra.mxu0 0
  %753 = vmatprep.subr.bf16.mxu0 0
  %754 = vmatpush1.bf16.msra.mxu0 %v734
  %755 = vmatprep.subr.bf16.mxu0 0
  %756 = vmatpush2.bf16.msra.mxu0 0
  %757 = vmatprep.subr.bf16.mxu0 0
  %758 = vmatpush2.bf16.msra.mxu0 0
  %759 = vmatprep.subr.bf16.mxu0 0
  %760 = vmatpush2.bf16.msra.mxu0 0
  %761 = vmatprep.subr.bf16.mxu0 0
  %762 = vmatpush2.bf16.msra.mxu0 0
  %763 = vmatprep.subr.bf16.mxu0 0
  %764 = vmatpush2.bf16.msra.mxu0 0
  %765 = vmatprep.subr.bf16.mxu0 0
  %766 = vmatpush2.bf16.msra.mxu0 0
  %767 = vmatprep.subr.bf16.mxu0 0
  %768 = vmatpush2.bf16.msra.mxu0 0
  %769 = vmatprep.subr.bf16.mxu0 0
  %770 = vmatpush2.bf16.msra.mxu0 0
  %771 = vmatprep.mubr.bf16.mxu0 0
  %772 = vmatmul.mubr.bf16.gmra.mxu0 %v737
  %v773 = vpop.f32.mrf.mxu0
  %v774 = vadd.f32 %v729, %v773
  %v775 = vpop.f32.mrf.mxu0
  %v776 = vpop.f32.mrf.mxu0
  %v777 = vadd.f32 %v729, %v776
  %v778 = vpop.f32.mrf.mxu0
  %779 = vdwg.mxu0
  %v780 = vmul.f32 %v774, 0.5
  %v781 = vmul.f32 %v777, 0.5
  %v782 = vmul.f32 %v774, 0.044715
  %v783 = vmul.f32 %v777, 0.044715
  %v784 = vmul.f32 %v782, %v774
  %v785 = vmul.f32 %v783, %v777
  %v786 = vmul.f32 %v784, %v774
  %v787 = vmul.f32 %v785, %v777
  %v788 = vadd.f32 %v774, %v786
  %v789 = vadd.f32 %v777, %v787
  %v790 = vmul.f32 %v788, 0.7978846
  %v791 = vmul.f32 %v789, 0.7978846
  %v792 = vtanh.pop %v790
  %v793 = vtanh.pop %v791
  %v794 = vadd.f32 %v792, 1.0
  %v795 = vadd.f32 %v793, 1.0
  %v796 = vmul.f32 %v780, %v794
  %v797 = vmul.f32 %v781, %v795
  %v798 = vld [vmem:[%s5] sm:$0xf]
  %v799 = vld [vmem:[%s5 + $0x4] sm:$0xf]
  %v800 = vld [vmem:[%s5 + $0x8] sm:$0xf]
  %v801 = vld [vmem:[%s5 + $0xc] sm:$0xf]
  %v802 = vld [vmem:[%s5 + $0x10] sm:$0xf]
  %v803 = vld [vmem:[%s5 + $0x14] sm:$0xf]
  %v804 = vld [vmem:[%s5 + $0x18] sm:$0xf]
  %v805 = vld [vmem:[%s5 + $0x1c] sm:$0xf]
  %v806 = vpack.c.bf16 %v797, %v796
  %v815 = vunpack.c.l.b16 %v798
  %v816 = vunpack.c.l.b16 %v799
  %v817 = vunpack.c.l.b16 %v800
  %v818 = vunpack.c.l.b16 %v801
  %v819 = vunpack.c.l.b16 %v802
  %v820 = vunpack.c.l.b16 %v803
  %v821 = vunpack.c.l.b16 %v804
  %v822 = vunpack.c.l.b16 %v805
  %v823 = vpack.c.b16 %v816, %v815
  %v824 = vpack.c.b16 %v818, %v817
  %v825 = vpack.c.b16 %v820, %v819
  %v826 = vpack.c.b16 %v822, %v821
  %vm831 = vcmask 523264
  %v833 = vsel %vm831, %v806, 0
  %835 = vmatprep.subr.bf16.mxu0 0
  %836 = vmatpush1.bf16.msra.mxu0 0
  %837 = vmatprep.subr.bf16.mxu0 0
  %838 = vmatpush1.bf16.msra.mxu0 0
  %839 = vmatprep.subr.bf16.mxu0 0
  %840 = vmatpush1.bf16.msra.mxu0 0
  %841 = vmatprep.subr.bf16.mxu0 0
  %842 = vmatpush1.bf16.msra.mxu0 0
  %843 = vmatprep.subr.bf16.mxu0 0
  %844 = vmatpush1.bf16.msra.mxu0 %v826
  %845 = vmatprep.subr.bf16.mxu0 0
  %846 = vmatpush1.bf16.msra.mxu0 %v825
  %847 = vmatprep.subr.bf16.mxu0 0
  %848 = vmatpush1.bf16.msra.mxu0 %v824
  %849 = vmatprep.subr.bf16.mxu0 0
  %850 = vmatpush1.bf16.msra.mxu0 %v823
  %851 = vmatprep.subr.bf16.mxu0 0
  %852 = vmatpush2.bf16.msra.mxu0 0
  %853 = vmatprep.subr.bf16.mxu0 0
  %854 = vmatpush2.bf16.msra.mxu0 0
  %855 = vmatprep.subr.bf16.mxu0 0
  %856 = vmatpush2.bf16.msra.mxu0 0
  %857 = vmatprep.subr.bf16.mxu0 0
  %858 = vmatpush2.bf16.msra.mxu0 0
  %859 = vmatprep.subr.bf16.mxu0 0
  %860 = vmatpush2.bf16.msra.mxu0 0
  %861 = vmatprep.subr.bf16.mxu0 0
  %862 = vmatpush2.bf16.msra.mxu0 0
  %863 = vmatprep.subr.bf16.mxu0 0
  %864 = vmatpush2.bf16.msra.mxu0 0
  %865 = vmatprep.subr.bf16.mxu0 0
  %866 = vmatpush2.bf16.msra.mxu0 0
  %867 = vmatprep.mubr.bf16.mxu0 0
  %868 = vmatmul.mubr.bf16.gmra.mxu0 %v833
  %v869 = vpop.f32.mrf.mxu0
  %v870 = vadd.f32 0.0, %v869
  %v871 = vpop.f32.mrf.mxu0
  %v872 = vpop.f32.mrf.mxu0
  %v873 = vadd.f32 0.0, %v872
  %v874 = vpop.f32.mrf.mxu0
  %875 = vdwg.mxu0
  %v876 = vadd.f32 %v682, %v870
  %v877 = vadd.f32 %v683, %v873
  %v878 = vlaneseq
  %v879 = vshrl.u32 %v878, 7
  %v880 = vsub.s32 1, %v879
  %v881 = vrot.slane %v722, %v880
  %v882 = vadd.f32 %v876, %v881
  %v883 = vadd.f32 %v877, %v881
  %s884 = scalar_lea.vmem %s1, 4
  %v885 = vld [vmem:[%s884] sm:$0xf]
  %v886 = vsel %vm33, %v882, 0.0
  %887 = vadd.xlane.f32.xlu0 %v886
  %v888 = vpop.xlane.xlu0 %887
  %v889 = vsel %vm33, %v883, 0.0
  %890 = vadd.xlane.f32.xlu0 %v889
  %v891 = vpop.xlane.xlu0 %890
  %v892 = vmul.f32 %v888, %v40
  %v893 = vmul.f32 %v891, %v40
  %v894 = vsub.f32 %v882, %v892
  %v895 = vsub.f32 %v883, %v893
  %v896 = vmul.f32 %v894, %v894
  %v897 = vmul.f32 %v895, %v895
  %v898 = vsel %vm33, %v896, 0.0
  %899 = vadd.xlane.f32.xlu0 %v898
  %v900 = vpop.xlane.xlu0 %899
  %v901 = vsel %vm33, %v897, 0.0
  %902 = vadd.xlane.f32.xlu0 %v901
  %v903 = vpop.xlane.xlu0 %902
  %v904 = vmul.f32 %v900, %v40
  %v905 = vmul.f32 %v903, %v40
  %v906 = vadd.f32 %v904, 1e-05
  %v907 = vadd.f32 %v905, 1e-05
  %v908 = vrsqrt.pop %v906
  %v909 = vrsqrt.pop %v907
  %v910 = vmul.f32 %v894, %v908
  %v911 = vmul.f32 %v895, %v909
  %v912 = vlaneseq
  %v913 = vshrl.u32 %v912, 7
  %v914 = vsub.s32 0, %v913
  %v915 = vrot.slane %v885, %v914
  %v916 = vmul.f32 %v910, %v915
  %v917 = vmul.f32 %v911, %v915
  %v918 = vlaneseq
  %v919 = vshrl.u32 %v918, 7
  %v920 = vsub.s32 1, %v919
  %v921 = vrot.slane %v885, %v920
  %v922 = vadd.f32 %v916, %v921
  %v923 = vadd.f32 %v917, %v921
  %s924 = scalar_lea.vmem %s2, 8
  %v925 = vld [vmem:[%s924] sm:$0xf]
  %v926 = vld [vmem:[%s924 + $0x4] sm:$0xf]
  %v927 = vpack.c.bf16 %v923, %v922
  %v930 = vunpack.c.l.b16 %v925
  %v931 = vunpack.c.l.b16 %v926
  %v932 = vpack.c.b16 %v931, %v930
  %v935 = vsel %vm33, %v927, 0
  %937 = vmatprep.subr.bf16.mxu0 0
  %938 = vmatpush1.bf16.msra.mxu0 0
  %939 = vmatprep.subr.bf16.mxu0 0
  %940 = vmatpush1.bf16.msra.mxu0 0
  %941 = vmatprep.subr.bf16.mxu0 0
  %942 = vmatpush1.bf16.msra.mxu0 0
  %943 = vmatprep.subr.bf16.mxu0 0
  %944 = vmatpush1.bf16.msra.mxu0 0
  %945 = vmatprep.subr.bf16.mxu0 0
  %946 = vmatpush1.bf16.msra.mxu0 0
  %947 = vmatprep.subr.bf16.mxu0 0
  %948 = vmatpush1.bf16.msra.mxu0 0
  %949 = vmatprep.subr.bf16.mxu0 0
  %950 = vmatpush1.bf16.msra.mxu0 0
  %951 = vmatprep.subr.bf16.mxu0 0
  %952 = vmatpush1.bf16.msra.mxu0 %v932
  %953 = vmatprep.subr.bf16.mxu0 0
  %954 = vmatpush2.bf16.msra.mxu0 0
  %955 = vmatprep.subr.bf16.mxu0 0
  %956 = vmatpush2.bf16.msra.mxu0 0
  %957 = vmatprep.subr.bf16.mxu0 0
  %958 = vmatpush2.bf16.msra.mxu0 0
  %959 = vmatprep.subr.bf16.mxu0 0
  %960 = vmatpush2.bf16.msra.mxu0 0
  %961 = vmatprep.subr.bf16.mxu0 0
  %962 = vmatpush2.bf16.msra.mxu0 0
  %963 = vmatprep.subr.bf16.mxu0 0
  %964 = vmatpush2.bf16.msra.mxu0 0
  %965 = vmatprep.subr.bf16.mxu0 0
  %966 = vmatpush2.bf16.msra.mxu0 0
  %967 = vmatprep.subr.bf16.mxu0 0
  %968 = vmatpush2.bf16.msra.mxu0 0
  %969 = vmatprep.mubr.bf16.mxu0 0
  %970 = vmatmul.mubr.bf16.gmra.mxu0 %v935
  %v971 = vpop.f32.mrf.mxu0
  %v972 = vadd.f32 0.0, %v971
  %v973 = vpop.f32.mrf.mxu0
  %v974 = vpop.f32.mrf.mxu0
  %v975 = vadd.f32 0.0, %v974
  %v976 = vpop.f32.mrf.mxu0
  %977 = vdwg.mxu0
  %980 = vrot.lane.b32.xlu0 %v972, 120
  %v981 = vpop.permute.xlu0 %980
  %982 = vrot.lane.b32.xlu0 %v975, 120
  %v983 = vpop.permute.xlu0 %982
  %v986 = vmul.f32 %v972, 0.35355338
  %v987 = vmul.f32 %v975, 0.35355338
  %v988 = vmul.f32 %v981, 0.35355338
  %v989 = vmul.f32 %v983, 0.35355338
  %v990 = vpack.c.bf16 %v986, %v986
  %v991 = vpack.c.bf16 %v987, %v987
  %v992 = vpack.c.bf16 %v988, %v988
  %v993 = vpack.c.bf16 %v989, %v989
  %v994 = vpack.c.bf16 %v972, %v972
  %v995 = vpack.c.bf16 %v975, %v975
  %v996 = vpack.c.bf16 %v981, %v981
  %v997 = vpack.c.bf16 %v983, %v983
  %999 = vrot.lane.b32.xlu0 %v994, 112
  %v1000 = vpop.permute.xlu0 %999
  %v1002 = vsel %vm149, %v990, 0
  %v1005 = vsel %vm149, %v1000, 0
  %1007 = vmatprep.subr.bf16.mxu0 0
  %1008 = vmatpush1.bf16.xpose.msra.mxu0 0
  %1009 = vmatprep.subr.bf16.mxu0 0
  %1010 = vmatpush1.bf16.xpose.msra.mxu0 0
  %1011 = vmatprep.subr.bf16.mxu0 0
  %1012 = vmatpush1.bf16.xpose.msra.mxu0 0
  %1013 = vmatprep.subr.bf16.mxu0 0
  %1014 = vmatpush1.bf16.xpose.msra.mxu0 0
  %1015 = vmatprep.subr.bf16.mxu0 0
  %1016 = vmatpush1.bf16.xpose.msra.mxu0 0
  %1017 = vmatprep.subr.bf16.mxu0 0
  %1018 = vmatpush1.bf16.xpose.msra.mxu0 0
  %1019 = vmatprep.subr.bf16.mxu0 0
  %1020 = vmatpush1.bf16.xpose.msra.mxu0 0
  %1021 = vmatprep.subr.bf16.mxu0 0
  %1022 = vmatpush1.bf16.xpose.msra.mxu0 %v1005
  %1023 = vmatprep.subr.bf16.mxu0 0
  %1024 = vmatpush2.bf16.xpose.msra.mxu0 0
  %1025 = vmatprep.subr.bf16.mxu0 0
  %1026 = vmatpush2.bf16.xpose.msra.mxu0 0
  %1027 = vmatprep.subr.bf16.mxu0 0
  %1028 = vmatpush2.bf16.xpose.msra.mxu0 0
  %1029 = vmatprep.subr.bf16.mxu0 0
  %1030 = vmatpush2.bf16.xpose.msra.mxu0 0
  %1031 = vmatprep.subr.bf16.mxu0 0
  %1032 = vmatpush2.bf16.xpose.msra.mxu0 0
  %1033 = vmatprep.subr.bf16.mxu0 0
  %1034 = vmatpush2.bf16.xpose.msra.mxu0 0
  %1035 = vmatprep.subr.bf16.mxu0 0
  %1036 = vmatpush2.bf16.xpose.msra.mxu0 0
  %1037 = vmatprep.subr.bf16.mxu0 0
  %1038 = vmatpush2.bf16.xpose.msra.mxu0 0
  %1039 = vmatprep.mubr.bf16.mxu0 0
  %1040 = vmatmul.mubr.bf16.gmra.mxu0 %v1002
  %v1041 = vpop.f32.mrf.mxu0
  %v1042 = vadd.f32 0.0, %v1041
  %v1043 = vpop.f32.mrf.mxu0
  %v1044 = vpop.f32.mrf.mxu0
  %v1045 = vpop.f32.mrf.mxu0
  %1046 = vdwg.mxu0
  %1048 = vrot.lane.b32.xlu0 %v995, 112
  %v1049 = vpop.permute.xlu0 %1048
  %v1051 = vsel %vm149, %v991, 0
  %v1054 = vsel %vm149, %v1049, 0
  %1056 = vmatprep.subr.bf16.mxu0 0
  %1057 = vmatpush1.bf16.xpose.msra.mxu0 0
  %1058 = vmatprep.subr.bf16.mxu0 0
  %1059 = vmatpush1.bf16.xpose.msra.mxu0 0
  %1060 = vmatprep.subr.bf16.mxu0 0
  %1061 = vmatpush1.bf16.xpose.msra.mxu0 0
  %1062 = vmatprep.subr.bf16.mxu0 0
  %1063 = vmatpush1.bf16.xpose.msra.mxu0 0
  %1064 = vmatprep.subr.bf16.mxu0 0
  %1065 = vmatpush1.bf16.xpose.msra.mxu0 0
  %1066 = vmatprep.subr.bf16.mxu0 0
  %1067 = vmatpush1.bf16.xpose.msra.mxu0 0
  %1068 = vmatprep.subr.bf16.mxu0 0
  %1069 = vmatpush1.bf16.xpose.msra.mxu0 0
  %1070 = vmatprep.subr.bf16.mxu0 0
  %1071 = vmatpush1.bf16.xpose.msra.mxu0 %v1054
  %1072 = vmatprep.subr.bf16.mxu0 0
  %1073 = vmatpush2.bf16.xpose.msra.mxu0 0
  %1074 = vmatprep.subr.bf16.mxu0 0
  %1075 = vmatpush2.bf16.xpose.msra.mxu0 0
  %1076 = vmatprep.subr.bf16.mxu0 0
  %1077 = vmatpush2.bf16.xpose.msra.mxu0 0
  %1078 = vmatprep.subr.bf16.mxu0 0
  %1079 = vmatpush2.bf16.xpose.msra.mxu0 0
  %1080 = vmatprep.subr.bf16.mxu0 0
  %1081 = vmatpush2.bf16.xpose.msra.mxu0 0
  %1082 = vmatprep.subr.bf16.mxu0 0
  %1083 = vmatpush2.bf16.xpose.msra.mxu0 0
  %1084 = vmatprep.subr.bf16.mxu0 0
  %1085 = vmatpush2.bf16.xpose.msra.mxu0 0
  %1086 = vmatprep.subr.bf16.mxu0 0
  %1087 = vmatpush2.bf16.xpose.msra.mxu0 0
  %1088 = vmatprep.mubr.bf16.mxu0 0
  %1089 = vmatmul.mubr.bf16.gmra.mxu0 %v1051
  %v1090 = vpop.f32.mrf.mxu0
  %v1091 = vadd.f32 0.0, %v1090
  %v1092 = vpop.f32.mrf.mxu0
  %v1093 = vpop.f32.mrf.mxu0
  %v1094 = vpop.f32.mrf.mxu0
  %1095 = vdwg.mxu0
  %1097 = vrot.lane.b32.xlu0 %v996, 112
  %v1098 = vpop.permute.xlu0 %1097
  %v1100 = vsel %vm149, %v992, 0
  %v1103 = vsel %vm149, %v1098, 0
  %1105 = vmatprep.subr.bf16.mxu0 0
  %1106 = vmatpush1.bf16.xpose.msra.mxu0 0
  %1107 = vmatprep.subr.bf16.mxu0 0
  %1108 = vmatpush1.bf16.xpose.msra.mxu0 0
  %1109 = vmatprep.subr.bf16.mxu0 0
  %1110 = vmatpush1.bf16.xpose.msra.mxu0 0
  %1111 = vmatprep.subr.bf16.mxu0 0
  %1112 = vmatpush1.bf16.xpose.msra.mxu0 0
  %1113 = vmatprep.subr.bf16.mxu0 0
  %1114 = vmatpush1.bf16.xpose.msra.mxu0 0
  %1115 = vmatprep.subr.bf16.mxu0 0
  %1116 = vmatpush1.bf16.xpose.msra.mxu0 0
  %1117 = vmatprep.subr.bf16.mxu0 0
  %1118 = vmatpush1.bf16.xpose.msra.mxu0 0
  %1119 = vmatprep.subr.bf16.mxu0 0
  %1120 = vmatpush1.bf16.xpose.msra.mxu0 %v1103
  %1121 = vmatprep.subr.bf16.mxu0 0
  %1122 = vmatpush2.bf16.xpose.msra.mxu0 0
  %1123 = vmatprep.subr.bf16.mxu0 0
  %1124 = vmatpush2.bf16.xpose.msra.mxu0 0
  %1125 = vmatprep.subr.bf16.mxu0 0
  %1126 = vmatpush2.bf16.xpose.msra.mxu0 0
  %1127 = vmatprep.subr.bf16.mxu0 0
  %1128 = vmatpush2.bf16.xpose.msra.mxu0 0
  %1129 = vmatprep.subr.bf16.mxu0 0
  %1130 = vmatpush2.bf16.xpose.msra.mxu0 0
  %1131 = vmatprep.subr.bf16.mxu0 0
  %1132 = vmatpush2.bf16.xpose.msra.mxu0 0
  %1133 = vmatprep.subr.bf16.mxu0 0
  %1134 = vmatpush2.bf16.xpose.msra.mxu0 0
  %1135 = vmatprep.subr.bf16.mxu0 0
  %1136 = vmatpush2.bf16.xpose.msra.mxu0 0
  %1137 = vmatprep.mubr.bf16.mxu0 0
  %1138 = vmatmul.mubr.bf16.gmra.mxu0 %v1100
  %v1139 = vpop.f32.mrf.mxu0
  %v1140 = vadd.f32 0.0, %v1139
  %v1141 = vpop.f32.mrf.mxu0
  %v1142 = vpop.f32.mrf.mxu0
  %v1143 = vpop.f32.mrf.mxu0
  %1144 = vdwg.mxu0
  %1146 = vrot.lane.b32.xlu0 %v997, 112
  %v1147 = vpop.permute.xlu0 %1146
  %v1149 = vsel %vm149, %v993, 0
  %v1152 = vsel %vm149, %v1147, 0
  %1154 = vmatprep.subr.bf16.mxu0 0
  %1155 = vmatpush1.bf16.xpose.msra.mxu0 0
  %1156 = vmatprep.subr.bf16.mxu0 0
  %1157 = vmatpush1.bf16.xpose.msra.mxu0 0
  %1158 = vmatprep.subr.bf16.mxu0 0
  %1159 = vmatpush1.bf16.xpose.msra.mxu0 0
  %1160 = vmatprep.subr.bf16.mxu0 0
  %1161 = vmatpush1.bf16.xpose.msra.mxu0 0
  %1162 = vmatprep.subr.bf16.mxu0 0
  %1163 = vmatpush1.bf16.xpose.msra.mxu0 0
  %1164 = vmatprep.subr.bf16.mxu0 0
  %1165 = vmatpush1.bf16.xpose.msra.mxu0 0
  %1166 = vmatprep.subr.bf16.mxu0 0
  %1167 = vmatpush1.bf16.xpose.msra.mxu0 0
  %1168 = vmatprep.subr.bf16.mxu0 0
  %1169 = vmatpush1.bf16.xpose.msra.mxu0 %v1152
  %1170 = vmatprep.subr.bf16.mxu0 0
  %1171 = vmatpush2.bf16.xpose.msra.mxu0 0
  %1172 = vmatprep.subr.bf16.mxu0 0
  %1173 = vmatpush2.bf16.xpose.msra.mxu0 0
  %1174 = vmatprep.subr.bf16.mxu0 0
  %1175 = vmatpush2.bf16.xpose.msra.mxu0 0
  %1176 = vmatprep.subr.bf16.mxu0 0
  %1177 = vmatpush2.bf16.xpose.msra.mxu0 0
  %1178 = vmatprep.subr.bf16.mxu0 0
  %1179 = vmatpush2.bf16.xpose.msra.mxu0 0
  %1180 = vmatprep.subr.bf16.mxu0 0
  %1181 = vmatpush2.bf16.xpose.msra.mxu0 0
  %1182 = vmatprep.subr.bf16.mxu0 0
  %1183 = vmatpush2.bf16.xpose.msra.mxu0 0
  %1184 = vmatprep.subr.bf16.mxu0 0
  %1185 = vmatpush2.bf16.xpose.msra.mxu0 0
  %1186 = vmatprep.mubr.bf16.mxu0 0
  %1187 = vmatmul.mubr.bf16.gmra.mxu0 %v1149
  %v1188 = vpop.f32.mrf.mxu0
  %v1189 = vadd.f32 0.0, %v1188
  %v1190 = vpop.f32.mrf.mxu0
  %v1191 = vpop.f32.mrf.mxu0
  %v1192 = vpop.f32.mrf.mxu0
  %1193 = vdwg.mxu0
  %v1194 = vsel %vm149, %v1042, -inf
  %1195 = vmax.xlane.f32.xlu0 %v1194
  %v1196 = vpop.xlane.xlu0 %1195
  %v1197 = vsel %vm149, %v1091, -inf
  %1198 = vmax.xlane.f32.xlu0 %v1197
  %v1199 = vpop.xlane.xlu0 %1198
  %v1200 = vsel %vm149, %v1140, -inf
  %1201 = vmax.xlane.f32.xlu0 %v1200
  %v1202 = vpop.xlane.xlu0 %1201
  %v1203 = vsel %vm149, %v1189, -inf
  %1204 = vmax.xlane.f32.xlu0 %v1203
  %v1205 = vpop.xlane.xlu0 %1204
  %v1206 = vsub.f32 %v1042, %v1196
  %v1207 = vsub.f32 %v1091, %v1199
  %v1208 = vsub.f32 %v1140, %v1202
  %v1209 = vsub.f32 %v1189, %v1205
  %v1210 = vmul.f32 %v1206, 1.442695
  %v1211 = vpow.pop %v1210
  %v1212 = vmul.f32 %v1207, 1.442695
  %v1213 = vpow.pop %v1212
  %v1214 = vmul.f32 %v1208, 1.442695
  %v1215 = vpow.pop %v1214
  %v1216 = vmul.f32 %v1209, 1.442695
  %v1217 = vpow.pop %v1216
  %v1218 = vsel %vm149, %v1211, 0.0
  %1219 = vadd.xlane.f32.xlu0 %v1218
  %v1220 = vpop.xlane.xlu0 %1219
  %v1221 = vsel %vm149, %v1213, 0.0
  %1222 = vadd.xlane.f32.xlu0 %v1221
  %v1223 = vpop.xlane.xlu0 %1222
  %v1224 = vsel %vm149, %v1215, 0.0
  %1225 = vadd.xlane.f32.xlu0 %v1224
  %v1226 = vpop.xlane.xlu0 %1225
  %v1227 = vsel %vm149, %v1217, 0.0
  %1228 = vadd.xlane.f32.xlu0 %v1227
  %v1229 = vpop.xlane.xlu0 %1228
  %v1230 = vrcp.pop %v1220
  %v1231 = vrcp.pop %v1223
  %v1232 = vrcp.pop %v1226
  %v1233 = vrcp.pop %v1229
  %v1234 = vmul.f32 %v1211, %v1230
  %v1235 = vmul.f32 %v1213, %v1231
  %v1236 = vmul.f32 %v1215, %v1232
  %v1237 = vmul.f32 %v1217, %v1233
  %v1238 = vpack.c.bf16 %v1234, %v1234
  %v1239 = vpack.c.bf16 %v1235, %v1235
  %v1240 = vpack.c.bf16 %v1236, %v1236
  %v1241 = vpack.c.bf16 %v1237, %v1237
  %1242 = vrot.lane.b32.xlu0 %v994, 96
  %v1243 = vpop.permute.xlu0 %1242
  %v1245 = vsel %vm149, %v1238, 0
  %v1248 = vsel %vm396, %v1243, 0
  %1250 = vmatprep.subr.bf16.mxu0 0
  %1251 = vmatpush1.bf16.msra.mxu0 0
  %1252 = vmatprep.subr.bf16.mxu0 0
  %1253 = vmatpush1.bf16.msra.mxu0 0
  %1254 = vmatprep.subr.bf16.mxu0 0
  %1255 = vmatpush1.bf16.msra.mxu0 0
  %1256 = vmatprep.subr.bf16.mxu0 0
  %1257 = vmatpush1.bf16.msra.mxu0 0
  %1258 = vmatprep.subr.bf16.mxu0 0
  %1259 = vmatpush1.bf16.msra.mxu0 0
  %1260 = vmatprep.subr.bf16.mxu0 0
  %1261 = vmatpush1.bf16.msra.mxu0 0
  %1262 = vmatprep.subr.bf16.mxu0 0
  %1263 = vmatpush1.bf16.msra.mxu0 0
  %1264 = vmatprep.subr.bf16.mxu0 0
  %1265 = vmatpush1.bf16.msra.mxu0 %v1248
  %1266 = vmatprep.subr.bf16.mxu0 0
  %1267 = vmatpush2.bf16.msra.mxu0 0
  %1268 = vmatprep.subr.bf16.mxu0 0
  %1269 = vmatpush2.bf16.msra.mxu0 0
  %1270 = vmatprep.subr.bf16.mxu0 0
  %1271 = vmatpush2.bf16.msra.mxu0 0
  %1272 = vmatprep.subr.bf16.mxu0 0
  %1273 = vmatpush2.bf16.msra.mxu0 0
  %1274 = vmatprep.subr.bf16.mxu0 0
  %1275 = vmatpush2.bf16.msra.mxu0 0
  %1276 = vmatprep.subr.bf16.mxu0 0
  %1277 = vmatpush2.bf16.msra.mxu0 0
  %1278 = vmatprep.subr.bf16.mxu0 0
  %1279 = vmatpush2.bf16.msra.mxu0 0
  %1280 = vmatprep.subr.bf16.mxu0 0
  %1281 = vmatpush2.bf16.msra.mxu0 0
  %1282 = vmatprep.mubr.bf16.mxu0 0
  %1283 = vmatmul.mubr.bf16.gmra.mxu0 %v1245
  %v1284 = vpop.f32.mrf.mxu0
  %v1285 = vadd.f32 0.0, %v1284
  %v1286 = vpop.f32.mrf.mxu0
  %v1287 = vpop.f32.mrf.mxu0
  %v1288 = vpop.f32.mrf.mxu0
  %1289 = vdwg.mxu0
  %1290 = vrot.lane.b32.xlu0 %v995, 96
  %v1291 = vpop.permute.xlu0 %1290
  %v1293 = vsel %vm149, %v1239, 0
  %v1296 = vsel %vm396, %v1291, 0
  %1298 = vmatprep.subr.bf16.mxu0 0
  %1299 = vmatpush1.bf16.msra.mxu0 0
  %1300 = vmatprep.subr.bf16.mxu0 0
  %1301 = vmatpush1.bf16.msra.mxu0 0
  %1302 = vmatprep.subr.bf16.mxu0 0
  %1303 = vmatpush1.bf16.msra.mxu0 0
  %1304 = vmatprep.subr.bf16.mxu0 0
  %1305 = vmatpush1.bf16.msra.mxu0 0
  %1306 = vmatprep.subr.bf16.mxu0 0
  %1307 = vmatpush1.bf16.msra.mxu0 0
  %1308 = vmatprep.subr.bf16.mxu0 0
  %1309 = vmatpush1.bf16.msra.mxu0 0
  %1310 = vmatprep.subr.bf16.mxu0 0
  %1311 = vmatpush1.bf16.msra.mxu0 0
  %1312 = vmatprep.subr.bf16.mxu0 0
  %1313 = vmatpush1.bf16.msra.mxu0 %v1296
  %1314 = vmatprep.subr.bf16.mxu0 0
  %1315 = vmatpush2.bf16.msra.mxu0 0
  %1316 = vmatprep.subr.bf16.mxu0 0
  %1317 = vmatpush2.bf16.msra.mxu0 0
  %1318 = vmatprep.subr.bf16.mxu0 0
  %1319 = vmatpush2.bf16.msra.mxu0 0
  %1320 = vmatprep.subr.bf16.mxu0 0
  %1321 = vmatpush2.bf16.msra.mxu0 0
  %1322 = vmatprep.subr.bf16.mxu0 0
  %1323 = vmatpush2.bf16.msra.mxu0 0
  %1324 = vmatprep.subr.bf16.mxu0 0
  %1325 = vmatpush2.bf16.msra.mxu0 0
  %1326 = vmatprep.subr.bf16.mxu0 0
  %1327 = vmatpush2.bf16.msra.mxu0 0
  %1328 = vmatprep.subr.bf16.mxu0 0
  %1329 = vmatpush2.bf16.msra.mxu0 0
  %1330 = vmatprep.mubr.bf16.mxu0 0
  %1331 = vmatmul.mubr.bf16.gmra.mxu0 %v1293
  %v1332 = vpop.f32.mrf.mxu0
  %v1333 = vadd.f32 0.0, %v1332
  %v1334 = vpop.f32.mrf.mxu0
  %v1335 = vpop.f32.mrf.mxu0
  %v1336 = vpop.f32.mrf.mxu0
  %1337 = vdwg.mxu0
  %1338 = vrot.lane.b32.xlu0 %v996, 96
  %v1339 = vpop.permute.xlu0 %1338
  %v1341 = vsel %vm149, %v1240, 0
  %v1344 = vsel %vm396, %v1339, 0
  %1346 = vmatprep.subr.bf16.mxu0 0
  %1347 = vmatpush1.bf16.msra.mxu0 0
  %1348 = vmatprep.subr.bf16.mxu0 0
  %1349 = vmatpush1.bf16.msra.mxu0 0
  %1350 = vmatprep.subr.bf16.mxu0 0
  %1351 = vmatpush1.bf16.msra.mxu0 0
  %1352 = vmatprep.subr.bf16.mxu0 0
  %1353 = vmatpush1.bf16.msra.mxu0 0
  %1354 = vmatprep.subr.bf16.mxu0 0
  %1355 = vmatpush1.bf16.msra.mxu0 0
  %1356 = vmatprep.subr.bf16.mxu0 0
  %1357 = vmatpush1.bf16.msra.mxu0 0
  %1358 = vmatprep.subr.bf16.mxu0 0
  %1359 = vmatpush1.bf16.msra.mxu0 0
  %1360 = vmatprep.subr.bf16.mxu0 0
  %1361 = vmatpush1.bf16.msra.mxu0 %v1344
  %1362 = vmatprep.subr.bf16.mxu0 0
  %1363 = vmatpush2.bf16.msra.mxu0 0
  %1364 = vmatprep.subr.bf16.mxu0 0
  %1365 = vmatpush2.bf16.msra.mxu0 0
  %1366 = vmatprep.subr.bf16.mxu0 0
  %1367 = vmatpush2.bf16.msra.mxu0 0
  %1368 = vmatprep.subr.bf16.mxu0 0
  %1369 = vmatpush2.bf16.msra.mxu0 0
  %1370 = vmatprep.subr.bf16.mxu0 0
  %1371 = vmatpush2.bf16.msra.mxu0 0
  %1372 = vmatprep.subr.bf16.mxu0 0
  %1373 = vmatpush2.bf16.msra.mxu0 0
  %1374 = vmatprep.subr.bf16.mxu0 0
  %1375 = vmatpush2.bf16.msra.mxu0 0
  %1376 = vmatprep.subr.bf16.mxu0 0
  %1377 = vmatpush2.bf16.msra.mxu0 0
  %1378 = vmatprep.mubr.bf16.mxu0 0
  %1379 = vmatmul.mubr.bf16.gmra.mxu0 %v1341
  %v1380 = vpop.f32.mrf.mxu0
  %v1381 = vadd.f32 0.0, %v1380
  %v1382 = vpop.f32.mrf.mxu0
  %v1383 = vpop.f32.mrf.mxu0
  %v1384 = vpop.f32.mrf.mxu0
  %1385 = vdwg.mxu0
  %1386 = vrot.lane.b32.xlu0 %v997, 96
  %v1387 = vpop.permute.xlu0 %1386
  %v1389 = vsel %vm149, %v1241, 0
  %v1392 = vsel %vm396, %v1387, 0
  %1394 = vmatprep.subr.bf16.mxu0 0
  %1395 = vmatpush1.bf16.msra.mxu0 0
  %1396 = vmatprep.subr.bf16.mxu0 0
  %1397 = vmatpush1.bf16.msra.mxu0 0
  %1398 = vmatprep.subr.bf16.mxu0 0
  %1399 = vmatpush1.bf16.msra.mxu0 0
  %1400 = vmatprep.subr.bf16.mxu0 0
  %1401 = vmatpush1.bf16.msra.mxu0 0
  %1402 = vmatprep.subr.bf16.mxu0 0
  %1403 = vmatpush1.bf16.msra.mxu0 0
  %1404 = vmatprep.subr.bf16.mxu0 0
  %1405 = vmatpush1.bf16.msra.mxu0 0
  %1406 = vmatprep.subr.bf16.mxu0 0
  %1407 = vmatpush1.bf16.msra.mxu0 0
  %1408 = vmatprep.subr.bf16.mxu0 0
  %1409 = vmatpush1.bf16.msra.mxu0 %v1392
  %1410 = vmatprep.subr.bf16.mxu0 0
  %1411 = vmatpush2.bf16.msra.mxu0 0
  %1412 = vmatprep.subr.bf16.mxu0 0
  %1413 = vmatpush2.bf16.msra.mxu0 0
  %1414 = vmatprep.subr.bf16.mxu0 0
  %1415 = vmatpush2.bf16.msra.mxu0 0
  %1416 = vmatprep.subr.bf16.mxu0 0
  %1417 = vmatpush2.bf16.msra.mxu0 0
  %1418 = vmatprep.subr.bf16.mxu0 0
  %1419 = vmatpush2.bf16.msra.mxu0 0
  %1420 = vmatprep.subr.bf16.mxu0 0
  %1421 = vmatpush2.bf16.msra.mxu0 0
  %1422 = vmatprep.subr.bf16.mxu0 0
  %1423 = vmatpush2.bf16.msra.mxu0 0
  %1424 = vmatprep.subr.bf16.mxu0 0
  %1425 = vmatpush2.bf16.msra.mxu0 0
  %1426 = vmatprep.mubr.bf16.mxu0 0
  %1427 = vmatmul.mubr.bf16.gmra.mxu0 %v1389
  %v1428 = vpop.f32.mrf.mxu0
  %v1429 = vadd.f32 0.0, %v1428
  %v1430 = vpop.f32.mrf.mxu0
  %v1431 = vpop.f32.mrf.mxu0
  %v1432 = vpop.f32.mrf.mxu0
  %1433 = vdwg.mxu0
  %s1434 = scalar_lea.vmem %s3, 8
  %v1435 = vld [vmem:[%s1434] sm:$0xf]
  %v1436 = vld [vmem:[%s1434 + $0x4] sm:$0xf]
  %v1437 = vpack.c.bf16 %v1333, %v1285
  %v1438 = vpack.c.bf16 %v1429, %v1381
  %v1440 = vsel %vm149, %v1438, 0
  %v1443 = vsel %vm396, %v1436, 0
  %1445 = vmatprep.subr.bf16.mxu0 0
  %1446 = vmatpush1.bf16.msra.mxu0 0
  %1447 = vmatprep.subr.bf16.mxu0 0
  %1448 = vmatpush1.bf16.msra.mxu0 0
  %1449 = vmatprep.subr.bf16.mxu0 0
  %1450 = vmatpush1.bf16.msra.mxu0 0
  %1451 = vmatprep.subr.bf16.mxu0 0
  %1452 = vmatpush1.bf16.msra.mxu0 0
  %1453 = vmatprep.subr.bf16.mxu0 0
  %1454 = vmatpush1.bf16.msra.mxu0 0
  %1455 = vmatprep.subr.bf16.mxu0 0
  %1456 = vmatpush1.bf16.msra.mxu0 0
  %1457 = vmatprep.subr.bf16.mxu0 0
  %1458 = vmatpush1.bf16.msra.mxu0 0
  %1459 = vmatprep.subr.bf16.mxu0 0
  %1460 = vmatpush1.bf16.msra.mxu0 %v1443
  %1461 = vmatprep.subr.bf16.mxu0 0
  %1462 = vmatpush2.bf16.msra.mxu0 0
  %1463 = vmatprep.subr.bf16.mxu0 0
  %1464 = vmatpush2.bf16.msra.mxu0 0
  %1465 = vmatprep.subr.bf16.mxu0 0
  %1466 = vmatpush2.bf16.msra.mxu0 0
  %1467 = vmatprep.subr.bf16.mxu0 0
  %1468 = vmatpush2.bf16.msra.mxu0 0
  %1469 = vmatprep.subr.bf16.mxu0 0
  %1470 = vmatpush2.bf16.msra.mxu0 0
  %1471 = vmatprep.subr.bf16.mxu0 0
  %1472 = vmatpush2.bf16.msra.mxu0 0
  %1473 = vmatprep.subr.bf16.mxu0 0
  %1474 = vmatpush2.bf16.msra.mxu0 0
  %1475 = vmatprep.subr.bf16.mxu0 0
  %1476 = vmatpush2.bf16.msra.mxu0 0
  %1477 = vmatprep.mubr.bf16.mxu0 0
  %1478 = vmatmul.mubr.bf16.gmra.mxu0 %v1440
  %v1479 = vpop.f32.mrf.mxu0
  %v1480 = vadd.f32 0.0, %v1479
  %v1481 = vpop.f32.mrf.mxu0
  %v1482 = vpop.f32.mrf.mxu0
  %v1483 = vadd.f32 0.0, %v1482
  %v1484 = vpop.f32.mrf.mxu0
  %1485 = vdwg.mxu0
  %v1487 = vsel %vm149, %v1437, 0
  %v1490 = vsel %vm396, %v1435, 0
  %1492 = vmatprep.subr.bf16.mxu0 0
  %1493 = vmatpush1.bf16.msra.mxu0 0
  %1494 = vmatprep.subr.bf16.mxu0 0
  %1495 = vmatpush1.bf16.msra.mxu0 0
  %1496 = vmatprep.subr.bf16.mxu0 0
  %1497 = vmatpush1.bf16.msra.mxu0 0
  %1498 = vmatprep.subr.bf16.mxu0 0
  %1499 = vmatpush1.bf16.msra.mxu0 0
  %1500 = vmatprep.subr.bf16.mxu0 0
  %1501 = vmatpush1.bf16.msra.mxu0 0
  %1502 = vmatprep.subr.bf16.mxu0 0
  %1503 = vmatpush1.bf16.msra.mxu0 0
  %1504 = vmatprep.subr.bf16.mxu0 0
  %1505 = vmatpush1.bf16.msra.mxu0 0
  %1506 = vmatprep.subr.bf16.mxu0 0
  %1507 = vmatpush1.bf16.msra.mxu0 %v1490
  %1508 = vmatprep.subr.bf16.mxu0 0
  %1509 = vmatpush2.bf16.msra.mxu0 0
  %1510 = vmatprep.subr.bf16.mxu0 0
  %1511 = vmatpush2.bf16.msra.mxu0 0
  %1512 = vmatprep.subr.bf16.mxu0 0
  %1513 = vmatpush2.bf16.msra.mxu0 0
  %1514 = vmatprep.subr.bf16.mxu0 0
  %1515 = vmatpush2.bf16.msra.mxu0 0
  %1516 = vmatprep.subr.bf16.mxu0 0
  %1517 = vmatpush2.bf16.msra.mxu0 0
  %1518 = vmatprep.subr.bf16.mxu0 0
  %1519 = vmatpush2.bf16.msra.mxu0 0
  %1520 = vmatprep.subr.bf16.mxu0 0
  %1521 = vmatpush2.bf16.msra.mxu0 0
  %1522 = vmatprep.subr.bf16.mxu0 0
  %1523 = vmatpush2.bf16.msra.mxu0 0
  %1524 = vmatprep.mubr.bf16.mxu0 0
  %1525 = vmatmul.mubr.bf16.gmra.mxu0 %v1487
  %v1526 = vpop.f32.mrf.mxu0
  %v1527 = vadd.f32 %v1480, %v1526
  %v1528 = vpop.f32.mrf.mxu0
  %v1529 = vpop.f32.mrf.mxu0
  %v1530 = vadd.f32 %v1483, %v1529
  %v1531 = vpop.f32.mrf.mxu0
  %1532 = vdwg.mxu0
  %v1533 = vadd.f32 %v882, %v1527
  %v1534 = vadd.f32 %v883, %v1530
  %v1535 = vsel %vm33, %v1533, 0.0
  %1536 = vadd.xlane.f32.xlu0 %v1535
  %v1537 = vpop.xlane.xlu0 %1536
  %v1538 = vsel %vm33, %v1534, 0.0
  %1539 = vadd.xlane.f32.xlu0 %v1538
  %v1540 = vpop.xlane.xlu0 %1539
  %v1541 = vmul.f32 %v1537, %v40
  %v1542 = vmul.f32 %v1540, %v40
  %v1543 = vsub.f32 %v1533, %v1541
  %v1544 = vsub.f32 %v1534, %v1542
  %v1545 = vmul.f32 %v1543, %v1543
  %v1546 = vmul.f32 %v1544, %v1544
  %v1547 = vsel %vm33, %v1545, 0.0
  %1548 = vadd.xlane.f32.xlu0 %v1547
  %v1549 = vpop.xlane.xlu0 %1548
  %v1550 = vsel %vm33, %v1546, 0.0
  %1551 = vadd.xlane.f32.xlu0 %v1550
  %v1552 = vpop.xlane.xlu0 %1551
  %v1553 = vmul.f32 %v1549, %v40
  %v1554 = vmul.f32 %v1552, %v40
  %v1555 = vadd.f32 %v1553, 1e-05
  %v1556 = vadd.f32 %v1554, 1e-05
  %v1557 = vrsqrt.pop %v1555
  %v1558 = vrsqrt.pop %v1556
  %v1559 = vmul.f32 %v1543, %v1557
  %v1560 = vmul.f32 %v1544, %v1558
  %v1561 = vlaneseq
  %v1562 = vshrl.u32 %v1561, 7
  %v1563 = vsub.s32 2, %v1562
  %v1564 = vrot.slane %v885, %v1563
  %v1565 = vmul.f32 %v1559, %v1564
  %v1566 = vmul.f32 %v1560, %v1564
  %v1567 = vlaneseq
  %v1568 = vshrl.u32 %v1567, 7
  %v1569 = vsub.s32 3, %v1568
  %v1570 = vrot.slane %v885, %v1569
  %v1571 = vadd.f32 %v1565, %v1570
  %v1572 = vadd.f32 %v1566, %v1570
  %s1573 = scalar_lea.vmem %s6, 2
  %v1574 = vld [vmem:[%s1573] sm:$0x3]
  %s1575 = scalar_lea.vmem %s4, 8
  %v1576 = vld [vmem:[%s1575] sm:$0xf]
  %v1577 = vld [vmem:[%s1575 + $0x4] sm:$0xf]
  %v1578 = vpack.c.bf16 %v1572, %v1571
  %v1579 = vlaneseq
  %v1580 = vshrl.u32 %v1579, 7
  %v1581 = vsub.s32 0, %v1580
  %v1582 = vrot.slane %v1574, %v1581
  %v1585 = vunpack.c.l.b16 %v1576
  %v1586 = vunpack.c.l.b16 %v1577
  %v1587 = vpack.c.b16 %v1586, %v1585
  %v1590 = vsel %vm33, %v1578, 0
  %1592 = vmatprep.subr.bf16.mxu0 0
  %1593 = vmatpush1.bf16.msra.mxu0 0
  %1594 = vmatprep.subr.bf16.mxu0 0
  %1595 = vmatpush1.bf16.msra.mxu0 0
  %1596 = vmatprep.subr.bf16.mxu0 0
  %1597 = vmatpush1.bf16.msra.mxu0 0
  %1598 = vmatprep.subr.bf16.mxu0 0
  %1599 = vmatpush1.bf16.msra.mxu0 0
  %1600 = vmatprep.subr.bf16.mxu0 0
  %1601 = vmatpush1.bf16.msra.mxu0 0
  %1602 = vmatprep.subr.bf16.mxu0 0
  %1603 = vmatpush1.bf16.msra.mxu0 0
  %1604 = vmatprep.subr.bf16.mxu0 0
  %1605 = vmatpush1.bf16.msra.mxu0 0
  %1606 = vmatprep.subr.bf16.mxu0 0
  %1607 = vmatpush1.bf16.msra.mxu0 %v1587
  %1608 = vmatprep.subr.bf16.mxu0 0
  %1609 = vmatpush2.bf16.msra.mxu0 0
  %1610 = vmatprep.subr.bf16.mxu0 0
  %1611 = vmatpush2.bf16.msra.mxu0 0
  %1612 = vmatprep.subr.bf16.mxu0 0
  %1613 = vmatpush2.bf16.msra.mxu0 0
  %1614 = vmatprep.subr.bf16.mxu0 0
  %1615 = vmatpush2.bf16.msra.mxu0 0
  %1616 = vmatprep.subr.bf16.mxu0 0
  %1617 = vmatpush2.bf16.msra.mxu0 0
  %1618 = vmatprep.subr.bf16.mxu0 0
  %1619 = vmatpush2.bf16.msra.mxu0 0
  %1620 = vmatprep.subr.bf16.mxu0 0
  %1621 = vmatpush2.bf16.msra.mxu0 0
  %1622 = vmatprep.subr.bf16.mxu0 0
  %1623 = vmatpush2.bf16.msra.mxu0 0
  %1624 = vmatprep.mubr.bf16.mxu0 0
  %1625 = vmatmul.mubr.bf16.gmra.mxu0 %v1590
  %v1626 = vpop.f32.mrf.mxu0
  %v1627 = vadd.f32 %v1582, %v1626
  %v1628 = vpop.f32.mrf.mxu0
  %v1629 = vpop.f32.mrf.mxu0
  %v1630 = vadd.f32 %v1582, %v1629
  %v1631 = vpop.f32.mrf.mxu0
  %1632 = vdwg.mxu0
  %v1633 = vmul.f32 %v1627, 0.5
  %v1634 = vmul.f32 %v1630, 0.5
  %v1635 = vmul.f32 %v1627, 0.044715
  %v1636 = vmul.f32 %v1630, 0.044715
  %v1637 = vmul.f32 %v1635, %v1627
  %v1638 = vmul.f32 %v1636, %v1630
  %v1639 = vmul.f32 %v1637, %v1627
  %v1640 = vmul.f32 %v1638, %v1630
  %v1641 = vadd.f32 %v1627, %v1639
  %v1642 = vadd.f32 %v1630, %v1640
  %v1643 = vmul.f32 %v1641, 0.7978846
  %v1644 = vmul.f32 %v1642, 0.7978846
  %v1645 = vtanh.pop %v1643
  %v1646 = vtanh.pop %v1644
  %v1647 = vadd.f32 %v1645, 1.0
  %v1648 = vadd.f32 %v1646, 1.0
  %v1649 = vmul.f32 %v1633, %v1647
  %v1650 = vmul.f32 %v1634, %v1648
  %s1651 = scalar_lea.vmem %s5, 32
  %v1652 = vld [vmem:[%s1651] sm:$0xf]
  %v1653 = vld [vmem:[%s1651 + $0x4] sm:$0xf]
  %v1654 = vld [vmem:[%s1651 + $0x8] sm:$0xf]
  %v1655 = vld [vmem:[%s1651 + $0xc] sm:$0xf]
  %v1656 = vld [vmem:[%s1651 + $0x10] sm:$0xf]
  %v1657 = vld [vmem:[%s1651 + $0x14] sm:$0xf]
  %v1658 = vld [vmem:[%s1651 + $0x18] sm:$0xf]
  %v1659 = vld [vmem:[%s1651 + $0x1c] sm:$0xf]
  %v1660 = vpack.c.bf16 %v1650, %v1649
  %v1669 = vunpack.c.l.b16 %v1652
  %v1670 = vunpack.c.l.b16 %v1653
  %v1671 = vunpack.c.l.b16 %v1654
  %v1672 = vunpack.c.l.b16 %v1655
  %v1673 = vunpack.c.l.b16 %v1656
  %v1674 = vunpack.c.l.b16 %v1657
  %v1675 = vunpack.c.l.b16 %v1658
  %v1676 = vunpack.c.l.b16 %v1659
  %v1677 = vpack.c.b16 %v1670, %v1669
  %v1678 = vpack.c.b16 %v1672, %v1671
  %v1679 = vpack.c.b16 %v1674, %v1673
  %v1680 = vpack.c.b16 %v1676, %v1675
  %v1686 = vsel %vm831, %v1660, 0
  %1688 = vmatprep.subr.bf16.mxu0 0
  %1689 = vmatpush1.bf16.msra.mxu0 0
  %1690 = vmatprep.subr.bf16.mxu0 0
  %1691 = vmatpush1.bf16.msra.mxu0 0
  %1692 = vmatprep.subr.bf16.mxu0 0
  %1693 = vmatpush1.bf16.msra.mxu0 0
  %1694 = vmatprep.subr.bf16.mxu0 0
  %1695 = vmatpush1.bf16.msra.mxu0 0
  %1696 = vmatprep.subr.bf16.mxu0 0
  %1697 = vmatpush1.bf16.msra.mxu0 %v1680
  %1698 = vmatprep.subr.bf16.mxu0 0
  %1699 = vmatpush1.bf16.msra.mxu0 %v1679
  %1700 = vmatprep.subr.bf16.mxu0 0
  %1701 = vmatpush1.bf16.msra.mxu0 %v1678
  %1702 = vmatprep.subr.bf16.mxu0 0
  %1703 = vmatpush1.bf16.msra.mxu0 %v1677
  %1704 = vmatprep.subr.bf16.mxu0 0
  %1705 = vmatpush2.bf16.msra.mxu0 0
  %1706 = vmatprep.subr.bf16.mxu0 0
  %1707 = vmatpush2.bf16.msra.mxu0 0
  %1708 = vmatprep.subr.bf16.mxu0 0
  %1709 = vmatpush2.bf16.msra.mxu0 0
  %1710 = vmatprep.subr.bf16.mxu0 0
  %1711 = vmatpush2.bf16.msra.mxu0 0
  %1712 = vmatprep.subr.bf16.mxu0 0
  %1713 = vmatpush2.bf16.msra.mxu0 0
  %1714 = vmatprep.subr.bf16.mxu0 0
  %1715 = vmatpush2.bf16.msra.mxu0 0
  %1716 = vmatprep.subr.bf16.mxu0 0
  %1717 = vmatpush2.bf16.msra.mxu0 0
  %1718 = vmatprep.subr.bf16.mxu0 0
  %1719 = vmatpush2.bf16.msra.mxu0 0
  %1720 = vmatprep.mubr.bf16.mxu0 0
  %1721 = vmatmul.mubr.bf16.gmra.mxu0 %v1686
  %v1722 = vpop.f32.mrf.mxu0
  %v1723 = vadd.f32 0.0, %v1722
  %v1724 = vpop.f32.mrf.mxu0
  %v1725 = vpop.f32.mrf.mxu0
  %v1726 = vadd.f32 0.0, %v1725
  %v1727 = vpop.f32.mrf.mxu0
  %1728 = vdwg.mxu0
  %v1729 = vadd.f32 %v1533, %v1723
  %v1730 = vadd.f32 %v1534, %v1726
  %v1731 = vlaneseq
  %v1732 = vshrl.u32 %v1731, 7
  %v1733 = vsub.s32 1, %v1732
  %v1734 = vrot.slane %v1574, %v1733
  %v1735 = vadd.f32 %v1729, %v1734
  %v1736 = vadd.f32 %v1730, %v1734
  %v1737 = vld [vmem:[%s7] sm:$0x3]
  %v1738 = vsel %vm33, %v1735, 0.0
  %1739 = vadd.xlane.f32.xlu0 %v1738
  %v1740 = vpop.xlane.xlu0 %1739
  %v1741 = vsel %vm33, %v1736, 0.0
  %1742 = vadd.xlane.f32.xlu0 %v1741
  %v1743 = vpop.xlane.xlu0 %1742
  %v1744 = vmul.f32 %v1740, %v40
  %v1745 = vmul.f32 %v1743, %v40
  %v1746 = vsub.f32 %v1735, %v1744
  %v1747 = vsub.f32 %v1736, %v1745
  %v1748 = vmul.f32 %v1746, %v1746
  %v1749 = vmul.f32 %v1747, %v1747
  %v1750 = vsel %vm33, %v1748, 0.0
  %1751 = vadd.xlane.f32.xlu0 %v1750
  %v1752 = vpop.xlane.xlu0 %1751
  %v1753 = vsel %vm33, %v1749, 0.0
  %1754 = vadd.xlane.f32.xlu0 %v1753
  %v1755 = vpop.xlane.xlu0 %1754
  %v1756 = vmul.f32 %v1752, %v40
  %v1757 = vmul.f32 %v1755, %v40
  %v1758 = vadd.f32 %v1756, 1e-05
  %v1759 = vadd.f32 %v1757, 1e-05
  %v1760 = vrsqrt.pop %v1758
  %v1761 = vrsqrt.pop %v1759
  %v1762 = vmul.f32 %v1746, %v1760
  %v1763 = vmul.f32 %v1747, %v1761
  %v1764 = vlaneseq
  %v1765 = vshrl.u32 %v1764, 7
  %v1766 = vsub.s32 0, %v1765
  %v1767 = vrot.slane %v1737, %v1766
  %v1768 = vmul.f32 %v1762, %v1767
  %v1769 = vmul.f32 %v1763, %v1767
  %v1770 = vlaneseq
  %v1771 = vshrl.u32 %v1770, 7
  %v1772 = vsub.s32 1, %v1771
  %v1773 = vrot.slane %v1737, %v1772
  %v1774 = vadd.f32 %v1768, %v1773
  %v1775 = vadd.f32 %v1769, %v1773
  %1776 = vst.msk [vmem:[%s8] sm:$0xff] %vm33, %v1774
  %1777 = vst.msk [vmem:[%s8 + $0x8] sm:$0xff] %vm33, %v1775
  // Predicated region
  $region34: #{tipae_forward.8} parent=0 // pred_check
    _
  $region35: #{tipae_forward.8} parent=0 // pred_check_branch
    %1779 = sbr.rel (0) target = $region37
  $region36: #{tipae_forward.8} parent=0 // pred_region
    _
  $region37: #{tipae_forward.8} parent=0 // pred_fallthru
    _
  // Predicated region
  $region38: #{tipae_forward.8} parent=0 // pred_check
    _
  $region39: #{tipae_forward.8} parent=0 // pred_check_branch
    %1781 = sbr.rel (0) target = $region41
  $region40: #{tipae_forward.8} parent=0 // pred_region
    _
  $region41: #{tipae_forward.8} parent=0 // pred_fallthru
    _

// kernel: tipae_forward.5
$region0: #{tipae_forward.5}
  #allocation0 [shape = 'u32[]', space=smem, size = 0x4, offset = 0x4, fixed_abs, tag = 'smem constant byte address 0x4 - core index']
  #allocation1 [shape = 'u32[144,128]{1,0:T(1,128)}', space=vmem, size = 0x12000, scoped, tag = 'internal scratch']
  %s0 = inlined_call_operand.vmem [shape: f32[2,16,48], index: 0, kind: input, shape index: {}]
  %s1 = inlined_call_operand.vmem [shape: f32[16,32], index: 1, kind: input, shape index: {}]
  %s2 = inlined_call_operand.vmem [shape: f32[2,48], index: 2, kind: input, shape index: {}]
  %s3 = inlined_call_operand.vmem [shape: bf16[48,32], index: 3, kind: input, shape index: {}]
  %s4 = inlined_call_operand.vmem [shape: f32[3,32], index: 4, kind: input, shape index: {}]
  %s5 = inlined_call_operand.vmem [shape: f32[2,4,32], index: 5, kind: input, shape index: {}]
  %s6 = inlined_call_operand.vmem [shape: bf16[2,32,48], index: 6, kind: input, shape index: {}]
  %s7 = inlined_call_operand.vmem [shape: bf16[2,16,32], index: 7, kind: input, shape index: {}]
  %s8 = inlined_call_operand.vmem [shape: bf16[2,32,64], index: 8, kind: input, shape index: {}]
  %s9 = inlined_call_operand.vmem [shape: bf16[2,64,32], index: 9, kind: input, shape index: {}]
  %s10 = inlined_call_operand.vmem [shape: f32[2,2,64], index: 10, kind: input, shape index: {}]
  %s11 = inlined_call_operand.vmem [shape: f32[2,32], index: 11, kind: input, shape index: {}]
  %s12 = inlined_call_operand.vmem [shape: f32[2,16,32], index: 12, kind: output, shape index: {}]
  %s13 = sld [smem:[#allocation0]]
  $region58: #{tipae_forward.5} parent=0
    _
  %s15 = ssub.s32 1, %s13
  %s16 = scalar_select 0, %s15, %s13
  // Predicated region
  $region2: #{tipae_forward.5} parent=0 // pred_check
    _
  $region3: #{tipae_forward.5} parent=0 // pred_check_branch
    %18 = sbr.rel (0) target = $region5
  $region4: #{tipae_forward.5} parent=0 // pred_region
    _
  $region5: #{tipae_forward.5} parent=0 // pred_fallthru
    _
  // Predicated region
  $region6: #{tipae_forward.5} parent=0 // pred_check
    _
  $region7: #{tipae_forward.5} parent=0 // pred_check_branch
    %20 = sbr.rel (0) target = $region9
  $region8: #{tipae_forward.5} parent=0 // pred_region
    _
  $region9: #{tipae_forward.5} parent=0 // pred_fallthru
    _
  // Predicated region
  $region10: #{tipae_forward.5} parent=0 // pred_check
    _
  $region11: #{tipae_forward.5} parent=0 // pred_check_branch
    %22 = sbr.rel (0) target = $region13
  $region12: #{tipae_forward.5} parent=0 // pred_region
    _
  $region13: #{tipae_forward.5} parent=0 // pred_fallthru
    _
  // Predicated region
  $region14: #{tipae_forward.5} parent=0 // pred_check
    _
  $region15: #{tipae_forward.5} parent=0 // pred_check_branch
    %24 = sbr.rel (0) target = $region17
  $region16: #{tipae_forward.5} parent=0 // pred_region
    _
  $region17: #{tipae_forward.5} parent=0 // pred_fallthru
    _
  // Predicated region
  $region18: #{tipae_forward.5} parent=0 // pred_check
    _
  $region19: #{tipae_forward.5} parent=0 // pred_check_branch
    %26 = sbr.rel (0) target = $region21
  $region20: #{tipae_forward.5} parent=0 // pred_region
    _
  $region21: #{tipae_forward.5} parent=0 // pred_fallthru
    _
  // Predicated region
  $region22: #{tipae_forward.5} parent=0 // pred_check
    _
  $region23: #{tipae_forward.5} parent=0 // pred_check_branch
    %28 = sbr.rel (0) target = $region25
  $region24: #{tipae_forward.5} parent=0 // pred_region
    _
  $region25: #{tipae_forward.5} parent=0 // pred_fallthru
    _
  // Predicated region
  $region26: #{tipae_forward.5} parent=0 // pred_check
    _
  $region27: #{tipae_forward.5} parent=0 // pred_check_branch
    %30 = sbr.rel (0) target = $region29
  $region28: #{tipae_forward.5} parent=0 // pred_region
    _
  $region29: #{tipae_forward.5} parent=0 // pred_fallthru
    _
  // Predicated region
  $region30: #{tipae_forward.5} parent=0 // pred_check
    _
  $region31: #{tipae_forward.5} parent=0 // pred_check_branch
    %32 = sbr.rel (0) target = $region33
  $region32: #{tipae_forward.5} parent=0 // pred_region
    _
  $region33: #{tipae_forward.5} parent=0 // pred_fallthru
    _
  // Predicated region
  $region34: #{tipae_forward.5} parent=0 // pred_check
    _
  $region35: #{tipae_forward.5} parent=0 // pred_check_branch
    %34 = sbr.rel (0) target = $region37
  $region36: #{tipae_forward.5} parent=0 // pred_region
    _
  $region37: #{tipae_forward.5} parent=0 // pred_fallthru
    _
  // Predicated region
  $region38: #{tipae_forward.5} parent=0 // pred_check
    _
  $region39: #{tipae_forward.5} parent=0 // pred_check_branch
    %36 = sbr.rel (0) target = $region41
  $region40: #{tipae_forward.5} parent=0 // pred_region
    _
  $region41: #{tipae_forward.5} parent=0 // pred_fallthru
    _
  // Predicated region
  $region42: #{tipae_forward.5} parent=0 // pred_check
    _
  $region43: #{tipae_forward.5} parent=0 // pred_check_branch
    %38 = sbr.rel (0) target = $region45
  $region44: #{tipae_forward.5} parent=0 // pred_region
    _
  $region45: #{tipae_forward.5} parent=0 // pred_fallthru
    _
  // Predicated region
  $region46: #{tipae_forward.5} parent=0 // pred_check
    _
  $region47: #{tipae_forward.5} parent=0 // pred_check_branch
    %40 = sbr.rel (0) target = $region49
  $region48: #{tipae_forward.5} parent=0 // pred_region
    _
  $region49: #{tipae_forward.5} parent=0 // pred_fallthru
    _
  %v42 = vld [vmem:[%s0] sm:$0xff]
  %v43 = vld [vmem:[%s0 + $0x8] sm:$0xff]
  %v44 = vld [vmem:[%s0 + $0x10] sm:$0xff]
  %v45 = vld [vmem:[%s0 + $0x18] sm:$0xff]
  %v46 = vld [vmem:[%s2] sm:$0x3]
  %vm47 = vcmask 392192
  %v48 = vsel %vm47, %v42, 0.0
  %49 = vadd.xlane.f32.xlu0 %v48
  %v50 = vpop.xlane.xlu0 %49
  %v51 = vsel %vm47, %v43, 0.0
  %52 = vadd.xlane.f32.xlu0 %v51
  %v53 = vpop.xlane.xlu0 %52
  %v54 = vsel %vm47, %v44, 0.0
  %55 = vadd.xlane.f32.xlu0 %v54
  %v56 = vpop.xlane.xlu0 %55
  %v57 = vsel %vm47, %v45, 0.0
  %58 = vadd.xlane.f32.xlu0 %v57
  %v59 = vpop.xlane.xlu0 %58
  %v60 = vrcp.pop 48.0
  %v61 = vmul.f32 %v50, %v60
  %v62 = vmul.f32 %v53, %v60
  %v63 = vmul.f32 %v56, %v60
  %v64 = vmul.f32 %v59, %v60
  %v65 = vsub.f32 %v42, %v61
  %v66 = vsub.f32 %v43, %v62
  %v67 = vsub.f32 %v44, %v63
  %v68 = vsub.f32 %v45, %v64
  %v69 = vmul.f32 %v65, %v65
  %v70 = vmul.f32 %v66, %v66
  %v71 = vmul.f32 %v67, %v67
  %v72 = vmul.f32 %v68, %v68
  %v73 = vsel %vm47, %v69, 0.0
  %74 = vadd.xlane.f32.xlu0 %v73
  %v75 = vpop.xlane.xlu0 %74
  %v76 = vsel %vm47, %v70, 0.0
  %77 = vadd.xlane.f32.xlu0 %v76
  %v78 = vpop.xlane.xlu0 %77
  %v79 = vsel %vm47, %v71, 0.0
  %80 = vadd.xlane.f32.xlu0 %v79
  %v81 = vpop.xlane.xlu0 %80
  %v82 = vsel %vm47, %v72, 0.0
  %83 = vadd.xlane.f32.xlu0 %v82
  %v84 = vpop.xlane.xlu0 %83
  %v85 = vmul.f32 %v75, %v60
  %v86 = vmul.f32 %v78, %v60
  %v87 = vmul.f32 %v81, %v60
  %v88 = vmul.f32 %v84, %v60
  %v89 = vadd.f32 %v85, 1e-05
  %v90 = vadd.f32 %v86, 1e-05
  %v91 = vadd.f32 %v87, 1e-05
  %v92 = vadd.f32 %v88, 1e-05
  %v93 = vrsqrt.pop %v89
  %v94 = vrsqrt.pop %v90
  %v95 = vrsqrt.pop %v91
  %v96 = vrsqrt.pop %v92
  %v97 = vmul.f32 %v65, %v93
  %v98 = vmul.f32 %v66, %v94
  %v99 = vmul.f32 %v67, %v95
  %v100 = vmul.f32 %v68, %v96
  %v101 = vlaneseq
  %v102 = vshrl.u32 %v101, 7
  %v103 = vsub.s32 0, %v102
  %v104 = vrot.slane %v46, %v103
  %v105 = vmul.f32 %v97, %v104
  %v106 = vmul.f32 %v98, %v104
  %v107 = vmul.f32 %v99, %v104
  %v108 = vmul.f32 %v100, %v104
  %v109 = vlaneseq
  %v110 = vshrl.u32 %v109, 7
  %v111 = vsub.s32 1, %v110
  %v112 = vrot.slane %v46, %v111
  %v113 = vadd.f32 %v105, %v112
  %v114 = vadd.f32 %v106, %v112
  %v115 = vadd.f32 %v107, %v112
  %v116 = vadd.f32 %v108, %v112
  %v117 = vld [vmem:[%s4] sm:$0x7]
  %v118 = vld [vmem:[%s3] sm:$0xf]
  %v119 = vld [vmem:[%s3 + $0x4] sm:$0xf]
  %v120 = vld [vmem:[%s3 + $0x8] sm:$0xf]
  %v121 = vld [vmem:[%s3 + $0xc] sm:$0xf]
  %v122 = vld [vmem:[%s3 + $0x10] sm:$0xf]
  %v123 = vld [vmem:[%s3 + $0x14] sm:$0xf]
  %v124 = vpack.c.bf16 %v114, %v113
  %v125 = vpack.c.bf16 %v116, %v115
  %v126 = vlaneseq
  %v127 = vshrl.u32 %v126, 7
  %v128 = vsub.s32 0, %v127
  %v129 = vrot.slane %v117, %v128
  %v136 = vunpack.c.l.b16 %v118
  %v137 = vunpack.c.l.b16 %v119
  %v138 = vunpack.c.l.b16 %v120
  %v139 = vunpack.c.l.b16 %v121
  %v140 = vunpack.c.l.b16 %v122
  %v141 = vunpack.c.l.b16 %v123
  %v142 = vpack.c.b16 %v137, %v136
  %v143 = vpack.c.b16 %v139, %v138
  %v144 = vpack.c.b16 %v141, %v140
  %v149 = vsel %vm47, %v124, 0
  %v152 = vsel %vm47, %v125, 0
  %154 = vmatprep.subr.bf16.mxu0 0
  %155 = vmatpush1.bf16.msra.mxu0 0
  %156 = vmatprep.subr.bf16.mxu0 0
  %157 = vmatpush1.bf16.msra.mxu0 0
  %158 = vmatprep.subr.bf16.mxu0 0
  %159 = vmatpush1.bf16.msra.mxu0 0
  %160 = vmatprep.subr.bf16.mxu0 0
  %161 = vmatpush1.bf16.msra.mxu0 0
  %162 = vmatprep.subr.bf16.mxu0 0
  %163 = vmatpush1.bf16.msra.mxu0 0
  %164 = vmatprep.subr.bf16.mxu0 0
  %165 = vmatpush1.bf16.msra.mxu0 %v144
  %166 = vmatprep.subr.bf16.mxu0 0
  %167 = vmatpush1.bf16.msra.mxu0 %v143
  %168 = vmatprep.subr.bf16.mxu0 0
  %169 = vmatpush1.bf16.msra.mxu0 %v142
  %170 = vmatprep.subr.bf16.mxu0 0
  %171 = vmatpush2.bf16.msra.mxu0 0
  %172 = vmatprep.subr.bf16.mxu0 0
  %173 = vmatpush2.bf16.msra.mxu0 0
  %174 = vmatprep.subr.bf16.mxu0 0
  %175 = vmatpush2.bf16.msra.mxu0 0
  %176 = vmatprep.subr.bf16.mxu0 0
  %177 = vmatpush2.bf16.msra.mxu0 0
  %178 = vmatprep.subr.bf16.mxu0 0
  %179 = vmatpush2.bf16.msra.mxu0 0
  %180 = vmatprep.subr.bf16.mxu0 0
  %181 = vmatpush2.bf16.msra.mxu0 0
  %182 = vmatprep.subr.bf16.mxu0 0
  %183 = vmatpush2.bf16.msra.mxu0 0
  %184 = vmatprep.subr.bf16.mxu0 0
  %185 = vmatpush2.bf16.msra.mxu0 0
  %186 = vmatprep.mubr.bf16.mxu0 0
  %187 = vmatmul.mubr.bf16.gmra.mxu0 %v149
  %v188 = vpop.f32.mrf.mxu0
  %v189 = vadd.f32 %v129, %v188
  %v190 = vpop.f32.mrf.mxu0
  %v191 = vpop.f32.mrf.mxu0
  %v192 = vadd.f32 %v129, %v191
  %v193 = vpop.f32.mrf.mxu0
  %194 = vmatprep.mubr.bf16.mxu0 0
  %195 = vmatmul.mubr.bf16.gmra.mxu0 %v152
  %v196 = vpop.f32.mrf.mxu0
  %v197 = vadd.f32 %v129, %v196
  %v198 = vpop.f32.mrf.mxu0
  %v199 = vpop.f32.mrf.mxu0
  %v200 = vadd.f32 %v129, %v199
  %v201 = vpop.f32.mrf.mxu0
  %202 = vdwg.mxu0
  %vm203 = vcmask 261120
  %v204 = vsel %vm203, %v189, 0.0
  %205 = vadd.xlane.f32.xlu0 %v204
  %v206 = vpop.xlane.xlu0 %205
  %v207 = vsel %vm203, %v192, 0.0
  %208 = vadd.xlane.f32.xlu0 %v207
  %v209 = vpop.xlane.xlu0 %208
  %v210 = vsel %vm203, %v197, 0.0
  %211 = vadd.xlane.f32.xlu0 %v210
  %v212 = vpop.xlane.xlu0 %211
  %v213 = vsel %vm203, %v200, 0.0
  %214 = vadd.xlane.f32.xlu0 %v213
  %v215 = vpop.xlane.xlu0 %214
  %v216 = vrcp.pop 32.0
  %v217 = vmul.f32 %v206, %v216
  %v218 = vmul.f32 %v209, %v216
  %v219 = vmul.f32 %v212, %v216
  %v220 = vmul.f32 %v215, %v216
  %v221 = vsub.f32 %v189, %v217
  %v222 = vsub.f32 %v192, %v218
  %v223 = vsub.f32 %v197, %v219
  %v224 = vsub.f32 %v200, %v220
  %v225 = vmul.f32 %v221, %v221
  %v226 = vmul.f32 %v222, %v222
  %v227 = vmul.f32 %v223, %v223
  %v228 = vmul.f32 %v224, %v224
  %v229 = vsel %vm203, %v225, 0.0
  %230 = vadd.xlane.f32.xlu0 %v229
  %v231 = vpop.xlane.xlu0 %230
  %v232 = vsel %vm203, %v226, 0.0
  %233 = vadd.xlane.f32.xlu0 %v232
  %v234 = vpop.xlane.xlu0 %233
  %v235 = vsel %vm203, %v227, 0.0
  %236 = vadd.xlane.f32.xlu0 %v235
  %v237 = vpop.xlane.xlu0 %236
  %v238 = vsel %vm203, %v228, 0.0
  %239 = vadd.xlane.f32.xlu0 %v238
  %v240 = vpop.xlane.xlu0 %239
  %v241 = vmul.f32 %v231, %v216
  %v242 = vmul.f32 %v234, %v216
  %v243 = vmul.f32 %v237, %v216
  %v244 = vmul.f32 %v240, %v216
  %v245 = vadd.f32 %v241, 1e-05
  %v246 = vadd.f32 %v242, 1e-05
  %v247 = vadd.f32 %v243, 1e-05
  %v248 = vadd.f32 %v244, 1e-05
  %v249 = vrsqrt.pop %v245
  %v250 = vrsqrt.pop %v246
  %v251 = vrsqrt.pop %v247
  %v252 = vrsqrt.pop %v248
  %v253 = vmul.f32 %v221, %v249
  %v254 = vmul.f32 %v222, %v250
  %v255 = vmul.f32 %v223, %v251
  %v256 = vmul.f32 %v224, %v252
  %v257 = vlaneseq
  %v258 = vshrl.u32 %v257, 7
  %v259 = vsub.s32 1, %v258
  %v260 = vrot.slane %v117, %v259
  %v261 = vmul.f32 %v253, %v260
  %v262 = vmul.f32 %v254, %v260
  %v263 = vmul.f32 %v255, %v260
  %v264 = vmul.f32 %v256, %v260
  %v265 = vlaneseq
  %v266 = vshrl.u32 %v265, 7
  %v267 = vsub.s32 2, %v266
  %v268 = vrot.slane %v117, %v267
  %v269 = vadd.f32 %v261, %v268
  %v270 = vadd.f32 %v262, %v268
  %v271 = vadd.f32 %v263, %v268
  %v272 = vadd.f32 %v264, %v268
  %v273 = vld [vmem:[%s1] sm:$0xff]
  %v274 = vld [vmem:[%s1 + $0x8] sm:$0xff]
  %v275 = vadd.f32 %v269, %v273
  %v276 = vadd.f32 %v270, %v274
  %v277 = vadd.f32 %v271, %v273
  %v278 = vadd.f32 %v272, %v274
  %v279 = vld [vmem:[%s5] sm:$0xf]
  %v280 = vsel %vm203, %v275, 0.0
  %281 = vadd.xlane.f32.xlu0 %v280
  %v282 = vpop.xlane.xlu0 %281
  %v283 = vsel %vm203, %v276, 0.0
  %284 = vadd.xlane.f32.xlu0 %v283
  %v285 = vpop.xlane.xlu0 %284
  %v286 = vsel %vm203, %v277, 0.0
  %287 = vadd.xlane.f32.xlu0 %v286
  %v288 = vpop.xlane.xlu0 %287
  %v289 = vsel %vm203, %v278, 0.0
  %290 = vadd.xlane.f32.xlu0 %v289
  %v291 = vpop.xlane.xlu0 %290
  %v292 = vmul.f32 %v282, %v216
  %v293 = vmul.f32 %v285, %v216
  %v294 = vmul.f32 %v288, %v216
  %v295 = vmul.f32 %v291, %v216
  %v296 = vsub.f32 %v275, %v292
  %v297 = vsub.f32 %v276, %v293
  %v298 = vsub.f32 %v277, %v294
  %v299 = vsub.f32 %v278, %v295
  %v300 = vmul.f32 %v296, %v296
  %v301 = vmul.f32 %v297, %v297
  %v302 = vmul.f32 %v298, %v298
  %v303 = vmul.f32 %v299, %v299
  %v304 = vsel %vm203, %v300, 0.0
  %305 = vadd.xlane.f32.xlu0 %v304
  %v306 = vpop.xlane.xlu0 %305
  %v307 = vsel %vm203, %v301, 0.0
  %308 = vadd.xlane.f32.xlu0 %v307
  %v309 = vpop.xlane.xlu0 %308
  %v310 = vsel %vm203, %v302, 0.0
  %311 = vadd.xlane.f32.xlu0 %v310
  %v312 = vpop.xlane.xlu0 %311
  %v313 = vsel %vm203, %v303, 0.0
  %314 = vadd.xlane.f32.xlu0 %v313
  %v315 = vpop.xlane.xlu0 %314
  %v316 = vmul.f32 %v306, %v216
  %v317 = vmul.f32 %v309, %v216
  %v318 = vmul.f32 %v312, %v216
  %v319 = vmul.f32 %v315, %v216
  %v320 = vadd.f32 %v316, 1e-05
  %v321 = vadd.f32 %v317, 1e-05
  %v322 = vadd.f32 %v318, 1e-05
  %v323 = vadd.f32 %v319, 1e-05
  %v324 = vrsqrt.pop %v320
  %v325 = vrsqrt.pop %v321
  %v326 = vrsqrt.pop %v322
  %v327 = vrsqrt.pop %v323
  %v328 = vmul.f32 %v296, %v324
  %v329 = vmul.f32 %v297, %v325
  %v330 = vmul.f32 %v298, %v326
  %v331 = vmul.f32 %v299, %v327
  %v332 = vlaneseq
  %v333 = vshrl.u32 %v332, 7
  %v334 = vsub.s32 0, %v333
  %v335 = vrot.slane %v279, %v334
  %v336 = vmul.f32 %v328, %v335
  %v337 = vmul.f32 %v329, %v335
  %v338 = vmul.f32 %v330, %v335
  %v339 = vmul.f32 %v331, %v335
  %v340 = vlaneseq
  %v341 = vshrl.u32 %v340, 7
  %v342 = vsub.s32 1, %v341
  %v343 = vrot.slane %v279, %v342
  %v344 = vadd.f32 %v336, %v343
  %v345 = vadd.f32 %v337, %v343
  %v346 = vadd.f32 %v338, %v343
  %v347 = vadd.f32 %v339, %v343
  %v348 = vld [vmem:[%s6] sm:$0xf]
  %v349 = vld [vmem:[%s6 + $0x4] sm:$0xf]
  %v350 = vld [vmem:[%s6 + $0x8] sm:$0xf]
  %v351 = vld [vmem:[%s6 + $0xc] sm:$0xf]
  %v352 = vpack.c.bf16 %v345, %v344
  %v353 = vpack.c.bf16 %v347, %v346
  %v358 = vunpack.c.l.b16 %v348
  %v359 = vunpack.c.l.b16 %v349
  %v360 = vunpack.c.l.b16 %v350
  %v361 = vunpack.c.l.b16 %v351
  %v362 = vpack.c.b16 %v359, %v358
  %v363 = vpack.c.b16 %v361, %v360
  %v367 = vsel %vm203, %v352, 0
  %v370 = vsel %vm203, %v353, 0
  %372 = vmatprep.subr.bf16.mxu0 0
  %373 = vmatpush1.bf16.msra.mxu0 0
  %374 = vmatprep.subr.bf16.mxu0 0
  %375 = vmatpush1.bf16.msra.mxu0 0
  %376 = vmatprep.subr.bf16.mxu0 0
  %377 = vmatpush1.bf16.msra.mxu0 0
  %378 = vmatprep.subr.bf16.mxu0 0
  %379 = vmatpush1.bf16.msra.mxu0 0
  %380 = vmatprep.subr.bf16.mxu0 0
  %381 = vmatpush1.bf16.msra.mxu0 0
  %382 = vmatprep.subr.bf16.mxu0 0
  %383 = vmatpush1.bf16.msra.mxu0 0
  %384 = vmatprep.subr.bf16.mxu0 0
  %385 = vmatpush1.bf16.msra.mxu0 %v363
  %386 = vmatprep.subr.bf16.mxu0 0
  %387 = vmatpush1.bf16.msra.mxu0 %v362
  %388 = vmatprep.subr.bf16.mxu0 0
  %389 = vmatpush2.bf16.msra.mxu0 0
  %390 = vmatprep.subr.bf16.mxu0 0
  %391 = vmatpush2.bf16.msra.mxu0 0
  %392 = vmatprep.subr.bf16.mxu0 0
  %393 = vmatpush2.bf16.msra.mxu0 0
  %394 = vmatprep.subr.bf16.mxu0 0
  %395 = vmatpush2.bf16.msra.mxu0 0
  %396 = vmatprep.subr.bf16.mxu0 0
  %397 = vmatpush2.bf16.msra.mxu0 0
  %398 = vmatprep.subr.bf16.mxu0 0
  %399 = vmatpush2.bf16.msra.mxu0 0
  %400 = vmatprep.subr.bf16.mxu0 0
  %401 = vmatpush2.bf16.msra.mxu0 0
  %402 = vmatprep.subr.bf16.mxu0 0
  %403 = vmatpush2.bf16.msra.mxu0 0
  %404 = vmatprep.mubr.bf16.mxu0 0
  %405 = vmatmul.mubr.bf16.gmra.mxu0 %v367
  %v406 = vpop.f32.mrf.mxu0
  %v407 = vadd.f32 0.0, %v406
  %v408 = vpop.f32.mrf.mxu0
  %v409 = vpop.f32.mrf.mxu0
  %v410 = vadd.f32 0.0, %v409
  %v411 = vpop.f32.mrf.mxu0
  %412 = vmatprep.mubr.bf16.mxu0 0
  %413 = vmatmul.mubr.bf16.gmra.mxu0 %v370
  %v414 = vpop.f32.mrf.mxu0
  %v415 = vadd.f32 0.0, %v414
  %v416 = vpop.f32.mrf.mxu0
  %v417 = vpop.f32.mrf.mxu0
  %v418 = vadd.f32 0.0, %v417
  %v419 = vpop.f32.mrf.mxu0
  %420 = vdwg.mxu0
  %425 = vrot.lane.b32.xlu0 %v407, 120
  %v426 = vpop.permute.xlu0 %425
  %427 = vrot.lane.b32.xlu0 %v410, 120
  %v428 = vpop.permute.xlu0 %427
  %429 = vrot.lane.b32.xlu0 %v415, 120
  %v430 = vpop.permute.xlu0 %429
  %431 = vrot.lane.b32.xlu0 %v418, 120
  %v432 = vpop.permute.xlu0 %431
  %v437 = vmul.f32 %v407, 0.35355338
  %v438 = vmul.f32 %v410, 0.35355338
  %v439 = vmul.f32 %v415, 0.35355338
  %v440 = vmul.f32 %v418, 0.35355338
  %v441 = vmul.f32 %v426, 0.35355338
  %v442 = vmul.f32 %v428, 0.35355338
  %v443 = vmul.f32 %v430, 0.35355338
  %v444 = vmul.f32 %v432, 0.35355338
  %v445 = vpack.c.bf16 %v438, %v437
  %v446 = vpack.c.bf16 %v440, %v439
  %v447 = vpack.c.bf16 %v442, %v441
  %v448 = vpack.c.bf16 %v444, %v443
  %v449 = vpack.c.bf16 %v410, %v407
  %v450 = vpack.c.bf16 %v418, %v415
  %v451 = vpack.c.bf16 %v428, %v426
  %v452 = vpack.c.bf16 %v432, %v430
  %454 = vrot.lane.b32.xlu0 %v449, 112
  %v455 = vpop.permute.xlu0 %454
  %vm456 = vcmask 64512
  %v458 = vsel %vm456, %v445, 0
  %v461 = vsel %vm456, %v455, 0
  %463 = vmatprep.subr.bf16.mxu0 0
  %464 = vmatpush1.bf16.xpose.msra.mxu0 0
  %465 = vmatprep.subr.bf16.mxu0 0
  %466 = vmatpush1.bf16.xpose.msra.mxu0 0
  %467 = vmatprep.subr.bf16.mxu0 0
  %468 = vmatpush1.bf16.xpose.msra.mxu0 0
  %469 = vmatprep.subr.bf16.mxu0 0
  %470 = vmatpush1.bf16.xpose.msra.mxu0 0
  %471 = vmatprep.subr.bf16.mxu0 0
  %472 = vmatpush1.bf16.xpose.msra.mxu0 0
  %473 = vmatprep.subr.bf16.mxu0 0
  %474 = vmatpush1.bf16.xpose.msra.mxu0 0
  %475 = vmatprep.subr.bf16.mxu0 0
  %476 = vmatpush1.bf16.xpose.msra.mxu0 0
  %477 = vmatprep.subr.bf16.mxu0 0
  %478 = vmatpush1.bf16.xpose.msra.mxu0 %v461
  %479 = vmatprep.subr.bf16.mxu0 0
  %480 = vmatpush2.bf16.xpose.msra.mxu0 0
  %481 = vmatprep.subr.bf16.mxu0 0
  %482 = vmatpush2.bf16.xpose.msra.mxu0 0
  %483 = vmatprep.subr.bf16.mxu0 0
  %484 = vmatpush2.bf16.xpose.msra.mxu0 0
  %485 = vmatprep.subr.bf16.mxu0 0
  %486 = vmatpush2.bf16.xpose.msra.mxu0 0
  %487 = vmatprep.subr.bf16.mxu0 0
  %488 = vmatpush2.bf16.xpose.msra.mxu0 0
  %489 = vmatprep.subr.bf16.mxu0 0
  %490 = vmatpush2.bf16.xpose.msra.mxu0 0
  %491 = vmatprep.subr.bf16.mxu0 0
  %492 = vmatpush2.bf16.xpose.msra.mxu0 0
  %493 = vmatprep.subr.bf16.mxu0 0
  %494 = vmatpush2.bf16.xpose.msra.mxu0 0
  %495 = vmatprep.mubr.bf16.mxu0 0
  %496 = vmatmul.mubr.bf16.gmra.mxu0 %v458
  %v497 = vpop.f32.mrf.mxu0
  %v498 = vadd.f32 0.0, %v497
  %v499 = vpop.f32.mrf.mxu0
  %v500 = vpop.f32.mrf.mxu0
  %v501 = vadd.f32 0.0, %v500
  %v502 = vpop.f32.mrf.mxu0
  %503 = vdwg.mxu0
  %505 = vrot.lane.b32.xlu0 %v450, 112
  %v506 = vpop.permute.xlu0 %505
  %v508 = vsel %vm456, %v446, 0
  %v511 = vsel %vm456, %v506, 0
  %513 = vmatprep.subr.bf16.mxu0 0
  %514 = vmatpush1.bf16.xpose.msra.mxu0 0
  %515 = vmatprep.subr.bf16.mxu0 0
  %516 = vmatpush1.bf16.xpose.msra.mxu0 0
  %517 = vmatprep.subr.bf16.mxu0 0
  %518 = vmatpush1.bf16.xpose.msra.mxu0 0
  %519 = vmatprep.subr.bf16.mxu0 0
  %520 = vmatpush1.bf16.xpose.msra.mxu0 0
  %521 = vmatprep.subr.bf16.mxu0 0
  %522 = vmatpush1.bf16.xpose.msra.mxu0 0
  %523 = vmatprep.subr.bf16.mxu0 0
  %524 = vmatpush1.bf16.xpose.msra.mxu0 0
  %525 = vmatprep.subr.bf16.mxu0 0
  %526 = vmatpush1.bf16.xpose.msra.mxu0 0
  %527 = vmatprep.subr.bf16.mxu0 0
  %528 = vmatpush1.bf16.xpose.msra.mxu0 %v511
  %529 = vmatprep.subr.bf16.mxu0 0
  %530 = vmatpush2.bf16.xpose.msra.mxu0 0
  %531 = vmatprep.subr.bf16.mxu0 0
  %532 = vmatpush2.bf16.xpose.msra.mxu0 0
  %533 = vmatprep.subr.bf16.mxu0 0
  %534 = vmatpush2.bf16.xpose.msra.mxu0 0
  %535 = vmatprep.subr.bf16.mxu0 0
  %536 = vmatpush2.bf16.xpose.msra.mxu0 0
  %537 = vmatprep.subr.bf16.mxu0 0
  %538 = vmatpush2.bf16.xpose.msra.mxu0 0
  %539 = vmatprep.subr.bf16.mxu0 0
  %540 = vmatpush2.bf16.xpose.msra.mxu0 0
  %541 = vmatprep.subr.bf16.mxu0 0
  %542 = vmatpush2.bf16.xpose.msra.mxu0 0
  %543 = vmatprep.subr.bf16.mxu0 0
  %544 = vmatpush2.bf16.xpose.msra.mxu0 0
  %545 = vmatprep.mubr.bf16.mxu0 0
  %546 = vmatmul.mubr.bf16.gmra.mxu0 %v508
  %v547 = vpop.f32.mrf.mxu0
  %v548 = vadd.f32 0.0, %v547
  %v549 = vpop.f32.mrf.mxu0
  %v550 = vpop.f32.mrf.mxu0
  %v551 = vadd.f32 0.0, %v550
  %v552 = vpop.f32.mrf.mxu0
  %553 = vdwg.mxu0
  %555 = vrot.lane.b32.xlu0 %v451, 112
  %v556 = vpop.permute.xlu0 %555
  %v558 = vsel %vm456, %v447, 0
  %v561 = vsel %vm456, %v556, 0
  %563 = vmatprep.subr.bf16.mxu0 0
  %564 = vmatpush1.bf16.xpose.msra.mxu0 0
  %565 = vmatprep.subr.bf16.mxu0 0
  %566 = vmatpush1.bf16.xpose.msra.mxu0 0
  %567 = vmatprep.subr.bf16.mxu0 0
  %568 = vmatpush1.bf16.xpose.msra.mxu0 0
  %569 = vmatprep.subr.bf16.mxu0 0
  %570 = vmatpush1.bf16.xpose.msra.mxu0 0
  %571 = vmatprep.subr.bf16.mxu0 0
  %572 = vmatpush1.bf16.xpose.msra.mxu0 0
  %573 = vmatprep.subr.bf16.mxu0 0
  %574 = vmatpush1.bf16.xpose.msra.mxu0 0
  %575 = vmatprep.subr.bf16.mxu0 0
  %576 = vmatpush1.bf16.xpose.msra.mxu0 0
  %577 = vmatprep.subr.bf16.mxu0 0
  %578 = vmatpush1.bf16.xpose.msra.mxu0 %v561
  %579 = vmatprep.subr.bf16.mxu0 0
  %580 = vmatpush2.bf16.xpose.msra.mxu0 0
  %581 = vmatprep.subr.bf16.mxu0 0
  %582 = vmatpush2.bf16.xpose.msra.mxu0 0
  %583 = vmatprep.subr.bf16.mxu0 0
  %584 = vmatpush2.bf16.xpose.msra.mxu0 0
  %585 = vmatprep.subr.bf16.mxu0 0
  %586 = vmatpush2.bf16.xpose.msra.mxu0 0
  %587 = vmatprep.subr.bf16.mxu0 0
  %588 = vmatpush2.bf16.xpose.msra.mxu0 0
  %589 = vmatprep.subr.bf16.mxu0 0
  %590 = vmatpush2.bf16.xpose.msra.mxu0 0
  %591 = vmatprep.subr.bf16.mxu0 0
  %592 = vmatpush2.bf16.xpose.msra.mxu0 0
  %593 = vmatprep.subr.bf16.mxu0 0
  %594 = vmatpush2.bf16.xpose.msra.mxu0 0
  %595 = vmatprep.mubr.bf16.mxu0 0
  %596 = vmatmul.mubr.bf16.gmra.mxu0 %v558
  %v597 = vpop.f32.mrf.mxu0
  %v598 = vadd.f32 0.0, %v597
  %v599 = vpop.f32.mrf.mxu0
  %v600 = vpop.f32.mrf.mxu0
  %v601 = vadd.f32 0.0, %v600
  %v602 = vpop.f32.mrf.mxu0
  %603 = vdwg.mxu0
  %605 = vrot.lane.b32.xlu0 %v452, 112
  %v606 = vpop.permute.xlu0 %605
  %v608 = vsel %vm456, %v448, 0
  %v611 = vsel %vm456, %v606, 0
  %613 = vmatprep.subr.bf16.mxu0 0
  %614 = vmatpush1.bf16.xpose.msra.mxu0 0
  %615 = vmatprep.subr.bf16.mxu0 0
  %616 = vmatpush1.bf16.xpose.msra.mxu0 0
  %617 = vmatprep.subr.bf16.mxu0 0
  %618 = vmatpush1.bf16.xpose.msra.mxu0 0
  %619 = vmatprep.subr.bf16.mxu0 0
  %620 = vmatpush1.bf16.xpose.msra.mxu0 0
  %621 = vmatprep.subr.bf16.mxu0 0
  %622 = vmatpush1.bf16.xpose.msra.mxu0 0
  %623 = vmatprep.subr.bf16.mxu0 0
  %624 = vmatpush1.bf16.xpose.msra.mxu0 0
  %625 = vmatprep.subr.bf16.mxu0 0
  %626 = vmatpush1.bf16.xpose.msra.mxu0 0
  %627 = vmatprep.subr.bf16.mxu0 0
  %628 = vmatpush1.bf16.xpose.msra.mxu0 %v611
  %629 = vmatprep.subr.bf16.mxu0 0
  %630 = vmatpush2.bf16.xpose.msra.mxu0 0
  %631 = vmatprep.subr.bf16.mxu0 0
  %632 = vmatpush2.bf16.xpose.msra.mxu0 0
  %633 = vmatprep.subr.bf16.mxu0 0
  %634 = vmatpush2.bf16.xpose.msra.mxu0 0
  %635 = vmatprep.subr.bf16.mxu0 0
  %636 = vmatpush2.bf16.xpose.msra.mxu0 0
  %637 = vmatprep.subr.bf16.mxu0 0
  %638 = vmatpush2.bf16.xpose.msra.mxu0 0
  %639 = vmatprep.subr.bf16.mxu0 0
  %640 = vmatpush2.bf16.xpose.msra.mxu0 0
  %641 = vmatprep.subr.bf16.mxu0 0
  %642 = vmatpush2.bf16.xpose.msra.mxu0 0
  %643 = vmatprep.subr.bf16.mxu0 0
  %644 = vmatpush2.bf16.xpose.msra.mxu0 0
  %645 = vmatprep.mubr.bf16.mxu0 0
  %646 = vmatmul.mubr.bf16.gmra.mxu0 %v608
  %v647 = vpop.f32.mrf.mxu0
  %v648 = vadd.f32 0.0, %v647
  %v649 = vpop.f32.mrf.mxu0
  %v650 = vpop.f32.mrf.mxu0
  %v651 = vadd.f32 0.0, %v650
  %v652 = vpop.f32.mrf.mxu0
  %653 = vdwg.mxu0
  %vm654 = vcmask 130048
  %v655 = vsel %vm654, %v498, -inf
  %656 = vmax.xlane.f32.xlu0 %v655
  %v657 = vpop.xlane.xlu0 %656
  %v658 = vsel %vm654, %v501, -inf
  %659 = vmax.xlane.f32.xlu0 %v658
  %v660 = vpop.xlane.xlu0 %659
  %v661 = vsel %vm654, %v548, -inf
  %662 = vmax.xlane.f32.xlu0 %v661
  %v663 = vpop.xlane.xlu0 %662
  %v664 = vsel %vm654, %v551, -inf
  %665 = vmax.xlane.f32.xlu0 %v664
  %v666 = vpop.xlane.xlu0 %665
  %v667 = vsel %vm654, %v598, -inf
  %668 = vmax.xlane.f32.xlu0 %v667
  %v669 = vpop.xlane.xlu0 %668
  %v670 = vsel %vm654, %v601, -inf
  %671 = vmax.xlane.f32.xlu0 %v670
  %v672 = vpop.xlane.xlu0 %671
  %v673 = vsel %vm654, %v648, -inf
  %674 = vmax.xlane.f32.xlu0 %v673
  %v675 = vpop.xlane.xlu0 %674
  %v676 = vsel %vm654, %v651, -inf
  %677 = vmax.xlane.f32.xlu0 %v676
  %v678 = vpop.xlane.xlu0 %677
  %v679 = vsub.f32 %v498, %v657
  %v680 = vsub.f32 %v501, %v660
  %v681 = vsub.f32 %v548, %v663
  %v682 = vsub.f32 %v551, %v666
  %v683 = vsub.f32 %v598, %v669
  %v684 = vsub.f32 %v601, %v672
  %v685 = vsub.f32 %v648, %v675
  %v686 = vsub.f32 %v651, %v678
  %v687 = vmul.f32 %v679, 1.442695
  %v688 = vpow.pop %v687
  %v689 = vmul.f32 %v680, 1.442695
  %v690 = vpow.pop %v689
  %v691 = vmul.f32 %v681, 1.442695
  %v692 = vpow.pop %v691
  %v693 = vmul.f32 %v682, 1.442695
  %v694 = vpow.pop %v693
  %v695 = vmul.f32 %v683, 1.442695
  %v696 = vpow.pop %v695
  %v697 = vmul.f32 %v684, 1.442695
  %v698 = vpow.pop %v697
  %v699 = vmul.f32 %v685, 1.442695
  %v700 = vpow.pop %v699
  %v701 = vmul.f32 %v686, 1.442695
  %v702 = vpow.pop %v701
  %v703 = vsel %vm654, %v688, 0.0
  %704 = vadd.xlane.f32.xlu0 %v703
  %v705 = vpop.xlane.xlu0 %704
  %v706 = vsel %vm654, %v690, 0.0
  %707 = vadd.xlane.f32.xlu0 %v706
  %v708 = vpop.xlane.xlu0 %707
  %v709 = vsel %vm654, %v692, 0.0
  %710 = vadd.xlane.f32.xlu0 %v709
  %v711 = vpop.xlane.xlu0 %710
  %v712 = vsel %vm654, %v694, 0.0
  %713 = vadd.xlane.f32.xlu0 %v712
  %v714 = vpop.xlane.xlu0 %713
  %v715 = vsel %vm654, %v696, 0.0
  %716 = vadd.xlane.f32.xlu0 %v715
  %v717 = vpop.xlane.xlu0 %716
  %v718 = vsel %vm654, %v698, 0.0
  %719 = vadd.xlane.f32.xlu0 %v718
  %v720 = vpop.xlane.xlu0 %719
  %v721 = vsel %vm654, %v700, 0.0
  %722 = vadd.xlane.f32.xlu0 %v721
  %v723 = vpop.xlane.xlu0 %722
  %v724 = vsel %vm654, %v702, 0.0
  %725 = vadd.xlane.f32.xlu0 %v724
  %v726 = vpop.xlane.xlu0 %725
  %v727 = vrcp.pop %v705
  %v728 = vrcp.pop %v708
  %v729 = vrcp.pop %v711
  %v730 = vrcp.pop %v714
  %v731 = vrcp.pop %v717
  %v732 = vrcp.pop %v720
  %v733 = vrcp.pop %v723
  %v734 = vrcp.pop %v726
  %v735 = vmul.f32 %v688, %v727
  %v736 = vmul.f32 %v690, %v728
  %v737 = vmul.f32 %v692, %v729
  %v738 = vmul.f32 %v694, %v730
  %v739 = vmul.f32 %v696, %v731
  %v740 = vmul.f32 %v698, %v732
  %v741 = vmul.f32 %v700, %v733
  %v742 = vmul.f32 %v702, %v734
  %v743 = vpack.c.bf16 %v736, %v735
  %v744 = vpack.c.bf16 %v738, %v737
  %v745 = vpack.c.bf16 %v740, %v739
  %v746 = vpack.c.bf16 %v742, %v741
  %747 = vrot.lane.b32.xlu0 %v449, 96
  %v748 = vpop.permute.xlu0 %747
  %v751 = vsel %vm654, %v743, 0
  %753 = vmatprep.subr.bf16.mxu0 0
  %754 = vmatpush1.bf16.msra.mxu0 0
  %755 = vmatprep.subr.bf16.mxu0 0
  %756 = vmatpush1.bf16.msra.mxu0 0
  %757 = vmatprep.subr.bf16.mxu0 0
  %758 = vmatpush1.bf16.msra.mxu0 0
  %759 = vmatprep.subr.bf16.mxu0 0
  %760 = vmatpush1.bf16.msra.mxu0 0
  %761 = vmatprep.subr.bf16.mxu0 0
  %762 = vmatpush1.bf16.msra.mxu0 0
  %763 = vmatprep.subr.bf16.mxu0 0
  %764 = vmatpush1.bf16.msra.mxu0 0
  %765 = vmatprep.subr.bf16.mxu0 0
  %766 = vmatpush1.bf16.msra.mxu0 0
  %767 = vmatprep.subr.bf16.mxu0 0
  %768 = vmatpush1.bf16.msra.mxu0 %v748
  %769 = vmatprep.subr.bf16.mxu0 0
  %770 = vmatpush2.bf16.msra.mxu0 0
  %771 = vmatprep.subr.bf16.mxu0 0
  %772 = vmatpush2.bf16.msra.mxu0 0
  %773 = vmatprep.subr.bf16.mxu0 0
  %774 = vmatpush2.bf16.msra.mxu0 0
  %775 = vmatprep.subr.bf16.mxu0 0
  %776 = vmatpush2.bf16.msra.mxu0 0
  %777 = vmatprep.subr.bf16.mxu0 0
  %778 = vmatpush2.bf16.msra.mxu0 0
  %779 = vmatprep.subr.bf16.mxu0 0
  %780 = vmatpush2.bf16.msra.mxu0 0
  %781 = vmatprep.subr.bf16.mxu0 0
  %782 = vmatpush2.bf16.msra.mxu0 0
  %783 = vmatprep.subr.bf16.mxu0 0
  %784 = vmatpush2.bf16.msra.mxu0 0
  %785 = vmatprep.mubr.bf16.mxu0 0
  %786 = vmatmul.mubr.bf16.gmra.mxu0 %v751
  %v787 = vpop.f32.mrf.mxu0
  %v788 = vadd.f32 0.0, %v787
  %v789 = vpop.f32.mrf.mxu0
  %v790 = vpop.f32.mrf.mxu0
  %v791 = vadd.f32 0.0, %v790
  %v792 = vpop.f32.mrf.mxu0
  %793 = vdwg.mxu0
  %794 = vrot.lane.b32.xlu0 %v450, 96
  %v795 = vpop.permute.xlu0 %794
  %v798 = vsel %vm654, %v744, 0
  %800 = vmatprep.subr.bf16.mxu0 0
  %801 = vmatpush1.bf16.msra.mxu0 0
  %802 = vmatprep.subr.bf16.mxu0 0
  %803 = vmatpush1.bf16.msra.mxu0 0
  %804 = vmatprep.subr.bf16.mxu0 0
  %805 = vmatpush1.bf16.msra.mxu0 0
  %806 = vmatprep.subr.bf16.mxu0 0
  %807 = vmatpush1.bf16.msra.mxu0 0
  %808 = vmatprep.subr.bf16.mxu0 0
  %809 = vmatpush1.bf16.msra.mxu0 0
  %810 = vmatprep.subr.bf16.mxu0 0
  %811 = vmatpush1.bf16.msra.mxu0 0
  %812 = vmatprep.subr.bf16.mxu0 0
  %813 = vmatpush1.bf16.msra.mxu0 0
  %814 = vmatprep.subr.bf16.mxu0 0
  %815 = vmatpush1.bf16.msra.mxu0 %v795
  %816 = vmatprep.subr.bf16.mxu0 0
  %817 = vmatpush2.bf16.msra.mxu0 0
  %818 = vmatprep.subr.bf16.mxu0 0
  %819 = vmatpush2.bf16.msra.mxu0 0
  %820 = vmatprep.subr.bf16.mxu0 0
  %821 = vmatpush2.bf16.msra.mxu0 0
  %822 = vmatprep.subr.bf16.mxu0 0
  %823 = vmatpush2.bf16.msra.mxu0 0
  %824 = vmatprep.subr.bf16.mxu0 0
  %825 = vmatpush2.bf16.msra.mxu0 0
  %826 = vmatprep.subr.bf16.mxu0 0
  %827 = vmatpush2.bf16.msra.mxu0 0
  %828 = vmatprep.subr.bf16.mxu0 0
  %829 = vmatpush2.bf16.msra.mxu0 0
  %830 = vmatprep.subr.bf16.mxu0 0
  %831 = vmatpush2.bf16.msra.mxu0 0
  %832 = vmatprep.mubr.bf16.mxu0 0
  %833 = vmatmul.mubr.bf16.gmra.mxu0 %v798
  %v834 = vpop.f32.mrf.mxu0
  %v835 = vadd.f32 0.0, %v834
  %v836 = vpop.f32.mrf.mxu0
  %v837 = vpop.f32.mrf.mxu0
  %v838 = vadd.f32 0.0, %v837
  %v839 = vpop.f32.mrf.mxu0
  %840 = vdwg.mxu0
  %841 = vrot.lane.b32.xlu0 %v451, 96
  %v842 = vpop.permute.xlu0 %841
  %v845 = vsel %vm654, %v745, 0
  %847 = vmatprep.subr.bf16.mxu0 0
  %848 = vmatpush1.bf16.msra.mxu0 0
  %849 = vmatprep.subr.bf16.mxu0 0
  %850 = vmatpush1.bf16.msra.mxu0 0
  %851 = vmatprep.subr.bf16.mxu0 0
  %852 = vmatpush1.bf16.msra.mxu0 0
  %853 = vmatprep.subr.bf16.mxu0 0
  %854 = vmatpush1.bf16.msra.mxu0 0
  %855 = vmatprep.subr.bf16.mxu0 0
  %856 = vmatpush1.bf16.msra.mxu0 0
  %857 = vmatprep.subr.bf16.mxu0 0
  %858 = vmatpush1.bf16.msra.mxu0 0
  %859 = vmatprep.subr.bf16.mxu0 0
  %860 = vmatpush1.bf16.msra.mxu0 0
  %861 = vmatprep.subr.bf16.mxu0 0
  %862 = vmatpush1.bf16.msra.mxu0 %v842
  %863 = vmatprep.subr.bf16.mxu0 0
  %864 = vmatpush2.bf16.msra.mxu0 0
  %865 = vmatprep.subr.bf16.mxu0 0
  %866 = vmatpush2.bf16.msra.mxu0 0
  %867 = vmatprep.subr.bf16.mxu0 0
  %868 = vmatpush2.bf16.msra.mxu0 0
  %869 = vmatprep.subr.bf16.mxu0 0
  %870 = vmatpush2.bf16.msra.mxu0 0
  %871 = vmatprep.subr.bf16.mxu0 0
  %872 = vmatpush2.bf16.msra.mxu0 0
  %873 = vmatprep.subr.bf16.mxu0 0
  %874 = vmatpush2.bf16.msra.mxu0 0
  %875 = vmatprep.subr.bf16.mxu0 0
  %876 = vmatpush2.bf16.msra.mxu0 0
  %877 = vmatprep.subr.bf16.mxu0 0
  %878 = vmatpush2.bf16.msra.mxu0 0
  %879 = vmatprep.mubr.bf16.mxu0 0
  %880 = vmatmul.mubr.bf16.gmra.mxu0 %v845
  %v881 = vpop.f32.mrf.mxu0
  %v882 = vadd.f32 0.0, %v881
  %v883 = vpop.f32.mrf.mxu0
  %v884 = vpop.f32.mrf.mxu0
  %v885 = vadd.f32 0.0, %v884
  %v886 = vpop.f32.mrf.mxu0
  %887 = vdwg.mxu0
  %888 = vrot.lane.b32.xlu0 %v452, 96
  %v889 = vpop.permute.xlu0 %888
  %v892 = vsel %vm654, %v746, 0
  %894 = vmatprep.subr.bf16.mxu0 0
  %895 = vmatpush1.bf16.msra.mxu0 0
  %896 = vmatprep.subr.bf16.mxu0 0
  %897 = vmatpush1.bf16.msra.mxu0 0
  %898 = vmatprep.subr.bf16.mxu0 0
  %899 = vmatpush1.bf16.msra.mxu0 0
  %900 = vmatprep.subr.bf16.mxu0 0
  %901 = vmatpush1.bf16.msra.mxu0 0
  %902 = vmatprep.subr.bf16.mxu0 0
  %903 = vmatpush1.bf16.msra.mxu0 0
  %904 = vmatprep.subr.bf16.mxu0 0
  %905 = vmatpush1.bf16.msra.mxu0 0
  %906 = vmatprep.subr.bf16.mxu0 0
  %907 = vmatpush1.bf16.msra.mxu0 0
  %908 = vmatprep.subr.bf16.mxu0 0
  %909 = vmatpush1.bf16.msra.mxu0 %v889
  %910 = vmatprep.subr.bf16.mxu0 0
  %911 = vmatpush2.bf16.msra.mxu0 0
  %912 = vmatprep.subr.bf16.mxu0 0
  %913 = vmatpush2.bf16.msra.mxu0 0
  %914 = vmatprep.subr.bf16.mxu0 0
  %915 = vmatpush2.bf16.msra.mxu0 0
  %916 = vmatprep.subr.bf16.mxu0 0
  %917 = vmatpush2.bf16.msra.mxu0 0
  %918 = vmatprep.subr.bf16.mxu0 0
  %919 = vmatpush2.bf16.msra.mxu0 0
  %920 = vmatprep.subr.bf16.mxu0 0
  %921 = vmatpush2.bf16.msra.mxu0 0
  %922 = vmatprep.subr.bf16.mxu0 0
  %923 = vmatpush2.bf16.msra.mxu0 0
  %924 = vmatprep.subr.bf16.mxu0 0
  %925 = vmatpush2.bf16.msra.mxu0 0
  %926 = vmatprep.mubr.bf16.mxu0 0
  %927 = vmatmul.mubr.bf16.gmra.mxu0 %v892
  %v928 = vpop.f32.mrf.mxu0
  %v929 = vadd.f32 0.0, %v928
  %v930 = vpop.f32.mrf.mxu0
  %v931 = vpop.f32.mrf.mxu0
  %v932 = vadd.f32 0.0, %v931
  %v933 = vpop.f32.mrf.mxu0
  %934 = vdwg.mxu0
  %v935 = vld [vmem:[%s7] sm:$0xf]
  %v936 = vld [vmem:[%s7 + $0x4] sm:$0xf]
  %v937 = vpack.c.bf16 %v791, %v788
  %v938 = vpack.c.bf16 %v838, %v835
  %v939 = vpack.c.bf16 %v885, %v882
  %v940 = vpack.c.bf16 %v932, %v929
  %v942 = vsel %vm456, %v939, 0
  %v945 = vsel %vm456, %v940, 0
  %vm947 = vcmask 1043456
  %v949 = vsel %vm947, %v936, 0
  %951 = vmatprep.subr.bf16.mxu0 0
  %952 = vmatpush1.bf16.msra.mxu0 0
  %953 = vmatprep.subr.bf16.mxu0 0
  %954 = vmatpush1.bf16.msra.mxu0 0
  %955 = vmatprep.subr.bf16.mxu0 0
  %956 = vmatpush1.bf16.msra.mxu0 0
  %957 = vmatprep.subr.bf16.mxu0 0
  %958 = vmatpush1.bf16.msra.mxu0 0
  %959 = vmatprep.subr.bf16.mxu0 0
  %960 = vmatpush1.bf16.msra.mxu0 0
  %961 = vmatprep.subr.bf16.mxu0 0
  %962 = vmatpush1.bf16.msra.mxu0 0
  %963 = vmatprep.subr.bf16.mxu0 0
  %964 = vmatpush1.bf16.msra.mxu0 0
  %965 = vmatprep.subr.bf16.mxu0 0
  %966 = vmatpush1.bf16.msra.mxu0 %v949
  %967 = vmatprep.subr.bf16.mxu0 0
  %968 = vmatpush2.bf16.msra.mxu0 0
  %969 = vmatprep.subr.bf16.mxu0 0
  %970 = vmatpush2.bf16.msra.mxu0 0
  %971 = vmatprep.subr.bf16.mxu0 0
  %972 = vmatpush2.bf16.msra.mxu0 0
  %973 = vmatprep.subr.bf16.mxu0 0
  %974 = vmatpush2.bf16.msra.mxu0 0
  %975 = vmatprep.subr.bf16.mxu0 0
  %976 = vmatpush2.bf16.msra.mxu0 0
  %977 = vmatprep.subr.bf16.mxu0 0
  %978 = vmatpush2.bf16.msra.mxu0 0
  %979 = vmatprep.subr.bf16.mxu0 0
  %980 = vmatpush2.bf16.msra.mxu0 0
  %981 = vmatprep.subr.bf16.mxu0 0
  %982 = vmatpush2.bf16.msra.mxu0 0
  %983 = vmatprep.mubr.bf16.mxu0 0
  %984 = vmatmul.mubr.bf16.gmra.mxu0 %v942
  %v985 = vpop.f32.mrf.mxu0
  %v986 = vadd.f32 0.0, %v985
  %v987 = vpop.f32.mrf.mxu0
  %v988 = vpop.f32.mrf.mxu0
  %v989 = vadd.f32 0.0, %v988
  %v990 = vpop.f32.mrf.mxu0
  %991 = vmatprep.mubr.bf16.mxu0 0
  %992 = vmatmul.mubr.bf16.gmra.mxu0 %v945
  %v993 = vpop.f32.mrf.mxu0
  %v994 = vadd.f32 0.0, %v993
  %v995 = vpop.f32.mrf.mxu0
  %v996 = vpop.f32.mrf.mxu0
  %v997 = vadd.f32 0.0, %v996
  %v998 = vpop.f32.mrf.mxu0
  %999 = vdwg.mxu0
  %v1001 = vsel %vm456, %v937, 0
  %v1004 = vsel %vm456, %v938, 0
  %v1007 = vsel %vm947, %v935, 0
  %1009 = vmatprep.subr.bf16.mxu0 0
  %1010 = vmatpush1.bf16.msra.mxu0 0
  %1011 = vmatprep.subr.bf16.mxu0 0
  %1012 = vmatpush1.bf16.msra.mxu0 0
  %1013 = vmatprep.subr.bf16.mxu0 0
  %1014 = vmatpush1.bf16.msra.mxu0 0
  %1015 = vmatprep.subr.bf16.mxu0 0
  %1016 = vmatpush1.bf16.msra.mxu0 0
  %1017 = vmatprep.subr.bf16.mxu0 0
  %1018 = vmatpush1.bf16.msra.mxu0 0
  %1019 = vmatprep.subr.bf16.mxu0 0
  %1020 = vmatpush1.bf16.msra.mxu0 0
  %1021 = vmatprep.subr.bf16.mxu0 0
  %1022 = vmatpush1.bf16.msra.mxu0 0
  %1023 = vmatprep.subr.bf16.mxu0 0
  %1024 = vmatpush1.bf16.msra.mxu0 %v1007
  %1025 = vmatprep.subr.bf16.mxu0 0
  %1026 = vmatpush2.bf16.msra.mxu0 0
  %1027 = vmatprep.subr.bf16.mxu0 0
  %1028 = vmatpush2.bf16.msra.mxu0 0
  %1029 = vmatprep.subr.bf16.mxu0 0
  %1030 = vmatpush2.bf16.msra.mxu0 0
  %1031 = vmatprep.subr.bf16.mxu0 0
  %1032 = vmatpush2.bf16.msra.mxu0 0
  %1033 = vmatprep.subr.bf16.mxu0 0
  %1034 = vmatpush2.bf16.msra.mxu0 0
  %1035 = vmatprep.subr.bf16.mxu0 0
  %1036 = vmatpush2.bf16.msra.mxu0 0
  %1037 = vmatprep.subr.bf16.mxu0 0
  %1038 = vmatpush2.bf16.msra.mxu0 0
  %1039 = vmatprep.subr.bf16.mxu0 0
  %1040 = vmatpush2.bf16.msra.mxu0 0
  %1041 = vmatprep.mubr.bf16.mxu0 0
  %1042 = vmatmul.mubr.bf16.gmra.mxu0 %v1001
  %v1043 = vpop.f32.mrf.mxu0
  %v1044 = vadd.f32 %v986, %v1043
  %v1045 = vpop.f32.mrf.mxu0
  %v1046 = vpop.f32.mrf.mxu0
  %v1047 = vadd.f32 %v989, %v1046
  %v1048 = vpop.f32.mrf.mxu0
  %1049 = vmatprep.mubr.bf16.mxu0 0
  %1050 = vmatmul.mubr.bf16.gmra.mxu0 %v1004
  %v1051 = vpop.f32.mrf.mxu0
  %v1052 = vadd.f32 %v994, %v1051
  %v1053 = vpop.f32.mrf.mxu0
  %v1054 = vpop.f32.mrf.mxu0
  %v1055 = vadd.f32 %v997, %v1054
  %v1056 = vpop.f32.mrf.mxu0
  %1057 = vdwg.mxu0
  %v1058 = vadd.f32 %v275, %v1044
  %v1059 = vadd.f32 %v276, %v1047
  %v1060 = vadd.f32 %v277, %v1052
  %v1061 = vadd.f32 %v278, %v1055
  %v1062 = vsel %vm203, %v1058, 0.0
  %1063 = vadd.xlane.f32.xlu0 %v1062
  %v1064 = vpop.xlane.xlu0 %1063
  %v1065 = vsel %vm203, %v1059, 0.0
  %1066 = vadd.xlane.f32.xlu0 %v1065
  %v1067 = vpop.xlane.xlu0 %1066
  %v1068 = vsel %vm203, %v1060, 0.0
  %1069 = vadd.xlane.f32.xlu0 %v1068
  %v1070 = vpop.xlane.xlu0 %1069
  %v1071 = vsel %vm203, %v1061, 0.0
  %1072 = vadd.xlane.f32.xlu0 %v1071
  %v1073 = vpop.xlane.xlu0 %1072
  %v1074 = vmul.f32 %v1064, %v216
  %v1075 = vmul.f32 %v1067, %v216
  %v1076 = vmul.f32 %v1070, %v216
  %v1077 = vmul.f32 %v1073, %v216
  %v1078 = vsub.f32 %v1058, %v1074
  %v1079 = vsub.f32 %v1059, %v1075
  %v1080 = vsub.f32 %v1060, %v1076
  %v1081 = vsub.f32 %v1061, %v1077
  %v1082 = vmul.f32 %v1078, %v1078
  %v1083 = vmul.f32 %v1079, %v1079
  %v1084 = vmul.f32 %v1080, %v1080
  %v1085 = vmul.f32 %v1081, %v1081
  %v1086 = vsel %vm203, %v1082, 0.0
  %1087 = vadd.xlane.f32.xlu0 %v1086
  %v1088 = vpop.xlane.xlu0 %1087
  %v1089 = vsel %vm203, %v1083, 0.0
  %1090 = vadd.xlane.f32.xlu0 %v1089
  %v1091 = vpop.xlane.xlu0 %1090
  %v1092 = vsel %vm203, %v1084, 0.0
  %1093 = vadd.xlane.f32.xlu0 %v1092
  %v1094 = vpop.xlane.xlu0 %1093
  %v1095 = vsel %vm203, %v1085, 0.0
  %1096 = vadd.xlane.f32.xlu0 %v1095
  %v1097 = vpop.xlane.xlu0 %1096
  %v1098 = vmul.f32 %v1088, %v216
  %v1099 = vmul.f32 %v1091, %v216
  %v1100 = vmul.f32 %v1094, %v216
  %v1101 = vmul.f32 %v1097, %v216
  %v1102 = vadd.f32 %v1098, 1e-05
  %v1103 = vadd.f32 %v1099, 1e-05
  %v1104 = vadd.f32 %v1100, 1e-05
  %v1105 = vadd.f32 %v1101, 1e-05
  %v1106 = vrsqrt.pop %v1102
  %v1107 = vrsqrt.pop %v1103
  %v1108 = vrsqrt.pop %v1104
  %v1109 = vrsqrt.pop %v1105
  %v1110 = vmul.f32 %v1078, %v1106
  %v1111 = vmul.f32 %v1079, %v1107
  %v1112 = vmul.f32 %v1080, %v1108
  %v1113 = vmul.f32 %v1081, %v1109
  %v1114 = vlaneseq
  %v1115 = vshrl.u32 %v1114, 7
  %v1116 = vsub.s32 2, %v1115
  %v1117 = vrot.slane %v279, %v1116
  %v1118 = vmul.f32 %v1110, %v1117
  %v1119 = vmul.f32 %v1111, %v1117
  %v1120 = vmul.f32 %v1112, %v1117
  %v1121 = vmul.f32 %v1113, %v1117
  %v1122 = vlaneseq
  %v1123 = vshrl.u32 %v1122, 7
  %v1124 = vsub.s32 3, %v1123
  %v1125 = vrot.slane %v279, %v1124
  %v1126 = vadd.f32 %v1118, %v1125
  %v1127 = vadd.f32 %v1119, %v1125
  %v1128 = vadd.f32 %v1120, %v1125
  %v1129 = vadd.f32 %v1121, %v1125
  %v1130 = vld [vmem:[%s10] sm:$0x3]
  %v1131 = vld [vmem:[%s8] sm:$0xf]
  %v1132 = vld [vmem:[%s8 + $0x4] sm:$0xf]
  %v1133 = vld [vmem:[%s8 + $0x8] sm:$0xf]
  %v1134 = vld [vmem:[%s8 + $0xc] sm:$0xf]
  %v1135 = vpack.c.bf16 %v1127, %v1126
  %v1136 = vpack.c.bf16 %v1129, %v1128
  %v1137 = vlaneseq
  %v1138 = vshrl.u32 %v1137, 7
  %v1139 = vsub.s32 0, %v1138
  %v1140 = vrot.slane %v1130, %v1139
  %v1145 = vunpack.c.l.b16 %v1131
  %v1146 = vunpack.c.l.b16 %v1132
  %v1147 = vunpack.c.l.b16 %v1133
  %v1148 = vunpack.c.l.b16 %v1134
  %v1149 = vpack.c.b16 %v1146, %v1145
  %v1150 = vpack.c.b16 %v1148, %v1147
  %v1154 = vsel %vm203, %v1135, 0
  %v1157 = vsel %vm203, %v1136, 0
  %1159 = vmatprep.subr.bf16.mxu0 0
  %1160 = vmatpush1.bf16.msra.mxu0 0
  %1161 = vmatprep.subr.bf16.mxu0 0
  %1162 = vmatpush1.bf16.msra.mxu0 0
  %1163 = vmatprep.subr.bf16.mxu0 0
  %1164 = vmatpush1.bf16.msra.mxu0 0
  %1165 = vmatprep.subr.bf16.mxu0 0
  %1166 = vmatpush1.bf16.msra.mxu0 0
  %1167 = vmatprep.subr.bf16.mxu0 0
  %1168 = vmatpush1.bf16.msra.mxu0 0
  %1169 = vmatprep.subr.bf16.mxu0 0
  %1170 = vmatpush1.bf16.msra.mxu0 0
  %1171 = vmatprep.subr.bf16.mxu0 0
  %1172 = vmatpush1.bf16.msra.mxu0 %v1150
  %1173 = vmatprep.subr.bf16.mxu0 0
  %1174 = vmatpush1.bf16.msra.mxu0 %v1149
  %1175 = vmatprep.subr.bf16.mxu0 0
  %1176 = vmatpush2.bf16.msra.mxu0 0
  %1177 = vmatprep.subr.bf16.mxu0 0
  %1178 = vmatpush2.bf16.msra.mxu0 0
  %1179 = vmatprep.subr.bf16.mxu0 0
  %1180 = vmatpush2.bf16.msra.mxu0 0
  %1181 = vmatprep.subr.bf16.mxu0 0
  %1182 = vmatpush2.bf16.msra.mxu0 0
  %1183 = vmatprep.subr.bf16.mxu0 0
  %1184 = vmatpush2.bf16.msra.mxu0 0
  %1185 = vmatprep.subr.bf16.mxu0 0
  %1186 = vmatpush2.bf16.msra.mxu0 0
  %1187 = vmatprep.subr.bf16.mxu0 0
  %1188 = vmatpush2.bf16.msra.mxu0 0
  %1189 = vmatprep.subr.bf16.mxu0 0
  %1190 = vmatpush2.bf16.msra.mxu0 0
  %1191 = vmatprep.mubr.bf16.mxu0 0
  %1192 = vmatmul.mubr.bf16.gmra.mxu0 %v1154
  %v1193 = vpop.f32.mrf.mxu0
  %v1194 = vadd.f32 %v1140, %v1193
  %v1195 = vpop.f32.mrf.mxu0
  %v1196 = vpop.f32.mrf.mxu0
  %v1197 = vadd.f32 %v1140, %v1196
  %v1198 = vpop.f32.mrf.mxu0
  %1199 = vmatprep.mubr.bf16.mxu0 0
  %1200 = vmatmul.mubr.bf16.gmra.mxu0 %v1157
  %v1201 = vpop.f32.mrf.mxu0
  %v1202 = vadd.f32 %v1140, %v1201
  %v1203 = vpop.f32.mrf.mxu0
  %v1204 = vpop.f32.mrf.mxu0
  %v1205 = vadd.f32 %v1140, %v1204
  %v1206 = vpop.f32.mrf.mxu0
  %1207 = vdwg.mxu0
  %v1208 = vmul.f32 %v1194, 0.5
  %v1209 = vmul.f32 %v1197, 0.5
  %v1210 = vmul.f32 %v1202, 0.5
  %v1211 = vmul.f32 %v1205, 0.5
  %v1212 = vmul.f32 %v1194, 0.044715
  %v1213 = vmul.f32 %v1197, 0.044715
  %v1214 = vmul.f32 %v1202, 0.044715
  %v1215 = vmul.f32 %v1205, 0.044715
  %v1216 = vmul.f32 %v1212, %v1194
  %v1217 = vmul.f32 %v1213, %v1197
  %v1218 = vmul.f32 %v1214, %v1202
  %v1219 = vmul.f32 %v1215, %v1205
  %v1220 = vmul.f32 %v1216, %v1194
  %v1221 = vmul.f32 %v1217, %v1197
  %v1222 = vmul.f32 %v1218, %v1202
  %v1223 = vmul.f32 %v1219, %v1205
  %v1224 = vadd.f32 %v1194, %v1220
  %v1225 = vadd.f32 %v1197, %v1221
  %v1226 = vadd.f32 %v1202, %v1222
  %v1227 = vadd.f32 %v1205, %v1223
  %v1228 = vmul.f32 %v1224, 0.7978846
  %v1229 = vmul.f32 %v1225, 0.7978846
  %v1230 = vmul.f32 %v1226, 0.7978846
  %v1231 = vmul.f32 %v1227, 0.7978846
  %v1232 = vtanh.pop %v1228
  %v1233 = vtanh.pop %v1229
  %v1234 = vtanh.pop %v1230
  %v1235 = vtanh.pop %v1231
  %v1236 = vadd.f32 %v1232, 1.0
  %v1237 = vadd.f32 %v1233, 1.0
  %v1238 = vadd.f32 %v1234, 1.0
  %v1239 = vadd.f32 %v1235, 1.0
  %v1240 = vmul.f32 %v1208, %v1236
  %v1241 = vmul.f32 %v1209, %v1237
  %v1242 = vmul.f32 %v1210, %v1238
  %v1243 = vmul.f32 %v1211, %v1239
  %v1244 = vld [vmem:[%s9] sm:$0xf]
  %v1245 = vld [vmem:[%s9 + $0x4] sm:$0xf]
  %v1246 = vld [vmem:[%s9 + $0x8] sm:$0xf]
  %v1247 = vld [vmem:[%s9 + $0xc] sm:$0xf]
  %v1248 = vld [vmem:[%s9 + $0x10] sm:$0xf]
  %v1249 = vld [vmem:[%s9 + $0x14] sm:$0xf]
  %v1250 = vld [vmem:[%s9 + $0x18] sm:$0xf]
  %v1251 = vld [vmem:[%s9 + $0x1c] sm:$0xf]
  %v1252 = vpack.c.bf16 %v1241, %v1240
  %v1253 = vpack.c.bf16 %v1243, %v1242
  %v1262 = vunpack.c.l.b16 %v1244
  %v1263 = vunpack.c.l.b16 %v1245
  %v1264 = vunpack.c.l.b16 %v1246
  %v1265 = vunpack.c.l.b16 %v1247
  %v1266 = vunpack.c.l.b16 %v1248
  %v1267 = vunpack.c.l.b16 %v1249
  %v1268 = vunpack.c.l.b16 %v1250
  %v1269 = vunpack.c.l.b16 %v1251
  %v1270 = vpack.c.b16 %v1263, %v1262
  %v1271 = vpack.c.b16 %v1265, %v1264
  %v1272 = vpack.c.b16 %v1267, %v1266
  %v1273 = vpack.c.b16 %v1269, %v1268
  %vm1278 = vcmask 523264
  %v1280 = vsel %vm1278, %v1252, 0
  %v1283 = vsel %vm1278, %v1253, 0
  %1285 = vmatprep.subr.bf16.mxu0 0
  %1286 = vmatpush1.bf16.msra.mxu0 0
  %1287 = vmatprep.subr.bf16.mxu0 0
  %1288 = vmatpush1.bf16.msra.mxu0 0
  %1289 = vmatprep.subr.bf16.mxu0 0
  %1290 = vmatpush1.bf16.msra.mxu0 0
  %1291 = vmatprep.subr.bf16.mxu0 0
  %1292 = vmatpush1.bf16.msra.mxu0 0
  %1293 = vmatprep.subr.bf16.mxu0 0
  %1294 = vmatpush1.bf16.msra.mxu0 %v1273
  %1295 = vmatprep.subr.bf16.mxu0 0
  %1296 = vmatpush1.bf16.msra.mxu0 %v1272
  %1297 = vmatprep.subr.bf16.mxu0 0
  %1298 = vmatpush1.bf16.msra.mxu0 %v1271
  %1299 = vmatprep.subr.bf16.mxu0 0
  %1300 = vmatpush1.bf16.msra.mxu0 %v1270
  %1301 = vmatprep.subr.bf16.mxu0 0
  %1302 = vmatpush2.bf16.msra.mxu0 0
  %1303 = vmatprep.subr.bf16.mxu0 0
  %1304 = vmatpush2.bf16.msra.mxu0 0
  %1305 = vmatprep.subr.bf16.mxu0 0
  %1306 = vmatpush2.bf16.msra.mxu0 0
  %1307 = vmatprep.subr.bf16.mxu0 0
  %1308 = vmatpush2.bf16.msra.mxu0 0
  %1309 = vmatprep.subr.bf16.mxu0 0
  %1310 = vmatpush2.bf16.msra.mxu0 0
  %1311 = vmatprep.subr.bf16.mxu0 0
  %1312 = vmatpush2.bf16.msra.mxu0 0
  %1313 = vmatprep.subr.bf16.mxu0 0
  %1314 = vmatpush2.bf16.msra.mxu0 0
  %1315 = vmatprep.subr.bf16.mxu0 0
  %1316 = vmatpush2.bf16.msra.mxu0 0
  %1317 = vmatprep.mubr.bf16.mxu0 0
  %1318 = vmatmul.mubr.bf16.gmra.mxu0 %v1280
  %v1319 = vpop.f32.mrf.mxu0
  %v1320 = vadd.f32 0.0, %v1319
  %v1321 = vpop.f32.mrf.mxu0
  %v1322 = vpop.f32.mrf.mxu0
  %v1323 = vadd.f32 0.0, %v1322
  %v1324 = vpop.f32.mrf.mxu0
  %1325 = vmatprep.mubr.bf16.mxu0 0
  %1326 = vmatmul.mubr.bf16.gmra.mxu0 %v1283
  %v1327 = vpop.f32.mrf.mxu0
  %v1328 = vadd.f32 0.0, %v1327
  %v1329 = vpop.f32.mrf.mxu0
  %v1330 = vpop.f32.mrf.mxu0
  %v1331 = vadd.f32 0.0, %v1330
  %v1332 = vpop.f32.mrf.mxu0
  %1333 = vdwg.mxu0
  %v1334 = vadd.f32 %v1058, %v1320
  %v1335 = vadd.f32 %v1059, %v1323
  %v1336 = vadd.f32 %v1060, %v1328
  %v1337 = vadd.f32 %v1061, %v1331
  %v1338 = vlaneseq
  %v1339 = vshrl.u32 %v1338, 7
  %v1340 = vsub.s32 1, %v1339
  %v1341 = vrot.slane %v1130, %v1340
  %v1342 = vadd.f32 %v1334, %v1341
  %v1343 = vadd.f32 %v1335, %v1341
  %v1344 = vadd.f32 %v1336, %v1341
  %v1345 = vadd.f32 %v1337, %v1341
  %s1346 = scalar_lea.vmem %s5, 4
  %v1347 = vld [vmem:[%s1346] sm:$0xf]
  %v1348 = vsel %vm203, %v1342, 0.0
  %1349 = vadd.xlane.f32.xlu0 %v1348
  %v1350 = vpop.xlane.xlu0 %1349
  %v1351 = vsel %vm203, %v1343, 0.0
  %1352 = vadd.xlane.f32.xlu0 %v1351
  %v1353 = vpop.xlane.xlu0 %1352
  %v1354 = vsel %vm203, %v1344, 0.0
  %1355 = vadd.xlane.f32.xlu0 %v1354
  %v1356 = vpop.xlane.xlu0 %1355
  %v1357 = vsel %vm203, %v1345, 0.0
  %1358 = vadd.xlane.f32.xlu0 %v1357
  %v1359 = vpop.xlane.xlu0 %1358
  %v1360 = vmul.f32 %v1350, %v216
  %v1361 = vmul.f32 %v1353, %v216
  %v1362 = vmul.f32 %v1356, %v216
  %v1363 = vmul.f32 %v1359, %v216
  %v1364 = vsub.f32 %v1342, %v1360
  %v1365 = vsub.f32 %v1343, %v1361
  %v1366 = vsub.f32 %v1344, %v1362
  %v1367 = vsub.f32 %v1345, %v1363
  %v1368 = vmul.f32 %v1364, %v1364
  %v1369 = vmul.f32 %v1365, %v1365
  %v1370 = vmul.f32 %v1366, %v1366
  %v1371 = vmul.f32 %v1367, %v1367
  %v1372 = vsel %vm203, %v1368, 0.0
  %1373 = vadd.xlane.f32.xlu0 %v1372
  %v1374 = vpop.xlane.xlu0 %1373
  %v1375 = vsel %vm203, %v1369, 0.0
  %1376 = vadd.xlane.f32.xlu0 %v1375
  %v1377 = vpop.xlane.xlu0 %1376
  %v1378 = vsel %vm203, %v1370, 0.0
  %1379 = vadd.xlane.f32.xlu0 %v1378
  %v1380 = vpop.xlane.xlu0 %1379
  %v1381 = vsel %vm203, %v1371, 0.0
  %1382 = vadd.xlane.f32.xlu0 %v1381
  %v1383 = vpop.xlane.xlu0 %1382
  %v1384 = vmul.f32 %v1374, %v216
  %v1385 = vmul.f32 %v1377, %v216
  %v1386 = vmul.f32 %v1380, %v216
  %v1387 = vmul.f32 %v1383, %v216
  %v1388 = vadd.f32 %v1384, 1e-05
  %v1389 = vadd.f32 %v1385, 1e-05
  %v1390 = vadd.f32 %v1386, 1e-05
  %v1391 = vadd.f32 %v1387, 1e-05
  %v1392 = vrsqrt.pop %v1388
  %v1393 = vrsqrt.pop %v1389
  %v1394 = vrsqrt.pop %v1390
  %v1395 = vrsqrt.pop %v1391
  %v1396 = vmul.f32 %v1364, %v1392
  %v1397 = vmul.f32 %v1365, %v1393
  %v1398 = vmul.f32 %v1366, %v1394
  %v1399 = vmul.f32 %v1367, %v1395
  %v1400 = vlaneseq
  %v1401 = vshrl.u32 %v1400, 7
  %v1402 = vsub.s32 0, %v1401
  %v1403 = vrot.slane %v1347, %v1402
  %v1404 = vmul.f32 %v1396, %v1403
  %v1405 = vmul.f32 %v1397, %v1403
  %v1406 = vmul.f32 %v1398, %v1403
  %v1407 = vmul.f32 %v1399, %v1403
  %v1408 = vlaneseq
  %v1409 = vshrl.u32 %v1408, 7
  %v1410 = vsub.s32 1, %v1409
  %v1411 = vrot.slane %v1347, %v1410
  %v1412 = vadd.f32 %v1404, %v1411
  %v1413 = vadd.f32 %v1405, %v1411
  %v1414 = vadd.f32 %v1406, %v1411
  %v1415 = vadd.f32 %v1407, %v1411
  %s1416 = scalar_lea.vmem %s6, 16
  %v1417 = vld [vmem:[%s1416] sm:$0xf]
  %v1418 = vld [vmem:[%s1416 + $0x4] sm:$0xf]
  %v1419 = vld [vmem:[%s1416 + $0x8] sm:$0xf]
  %v1420 = vld [vmem:[%s1416 + $0xc] sm:$0xf]
  %v1421 = vpack.c.bf16 %v1413, %v1412
  %v1422 = vpack.c.bf16 %v1415, %v1414
  %v1427 = vunpack.c.l.b16 %v1417
  %v1428 = vunpack.c.l.b16 %v1418
  %v1429 = vunpack.c.l.b16 %v1419
  %v1430 = vunpack.c.l.b16 %v1420
  %v1431 = vpack.c.b16 %v1428, %v1427
  %v1432 = vpack.c.b16 %v1430, %v1429
  %v1436 = vsel %vm203, %v1421, 0
  %v1439 = vsel %vm203, %v1422, 0
  %1441 = vmatprep.subr.bf16.mxu0 0
  %1442 = vmatpush1.bf16.msra.mxu0 0
  %1443 = vmatprep.subr.bf16.mxu0 0
  %1444 = vmatpush1.bf16.msra.mxu0 0
  %1445 = vmatprep.subr.bf16.mxu0 0
  %1446 = vmatpush1.bf16.msra.mxu0 0
  %1447 = vmatprep.subr.bf16.mxu0 0
  %1448 = vmatpush1.bf16.msra.mxu0 0
  %1449 = vmatprep.subr.bf16.mxu0 0
  %1450 = vmatpush1.bf16.msra.mxu0 0
  %1451 = vmatprep.subr.bf16.mxu0 0
  %1452 = vmatpush1.bf16.msra.mxu0 0
  %1453 = vmatprep.subr.bf16.mxu0 0
  %1454 = vmatpush1.bf16.msra.mxu0 %v1432
  %1455 = vmatprep.subr.bf16.mxu0 0
  %1456 = vmatpush1.bf16.msra.mxu0 %v1431
  %1457 = vmatprep.subr.bf16.mxu0 0
  %1458 = vmatpush2.bf16.msra.mxu0 0
  %1459 = vmatprep.subr.bf16.mxu0 0
  %1460 = vmatpush2.bf16.msra.mxu0 0
  %1461 = vmatprep.subr.bf16.mxu0 0
  %1462 = vmatpush2.bf16.msra.mxu0 0
  %1463 = vmatprep.subr.bf16.mxu0 0
  %1464 = vmatpush2.bf16.msra.mxu0 0
  %1465 = vmatprep.subr.bf16.mxu0 0
  %1466 = vmatpush2.bf16.msra.mxu0 0
  %1467 = vmatprep.subr.bf16.mxu0 0
  %1468 = vmatpush2.bf16.msra.mxu0 0
  %1469 = vmatprep.subr.bf16.mxu0 0
  %1470 = vmatpush2.bf16.msra.mxu0 0
  %1471 = vmatprep.subr.bf16.mxu0 0
  %1472 = vmatpush2.bf16.msra.mxu0 0
  %1473 = vmatprep.mubr.bf16.mxu0 0
  %1474 = vmatmul.mubr.bf16.gmra.mxu0 %v1436
  %v1475 = vpop.f32.mrf.mxu0
  %v1476 = vadd.f32 0.0, %v1475
  %v1477 = vpop.f32.mrf.mxu0
  %v1478 = vpop.f32.mrf.mxu0
  %v1479 = vadd.f32 0.0, %v1478
  %v1480 = vpop.f32.mrf.mxu0
  %1481 = vmatprep.mubr.bf16.mxu0 0
  %1482 = vmatmul.mubr.bf16.gmra.mxu0 %v1439
  %v1483 = vpop.f32.mrf.mxu0
  %v1484 = vadd.f32 0.0, %v1483
  %v1485 = vpop.f32.mrf.mxu0
  %v1486 = vpop.f32.mrf.mxu0
  %v1487 = vadd.f32 0.0, %v1486
  %v1488 = vpop.f32.mrf.mxu0
  %1489 = vdwg.mxu0
  %1494 = vrot.lane.b32.xlu0 %v1476, 120
  %v1495 = vpop.permute.xlu0 %1494
  %1496 = vrot.lane.b32.xlu0 %v1479, 120
  %v1497 = vpop.permute.xlu0 %1496
  %1498 = vrot.lane.b32.xlu0 %v1484, 120
  %v1499 = vpop.permute.xlu0 %1498
  %1500 = vrot.lane.b32.xlu0 %v1487, 120
  %v1501 = vpop.permute.xlu0 %1500
  %v1506 = vmul.f32 %v1476, 0.35355338
  %v1507 = vmul.f32 %v1479, 0.35355338
  %v1508 = vmul.f32 %v1484, 0.35355338
  %v1509 = vmul.f32 %v1487, 0.35355338
  %v1510 = vmul.f32 %v1495, 0.35355338
  %v1511 = vmul.f32 %v1497, 0.35355338
  %v1512 = vmul.f32 %v1499, 0.35355338
  %v1513 = vmul.f32 %v1501, 0.35355338
  %v1514 = vpack.c.bf16 %v1507, %v1506
  %v1515 = vpack.c.bf16 %v1509, %v1508
  %v1516 = vpack.c.bf16 %v1511, %v1510
  %v1517 = vpack.c.bf16 %v1513, %v1512
  %v1518 = vpack.c.bf16 %v1479, %v1476
  %v1519 = vpack.c.bf16 %v1487, %v1484
  %v1520 = vpack.c.bf16 %v1497, %v1495
  %v1521 = vpack.c.bf16 %v1501, %v1499
  %1523 = vrot.lane.b32.xlu0 %v1518, 112
  %v1524 = vpop.permute.xlu0 %1523
  %v1526 = vsel %vm456, %v1514, 0
  %v1529 = vsel %vm456, %v1524, 0
  %1531 = vmatprep.subr.bf16.mxu0 0
  %1532 = vmatpush1.bf16.xpose.msra.mxu0 0
  %1533 = vmatprep.subr.bf16.mxu0 0
  %1534 = vmatpush1.bf16.xpose.msra.mxu0 0
  %1535 = vmatprep.subr.bf16.mxu0 0
  %1536 = vmatpush1.bf16.xpose.msra.mxu0 0
  %1537 = vmatprep.subr.bf16.mxu0 0
  %1538 = vmatpush1.bf16.xpose.msra.mxu0 0
  %1539 = vmatprep.subr.bf16.mxu0 0
  %1540 = vmatpush1.bf16.xpose.msra.mxu0 0
  %1541 = vmatprep.subr.bf16.mxu0 0
  %1542 = vmatpush1.bf16.xpose.msra.mxu0 0
  %1543 = vmatprep.subr.bf16.mxu0 0
  %1544 = vmatpush1.bf16.xpose.msra.mxu0 0
  %1545 = vmatprep.subr.bf16.mxu0 0
  %1546 = vmatpush1.bf16.xpose.msra.mxu0 %v1529
  %1547 = vmatprep.subr.bf16.mxu0 0
  %1548 = vmatpush2.bf16.xpose.msra.mxu0 0
  %1549 = vmatprep.subr.bf16.mxu0 0
  %1550 = vmatpush2.bf16.xpose.msra.mxu0 0
  %1551 = vmatprep.subr.bf16.mxu0 0
  %1552 = vmatpush2.bf16.xpose.msra.mxu0 0
  %1553 = vmatprep.subr.bf16.mxu0 0
  %1554 = vmatpush2.bf16.xpose.msra.mxu0 0
  %1555 = vmatprep.subr.bf16.mxu0 0
  %1556 = vmatpush2.bf16.xpose.msra.mxu0 0
  %1557 = vmatprep.subr.bf16.mxu0 0
  %1558 = vmatpush2.bf16.xpose.msra.mxu0 0
  %1559 = vmatprep.subr.bf16.mxu0 0
  %1560 = vmatpush2.bf16.xpose.msra.mxu0 0
  %1561 = vmatprep.subr.bf16.mxu0 0
  %1562 = vmatpush2.bf16.xpose.msra.mxu0 0
  %1563 = vmatprep.mubr.bf16.mxu0 0
  %1564 = vmatmul.mubr.bf16.gmra.mxu0 %v1526
  %v1565 = vpop.f32.mrf.mxu0
  %v1566 = vadd.f32 0.0, %v1565
  %v1567 = vpop.f32.mrf.mxu0
  %v1568 = vpop.f32.mrf.mxu0
  %v1569 = vadd.f32 0.0, %v1568
  %v1570 = vpop.f32.mrf.mxu0
  %1571 = vdwg.mxu0
  %1573 = vrot.lane.b32.xlu0 %v1519, 112
  %v1574 = vpop.permute.xlu0 %1573
  %v1576 = vsel %vm456, %v1515, 0
  %v1579 = vsel %vm456, %v1574, 0
  %1581 = vmatprep.subr.bf16.mxu0 0
  %1582 = vmatpush1.bf16.xpose.msra.mxu0 0
  %1583 = vmatprep.subr.bf16.mxu0 0
  %1584 = vmatpush1.bf16.xpose.msra.mxu0 0
  %1585 = vmatprep.subr.bf16.mxu0 0
  %1586 = vmatpush1.bf16.xpose.msra.mxu0 0
  %1587 = vmatprep.subr.bf16.mxu0 0
  %1588 = vmatpush1.bf16.xpose.msra.mxu0 0
  %1589 = vmatprep.subr.bf16.mxu0 0
  %1590 = vmatpush1.bf16.xpose.msra.mxu0 0
  %1591 = vmatprep.subr.bf16.mxu0 0
  %1592 = vmatpush1.bf16.xpose.msra.mxu0 0
  %1593 = vmatprep.subr.bf16.mxu0 0
  %1594 = vmatpush1.bf16.xpose.msra.mxu0 0
  %1595 = vmatprep.subr.bf16.mxu0 0
  %1596 = vmatpush1.bf16.xpose.msra.mxu0 %v1579
  %1597 = vmatprep.subr.bf16.mxu0 0
  %1598 = vmatpush2.bf16.xpose.msra.mxu0 0
  %1599 = vmatprep.subr.bf16.mxu0 0
  %1600 = vmatpush2.bf16.xpose.msra.mxu0 0
  %1601 = vmatprep.subr.bf16.mxu0 0
  %1602 = vmatpush2.bf16.xpose.msra.mxu0 0
  %1603 = vmatprep.subr.bf16.mxu0 0
  %1604 = vmatpush2.bf16.xpose.msra.mxu0 0
  %1605 = vmatprep.subr.bf16.mxu0 0
  %1606 = vmatpush2.bf16.xpose.msra.mxu0 0
  %1607 = vmatprep.subr.bf16.mxu0 0
  %1608 = vmatpush2.bf16.xpose.msra.mxu0 0
  %1609 = vmatprep.subr.bf16.mxu0 0
  %1610 = vmatpush2.bf16.xpose.msra.mxu0 0
  %1611 = vmatprep.subr.bf16.mxu0 0
  %1612 = vmatpush2.bf16.xpose.msra.mxu0 0
  %1613 = vmatprep.mubr.bf16.mxu0 0
  %1614 = vmatmul.mubr.bf16.gmra.mxu0 %v1576
  %v1615 = vpop.f32.mrf.mxu0
  %v1616 = vadd.f32 0.0, %v1615
  %v1617 = vpop.f32.mrf.mxu0
  %v1618 = vpop.f32.mrf.mxu0
  %v1619 = vadd.f32 0.0, %v1618
  %v1620 = vpop.f32.mrf.mxu0
  %1621 = vdwg.mxu0
  %1623 = vrot.lane.b32.xlu0 %v1520, 112
  %v1624 = vpop.permute.xlu0 %1623
  %v1626 = vsel %vm456, %v1516, 0
  %v1629 = vsel %vm456, %v1624, 0
  %1631 = vmatprep.subr.bf16.mxu0 0
  %1632 = vmatpush1.bf16.xpose.msra.mxu0 0
  %1633 = vmatprep.subr.bf16.mxu0 0
  %1634 = vmatpush1.bf16.xpose.msra.mxu0 0
  %1635 = vmatprep.subr.bf16.mxu0 0
  %1636 = vmatpush1.bf16.xpose.msra.mxu0 0
  %1637 = vmatprep.subr.bf16.mxu0 0
  %1638 = vmatpush1.bf16.xpose.msra.mxu0 0
  %1639 = vmatprep.subr.bf16.mxu0 0
  %1640 = vmatpush1.bf16.xpose.msra.mxu0 0
  %1641 = vmatprep.subr.bf16.mxu0 0
  %1642 = vmatpush1.bf16.xpose.msra.mxu0 0
  %1643 = vmatprep.subr.bf16.mxu0 0
  %1644 = vmatpush1.bf16.xpose.msra.mxu0 0
  %1645 = vmatprep.subr.bf16.mxu0 0
  %1646 = vmatpush1.bf16.xpose.msra.mxu0 %v1629
  %1647 = vmatprep.subr.bf16.mxu0 0
  %1648 = vmatpush2.bf16.xpose.msra.mxu0 0
  %1649 = vmatprep.subr.bf16.mxu0 0
  %1650 = vmatpush2.bf16.xpose.msra.mxu0 0
  %1651 = vmatprep.subr.bf16.mxu0 0
  %1652 = vmatpush2.bf16.xpose.msra.mxu0 0
  %1653 = vmatprep.subr.bf16.mxu0 0
  %1654 = vmatpush2.bf16.xpose.msra.mxu0 0
  %1655 = vmatprep.subr.bf16.mxu0 0
  %1656 = vmatpush2.bf16.xpose.msra.mxu0 0
  %1657 = vmatprep.subr.bf16.mxu0 0
  %1658 = vmatpush2.bf16.xpose.msra.mxu0 0
  %1659 = vmatprep.subr.bf16.mxu0 0
  %1660 = vmatpush2.bf16.xpose.msra.mxu0 0
  %1661 = vmatprep.subr.bf16.mxu0 0
  %1662 = vmatpush2.bf16.xpose.msra.mxu0 0
  %1663 = vmatprep.mubr.bf16.mxu0 0
  %1664 = vmatmul.mubr.bf16.gmra.mxu0 %v1626
  %v1665 = vpop.f32.mrf.mxu0
  %v1666 = vadd.f32 0.0, %v1665
  %v1667 = vpop.f32.mrf.mxu0
  %v1668 = vpop.f32.mrf.mxu0
  %v1669 = vadd.f32 0.0, %v1668
  %v1670 = vpop.f32.mrf.mxu0
  %1671 = vdwg.mxu0
  %1673 = vrot.lane.b32.xlu0 %v1521, 112
  %v1674 = vpop.permute.xlu0 %1673
  %v1676 = vsel %vm456, %v1517, 0
  %v1679 = vsel %vm456, %v1674, 0
  %1681 = vmatprep.subr.bf16.mxu0 0
  %1682 = vmatpush1.bf16.xpose.msra.mxu0 0
  %1683 = vmatprep.subr.bf16.mxu0 0
  %1684 = vmatpush1.bf16.xpose.msra.mxu0 0
  %1685 = vmatprep.subr.bf16.mxu0 0
  %1686 = vmatpush1.bf16.xpose.msra.mxu0 0
  %1687 = vmatprep.subr.bf16.mxu0 0
  %1688 = vmatpush1.bf16.xpose.msra.mxu0 0
  %1689 = vmatprep.subr.bf16.mxu0 0
  %1690 = vmatpush1.bf16.xpose.msra.mxu0 0
  %1691 = vmatprep.subr.bf16.mxu0 0
  %1692 = vmatpush1.bf16.xpose.msra.mxu0 0
  %1693 = vmatprep.subr.bf16.mxu0 0
  %1694 = vmatpush1.bf16.xpose.msra.mxu0 0
  %1695 = vmatprep.subr.bf16.mxu0 0
  %1696 = vmatpush1.bf16.xpose.msra.mxu0 %v1679
  %1697 = vmatprep.subr.bf16.mxu0 0
  %1698 = vmatpush2.bf16.xpose.msra.mxu0 0
  %1699 = vmatprep.subr.bf16.mxu0 0
  %1700 = vmatpush2.bf16.xpose.msra.mxu0 0
  %1701 = vmatprep.subr.bf16.mxu0 0
  %1702 = vmatpush2.bf16.xpose.msra.mxu0 0
  %1703 = vmatprep.subr.bf16.mxu0 0
  %1704 = vmatpush2.bf16.xpose.msra.mxu0 0
  %1705 = vmatprep.subr.bf16.mxu0 0
  %1706 = vmatpush2.bf16.xpose.msra.mxu0 0
  %1707 = vmatprep.subr.bf16.mxu0 0
  %1708 = vmatpush2.bf16.xpose.msra.mxu0 0
  %1709 = vmatprep.subr.bf16.mxu0 0
  %1710 = vmatpush2.bf16.xpose.msra.mxu0 0
  %1711 = vmatprep.subr.bf16.mxu0 0
  %1712 = vmatpush2.bf16.xpose.msra.mxu0 0
  %1713 = vmatprep.mubr.bf16.mxu0 0
  %1714 = vmatmul.mubr.bf16.gmra.mxu0 %v1676
  %v1715 = vpop.f32.mrf.mxu0
  %v1716 = vadd.f32 0.0, %v1715
  %v1717 = vpop.f32.mrf.mxu0
  %v1718 = vpop.f32.mrf.mxu0
  %v1719 = vadd.f32 0.0, %v1718
  %v1720 = vpop.f32.mrf.mxu0
  %1721 = vdwg.mxu0
  %v1722 = vsel %vm654, %v1566, -inf
  %1723 = vmax.xlane.f32.xlu0 %v1722
  %v1724 = vpop.xlane.xlu0 %1723
  %v1725 = vsel %vm654, %v1569, -inf
  %1726 = vmax.xlane.f32.xlu0 %v1725
  %v1727 = vpop.xlane.xlu0 %1726
  %v1728 = vsel %vm654, %v1616, -inf
  %1729 = vmax.xlane.f32.xlu0 %v1728
  %v1730 = vpop.xlane.xlu0 %1729
  %v1731 = vsel %vm654, %v1619, -inf
  %1732 = vmax.xlane.f32.xlu0 %v1731
  %v1733 = vpop.xlane.xlu0 %1732
  %v1734 = vsel %vm654, %v1666, -inf
  %1735 = vmax.xlane.f32.xlu0 %v1734
  %v1736 = vpop.xlane.xlu0 %1735
  %v1737 = vsel %vm654, %v1669, -inf
  %1738 = vmax.xlane.f32.xlu0 %v1737
  %v1739 = vpop.xlane.xlu0 %1738
  %v1740 = vsel %vm654, %v1716, -inf
  %1741 = vmax.xlane.f32.xlu0 %v1740
  %v1742 = vpop.xlane.xlu0 %1741
  %v1743 = vsel %vm654, %v1719, -inf
  %1744 = vmax.xlane.f32.xlu0 %v1743
  %v1745 = vpop.xlane.xlu0 %1744
  %v1746 = vsub.f32 %v1566, %v1724
  %v1747 = vsub.f32 %v1569, %v1727
  %v1748 = vsub.f32 %v1616, %v1730
  %v1749 = vsub.f32 %v1619, %v1733
  %v1750 = vsub.f32 %v1666, %v1736
  %v1751 = vsub.f32 %v1669, %v1739
  %v1752 = vsub.f32 %v1716, %v1742
  %v1753 = vsub.f32 %v1719, %v1745
  %v1754 = vmul.f32 %v1746, 1.442695
  %v1755 = vpow.pop %v1754
  %v1756 = vmul.f32 %v1747, 1.442695
  %v1757 = vpow.pop %v1756
  %v1758 = vmul.f32 %v1748, 1.442695
  %v1759 = vpow.pop %v1758
  %v1760 = vmul.f32 %v1749, 1.442695
  %v1761 = vpow.pop %v1760
  %v1762 = vmul.f32 %v1750, 1.442695
  %v1763 = vpow.pop %v1762
  %v1764 = vmul.f32 %v1751, 1.442695
  %v1765 = vpow.pop %v1764
  %v1766 = vmul.f32 %v1752, 1.442695
  %v1767 = vpow.pop %v1766
  %v1768 = vmul.f32 %v1753, 1.442695
  %v1769 = vpow.pop %v1768
  %v1770 = vsel %vm654, %v1755, 0.0
  %1771 = vadd.xlane.f32.xlu0 %v1770
  %v1772 = vpop.xlane.xlu0 %1771
  %v1773 = vsel %vm654, %v1757, 0.0
  %1774 = vadd.xlane.f32.xlu0 %v1773
  %v1775 = vpop.xlane.xlu0 %1774
  %v1776 = vsel %vm654, %v1759, 0.0
  %1777 = vadd.xlane.f32.xlu0 %v1776
  %v1778 = vpop.xlane.xlu0 %1777
  %v1779 = vsel %vm654, %v1761, 0.0
  %1780 = vadd.xlane.f32.xlu0 %v1779
  %v1781 = vpop.xlane.xlu0 %1780
  %v1782 = vsel %vm654, %v1763, 0.0
  %1783 = vadd.xlane.f32.xlu0 %v1782
  %v1784 = vpop.xlane.xlu0 %1783
  %v1785 = vsel %vm654, %v1765, 0.0
  %1786 = vadd.xlane.f32.xlu0 %v1785
  %v1787 = vpop.xlane.xlu0 %1786
  %v1788 = vsel %vm654, %v1767, 0.0
  %1789 = vadd.xlane.f32.xlu0 %v1788
  %v1790 = vpop.xlane.xlu0 %1789
  %v1791 = vsel %vm654, %v1769, 0.0
  %1792 = vadd.xlane.f32.xlu0 %v1791
  %v1793 = vpop.xlane.xlu0 %1792
  %v1794 = vrcp.pop %v1772
  %v1795 = vrcp.pop %v1775
  %v1796 = vrcp.pop %v1778
  %v1797 = vrcp.pop %v1781
  %v1798 = vrcp.pop %v1784
  %v1799 = vrcp.pop %v1787
  %v1800 = vrcp.pop %v1790
  %v1801 = vrcp.pop %v1793
  %v1802 = vmul.f32 %v1755, %v1794
  %v1803 = vmul.f32 %v1757, %v1795
  %v1804 = vmul.f32 %v1759, %v1796
  %v1805 = vmul.f32 %v1761, %v1797
  %v1806 = vmul.f32 %v1763, %v1798
  %v1807 = vmul.f32 %v1765, %v1799
  %v1808 = vmul.f32 %v1767, %v1800
  %v1809 = vmul.f32 %v1769, %v1801
  %v1810 = vpack.c.bf16 %v1803, %v1802
  %v1811 = vpack.c.bf16 %v1805, %v1804
  %v1812 = vpack.c.bf16 %v1807, %v1806
  %v1813 = vpack.c.bf16 %v1809, %v1808
  %1814 = vrot.lane.b32.xlu0 %v1518, 96
  %v1815 = vpop.permute.xlu0 %1814
  %v1818 = vsel %vm654, %v1810, 0
  %1820 = vmatprep.subr.bf16.mxu0 0
  %1821 = vmatpush1.bf16.msra.mxu0 0
  %1822 = vmatprep.subr.bf16.mxu0 0
  %1823 = vmatpush1.bf16.msra.mxu0 0
  %1824 = vmatprep.subr.bf16.mxu0 0
  %1825 = vmatpush1.bf16.msra.mxu0 0
  %1826 = vmatprep.subr.bf16.mxu0 0
  %1827 = vmatpush1.bf16.msra.mxu0 0
  %1828 = vmatprep.subr.bf16.mxu0 0
  %1829 = vmatpush1.bf16.msra.mxu0 0
  %1830 = vmatprep.subr.bf16.mxu0 0
  %1831 = vmatpush1.bf16.msra.mxu0 0
  %1832 = vmatprep.subr.bf16.mxu0 0
  %1833 = vmatpush1.bf16.msra.mxu0 0
  %1834 = vmatprep.subr.bf16.mxu0 0
  %1835 = vmatpush1.bf16.msra.mxu0 %v1815
  %1836 = vmatprep.subr.bf16.mxu0 0
  %1837 = vmatpush2.bf16.msra.mxu0 0
  %1838 = vmatprep.subr.bf16.mxu0 0
  %1839 = vmatpush2.bf16.msra.mxu0 0
  %1840 = vmatprep.subr.bf16.mxu0 0
  %1841 = vmatpush2.bf16.msra.mxu0 0
  %1842 = vmatprep.subr.bf16.mxu0 0
  %1843 = vmatpush2.bf16.msra.mxu0 0
  %1844 = vmatprep.subr.bf16.mxu0 0
  %1845 = vmatpush2.bf16.msra.mxu0 0
  %1846 = vmatprep.subr.bf16.mxu0 0
  %1847 = vmatpush2.bf16.msra.mxu0 0
  %1848 = vmatprep.subr.bf16.mxu0 0
  %1849 = vmatpush2.bf16.msra.mxu0 0
  %1850 = vmatprep.subr.bf16.mxu0 0
  %1851 = vmatpush2.bf16.msra.mxu0 0
  %1852 = vmatprep.mubr.bf16.mxu0 0
  %1853 = vmatmul.mubr.bf16.gmra.mxu0 %v1818
  %v1854 = vpop.f32.mrf.mxu0
  %v1855 = vadd.f32 0.0, %v1854
  %v1856 = vpop.f32.mrf.mxu0
  %v1857 = vpop.f32.mrf.mxu0
  %v1858 = vadd.f32 0.0, %v1857
  %v1859 = vpop.f32.mrf.mxu0
  %1860 = vdwg.mxu0
  %1861 = vrot.lane.b32.xlu0 %v1519, 96
  %v1862 = vpop.permute.xlu0 %1861
  %v1865 = vsel %vm654, %v1811, 0
  %1867 = vmatprep.subr.bf16.mxu0 0
  %1868 = vmatpush1.bf16.msra.mxu0 0
  %1869 = vmatprep.subr.bf16.mxu0 0
  %1870 = vmatpush1.bf16.msra.mxu0 0
  %1871 = vmatprep.subr.bf16.mxu0 0
  %1872 = vmatpush1.bf16.msra.mxu0 0
  %1873 = vmatprep.subr.bf16.mxu0 0
  %1874 = vmatpush1.bf16.msra.mxu0 0
  %1875 = vmatprep.subr.bf16.mxu0 0
  %1876 = vmatpush1.bf16.msra.mxu0 0
  %1877 = vmatprep.subr.bf16.mxu0 0
  %1878 = vmatpush1.bf16.msra.mxu0 0
  %1879 = vmatprep.subr.bf16.mxu0 0
  %1880 = vmatpush1.bf16.msra.mxu0 0
  %1881 = vmatprep.subr.bf16.mxu0 0
  %1882 = vmatpush1.bf16.msra.mxu0 %v1862
  %1883 = vmatprep.subr.bf16.mxu0 0
  %1884 = vmatpush2.bf16.msra.mxu0 0
  %1885 = vmatprep.subr.bf16.mxu0 0
  %1886 = vmatpush2.bf16.msra.mxu0 0
  %1887 = vmatprep.subr.bf16.mxu0 0
  %1888 = vmatpush2.bf16.msra.mxu0 0
  %1889 = vmatprep.subr.bf16.mxu0 0
  %1890 = vmatpush2.bf16.msra.mxu0 0
  %1891 = vmatprep.subr.bf16.mxu0 0
  %1892 = vmatpush2.bf16.msra.mxu0 0
  %1893 = vmatprep.subr.bf16.mxu0 0
  %1894 = vmatpush2.bf16.msra.mxu0 0
  %1895 = vmatprep.subr.bf16.mxu0 0
  %1896 = vmatpush2.bf16.msra.mxu0 0
  %1897 = vmatprep.subr.bf16.mxu0 0
  %1898 = vmatpush2.bf16.msra.mxu0 0
  %1899 = vmatprep.mubr.bf16.mxu0 0
  %1900 = vmatmul.mubr.bf16.gmra.mxu0 %v1865
  %v1901 = vpop.f32.mrf.mxu0
  %v1902 = vadd.f32 0.0, %v1901
  %v1903 = vpop.f32.mrf.mxu0
  %v1904 = vpop.f32.mrf.mxu0
  %v1905 = vadd.f32 0.0, %v1904
  %v1906 = vpop.f32.mrf.mxu0
  %1907 = vdwg.mxu0
  %1908 = vrot.lane.b32.xlu0 %v1520, 96
  %v1909 = vpop.permute.xlu0 %1908
  %v1912 = vsel %vm654, %v1812, 0
  %1914 = vmatprep.subr.bf16.mxu0 0
  %1915 = vmatpush1.bf16.msra.mxu0 0
  %1916 = vmatprep.subr.bf16.mxu0 0
  %1917 = vmatpush1.bf16.msra.mxu0 0
  %1918 = vmatprep.subr.bf16.mxu0 0
  %1919 = vmatpush1.bf16.msra.mxu0 0
  %1920 = vmatprep.subr.bf16.mxu0 0
  %1921 = vmatpush1.bf16.msra.mxu0 0
  %1922 = vmatprep.subr.bf16.mxu0 0
  %1923 = vmatpush1.bf16.msra.mxu0 0
  %1924 = vmatprep.subr.bf16.mxu0 0
  %1925 = vmatpush1.bf16.msra.mxu0 0
  %1926 = vmatprep.subr.bf16.mxu0 0
  %1927 = vmatpush1.bf16.msra.mxu0 0
  %1928 = vmatprep.subr.bf16.mxu0 0
  %1929 = vmatpush1.bf16.msra.mxu0 %v1909
  %1930 = vmatprep.subr.bf16.mxu0 0
  %1931 = vmatpush2.bf16.msra.mxu0 0
  %1932 = vmatprep.subr.bf16.mxu0 0
  %1933 = vmatpush2.bf16.msra.mxu0 0
  %1934 = vmatprep.subr.bf16.mxu0 0
  %1935 = vmatpush2.bf16.msra.mxu0 0
  %1936 = vmatprep.subr.bf16.mxu0 0
  %1937 = vmatpush2.bf16.msra.mxu0 0
  %1938 = vmatprep.subr.bf16.mxu0 0
  %1939 = vmatpush2.bf16.msra.mxu0 0
  %1940 = vmatprep.subr.bf16.mxu0 0
  %1941 = vmatpush2.bf16.msra.mxu0 0
  %1942 = vmatprep.subr.bf16.mxu0 0
  %1943 = vmatpush2.bf16.msra.mxu0 0
  %1944 = vmatprep.subr.bf16.mxu0 0
  %1945 = vmatpush2.bf16.msra.mxu0 0
  %1946 = vmatprep.mubr.bf16.mxu0 0
  %1947 = vmatmul.mubr.bf16.gmra.mxu0 %v1912
  %v1948 = vpop.f32.mrf.mxu0
  %v1949 = vadd.f32 0.0, %v1948
  %v1950 = vpop.f32.mrf.mxu0
  %v1951 = vpop.f32.mrf.mxu0
  %v1952 = vadd.f32 0.0, %v1951
  %v1953 = vpop.f32.mrf.mxu0
  %1954 = vdwg.mxu0
  %1955 = vrot.lane.b32.xlu0 %v1521, 96
  %v1956 = vpop.permute.xlu0 %1955
  %v1959 = vsel %vm654, %v1813, 0
  %1961 = vmatprep.subr.bf16.mxu0 0
  %1962 = vmatpush1.bf16.msra.mxu0 0
  %1963 = vmatprep.subr.bf16.mxu0 0
  %1964 = vmatpush1.bf16.msra.mxu0 0
  %1965 = vmatprep.subr.bf16.mxu0 0
  %1966 = vmatpush1.bf16.msra.mxu0 0
  %1967 = vmatprep.subr.bf16.mxu0 0
  %1968 = vmatpush1.bf16.msra.mxu0 0
  %1969 = vmatprep.subr.bf16.mxu0 0
  %1970 = vmatpush1.bf16.msra.mxu0 0
  %1971 = vmatprep.subr.bf16.mxu0 0
  %1972 = vmatpush1.bf16.msra.mxu0 0
  %1973 = vmatprep.subr.bf16.mxu0 0
  %1974 = vmatpush1.bf16.msra.mxu0 0
  %1975 = vmatprep.subr.bf16.mxu0 0
  %1976 = vmatpush1.bf16.msra.mxu0 %v1956
  %1977 = vmatprep.subr.bf16.mxu0 0
  %1978 = vmatpush2.bf16.msra.mxu0 0
  %1979 = vmatprep.subr.bf16.mxu0 0
  %1980 = vmatpush2.bf16.msra.mxu0 0
  %1981 = vmatprep.subr.bf16.mxu0 0
  %1982 = vmatpush2.bf16.msra.mxu0 0
  %1983 = vmatprep.subr.bf16.mxu0 0
  %1984 = vmatpush2.bf16.msra.mxu0 0
  %1985 = vmatprep.subr.bf16.mxu0 0
  %1986 = vmatpush2.bf16.msra.mxu0 0
  %1987 = vmatprep.subr.bf16.mxu0 0
  %1988 = vmatpush2.bf16.msra.mxu0 0
  %1989 = vmatprep.subr.bf16.mxu0 0
  %1990 = vmatpush2.bf16.msra.mxu0 0
  %1991 = vmatprep.subr.bf16.mxu0 0
  %1992 = vmatpush2.bf16.msra.mxu0 0
  %1993 = vmatprep.mubr.bf16.mxu0 0
  %1994 = vmatmul.mubr.bf16.gmra.mxu0 %v1959
  %v1995 = vpop.f32.mrf.mxu0
  %v1996 = vadd.f32 0.0, %v1995
  %v1997 = vpop.f32.mrf.mxu0
  %v1998 = vpop.f32.mrf.mxu0
  %v1999 = vadd.f32 0.0, %v1998
  %v2000 = vpop.f32.mrf.mxu0
  %2001 = vdwg.mxu0
  %s2002 = scalar_lea.vmem %s7, 8
  %v2003 = vld [vmem:[%s2002] sm:$0xf]
  %v2004 = vld [vmem:[%s2002 + $0x4] sm:$0xf]
  %v2005 = vpack.c.bf16 %v1858, %v1855
  %v2006 = vpack.c.bf16 %v1905, %v1902
  %v2007 = vpack.c.bf16 %v1952, %v1949
  %v2008 = vpack.c.bf16 %v1999, %v1996
  %v2010 = vsel %vm456, %v2007, 0
  %v2013 = vsel %vm456, %v2008, 0
  %v2016 = vsel %vm947, %v2004, 0
  %2018 = vmatprep.subr.bf16.mxu0 0
  %2019 = vmatpush1.bf16.msra.mxu0 0
  %2020 = vmatprep.subr.bf16.mxu0 0
  %2021 = vmatpush1.bf16.msra.mxu0 0
  %2022 = vmatprep.subr.bf16.mxu0 0
  %2023 = vmatpush1.bf16.msra.mxu0 0
  %2024 = vmatprep.subr.bf16.mxu0 0
  %2025 = vmatpush1.bf16.msra.mxu0 0
  %2026 = vmatprep.subr.bf16.mxu0 0
  %2027 = vmatpush1.bf16.msra.mxu0 0
  %2028 = vmatprep.subr.bf16.mxu0 0
  %2029 = vmatpush1.bf16.msra.mxu0 0
  %2030 = vmatprep.subr.bf16.mxu0 0
  %2031 = vmatpush1.bf16.msra.mxu0 0
  %2032 = vmatprep.subr.bf16.mxu0 0
  %2033 = vmatpush1.bf16.msra.mxu0 %v2016
  %2034 = vmatprep.subr.bf16.mxu0 0
  %2035 = vmatpush2.bf16.msra.mxu0 0
  %2036 = vmatprep.subr.bf16.mxu0 0
  %2037 = vmatpush2.bf16.msra.mxu0 0
  %2038 = vmatprep.subr.bf16.mxu0 0
  %2039 = vmatpush2.bf16.msra.mxu0 0
  %2040 = vmatprep.subr.bf16.mxu0 0
  %2041 = vmatpush2.bf16.msra.mxu0 0
  %2042 = vmatprep.subr.bf16.mxu0 0
  %2043 = vmatpush2.bf16.msra.mxu0 0
  %2044 = vmatprep.subr.bf16.mxu0 0
  %2045 = vmatpush2.bf16.msra.mxu0 0
  %2046 = vmatprep.subr.bf16.mxu0 0
  %2047 = vmatpush2.bf16.msra.mxu0 0
  %2048 = vmatprep.subr.bf16.mxu0 0
  %2049 = vmatpush2.bf16.msra.mxu0 0
  %2050 = vmatprep.mubr.bf16.mxu0 0
  %2051 = vmatmul.mubr.bf16.gmra.mxu0 %v2010
  %v2052 = vpop.f32.mrf.mxu0
  %v2053 = vadd.f32 0.0, %v2052
  %v2054 = vpop.f32.mrf.mxu0
  %v2055 = vpop.f32.mrf.mxu0
  %v2056 = vadd.f32 0.0, %v2055
  %v2057 = vpop.f32.mrf.mxu0
  %2058 = vmatprep.mubr.bf16.mxu0 0
  %2059 = vmatmul.mubr.bf16.gmra.mxu0 %v2013
  %v2060 = vpop.f32.mrf.mxu0
  %v2061 = vadd.f32 0.0, %v2060
  %v2062 = vpop.f32.mrf.mxu0
  %v2063 = vpop.f32.mrf.mxu0
  %v2064 = vadd.f32 0.0, %v2063
  %v2065 = vpop.f32.mrf.mxu0
  %2066 = vdwg.mxu0
  %v2068 = vsel %vm456, %v2005, 0
  %v2071 = vsel %vm456, %v2006, 0
  %v2074 = vsel %vm947, %v2003, 0
  %2076 = vmatprep.subr.bf16.mxu0 0
  %2077 = vmatpush1.bf16.msra.mxu0 0
  %2078 = vmatprep.subr.bf16.mxu0 0
  %2079 = vmatpush1.bf16.msra.mxu0 0
  %2080 = vmatprep.subr.bf16.mxu0 0
  %2081 = vmatpush1.bf16.msra.mxu0 0
  %2082 = vmatprep.subr.bf16.mxu0 0
  %2083 = vmatpush1.bf16.msra.mxu0 0
  %2084 = vmatprep.subr.bf16.mxu0 0
  %2085 = vmatpush1.bf16.msra.mxu0 0
  %2086 = vmatprep.subr.bf16.mxu0 0
  %2087 = vmatpush1.bf16.msra.mxu0 0
  %2088 = vmatprep.subr.bf16.mxu0 0
  %2089 = vmatpush1.bf16.msra.mxu0 0
  %2090 = vmatprep.subr.bf16.mxu0 0
  %2091 = vmatpush1.bf16.msra.mxu0 %v2074
  %2092 = vmatprep.subr.bf16.mxu0 0
  %2093 = vmatpush2.bf16.msra.mxu0 0
  %2094 = vmatprep.subr.bf16.mxu0 0
  %2095 = vmatpush2.bf16.msra.mxu0 0
  %2096 = vmatprep.subr.bf16.mxu0 0
  %2097 = vmatpush2.bf16.msra.mxu0 0
  %2098 = vmatprep.subr.bf16.mxu0 0
  %2099 = vmatpush2.bf16.msra.mxu0 0
  %2100 = vmatprep.subr.bf16.mxu0 0
  %2101 = vmatpush2.bf16.msra.mxu0 0
  %2102 = vmatprep.subr.bf16.mxu0 0
  %2103 = vmatpush2.bf16.msra.mxu0 0
  %2104 = vmatprep.subr.bf16.mxu0 0
  %2105 = vmatpush2.bf16.msra.mxu0 0
  %2106 = vmatprep.subr.bf16.mxu0 0
  %2107 = vmatpush2.bf16.msra.mxu0 0
  %2108 = vmatprep.mubr.bf16.mxu0 0
  %2109 = vmatmul.mubr.bf16.gmra.mxu0 %v2068
  %v2110 = vpop.f32.mrf.mxu0
  %v2111 = vadd.f32 %v2053, %v2110
  %v2112 = vpop.f32.mrf.mxu0
  %v2113 = vpop.f32.mrf.mxu0
  %v2114 = vadd.f32 %v2056, %v2113
  %v2115 = vpop.f32.mrf.mxu0
  %2116 = vmatprep.mubr.bf16.mxu0 0
  %2117 = vmatmul.mubr.bf16.gmra.mxu0 %v2071
  %v2118 = vpop.f32.mrf.mxu0
  %v2119 = vadd.f32 %v2061, %v2118
  %v2120 = vpop.f32.mrf.mxu0
  %v2121 = vpop.f32.mrf.mxu0
  %v2122 = vadd.f32 %v2064, %v2121
  %v2123 = vpop.f32.mrf.mxu0
  %2124 = vdwg.mxu0
  %v2125 = vadd.f32 %v1342, %v2111
  %v2126 = vadd.f32 %v1343, %v2114
  %v2127 = vadd.f32 %v1344, %v2119
  %v2128 = vadd.f32 %v1345, %v2122
  %v2129 = vsel %vm203, %v2125, 0.0
  %2130 = vadd.xlane.f32.xlu0 %v2129
  %v2131 = vpop.xlane.xlu0 %2130
  %v2132 = vsel %vm203, %v2126, 0.0
  %2133 = vadd.xlane.f32.xlu0 %v2132
  %v2134 = vpop.xlane.xlu0 %2133
  %v2135 = vsel %vm203, %v2127, 0.0
  %2136 = vadd.xlane.f32.xlu0 %v2135
  %v2137 = vpop.xlane.xlu0 %2136
  %v2138 = vsel %vm203, %v2128, 0.0
  %2139 = vadd.xlane.f32.xlu0 %v2138
  %v2140 = vpop.xlane.xlu0 %2139
  %v2141 = vmul.f32 %v2131, %v216
  %v2142 = vmul.f32 %v2134, %v216
  %v2143 = vmul.f32 %v2137, %v216
  %v2144 = vmul.f32 %v2140, %v216
  %v2145 = vsub.f32 %v2125, %v2141
  %v2146 = vsub.f32 %v2126, %v2142
  %v2147 = vsub.f32 %v2127, %v2143
  %v2148 = vsub.f32 %v2128, %v2144
  %v2149 = vmul.f32 %v2145, %v2145
  %v2150 = vmul.f32 %v2146, %v2146
  %v2151 = vmul.f32 %v2147, %v2147
  %v2152 = vmul.f32 %v2148, %v2148
  %v2153 = vsel %vm203, %v2149, 0.0
  %2154 = vadd.xlane.f32.xlu0 %v2153
  %v2155 = vpop.xlane.xlu0 %2154
  %v2156 = vsel %vm203, %v2150, 0.0
  %2157 = vadd.xlane.f32.xlu0 %v2156
  %v2158 = vpop.xlane.xlu0 %2157
  %v2159 = vsel %vm203, %v2151, 0.0
  %2160 = vadd.xlane.f32.xlu0 %v2159
  %v2161 = vpop.xlane.xlu0 %2160
  %v2162 = vsel %vm203, %v2152, 0.0
  %2163 = vadd.xlane.f32.xlu0 %v2162
  %v2164 = vpop.xlane.xlu0 %2163
  %v2165 = vmul.f32 %v2155, %v216
  %v2166 = vmul.f32 %v2158, %v216
  %v2167 = vmul.f32 %v2161, %v216
  %v2168 = vmul.f32 %v2164, %v216
  %v2169 = vadd.f32 %v2165, 1e-05
  %v2170 = vadd.f32 %v2166, 1e-05
  %v2171 = vadd.f32 %v2167, 1e-05
  %v2172 = vadd.f32 %v2168, 1e-05
  %v2173 = vrsqrt.pop %v2169
  %v2174 = vrsqrt.pop %v2170
  %v2175 = vrsqrt.pop %v2171
  %v2176 = vrsqrt.pop %v2172
  %v2177 = vmul.f32 %v2145, %v2173
  %v2178 = vmul.f32 %v2146, %v2174
  %v2179 = vmul.f32 %v2147, %v2175
  %v2180 = vmul.f32 %v2148, %v2176
  %v2181 = vlaneseq
  %v2182 = vshrl.u32 %v2181, 7
  %v2183 = vsub.s32 2, %v2182
  %v2184 = vrot.slane %v1347, %v2183
  %v2185 = vmul.f32 %v2177, %v2184
  %v2186 = vmul.f32 %v2178, %v2184
  %v2187 = vmul.f32 %v2179, %v2184
  %v2188 = vmul.f32 %v2180, %v2184
  %v2189 = vlaneseq
  %v2190 = vshrl.u32 %v2189, 7
  %v2191 = vsub.s32 3, %v2190
  %v2192 = vrot.slane %v1347, %v2191
  %v2193 = vadd.f32 %v2185, %v2192
  %v2194 = vadd.f32 %v2186, %v2192
  %v2195 = vadd.f32 %v2187, %v2192
  %v2196 = vadd.f32 %v2188, %v2192
  %s2197 = scalar_lea.vmem %s10, 2
  %v2198 = vld [vmem:[%s2197] sm:$0x3]
  %s2199 = scalar_lea.vmem %s8, 16
  %v2200 = vld [vmem:[%s2199] sm:$0xf]
  %v2201 = vld [vmem:[%s2199 + $0x4] sm:$0xf]
  %v2202 = vld [vmem:[%s2199 + $0x8] sm:$0xf]
  %v2203 = vld [vmem:[%s2199 + $0xc] sm:$0xf]
  %v2204 = vpack.c.bf16 %v2194, %v2193
  %v2205 = vpack.c.bf16 %v2196, %v2195
  %v2206 = vlaneseq
  %v2207 = vshrl.u32 %v2206, 7
  %v2208 = vsub.s32 0, %v2207
  %v2209 = vrot.slane %v2198, %v2208
  %v2214 = vunpack.c.l.b16 %v2200
  %v2215 = vunpack.c.l.b16 %v2201
  %v2216 = vunpack.c.l.b16 %v2202
  %v2217 = vunpack.c.l.b16 %v2203
  %v2218 = vpack.c.b16 %v2215, %v2214
  %v2219 = vpack.c.b16 %v2217, %v2216
  %v2223 = vsel %vm203, %v2204, 0
  %v2226 = vsel %vm203, %v2205, 0
  %2228 = vmatprep.subr.bf16.mxu0 0
  %2229 = vmatpush1.bf16.msra.mxu0 0
  %2230 = vmatprep.subr.bf16.mxu0 0
  %2231 = vmatpush1.bf16.msra.mxu0 0
  %2232 = vmatprep.subr.bf16.mxu0 0
  %2233 = vmatpush1.bf16.msra.mxu0 0
  %2234 = vmatprep.subr.bf16.mxu0 0
  %2235 = vmatpush1.bf16.msra.mxu0 0
  %2236 = vmatprep.subr.bf16.mxu0 0
  %2237 = vmatpush1.bf16.msra.mxu0 0
  %2238 = vmatprep.subr.bf16.mxu0 0
  %2239 = vmatpush1.bf16.msra.mxu0 0
  %2240 = vmatprep.subr.bf16.mxu0 0
  %2241 = vmatpush1.bf16.msra.mxu0 %v2219
  %2242 = vmatprep.subr.bf16.mxu0 0
  %2243 = vmatpush1.bf16.msra.mxu0 %v2218
  %2244 = vmatprep.subr.bf16.mxu0 0
  %2245 = vmatpush2.bf16.msra.mxu0 0
  %2246 = vmatprep.subr.bf16.mxu0 0
  %2247 = vmatpush2.bf16.msra.mxu0 0
  %2248 = vmatprep.subr.bf16.mxu0 0
  %2249 = vmatpush2.bf16.msra.mxu0 0
  %2250 = vmatprep.subr.bf16.mxu0 0
  %2251 = vmatpush2.bf16.msra.mxu0 0
  %2252 = vmatprep.subr.bf16.mxu0 0
  %2253 = vmatpush2.bf16.msra.mxu0 0
  %2254 = vmatprep.subr.bf16.mxu0 0
  %2255 = vmatpush2.bf16.msra.mxu0 0
  %2256 = vmatprep.subr.bf16.mxu0 0
  %2257 = vmatpush2.bf16.msra.mxu0 0
  %2258 = vmatprep.subr.bf16.mxu0 0
  %2259 = vmatpush2.bf16.msra.mxu0 0
  %2260 = vmatprep.mubr.bf16.mxu0 0
  %2261 = vmatmul.mubr.bf16.gmra.mxu0 %v2223
  %v2262 = vpop.f32.mrf.mxu0
  %v2263 = vadd.f32 %v2209, %v2262
  %v2264 = vpop.f32.mrf.mxu0
  %v2265 = vpop.f32.mrf.mxu0
  %v2266 = vadd.f32 %v2209, %v2265
  %v2267 = vpop.f32.mrf.mxu0
  %2268 = vmatprep.mubr.bf16.mxu0 0
  %2269 = vmatmul.mubr.bf16.gmra.mxu0 %v2226
  %v2270 = vpop.f32.mrf.mxu0
  %v2271 = vadd.f32 %v2209, %v2270
  %v2272 = vpop.f32.mrf.mxu0
  %v2273 = vpop.f32.mrf.mxu0
  %v2274 = vadd.f32 %v2209, %v2273
  %v2275 = vpop.f32.mrf.mxu0
  %2276 = vdwg.mxu0
  %v2277 = vmul.f32 %v2263, 0.5
  %v2278 = vmul.f32 %v2266, 0.5
  %v2279 = vmul.f32 %v2271, 0.5
  %v2280 = vmul.f32 %v2274, 0.5
  %v2281 = vmul.f32 %v2263, 0.044715
  %v2282 = vmul.f32 %v2266, 0.044715
  %v2283 = vmul.f32 %v2271, 0.044715
  %v2284 = vmul.f32 %v2274, 0.044715
  %v2285 = vmul.f32 %v2281, %v2263
  %v2286 = vmul.f32 %v2282, %v2266
  %v2287 = vmul.f32 %v2283, %v2271
  %v2288 = vmul.f32 %v2284, %v2274
  %v2289 = vmul.f32 %v2285, %v2263
  %v2290 = vmul.f32 %v2286, %v2266
  %v2291 = vmul.f32 %v2287, %v2271
  %v2292 = vmul.f32 %v2288, %v2274
  %v2293 = vadd.f32 %v2263, %v2289
  %v2294 = vadd.f32 %v2266, %v2290
  %v2295 = vadd.f32 %v2271, %v2291
  %v2296 = vadd.f32 %v2274, %v2292
  %v2297 = vmul.f32 %v2293, 0.7978846
  %v2298 = vmul.f32 %v2294, 0.7978846
  %v2299 = vmul.f32 %v2295, 0.7978846
  %v2300 = vmul.f32 %v2296, 0.7978846
  %v2301 = vtanh.pop %v2297
  %v2302 = vtanh.pop %v2298
  %v2303 = vtanh.pop %v2299
  %v2304 = vtanh.pop %v2300
  %v2305 = vadd.f32 %v2301, 1.0
  %v2306 = vadd.f32 %v2302, 1.0
  %v2307 = vadd.f32 %v2303, 1.0
  %v2308 = vadd.f32 %v2304, 1.0
  %v2309 = vmul.f32 %v2277, %v2305
  %v2310 = vmul.f32 %v2278, %v2306
  %v2311 = vmul.f32 %v2279, %v2307
  %v2312 = vmul.f32 %v2280, %v2308
  %s2313 = scalar_lea.vmem %s9, 32
  %v2314 = vld [vmem:[%s2313] sm:$0xf]
  %v2315 = vld [vmem:[%s2313 + $0x4] sm:$0xf]
  %v2316 = vld [vmem:[%s2313 + $0x8] sm:$0xf]
  %v2317 = vld [vmem:[%s2313 + $0xc] sm:$0xf]
  %v2318 = vld [vmem:[%s2313 + $0x10] sm:$0xf]
  %v2319 = vld [vmem:[%s2313 + $0x14] sm:$0xf]
  %v2320 = vld [vmem:[%s2313 + $0x18] sm:$0xf]
  %v2321 = vld [vmem:[%s2313 + $0x1c] sm:$0xf]
  %v2322 = vpack.c.bf16 %v2310, %v2309
  %v2323 = vpack.c.bf16 %v2312, %v2311
  %v2332 = vunpack.c.l.b16 %v2314
  %v2333 = vunpack.c.l.b16 %v2315
  %v2334 = vunpack.c.l.b16 %v2316
  %v2335 = vunpack.c.l.b16 %v2317
  %v2336 = vunpack.c.l.b16 %v2318
  %v2337 = vunpack.c.l.b16 %v2319
  %v2338 = vunpack.c.l.b16 %v2320
  %v2339 = vunpack.c.l.b16 %v2321
  %v2340 = vpack.c.b16 %v2333, %v2332
  %v2341 = vpack.c.b16 %v2335, %v2334
  %v2342 = vpack.c.b16 %v2337, %v2336
  %v2343 = vpack.c.b16 %v2339, %v2338
  %v2349 = vsel %vm1278, %v2322, 0
  %v2352 = vsel %vm1278, %v2323, 0
  %2354 = vmatprep.subr.bf16.mxu0 0
  %2355 = vmatpush1.bf16.msra.mxu0 0
  %2356 = vmatprep.subr.bf16.mxu0 0
  %2357 = vmatpush1.bf16.msra.mxu0 0
  %2358 = vmatprep.subr.bf16.mxu0 0
  %2359 = vmatpush1.bf16.msra.mxu0 0
  %2360 = vmatprep.subr.bf16.mxu0 0
  %2361 = vmatpush1.bf16.msra.mxu0 0
  %2362 = vmatprep.subr.bf16.mxu0 0
  %2363 = vmatpush1.bf16.msra.mxu0 %v2343
  %2364 = vmatprep.subr.bf16.mxu0 0
  %2365 = vmatpush1.bf16.msra.mxu0 %v2342
  %2366 = vmatprep.subr.bf16.mxu0 0
  %2367 = vmatpush1.bf16.msra.mxu0 %v2341
  %2368 = vmatprep.subr.bf16.mxu0 0
  %2369 = vmatpush1.bf16.msra.mxu0 %v2340
  %2370 = vmatprep.subr.bf16.mxu0 0
  %2371 = vmatpush2.bf16.msra.mxu0 0
  %2372 = vmatprep.subr.bf16.mxu0 0
  %2373 = vmatpush2.bf16.msra.mxu0 0
  %2374 = vmatprep.subr.bf16.mxu0 0
  %2375 = vmatpush2.bf16.msra.mxu0 0
  %2376 = vmatprep.subr.bf16.mxu0 0
  %2377 = vmatpush2.bf16.msra.mxu0 0
  %2378 = vmatprep.subr.bf16.mxu0 0
  %2379 = vmatpush2.bf16.msra.mxu0 0
  %2380 = vmatprep.subr.bf16.mxu0 0
  %2381 = vmatpush2.bf16.msra.mxu0 0
  %2382 = vmatprep.subr.bf16.mxu0 0
  %2383 = vmatpush2.bf16.msra.mxu0 0
  %2384 = vmatprep.subr.bf16.mxu0 0
  %2385 = vmatpush2.bf16.msra.mxu0 0
  %2386 = vmatprep.mubr.bf16.mxu0 0
  %2387 = vmatmul.mubr.bf16.gmra.mxu0 %v2349
  %v2388 = vpop.f32.mrf.mxu0
  %v2389 = vadd.f32 0.0, %v2388
  %v2390 = vpop.f32.mrf.mxu0
  %v2391 = vpop.f32.mrf.mxu0
  %v2392 = vadd.f32 0.0, %v2391
  %v2393 = vpop.f32.mrf.mxu0
  %2394 = vmatprep.mubr.bf16.mxu0 0
  %2395 = vmatmul.mubr.bf16.gmra.mxu0 %v2352
  %v2396 = vpop.f32.mrf.mxu0
  %v2397 = vadd.f32 0.0, %v2396
  %v2398 = vpop.f32.mrf.mxu0
  %v2399 = vpop.f32.mrf.mxu0
  %v2400 = vadd.f32 0.0, %v2399
  %v2401 = vpop.f32.mrf.mxu0
  %2402 = vdwg.mxu0
  %v2403 = vadd.f32 %v2125, %v2389
  %v2404 = vadd.f32 %v2126, %v2392
  %v2405 = vadd.f32 %v2127, %v2397
  %v2406 = vadd.f32 %v2128, %v2400
  %v2407 = vlaneseq
  %v2408 = vshrl.u32 %v2407, 7
  %v2409 = vsub.s32 1, %v2408
  %v2410 = vrot.slane %v2198, %v2409
  %v2411 = vadd.f32 %v2403, %v2410
  %v2412 = vadd.f32 %v2404, %v2410
  %v2413 = vadd.f32 %v2405, %v2410
  %v2414 = vadd.f32 %v2406, %v2410
  %v2415 = vld [vmem:[%s11] sm:$0x3]
  %v2416 = vsel %vm203, %v2411, 0.0
  %2417 = vadd.xlane.f32.xlu0 %v2416
  %v2418 = vpop.xlane.xlu0 %2417
  %v2419 = vsel %vm203, %v2412, 0.0
  %2420 = vadd.xlane.f32.xlu0 %v2419
  %v2421 = vpop.xlane.xlu0 %2420
  %v2422 = vsel %vm203, %v2413, 0.0
  %2423 = vadd.xlane.f32.xlu0 %v2422
  %v2424 = vpop.xlane.xlu0 %2423
  %v2425 = vsel %vm203, %v2414, 0.0
  %2426 = vadd.xlane.f32.xlu0 %v2425
  %v2427 = vpop.xlane.xlu0 %2426
  %v2428 = vmul.f32 %v2418, %v216
  %v2429 = vmul.f32 %v2421, %v216
  %v2430 = vmul.f32 %v2424, %v216
  %v2431 = vmul.f32 %v2427, %v216
  %v2432 = vsub.f32 %v2411, %v2428
  %v2433 = vsub.f32 %v2412, %v2429
  %v2434 = vsub.f32 %v2413, %v2430
  %v2435 = vsub.f32 %v2414, %v2431
  %v2436 = vmul.f32 %v2432, %v2432
  %v2437 = vmul.f32 %v2433, %v2433
  %v2438 = vmul.f32 %v2434, %v2434
  %v2439 = vmul.f32 %v2435, %v2435
  %v2440 = vsel %vm203, %v2436, 0.0
  %2441 = vadd.xlane.f32.xlu0 %v2440
  %v2442 = vpop.xlane.xlu0 %2441
  %v2443 = vsel %vm203, %v2437, 0.0
  %2444 = vadd.xlane.f32.xlu0 %v2443
  %v2445 = vpop.xlane.xlu0 %2444
  %v2446 = vsel %vm203, %v2438, 0.0
  %2447 = vadd.xlane.f32.xlu0 %v2446
  %v2448 = vpop.xlane.xlu0 %2447
  %v2449 = vsel %vm203, %v2439, 0.0
  %2450 = vadd.xlane.f32.xlu0 %v2449
  %v2451 = vpop.xlane.xlu0 %2450
  %v2452 = vmul.f32 %v2442, %v216
  %v2453 = vmul.f32 %v2445, %v216
  %v2454 = vmul.f32 %v2448, %v216
  %v2455 = vmul.f32 %v2451, %v216
  %v2456 = vadd.f32 %v2452, 1e-05
  %v2457 = vadd.f32 %v2453, 1e-05
  %v2458 = vadd.f32 %v2454, 1e-05
  %v2459 = vadd.f32 %v2455, 1e-05
  %v2460 = vrsqrt.pop %v2456
  %v2461 = vrsqrt.pop %v2457
  %v2462 = vrsqrt.pop %v2458
  %v2463 = vrsqrt.pop %v2459
  %v2464 = vmul.f32 %v2432, %v2460
  %v2465 = vmul.f32 %v2433, %v2461
  %v2466 = vmul.f32 %v2434, %v2462
  %v2467 = vmul.f32 %v2435, %v2463
  %v2468 = vlaneseq
  %v2469 = vshrl.u32 %v2468, 7
  %v2470 = vsub.s32 0, %v2469
  %v2471 = vrot.slane %v2415, %v2470
  %v2472 = vmul.f32 %v2464, %v2471
  %v2473 = vmul.f32 %v2465, %v2471
  %v2474 = vmul.f32 %v2466, %v2471
  %v2475 = vmul.f32 %v2467, %v2471
  %v2476 = vlaneseq
  %v2477 = vshrl.u32 %v2476, 7
  %v2478 = vsub.s32 1, %v2477
  %v2479 = vrot.slane %v2415, %v2478
  %v2480 = vadd.f32 %v2472, %v2479
  %v2481 = vadd.f32 %v2473, %v2479
  %v2482 = vadd.f32 %v2474, %v2479
  %v2483 = vadd.f32 %v2475, %v2479
  %2484 = vst.msk [vmem:[%s12] sm:$0xff] %vm203, %v2480
  %2485 = vst.msk [vmem:[%s12 + $0x8] sm:$0xff] %vm203, %v2481
  %2486 = vst.msk [vmem:[%s12 + $0x10] sm:$0xff] %vm203, %v2482
  %2487 = vst.msk [vmem:[%s12 + $0x18] sm:$0xff] %vm203, %v2483
  // Predicated region
  $region50: #{tipae_forward.5} parent=0 // pred_check
    _
  $region51: #{tipae_forward.5} parent=0 // pred_check_branch
    %2489 = sbr.rel (0) target = $region53
  $region52: #{tipae_forward.5} parent=0 // pred_region
    _
  $region53: #{tipae_forward.5} parent=0 // pred_fallthru
    _
  // Predicated region
  $region54: #{tipae_forward.5} parent=0 // pred_check
    _
  $region55: #{tipae_forward.5} parent=0 // pred_check_branch
    %2491 = sbr.rel (0) target = $region57
  $region56: #{tipae_forward.5} parent=0 // pred_region
    _
  $region57: #{tipae_forward.5} parent=0 // pred_fallthru
    _

// kernel: tipae_forward.6
$region0: #{tipae_forward.6}
  #allocation0 [shape = 'u32[]', space=smem, size = 0x4, offset = 0x4, fixed_abs, tag = 'smem constant byte address 0x4 - core index']
  #allocation1 [shape = 'u32[144,128]{1,0:T(1,128)}', space=vmem, size = 0x12000, scoped, tag = 'internal scratch']
  %s0 = inlined_call_operand.vmem [shape: f32[2,16,32], index: 0, kind: input, shape index: {}]
  %s1 = inlined_call_operand.vmem [shape: f32[2,4,32], index: 1, kind: input, shape index: {}]
  %s2 = inlined_call_operand.vmem [shape: bf16[2,32,48], index: 2, kind: input, shape index: {}]
  %s3 = inlined_call_operand.vmem [shape: bf16[2,16,32], index: 3, kind: input, shape index: {}]
  %s4 = inlined_call_operand.vmem [shape: bf16[2,32,64], index: 4, kind: input, shape index: {}]
  %s5 = inlined_call_operand.vmem [shape: bf16[2,64,32], index: 5, kind: input, shape index: {}]
  %s6 = inlined_call_operand.vmem [shape: f32[2,2,64], index: 6, kind: input, shape index: {}]
  %s7 = inlined_call_operand.vmem [shape: f32[2,32], index: 7, kind: input, shape index: {}]
  %s8 = inlined_call_operand.vmem [shape: f32[2,32], index: 8, kind: input, shape index: {}]
  %s9 = inlined_call_operand.vmem [shape: bf16[32,48], index: 9, kind: input, shape index: {}]
  %s10 = inlined_call_operand.vmem [shape: f32[3,48], index: 10, kind: input, shape index: {}]
  %s11 = inlined_call_operand.vmem [shape: f32[2,16,48], index: 11, kind: output, shape index: {}]
  %s12 = sld [smem:[#allocation0]]
  $region54: #{tipae_forward.6} parent=0
    _
  %s14 = ssub.s32 1, %s12
  %s15 = scalar_select 0, %s14, %s12
  // Predicated region
  $region2: #{tipae_forward.6} parent=0 // pred_check
    _
  $region3: #{tipae_forward.6} parent=0 // pred_check_branch
    %17 = sbr.rel (0) target = $region5
  $region4: #{tipae_forward.6} parent=0 // pred_region
    _
  $region5: #{tipae_forward.6} parent=0 // pred_fallthru
    _
  // Predicated region
  $region6: #{tipae_forward.6} parent=0 // pred_check
    _
  $region7: #{tipae_forward.6} parent=0 // pred_check_branch
    %19 = sbr.rel (0) target = $region9
  $region8: #{tipae_forward.6} parent=0 // pred_region
    _
  $region9: #{tipae_forward.6} parent=0 // pred_fallthru
    _
  // Predicated region
  $region10: #{tipae_forward.6} parent=0 // pred_check
    _
  $region11: #{tipae_forward.6} parent=0 // pred_check_branch
    %21 = sbr.rel (0) target = $region13
  $region12: #{tipae_forward.6} parent=0 // pred_region
    _
  $region13: #{tipae_forward.6} parent=0 // pred_fallthru
    _
  // Predicated region
  $region14: #{tipae_forward.6} parent=0 // pred_check
    _
  $region15: #{tipae_forward.6} parent=0 // pred_check_branch
    %23 = sbr.rel (0) target = $region17
  $region16: #{tipae_forward.6} parent=0 // pred_region
    _
  $region17: #{tipae_forward.6} parent=0 // pred_fallthru
    _
  // Predicated region
  $region18: #{tipae_forward.6} parent=0 // pred_check
    _
  $region19: #{tipae_forward.6} parent=0 // pred_check_branch
    %25 = sbr.rel (0) target = $region21
  $region20: #{tipae_forward.6} parent=0 // pred_region
    _
  $region21: #{tipae_forward.6} parent=0 // pred_fallthru
    _
  // Predicated region
  $region22: #{tipae_forward.6} parent=0 // pred_check
    _
  $region23: #{tipae_forward.6} parent=0 // pred_check_branch
    %27 = sbr.rel (0) target = $region25
  $region24: #{tipae_forward.6} parent=0 // pred_region
    _
  $region25: #{tipae_forward.6} parent=0 // pred_fallthru
    _
  // Predicated region
  $region26: #{tipae_forward.6} parent=0 // pred_check
    _
  $region27: #{tipae_forward.6} parent=0 // pred_check_branch
    %29 = sbr.rel (0) target = $region29
  $region28: #{tipae_forward.6} parent=0 // pred_region
    _
  $region29: #{tipae_forward.6} parent=0 // pred_fallthru
    _
  // Predicated region
  $region30: #{tipae_forward.6} parent=0 // pred_check
    _
  $region31: #{tipae_forward.6} parent=0 // pred_check_branch
    %31 = sbr.rel (0) target = $region33
  $region32: #{tipae_forward.6} parent=0 // pred_region
    _
  $region33: #{tipae_forward.6} parent=0 // pred_fallthru
    _
  // Predicated region
  $region34: #{tipae_forward.6} parent=0 // pred_check
    _
  $region35: #{tipae_forward.6} parent=0 // pred_check_branch
    %33 = sbr.rel (0) target = $region37
  $region36: #{tipae_forward.6} parent=0 // pred_region
    _
  $region37: #{tipae_forward.6} parent=0 // pred_fallthru
    _
  // Predicated region
  $region38: #{tipae_forward.6} parent=0 // pred_check
    _
  $region39: #{tipae_forward.6} parent=0 // pred_check_branch
    %35 = sbr.rel (0) target = $region41
  $region40: #{tipae_forward.6} parent=0 // pred_region
    _
  $region41: #{tipae_forward.6} parent=0 // pred_fallthru
    _
  // Predicated region
  $region42: #{tipae_forward.6} parent=0 // pred_check
    _
  $region43: #{tipae_forward.6} parent=0 // pred_check_branch
    %37 = sbr.rel (0) target = $region45
  $region44: #{tipae_forward.6} parent=0 // pred_region
    _
  $region45: #{tipae_forward.6} parent=0 // pred_fallthru
    _
  %v39 = vld [vmem:[%s0] sm:$0xff]
  %v40 = vld [vmem:[%s0 + $0x8] sm:$0xff]
  %v41 = vld [vmem:[%s0 + $0x10] sm:$0xff]
  %v42 = vld [vmem:[%s0 + $0x18] sm:$0xff]
  %v43 = vld [vmem:[%s1] sm:$0xf]
  %vm44 = vcmask 261120
  %v45 = vsel %vm44, %v39, 0.0
  %46 = vadd.xlane.f32.xlu0 %v45
  %v47 = vpop.xlane.xlu0 %46
  %v48 = vsel %vm44, %v40, 0.0
  %49 = vadd.xlane.f32.xlu0 %v48
  %v50 = vpop.xlane.xlu0 %49
  %v51 = vsel %vm44, %v41, 0.0
  %52 = vadd.xlane.f32.xlu0 %v51
  %v53 = vpop.xlane.xlu0 %52
  %v54 = vsel %vm44, %v42, 0.0
  %55 = vadd.xlane.f32.xlu0 %v54
  %v56 = vpop.xlane.xlu0 %55
  %v57 = vrcp.pop 32.0
  %v58 = vmul.f32 %v47, %v57
  %v59 = vmul.f32 %v50, %v57
  %v60 = vmul.f32 %v53, %v57
  %v61 = vmul.f32 %v56, %v57
  %v62 = vsub.f32 %v39, %v58
  %v63 = vsub.f32 %v40, %v59
  %v64 = vsub.f32 %v41, %v60
  %v65 = vsub.f32 %v42, %v61
  %v66 = vmul.f32 %v62, %v62
  %v67 = vmul.f32 %v63, %v63
  %v68 = vmul.f32 %v64, %v64
  %v69 = vmul.f32 %v65, %v65
  %v70 = vsel %vm44, %v66, 0.0
  %71 = vadd.xlane.f32.xlu0 %v70
  %v72 = vpop.xlane.xlu0 %71
  %v73 = vsel %vm44, %v67, 0.0
  %74 = vadd.xlane.f32.xlu0 %v73
  %v75 = vpop.xlane.xlu0 %74
  %v76 = vsel %vm44, %v68, 0.0
  %77 = vadd.xlane.f32.xlu0 %v76
  %v78 = vpop.xlane.xlu0 %77
  %v79 = vsel %vm44, %v69, 0.0
  %80 = vadd.xlane.f32.xlu0 %v79
  %v81 = vpop.xlane.xlu0 %80
  %v82 = vmul.f32 %v72, %v57
  %v83 = vmul.f32 %v75, %v57
  %v84 = vmul.f32 %v78, %v57
  %v85 = vmul.f32 %v81, %v57
  %v86 = vadd.f32 %v82, 1e-05
  %v87 = vadd.f32 %v83, 1e-05
  %v88 = vadd.f32 %v84, 1e-05
  %v89 = vadd.f32 %v85, 1e-05
  %v90 = vrsqrt.pop %v86
  %v91 = vrsqrt.pop %v87
  %v92 = vrsqrt.pop %v88
  %v93 = vrsqrt.pop %v89
  %v94 = vmul.f32 %v62, %v90
  %v95 = vmul.f32 %v63, %v91
  %v96 = vmul.f32 %v64, %v92
  %v97 = vmul.f32 %v65, %v93
  %v98 = vlaneseq
  %v99 = vshrl.u32 %v98, 7
  %v100 = vsub.s32 0, %v99
  %v101 = vrot.slane %v43, %v100
  %v102 = vmul.f32 %v94, %v101
  %v103 = vmul.f32 %v95, %v101
  %v104 = vmul.f32 %v96, %v101
  %v105 = vmul.f32 %v97, %v101
  %v106 = vlaneseq
  %v107 = vshrl.u32 %v106, 7
  %v108 = vsub.s32 1, %v107
  %v109 = vrot.slane %v43, %v108
  %v110 = vadd.f32 %v102, %v109
  %v111 = vadd.f32 %v103, %v109
  %v112 = vadd.f32 %v104, %v109
  %v113 = vadd.f32 %v105, %v109
  %v114 = vld [vmem:[%s2] sm:$0xf]
  %v115 = vld [vmem:[%s2 + $0x4] sm:$0xf]
  %v116 = vld [vmem:[%s2 + $0x8] sm:$0xf]
  %v117 = vld [vmem:[%s2 + $0xc] sm:$0xf]
  %v118 = vpack.c.bf16 %v111, %v110
  %v119 = vpack.c.bf16 %v113, %v112
  %v124 = vunpack.c.l.b16 %v114
  %v125 = vunpack.c.l.b16 %v115
  %v126 = vunpack.c.l.b16 %v116
  %v127 = vunpack.c.l.b16 %v117
  %v128 = vpack.c.b16 %v125, %v124
  %v129 = vpack.c.b16 %v127, %v126
  %v133 = vsel %vm44, %v118, 0
  %v136 = vsel %vm44, %v119, 0
  %138 = vmatprep.subr.bf16.mxu0 0
  %139 = vmatpush1.bf16.msra.mxu0 0
  %140 = vmatprep.subr.bf16.mxu0 0
  %141 = vmatpush1.bf16.msra.mxu0 0
  %142 = vmatprep.subr.bf16.mxu0 0
  %143 = vmatpush1.bf16.msra.mxu0 0
  %144 = vmatprep.subr.bf16.mxu0 0
  %145 = vmatpush1.bf16.msra.mxu0 0
  %146 = vmatprep.subr.bf16.mxu0 0
  %147 = vmatpush1.bf16.msra.mxu0 0
  %148 = vmatprep.subr.bf16.mxu0 0
  %149 = vmatpush1.bf16.msra.mxu0 0
  %150 = vmatprep.subr.bf16.mxu0 0
  %151 = vmatpush1.bf16.msra.mxu0 %v129
  %152 = vmatprep.subr.bf16.mxu0 0
  %153 = vmatpush1.bf16.msra.mxu0 %v128
  %154 = vmatprep.subr.bf16.mxu0 0
  %155 = vmatpush2.bf16.msra.mxu0 0
  %156 = vmatprep.subr.bf16.mxu0 0
  %157 = vmatpush2.bf16.msra.mxu0 0
  %158 = vmatprep.subr.bf16.mxu0 0
  %159 = vmatpush2.bf16.msra.mxu0 0
  %160 = vmatprep.subr.bf16.mxu0 0
  %161 = vmatpush2.bf16.msra.mxu0 0
  %162 = vmatprep.subr.bf16.mxu0 0
  %163 = vmatpush2.bf16.msra.mxu0 0
  %164 = vmatprep.subr.bf16.mxu0 0
  %165 = vmatpush2.bf16.msra.mxu0 0
  %166 = vmatprep.subr.bf16.mxu0 0
  %167 = vmatpush2.bf16.msra.mxu0 0
  %168 = vmatprep.subr.bf16.mxu0 0
  %169 = vmatpush2.bf16.msra.mxu0 0
  %170 = vmatprep.mubr.bf16.mxu0 0
  %171 = vmatmul.mubr.bf16.gmra.mxu0 %v133
  %v172 = vpop.f32.mrf.mxu0
  %v173 = vadd.f32 0.0, %v172
  %v174 = vpop.f32.mrf.mxu0
  %v175 = vpop.f32.mrf.mxu0
  %v176 = vadd.f32 0.0, %v175
  %v177 = vpop.f32.mrf.mxu0
  %178 = vmatprep.mubr.bf16.mxu0 0
  %179 = vmatmul.mubr.bf16.gmra.mxu0 %v136
  %v180 = vpop.f32.mrf.mxu0
  %v181 = vadd.f32 0.0, %v180
  %v182 = vpop.f32.mrf.mxu0
  %v183 = vpop.f32.mrf.mxu0
  %v184 = vadd.f32 0.0, %v183
  %v185 = vpop.f32.mrf.mxu0
  %186 = vdwg.mxu0
  %191 = vrot.lane.b32.xlu0 %v173, 120
  %v192 = vpop.permute.xlu0 %191
  %193 = vrot.lane.b32.xlu0 %v176, 120
  %v194 = vpop.permute.xlu0 %193
  %195 = vrot.lane.b32.xlu0 %v181, 120
  %v196 = vpop.permute.xlu0 %195
  %197 = vrot.lane.b32.xlu0 %v184, 120
  %v198 = vpop.permute.xlu0 %197
  %v203 = vmul.f32 %v173, 0.35355338
  %v204 = vmul.f32 %v176, 0.35355338
  %v205 = vmul.f32 %v181, 0.35355338
  %v206 = vmul.f32 %v184, 0.35355338
  %v207 = vmul.f32 %v192, 0.35355338
  %v208 = vmul.f32 %v194, 0.35355338
  %v209 = vmul.f32 %v196, 0.35355338
  %v210 = vmul.f32 %v198, 0.35355338
  %v211 = vpack.c.bf16 %v204, %v203
  %v212 = vpack.c.bf16 %v206, %v205
  %v213 = vpack.c.bf16 %v208, %v207
  %v214 = vpack.c.bf16 %v210, %v209
  %v215 = vpack.c.bf16 %v176, %v173
  %v216 = vpack.c.bf16 %v184, %v181
  %v217 = vpack.c.bf16 %v194, %v192
  %v218 = vpack.c.bf16 %v198, %v196
  %220 = vrot.lane.b32.xlu0 %v215, 112
  %v221 = vpop.permute.xlu0 %220
  %vm222 = vcmask 64512
  %v224 = vsel %vm222, %v211, 0
  %v227 = vsel %vm222, %v221, 0
  %229 = vmatprep.subr.bf16.mxu0 0
  %230 = vmatpush1.bf16.xpose.msra.mxu0 0
  %231 = vmatprep.subr.bf16.mxu0 0
  %232 = vmatpush1.bf16.xpose.msra.mxu0 0
  %233 = vmatprep.subr.bf16.mxu0 0
  %234 = vmatpush1.bf16.xpose.msra.mxu0 0
  %235 = vmatprep.subr.bf16.mxu0 0
  %236 = vmatpush1.bf16.xpose.msra.mxu0 0
  %237 = vmatprep.subr.bf16.mxu0 0
  %238 = vmatpush1.bf16.xpose.msra.mxu0 0
  %239 = vmatprep.subr.bf16.mxu0 0
  %240 = vmatpush1.bf16.xpose.msra.mxu0 0
  %241 = vmatprep.subr.bf16.mxu0 0
  %242 = vmatpush1.bf16.xpose.msra.mxu0 0
  %243 = vmatprep.subr.bf16.mxu0 0
  %244 = vmatpush1.bf16.xpose.msra.mxu0 %v227
  %245 = vmatprep.subr.bf16.mxu0 0
  %246 = vmatpush2.bf16.xpose.msra.mxu0 0
  %247 = vmatprep.subr.bf16.mxu0 0
  %248 = vmatpush2.bf16.xpose.msra.mxu0 0
  %249 = vmatprep.subr.bf16.mxu0 0
  %250 = vmatpush2.bf16.xpose.msra.mxu0 0
  %251 = vmatprep.subr.bf16.mxu0 0
  %252 = vmatpush2.bf16.xpose.msra.mxu0 0
  %253 = vmatprep.subr.bf16.mxu0 0
  %254 = vmatpush2.bf16.xpose.msra.mxu0 0
  %255 = vmatprep.subr.bf16.mxu0 0
  %256 = vmatpush2.bf16.xpose.msra.mxu0 0
  %257 = vmatprep.subr.bf16.mxu0 0
  %258 = vmatpush2.bf16.xpose.msra.mxu0 0
  %259 = vmatprep.subr.bf16.mxu0 0
  %260 = vmatpush2.bf16.xpose.msra.mxu0 0
  %261 = vmatprep.mubr.bf16.mxu0 0
  %262 = vmatmul.mubr.bf16.gmra.mxu0 %v224
  %v263 = vpop.f32.mrf.mxu0
  %v264 = vadd.f32 0.0, %v263
  %v265 = vpop.f32.mrf.mxu0
  %v266 = vpop.f32.mrf.mxu0
  %v267 = vadd.f32 0.0, %v266
  %v268 = vpop.f32.mrf.mxu0
  %269 = vdwg.mxu0
  %271 = vrot.lane.b32.xlu0 %v216, 112
  %v272 = vpop.permute.xlu0 %271
  %v274 = vsel %vm222, %v212, 0
  %v277 = vsel %vm222, %v272, 0
  %279 = vmatprep.subr.bf16.mxu0 0
  %280 = vmatpush1.bf16.xpose.msra.mxu0 0
  %281 = vmatprep.subr.bf16.mxu0 0
  %282 = vmatpush1.bf16.xpose.msra.mxu0 0
  %283 = vmatprep.subr.bf16.mxu0 0
  %284 = vmatpush1.bf16.xpose.msra.mxu0 0
  %285 = vmatprep.subr.bf16.mxu0 0
  %286 = vmatpush1.bf16.xpose.msra.mxu0 0
  %287 = vmatprep.subr.bf16.mxu0 0
  %288 = vmatpush1.bf16.xpose.msra.mxu0 0
  %289 = vmatprep.subr.bf16.mxu0 0
  %290 = vmatpush1.bf16.xpose.msra.mxu0 0
  %291 = vmatprep.subr.bf16.mxu0 0
  %292 = vmatpush1.bf16.xpose.msra.mxu0 0
  %293 = vmatprep.subr.bf16.mxu0 0
  %294 = vmatpush1.bf16.xpose.msra.mxu0 %v277
  %295 = vmatprep.subr.bf16.mxu0 0
  %296 = vmatpush2.bf16.xpose.msra.mxu0 0
  %297 = vmatprep.subr.bf16.mxu0 0
  %298 = vmatpush2.bf16.xpose.msra.mxu0 0
  %299 = vmatprep.subr.bf16.mxu0 0
  %300 = vmatpush2.bf16.xpose.msra.mxu0 0
  %301 = vmatprep.subr.bf16.mxu0 0
  %302 = vmatpush2.bf16.xpose.msra.mxu0 0
  %303 = vmatprep.subr.bf16.mxu0 0
  %304 = vmatpush2.bf16.xpose.msra.mxu0 0
  %305 = vmatprep.subr.bf16.mxu0 0
  %306 = vmatpush2.bf16.xpose.msra.mxu0 0
  %307 = vmatprep.subr.bf16.mxu0 0
  %308 = vmatpush2.bf16.xpose.msra.mxu0 0
  %309 = vmatprep.subr.bf16.mxu0 0
  %310 = vmatpush2.bf16.xpose.msra.mxu0 0
  %311 = vmatprep.mubr.bf16.mxu0 0
  %312 = vmatmul.mubr.bf16.gmra.mxu0 %v274
  %v313 = vpop.f32.mrf.mxu0
  %v314 = vadd.f32 0.0, %v313
  %v315 = vpop.f32.mrf.mxu0
  %v316 = vpop.f32.mrf.mxu0
  %v317 = vadd.f32 0.0, %v316
  %v318 = vpop.f32.mrf.mxu0
  %319 = vdwg.mxu0
  %321 = vrot.lane.b32.xlu0 %v217, 112
  %v322 = vpop.permute.xlu0 %321
  %v324 = vsel %vm222, %v213, 0
  %v327 = vsel %vm222, %v322, 0
  %329 = vmatprep.subr.bf16.mxu0 0
  %330 = vmatpush1.bf16.xpose.msra.mxu0 0
  %331 = vmatprep.subr.bf16.mxu0 0
  %332 = vmatpush1.bf16.xpose.msra.mxu0 0
  %333 = vmatprep.subr.bf16.mxu0 0
  %334 = vmatpush1.bf16.xpose.msra.mxu0 0
  %335 = vmatprep.subr.bf16.mxu0 0
  %336 = vmatpush1.bf16.xpose.msra.mxu0 0
  %337 = vmatprep.subr.bf16.mxu0 0
  %338 = vmatpush1.bf16.xpose.msra.mxu0 0
  %339 = vmatprep.subr.bf16.mxu0 0
  %340 = vmatpush1.bf16.xpose.msra.mxu0 0
  %341 = vmatprep.subr.bf16.mxu0 0
  %342 = vmatpush1.bf16.xpose.msra.mxu0 0
  %343 = vmatprep.subr.bf16.mxu0 0
  %344 = vmatpush1.bf16.xpose.msra.mxu0 %v327
  %345 = vmatprep.subr.bf16.mxu0 0
  %346 = vmatpush2.bf16.xpose.msra.mxu0 0
  %347 = vmatprep.subr.bf16.mxu0 0
  %348 = vmatpush2.bf16.xpose.msra.mxu0 0
  %349 = vmatprep.subr.bf16.mxu0 0
  %350 = vmatpush2.bf16.xpose.msra.mxu0 0
  %351 = vmatprep.subr.bf16.mxu0 0
  %352 = vmatpush2.bf16.xpose.msra.mxu0 0
  %353 = vmatprep.subr.bf16.mxu0 0
  %354 = vmatpush2.bf16.xpose.msra.mxu0 0
  %355 = vmatprep.subr.bf16.mxu0 0
  %356 = vmatpush2.bf16.xpose.msra.mxu0 0
  %357 = vmatprep.subr.bf16.mxu0 0
  %358 = vmatpush2.bf16.xpose.msra.mxu0 0
  %359 = vmatprep.subr.bf16.mxu0 0
  %360 = vmatpush2.bf16.xpose.msra.mxu0 0
  %361 = vmatprep.mubr.bf16.mxu0 0
  %362 = vmatmul.mubr.bf16.gmra.mxu0 %v324
  %v363 = vpop.f32.mrf.mxu0
  %v364 = vadd.f32 0.0, %v363
  %v365 = vpop.f32.mrf.mxu0
  %v366 = vpop.f32.mrf.mxu0
  %v367 = vadd.f32 0.0, %v366
  %v368 = vpop.f32.mrf.mxu0
  %369 = vdwg.mxu0
  %371 = vrot.lane.b32.xlu0 %v218, 112
  %v372 = vpop.permute.xlu0 %371
  %v374 = vsel %vm222, %v214, 0
  %v377 = vsel %vm222, %v372, 0
  %379 = vmatprep.subr.bf16.mxu0 0
  %380 = vmatpush1.bf16.xpose.msra.mxu0 0
  %381 = vmatprep.subr.bf16.mxu0 0
  %382 = vmatpush1.bf16.xpose.msra.mxu0 0
  %383 = vmatprep.subr.bf16.mxu0 0
  %384 = vmatpush1.bf16.xpose.msra.mxu0 0
  %385 = vmatprep.subr.bf16.mxu0 0
  %386 = vmatpush1.bf16.xpose.msra.mxu0 0
  %387 = vmatprep.subr.bf16.mxu0 0
  %388 = vmatpush1.bf16.xpose.msra.mxu0 0
  %389 = vmatprep.subr.bf16.mxu0 0
  %390 = vmatpush1.bf16.xpose.msra.mxu0 0
  %391 = vmatprep.subr.bf16.mxu0 0
  %392 = vmatpush1.bf16.xpose.msra.mxu0 0
  %393 = vmatprep.subr.bf16.mxu0 0
  %394 = vmatpush1.bf16.xpose.msra.mxu0 %v377
  %395 = vmatprep.subr.bf16.mxu0 0
  %396 = vmatpush2.bf16.xpose.msra.mxu0 0
  %397 = vmatprep.subr.bf16.mxu0 0
  %398 = vmatpush2.bf16.xpose.msra.mxu0 0
  %399 = vmatprep.subr.bf16.mxu0 0
  %400 = vmatpush2.bf16.xpose.msra.mxu0 0
  %401 = vmatprep.subr.bf16.mxu0 0
  %402 = vmatpush2.bf16.xpose.msra.mxu0 0
  %403 = vmatprep.subr.bf16.mxu0 0
  %404 = vmatpush2.bf16.xpose.msra.mxu0 0
  %405 = vmatprep.subr.bf16.mxu0 0
  %406 = vmatpush2.bf16.xpose.msra.mxu0 0
  %407 = vmatprep.subr.bf16.mxu0 0
  %408 = vmatpush2.bf16.xpose.msra.mxu0 0
  %409 = vmatprep.subr.bf16.mxu0 0
  %410 = vmatpush2.bf16.xpose.msra.mxu0 0
  %411 = vmatprep.mubr.bf16.mxu0 0
  %412 = vmatmul.mubr.bf16.gmra.mxu0 %v374
  %v413 = vpop.f32.mrf.mxu0
  %v414 = vadd.f32 0.0, %v413
  %v415 = vpop.f32.mrf.mxu0
  %v416 = vpop.f32.mrf.mxu0
  %v417 = vadd.f32 0.0, %v416
  %v418 = vpop.f32.mrf.mxu0
  %419 = vdwg.mxu0
  %vm420 = vcmask 130048
  %v421 = vsel %vm420, %v264, -inf
  %422 = vmax.xlane.f32.xlu0 %v421
  %v423 = vpop.xlane.xlu0 %422
  %v424 = vsel %vm420, %v267, -inf
  %425 = vmax.xlane.f32.xlu0 %v424
  %v426 = vpop.xlane.xlu0 %425
  %v427 = vsel %vm420, %v314, -inf
  %428 = vmax.xlane.f32.xlu0 %v427
  %v429 = vpop.xlane.xlu0 %428
  %v430 = vsel %vm420, %v317, -inf
  %431 = vmax.xlane.f32.xlu0 %v430
  %v432 = vpop.xlane.xlu0 %431
  %v433 = vsel %vm420, %v364, -inf
  %434 = vmax.xlane.f32.xlu0 %v433
  %v435 = vpop.xlane.xlu0 %434
  %v436 = vsel %vm420, %v367, -inf
  %437 = vmax.xlane.f32.xlu0 %v436
  %v438 = vpop.xlane.xlu0 %437
  %v439 = vsel %vm420, %v414, -inf
  %440 = vmax.xlane.f32.xlu0 %v439
  %v441 = vpop.xlane.xlu0 %440
  %v442 = vsel %vm420, %v417, -inf
  %443 = vmax.xlane.f32.xlu0 %v442
  %v444 = vpop.xlane.xlu0 %443
  %v445 = vsub.f32 %v264, %v423
  %v446 = vsub.f32 %v267, %v426
  %v447 = vsub.f32 %v314, %v429
  %v448 = vsub.f32 %v317, %v432
  %v449 = vsub.f32 %v364, %v435
  %v450 = vsub.f32 %v367, %v438
  %v451 = vsub.f32 %v414, %v441
  %v452 = vsub.f32 %v417, %v444
  %v453 = vmul.f32 %v445, 1.442695
  %v454 = vpow.pop %v453
  %v455 = vmul.f32 %v446, 1.442695
  %v456 = vpow.pop %v455
  %v457 = vmul.f32 %v447, 1.442695
  %v458 = vpow.pop %v457
  %v459 = vmul.f32 %v448, 1.442695
  %v460 = vpow.pop %v459
  %v461 = vmul.f32 %v449, 1.442695
  %v462 = vpow.pop %v461
  %v463 = vmul.f32 %v450, 1.442695
  %v464 = vpow.pop %v463
  %v465 = vmul.f32 %v451, 1.442695
  %v466 = vpow.pop %v465
  %v467 = vmul.f32 %v452, 1.442695
  %v468 = vpow.pop %v467
  %v469 = vsel %vm420, %v454, 0.0
  %470 = vadd.xlane.f32.xlu0 %v469
  %v471 = vpop.xlane.xlu0 %470
  %v472 = vsel %vm420, %v456, 0.0
  %473 = vadd.xlane.f32.xlu0 %v472
  %v474 = vpop.xlane.xlu0 %473
  %v475 = vsel %vm420, %v458, 0.0
  %476 = vadd.xlane.f32.xlu0 %v475
  %v477 = vpop.xlane.xlu0 %476
  %v478 = vsel %vm420, %v460, 0.0
  %479 = vadd.xlane.f32.xlu0 %v478
  %v480 = vpop.xlane.xlu0 %479
  %v481 = vsel %vm420, %v462, 0.0
  %482 = vadd.xlane.f32.xlu0 %v481
  %v483 = vpop.xlane.xlu0 %482
  %v484 = vsel %vm420, %v464, 0.0
  %485 = vadd.xlane.f32.xlu0 %v484
  %v486 = vpop.xlane.xlu0 %485
  %v487 = vsel %vm420, %v466, 0.0
  %488 = vadd.xlane.f32.xlu0 %v487
  %v489 = vpop.xlane.xlu0 %488
  %v490 = vsel %vm420, %v468, 0.0
  %491 = vadd.xlane.f32.xlu0 %v490
  %v492 = vpop.xlane.xlu0 %491
  %v493 = vrcp.pop %v471
  %v494 = vrcp.pop %v474
  %v495 = vrcp.pop %v477
  %v496 = vrcp.pop %v480
  %v497 = vrcp.pop %v483
  %v498 = vrcp.pop %v486
  %v499 = vrcp.pop %v489
  %v500 = vrcp.pop %v492
  %v501 = vmul.f32 %v454, %v493
  %v502 = vmul.f32 %v456, %v494
  %v503 = vmul.f32 %v458, %v495
  %v504 = vmul.f32 %v460, %v496
  %v505 = vmul.f32 %v462, %v497
  %v506 = vmul.f32 %v464, %v498
  %v507 = vmul.f32 %v466, %v499
  %v508 = vmul.f32 %v468, %v500
  %v509 = vpack.c.bf16 %v502, %v501
  %v510 = vpack.c.bf16 %v504, %v503
  %v511 = vpack.c.bf16 %v506, %v505
  %v512 = vpack.c.bf16 %v508, %v507
  %513 = vrot.lane.b32.xlu0 %v215, 96
  %v514 = vpop.permute.xlu0 %513
  %v517 = vsel %vm420, %v509, 0
  %519 = vmatprep.subr.bf16.mxu0 0
  %520 = vmatpush1.bf16.msra.mxu0 0
  %521 = vmatprep.subr.bf16.mxu0 0
  %522 = vmatpush1.bf16.msra.mxu0 0
  %523 = vmatprep.subr.bf16.mxu0 0
  %524 = vmatpush1.bf16.msra.mxu0 0
  %525 = vmatprep.subr.bf16.mxu0 0
  %526 = vmatpush1.bf16.msra.mxu0 0
  %527 = vmatprep.subr.bf16.mxu0 0
  %528 = vmatpush1.bf16.msra.mxu0 0
  %529 = vmatprep.subr.bf16.mxu0 0
  %530 = vmatpush1.bf16.msra.mxu0 0
  %531 = vmatprep.subr.bf16.mxu0 0
  %532 = vmatpush1.bf16.msra.mxu0 0
  %533 = vmatprep.subr.bf16.mxu0 0
  %534 = vmatpush1.bf16.msra.mxu0 %v514
  %535 = vmatprep.subr.bf16.mxu0 0
  %536 = vmatpush2.bf16.msra.mxu0 0
  %537 = vmatprep.subr.bf16.mxu0 0
  %538 = vmatpush2.bf16.msra.mxu0 0
  %539 = vmatprep.subr.bf16.mxu0 0
  %540 = vmatpush2.bf16.msra.mxu0 0
  %541 = vmatprep.subr.bf16.mxu0 0
  %542 = vmatpush2.bf16.msra.mxu0 0
  %543 = vmatprep.subr.bf16.mxu0 0
  %544 = vmatpush2.bf16.msra.mxu0 0
  %545 = vmatprep.subr.bf16.mxu0 0
  %546 = vmatpush2.bf16.msra.mxu0 0
  %547 = vmatprep.subr.bf16.mxu0 0
  %548 = vmatpush2.bf16.msra.mxu0 0
  %549 = vmatprep.subr.bf16.mxu0 0
  %550 = vmatpush2.bf16.msra.mxu0 0
  %551 = vmatprep.mubr.bf16.mxu0 0
  %552 = vmatmul.mubr.bf16.gmra.mxu0 %v517
  %v553 = vpop.f32.mrf.mxu0
  %v554 = vadd.f32 0.0, %v553
  %v555 = vpop.f32.mrf.mxu0
  %v556 = vpop.f32.mrf.mxu0
  %v557 = vadd.f32 0.0, %v556
  %v558 = vpop.f32.mrf.mxu0
  %559 = vdwg.mxu0
  %560 = vrot.lane.b32.xlu0 %v216, 96
  %v561 = vpop.permute.xlu0 %560
  %v564 = vsel %vm420, %v510, 0
  %566 = vmatprep.subr.bf16.mxu0 0
  %567 = vmatpush1.bf16.msra.mxu0 0
  %568 = vmatprep.subr.bf16.mxu0 0
  %569 = vmatpush1.bf16.msra.mxu0 0
  %570 = vmatprep.subr.bf16.mxu0 0
  %571 = vmatpush1.bf16.msra.mxu0 0
  %572 = vmatprep.subr.bf16.mxu0 0
  %573 = vmatpush1.bf16.msra.mxu0 0
  %574 = vmatprep.subr.bf16.mxu0 0
  %575 = vmatpush1.bf16.msra.mxu0 0
  %576 = vmatprep.subr.bf16.mxu0 0
  %577 = vmatpush1.bf16.msra.mxu0 0
  %578 = vmatprep.subr.bf16.mxu0 0
  %579 = vmatpush1.bf16.msra.mxu0 0
  %580 = vmatprep.subr.bf16.mxu0 0
  %581 = vmatpush1.bf16.msra.mxu0 %v561
  %582 = vmatprep.subr.bf16.mxu0 0
  %583 = vmatpush2.bf16.msra.mxu0 0
  %584 = vmatprep.subr.bf16.mxu0 0
  %585 = vmatpush2.bf16.msra.mxu0 0
  %586 = vmatprep.subr.bf16.mxu0 0
  %587 = vmatpush2.bf16.msra.mxu0 0
  %588 = vmatprep.subr.bf16.mxu0 0
  %589 = vmatpush2.bf16.msra.mxu0 0
  %590 = vmatprep.subr.bf16.mxu0 0
  %591 = vmatpush2.bf16.msra.mxu0 0
  %592 = vmatprep.subr.bf16.mxu0 0
  %593 = vmatpush2.bf16.msra.mxu0 0
  %594 = vmatprep.subr.bf16.mxu0 0
  %595 = vmatpush2.bf16.msra.mxu0 0
  %596 = vmatprep.subr.bf16.mxu0 0
  %597 = vmatpush2.bf16.msra.mxu0 0
  %598 = vmatprep.mubr.bf16.mxu0 0
  %599 = vmatmul.mubr.bf16.gmra.mxu0 %v564
  %v600 = vpop.f32.mrf.mxu0
  %v601 = vadd.f32 0.0, %v600
  %v602 = vpop.f32.mrf.mxu0
  %v603 = vpop.f32.mrf.mxu0
  %v604 = vadd.f32 0.0, %v603
  %v605 = vpop.f32.mrf.mxu0
  %606 = vdwg.mxu0
  %607 = vrot.lane.b32.xlu0 %v217, 96
  %v608 = vpop.permute.xlu0 %607
  %v611 = vsel %vm420, %v511, 0
  %613 = vmatprep.subr.bf16.mxu0 0
  %614 = vmatpush1.bf16.msra.mxu0 0
  %615 = vmatprep.subr.bf16.mxu0 0
  %616 = vmatpush1.bf16.msra.mxu0 0
  %617 = vmatprep.subr.bf16.mxu0 0
  %618 = vmatpush1.bf16.msra.mxu0 0
  %619 = vmatprep.subr.bf16.mxu0 0
  %620 = vmatpush1.bf16.msra.mxu0 0
  %621 = vmatprep.subr.bf16.mxu0 0
  %622 = vmatpush1.bf16.msra.mxu0 0
  %623 = vmatprep.subr.bf16.mxu0 0
  %624 = vmatpush1.bf16.msra.mxu0 0
  %625 = vmatprep.subr.bf16.mxu0 0
  %626 = vmatpush1.bf16.msra.mxu0 0
  %627 = vmatprep.subr.bf16.mxu0 0
  %628 = vmatpush1.bf16.msra.mxu0 %v608
  %629 = vmatprep.subr.bf16.mxu0 0
  %630 = vmatpush2.bf16.msra.mxu0 0
  %631 = vmatprep.subr.bf16.mxu0 0
  %632 = vmatpush2.bf16.msra.mxu0 0
  %633 = vmatprep.subr.bf16.mxu0 0
  %634 = vmatpush2.bf16.msra.mxu0 0
  %635 = vmatprep.subr.bf16.mxu0 0
  %636 = vmatpush2.bf16.msra.mxu0 0
  %637 = vmatprep.subr.bf16.mxu0 0
  %638 = vmatpush2.bf16.msra.mxu0 0
  %639 = vmatprep.subr.bf16.mxu0 0
  %640 = vmatpush2.bf16.msra.mxu0 0
  %641 = vmatprep.subr.bf16.mxu0 0
  %642 = vmatpush2.bf16.msra.mxu0 0
  %643 = vmatprep.subr.bf16.mxu0 0
  %644 = vmatpush2.bf16.msra.mxu0 0
  %645 = vmatprep.mubr.bf16.mxu0 0
  %646 = vmatmul.mubr.bf16.gmra.mxu0 %v611
  %v647 = vpop.f32.mrf.mxu0
  %v648 = vadd.f32 0.0, %v647
  %v649 = vpop.f32.mrf.mxu0
  %v650 = vpop.f32.mrf.mxu0
  %v651 = vadd.f32 0.0, %v650
  %v652 = vpop.f32.mrf.mxu0
  %653 = vdwg.mxu0
  %654 = vrot.lane.b32.xlu0 %v218, 96
  %v655 = vpop.permute.xlu0 %654
  %v658 = vsel %vm420, %v512, 0
  %660 = vmatprep.subr.bf16.mxu0 0
  %661 = vmatpush1.bf16.msra.mxu0 0
  %662 = vmatprep.subr.bf16.mxu0 0
  %663 = vmatpush1.bf16.msra.mxu0 0
  %664 = vmatprep.subr.bf16.mxu0 0
  %665 = vmatpush1.bf16.msra.mxu0 0
  %666 = vmatprep.subr.bf16.mxu0 0
  %667 = vmatpush1.bf16.msra.mxu0 0
  %668 = vmatprep.subr.bf16.mxu0 0
  %669 = vmatpush1.bf16.msra.mxu0 0
  %670 = vmatprep.subr.bf16.mxu0 0
  %671 = vmatpush1.bf16.msra.mxu0 0
  %672 = vmatprep.subr.bf16.mxu0 0
  %673 = vmatpush1.bf16.msra.mxu0 0
  %674 = vmatprep.subr.bf16.mxu0 0
  %675 = vmatpush1.bf16.msra.mxu0 %v655
  %676 = vmatprep.subr.bf16.mxu0 0
  %677 = vmatpush2.bf16.msra.mxu0 0
  %678 = vmatprep.subr.bf16.mxu0 0
  %679 = vmatpush2.bf16.msra.mxu0 0
  %680 = vmatprep.subr.bf16.mxu0 0
  %681 = vmatpush2.bf16.msra.mxu0 0
  %682 = vmatprep.subr.bf16.mxu0 0
  %683 = vmatpush2.bf16.msra.mxu0 0
  %684 = vmatprep.subr.bf16.mxu0 0
  %685 = vmatpush2.bf16.msra.mxu0 0
  %686 = vmatprep.subr.bf16.mxu0 0
  %687 = vmatpush2.bf16.msra.mxu0 0
  %688 = vmatprep.subr.bf16.mxu0 0
  %689 = vmatpush2.bf16.msra.mxu0 0
  %690 = vmatprep.subr.bf16.mxu0 0
  %691 = vmatpush2.bf16.msra.mxu0 0
  %692 = vmatprep.mubr.bf16.mxu0 0
  %693 = vmatmul.mubr.bf16.gmra.mxu0 %v658
  %v694 = vpop.f32.mrf.mxu0
  %v695 = vadd.f32 0.0, %v694
  %v696 = vpop.f32.mrf.mxu0
  %v697 = vpop.f32.mrf.mxu0
  %v698 = vadd.f32 0.0, %v697
  %v699 = vpop.f32.mrf.mxu0
  %700 = vdwg.mxu0
  %v701 = vld [vmem:[%s3] sm:$0xf]
  %v702 = vld [vmem:[%s3 + $0x4] sm:$0xf]
  %v703 = vpack.c.bf16 %v557, %v554
  %v704 = vpack.c.bf16 %v604, %v601
  %v705 = vpack.c.bf16 %v651, %v648
  %v706 = vpack.c.bf16 %v698, %v695
  %v708 = vsel %vm222, %v705, 0
  %v711 = vsel %vm222, %v706, 0
  %vm713 = vcmask 1043456
  %v715 = vsel %vm713, %v702, 0
  %717 = vmatprep.subr.bf16.mxu0 0
  %718 = vmatpush1.bf16.msra.mxu0 0
  %719 = vmatprep.subr.bf16.mxu0 0
  %720 = vmatpush1.bf16.msra.mxu0 0
  %721 = vmatprep.subr.bf16.mxu0 0
  %722 = vmatpush1.bf16.msra.mxu0 0
  %723 = vmatprep.subr.bf16.mxu0 0
  %724 = vmatpush1.bf16.msra.mxu0 0
  %725 = vmatprep.subr.bf16.mxu0 0
  %726 = vmatpush1.bf16.msra.mxu0 0
  %727 = vmatprep.subr.bf16.mxu0 0
  %728 = vmatpush1.bf16.msra.mxu0 0
  %729 = vmatprep.subr.bf16.mxu0 0
  %730 = vmatpush1.bf16.msra.mxu0 0
  %731 = vmatprep.subr.bf16.mxu0 0
  %732 = vmatpush1.bf16.msra.mxu0 %v715
  %733 = vmatprep.subr.bf16.mxu0 0
  %734 = vmatpush2.bf16.msra.mxu0 0
  %735 = vmatprep.subr.bf16.mxu0 0
  %736 = vmatpush2.bf16.msra.mxu0 0
  %737 = vmatprep.subr.bf16.mxu0 0
  %738 = vmatpush2.bf16.msra.mxu0 0
  %739 = vmatprep.subr.bf16.mxu0 0
  %740 = vmatpush2.bf16.msra.mxu0 0
  %741 = vmatprep.subr.bf16.mxu0 0
  %742 = vmatpush2.bf16.msra.mxu0 0
  %743 = vmatprep.subr.bf16.mxu0 0
  %744 = vmatpush2.bf16.msra.mxu0 0
  %745 = vmatprep.subr.bf16.mxu0 0
  %746 = vmatpush2.bf16.msra.mxu0 0
  %747 = vmatprep.subr.bf16.mxu0 0
  %748 = vmatpush2.bf16.msra.mxu0 0
  %749 = vmatprep.mubr.bf16.mxu0 0
  %750 = vmatmul.mubr.bf16.gmra.mxu0 %v708
  %v751 = vpop.f32.mrf.mxu0
  %v752 = vadd.f32 0.0, %v751
  %v753 = vpop.f32.mrf.mxu0
  %v754 = vpop.f32.mrf.mxu0
  %v755 = vadd.f32 0.0, %v754
  %v756 = vpop.f32.mrf.mxu0
  %757 = vmatprep.mubr.bf16.mxu0 0
  %758 = vmatmul.mubr.bf16.gmra.mxu0 %v711
  %v759 = vpop.f32.mrf.mxu0
  %v760 = vadd.f32 0.0, %v759
  %v761 = vpop.f32.mrf.mxu0
  %v762 = vpop.f32.mrf.mxu0
  %v763 = vadd.f32 0.0, %v762
  %v764 = vpop.f32.mrf.mxu0
  %765 = vdwg.mxu0
  %v767 = vsel %vm222, %v703, 0
  %v770 = vsel %vm222, %v704, 0
  %v773 = vsel %vm713, %v701, 0
  %775 = vmatprep.subr.bf16.mxu0 0
  %776 = vmatpush1.bf16.msra.mxu0 0
  %777 = vmatprep.subr.bf16.mxu0 0
  %778 = vmatpush1.bf16.msra.mxu0 0
  %779 = vmatprep.subr.bf16.mxu0 0
  %780 = vmatpush1.bf16.msra.mxu0 0
  %781 = vmatprep.subr.bf16.mxu0 0
  %782 = vmatpush1.bf16.msra.mxu0 0
  %783 = vmatprep.subr.bf16.mxu0 0
  %784 = vmatpush1.bf16.msra.mxu0 0
  %785 = vmatprep.subr.bf16.mxu0 0
  %786 = vmatpush1.bf16.msra.mxu0 0
  %787 = vmatprep.subr.bf16.mxu0 0
  %788 = vmatpush1.bf16.msra.mxu0 0
  %789 = vmatprep.subr.bf16.mxu0 0
  %790 = vmatpush1.bf16.msra.mxu0 %v773
  %791 = vmatprep.subr.bf16.mxu0 0
  %792 = vmatpush2.bf16.msra.mxu0 0
  %793 = vmatprep.subr.bf16.mxu0 0
  %794 = vmatpush2.bf16.msra.mxu0 0
  %795 = vmatprep.subr.bf16.mxu0 0
  %796 = vmatpush2.bf16.msra.mxu0 0
  %797 = vmatprep.subr.bf16.mxu0 0
  %798 = vmatpush2.bf16.msra.mxu0 0
  %799 = vmatprep.subr.bf16.mxu0 0
  %800 = vmatpush2.bf16.msra.mxu0 0
  %801 = vmatprep.subr.bf16.mxu0 0
  %802 = vmatpush2.bf16.msra.mxu0 0
  %803 = vmatprep.subr.bf16.mxu0 0
  %804 = vmatpush2.bf16.msra.mxu0 0
  %805 = vmatprep.subr.bf16.mxu0 0
  %806 = vmatpush2.bf16.msra.mxu0 0
  %807 = vmatprep.mubr.bf16.mxu0 0
  %808 = vmatmul.mubr.bf16.gmra.mxu0 %v767
  %v809 = vpop.f32.mrf.mxu0
  %v810 = vadd.f32 %v752, %v809
  %v811 = vpop.f32.mrf.mxu0
  %v812 = vpop.f32.mrf.mxu0
  %v813 = vadd.f32 %v755, %v812
  %v814 = vpop.f32.mrf.mxu0
  %815 = vmatprep.mubr.bf16.mxu0 0
  %816 = vmatmul.mubr.bf16.gmra.mxu0 %v770
  %v817 = vpop.f32.mrf.mxu0
  %v818 = vadd.f32 %v760, %v817
  %v819 = vpop.f32.mrf.mxu0
  %v820 = vpop.f32.mrf.mxu0
  %v821 = vadd.f32 %v763, %v820
  %v822 = vpop.f32.mrf.mxu0
  %823 = vdwg.mxu0
  %v824 = vadd.f32 %v39, %v810
  %v825 = vadd.f32 %v40, %v813
  %v826 = vadd.f32 %v41, %v818
  %v827 = vadd.f32 %v42, %v821
  %v828 = vsel %vm44, %v824, 0.0
  %829 = vadd.xlane.f32.xlu0 %v828
  %v830 = vpop.xlane.xlu0 %829
  %v831 = vsel %vm44, %v825, 0.0
  %832 = vadd.xlane.f32.xlu0 %v831
  %v833 = vpop.xlane.xlu0 %832
  %v834 = vsel %vm44, %v826, 0.0
  %835 = vadd.xlane.f32.xlu0 %v834
  %v836 = vpop.xlane.xlu0 %835
  %v837 = vsel %vm44, %v827, 0.0
  %838 = vadd.xlane.f32.xlu0 %v837
  %v839 = vpop.xlane.xlu0 %838
  %v840 = vmul.f32 %v830, %v57
  %v841 = vmul.f32 %v833, %v57
  %v842 = vmul.f32 %v836, %v57
  %v843 = vmul.f32 %v839, %v57
  %v844 = vsub.f32 %v824, %v840
  %v845 = vsub.f32 %v825, %v841
  %v846 = vsub.f32 %v826, %v842
  %v847 = vsub.f32 %v827, %v843
  %v848 = vmul.f32 %v844, %v844
  %v849 = vmul.f32 %v845, %v845
  %v850 = vmul.f32 %v846, %v846
  %v851 = vmul.f32 %v847, %v847
  %v852 = vsel %vm44, %v848, 0.0
  %853 = vadd.xlane.f32.xlu0 %v852
  %v854 = vpop.xlane.xlu0 %853
  %v855 = vsel %vm44, %v849, 0.0
  %856 = vadd.xlane.f32.xlu0 %v855
  %v857 = vpop.xlane.xlu0 %856
  %v858 = vsel %vm44, %v850, 0.0
  %859 = vadd.xlane.f32.xlu0 %v858
  %v860 = vpop.xlane.xlu0 %859
  %v861 = vsel %vm44, %v851, 0.0
  %862 = vadd.xlane.f32.xlu0 %v861
  %v863 = vpop.xlane.xlu0 %862
  %v864 = vmul.f32 %v854, %v57
  %v865 = vmul.f32 %v857, %v57
  %v866 = vmul.f32 %v860, %v57
  %v867 = vmul.f32 %v863, %v57
  %v868 = vadd.f32 %v864, 1e-05
  %v869 = vadd.f32 %v865, 1e-05
  %v870 = vadd.f32 %v866, 1e-05
  %v871 = vadd.f32 %v867, 1e-05
  %v872 = vrsqrt.pop %v868
  %v873 = vrsqrt.pop %v869
  %v874 = vrsqrt.pop %v870
  %v875 = vrsqrt.pop %v871
  %v876 = vmul.f32 %v844, %v872
  %v877 = vmul.f32 %v845, %v873
  %v878 = vmul.f32 %v846, %v874
  %v879 = vmul.f32 %v847, %v875
  %v880 = vlaneseq
  %v881 = vshrl.u32 %v880, 7
  %v882 = vsub.s32 2, %v881
  %v883 = vrot.slane %v43, %v882
  %v884 = vmul.f32 %v876, %v883
  %v885 = vmul.f32 %v877, %v883
  %v886 = vmul.f32 %v878, %v883
  %v887 = vmul.f32 %v879, %v883
  %v888 = vlaneseq
  %v889 = vshrl.u32 %v888, 7
  %v890 = vsub.s32 3, %v889
  %v891 = vrot.slane %v43, %v890
  %v892 = vadd.f32 %v884, %v891
  %v893 = vadd.f32 %v885, %v891
  %v894 = vadd.f32 %v886, %v891
  %v895 = vadd.f32 %v887, %v891
  %v896 = vld [vmem:[%s6] sm:$0x3]
  %v897 = vld [vmem:[%s4] sm:$0xf]
  %v898 = vld [vmem:[%s4 + $0x4] sm:$0xf]
  %v899 = vld [vmem:[%s4 + $0x8] sm:$0xf]
  %v900 = vld [vmem:[%s4 + $0xc] sm:$0xf]
  %v901 = vpack.c.bf16 %v893, %v892
  %v902 = vpack.c.bf16 %v895, %v894
  %v903 = vlaneseq
  %v904 = vshrl.u32 %v903, 7
  %v905 = vsub.s32 0, %v904
  %v906 = vrot.slane %v896, %v905
  %v911 = vunpack.c.l.b16 %v897
  %v912 = vunpack.c.l.b16 %v898
  %v913 = vunpack.c.l.b16 %v899
  %v914 = vunpack.c.l.b16 %v900
  %v915 = vpack.c.b16 %v912, %v911
  %v916 = vpack.c.b16 %v914, %v913
  %v920 = vsel %vm44, %v901, 0
  %v923 = vsel %vm44, %v902, 0
  %925 = vmatprep.subr.bf16.mxu0 0
  %926 = vmatpush1.bf16.msra.mxu0 0
  %927 = vmatprep.subr.bf16.mxu0 0
  %928 = vmatpush1.bf16.msra.mxu0 0
  %929 = vmatprep.subr.bf16.mxu0 0
  %930 = vmatpush1.bf16.msra.mxu0 0
  %931 = vmatprep.subr.bf16.mxu0 0
  %932 = vmatpush1.bf16.msra.mxu0 0
  %933 = vmatprep.subr.bf16.mxu0 0
  %934 = vmatpush1.bf16.msra.mxu0 0
  %935 = vmatprep.subr.bf16.mxu0 0
  %936 = vmatpush1.bf16.msra.mxu0 0
  %937 = vmatprep.subr.bf16.mxu0 0
  %938 = vmatpush1.bf16.msra.mxu0 %v916
  %939 = vmatprep.subr.bf16.mxu0 0
  %940 = vmatpush1.bf16.msra.mxu0 %v915
  %941 = vmatprep.subr.bf16.mxu0 0
  %942 = vmatpush2.bf16.msra.mxu0 0
  %943 = vmatprep.subr.bf16.mxu0 0
  %944 = vmatpush2.bf16.msra.mxu0 0
  %945 = vmatprep.subr.bf16.mxu0 0
  %946 = vmatpush2.bf16.msra.mxu0 0
  %947 = vmatprep.subr.bf16.mxu0 0
  %948 = vmatpush2.bf16.msra.mxu0 0
  %949 = vmatprep.subr.bf16.mxu0 0
  %950 = vmatpush2.bf16.msra.mxu0 0
  %951 = vmatprep.subr.bf16.mxu0 0
  %952 = vmatpush2.bf16.msra.mxu0 0
  %953 = vmatprep.subr.bf16.mxu0 0
  %954 = vmatpush2.bf16.msra.mxu0 0
  %955 = vmatprep.subr.bf16.mxu0 0
  %956 = vmatpush2.bf16.msra.mxu0 0
  %957 = vmatprep.mubr.bf16.mxu0 0
  %958 = vmatmul.mubr.bf16.gmra.mxu0 %v920
  %v959 = vpop.f32.mrf.mxu0
  %v960 = vadd.f32 %v906, %v959
  %v961 = vpop.f32.mrf.mxu0
  %v962 = vpop.f32.mrf.mxu0
  %v963 = vadd.f32 %v906, %v962
  %v964 = vpop.f32.mrf.mxu0
  %965 = vmatprep.mubr.bf16.mxu0 0
  %966 = vmatmul.mubr.bf16.gmra.mxu0 %v923
  %v967 = vpop.f32.mrf.mxu0
  %v968 = vadd.f32 %v906, %v967
  %v969 = vpop.f32.mrf.mxu0
  %v970 = vpop.f32.mrf.mxu0
  %v971 = vadd.f32 %v906, %v970
  %v972 = vpop.f32.mrf.mxu0
  %973 = vdwg.mxu0
  %v974 = vmul.f32 %v960, 0.5
  %v975 = vmul.f32 %v963, 0.5
  %v976 = vmul.f32 %v968, 0.5
  %v977 = vmul.f32 %v971, 0.5
  %v978 = vmul.f32 %v960, 0.044715
  %v979 = vmul.f32 %v963, 0.044715
  %v980 = vmul.f32 %v968, 0.044715
  %v981 = vmul.f32 %v971, 0.044715
  %v982 = vmul.f32 %v978, %v960
  %v983 = vmul.f32 %v979, %v963
  %v984 = vmul.f32 %v980, %v968
  %v985 = vmul.f32 %v981, %v971
  %v986 = vmul.f32 %v982, %v960
  %v987 = vmul.f32 %v983, %v963
  %v988 = vmul.f32 %v984, %v968
  %v989 = vmul.f32 %v985, %v971
  %v990 = vadd.f32 %v960, %v986
  %v991 = vadd.f32 %v963, %v987
  %v992 = vadd.f32 %v968, %v988
  %v993 = vadd.f32 %v971, %v989
  %v994 = vmul.f32 %v990, 0.7978846
  %v995 = vmul.f32 %v991, 0.7978846
  %v996 = vmul.f32 %v992, 0.7978846
  %v997 = vmul.f32 %v993, 0.7978846
  %v998 = vtanh.pop %v994
  %v999 = vtanh.pop %v995
  %v1000 = vtanh.pop %v996
  %v1001 = vtanh.pop %v997
  %v1002 = vadd.f32 %v998, 1.0
  %v1003 = vadd.f32 %v999, 1.0
  %v1004 = vadd.f32 %v1000, 1.0
  %v1005 = vadd.f32 %v1001, 1.0
  %v1006 = vmul.f32 %v974, %v1002
  %v1007 = vmul.f32 %v975, %v1003
  %v1008 = vmul.f32 %v976, %v1004
  %v1009 = vmul.f32 %v977, %v1005
  %v1010 = vld [vmem:[%s5] sm:$0xf]
  %v1011 = vld [vmem:[%s5 + $0x4] sm:$0xf]
  %v1012 = vld [vmem:[%s5 + $0x8] sm:$0xf]
  %v1013 = vld [vmem:[%s5 + $0xc] sm:$0xf]
  %v1014 = vld [vmem:[%s5 + $0x10] sm:$0xf]
  %v1015 = vld [vmem:[%s5 + $0x14] sm:$0xf]
  %v1016 = vld [vmem:[%s5 + $0x18] sm:$0xf]
  %v1017 = vld [vmem:[%s5 + $0x1c] sm:$0xf]
  %v1018 = vpack.c.bf16 %v1007, %v1006
  %v1019 = vpack.c.bf16 %v1009, %v1008
  %v1028 = vunpack.c.l.b16 %v1010
  %v1029 = vunpack.c.l.b16 %v1011
  %v1030 = vunpack.c.l.b16 %v1012
  %v1031 = vunpack.c.l.b16 %v1013
  %v1032 = vunpack.c.l.b16 %v1014
  %v1033 = vunpack.c.l.b16 %v1015
  %v1034 = vunpack.c.l.b16 %v1016
  %v1035 = vunpack.c.l.b16 %v1017
  %v1036 = vpack.c.b16 %v1029, %v1028
  %v1037 = vpack.c.b16 %v1031, %v1030
  %v1038 = vpack.c.b16 %v1033, %v1032
  %v1039 = vpack.c.b16 %v1035, %v1034
  %vm1044 = vcmask 523264
  %v1046 = vsel %vm1044, %v1018, 0
  %v1049 = vsel %vm1044, %v1019, 0
  %1051 = vmatprep.subr.bf16.mxu0 0
  %1052 = vmatpush1.bf16.msra.mxu0 0
  %1053 = vmatprep.subr.bf16.mxu0 0
  %1054 = vmatpush1.bf16.msra.mxu0 0
  %1055 = vmatprep.subr.bf16.mxu0 0
  %1056 = vmatpush1.bf16.msra.mxu0 0
  %1057 = vmatprep.subr.bf16.mxu0 0
  %1058 = vmatpush1.bf16.msra.mxu0 0
  %1059 = vmatprep.subr.bf16.mxu0 0
  %1060 = vmatpush1.bf16.msra.mxu0 %v1039
  %1061 = vmatprep.subr.bf16.mxu0 0
  %1062 = vmatpush1.bf16.msra.mxu0 %v1038
  %1063 = vmatprep.subr.bf16.mxu0 0
  %1064 = vmatpush1.bf16.msra.mxu0 %v1037
  %1065 = vmatprep.subr.bf16.mxu0 0
  %1066 = vmatpush1.bf16.msra.mxu0 %v1036
  %1067 = vmatprep.subr.bf16.mxu0 0
  %1068 = vmatpush2.bf16.msra.mxu0 0
  %1069 = vmatprep.subr.bf16.mxu0 0
  %1070 = vmatpush2.bf16.msra.mxu0 0
  %1071 = vmatprep.subr.bf16.mxu0 0
  %1072 = vmatpush2.bf16.msra.mxu0 0
  %1073 = vmatprep.subr.bf16.mxu0 0
  %1074 = vmatpush2.bf16.msra.mxu0 0
  %1075 = vmatprep.subr.bf16.mxu0 0
  %1076 = vmatpush2.bf16.msra.mxu0 0
  %1077 = vmatprep.subr.bf16.mxu0 0
  %1078 = vmatpush2.bf16.msra.mxu0 0
  %1079 = vmatprep.subr.bf16.mxu0 0
  %1080 = vmatpush2.bf16.msra.mxu0 0
  %1081 = vmatprep.subr.bf16.mxu0 0
  %1082 = vmatpush2.bf16.msra.mxu0 0
  %1083 = vmatprep.mubr.bf16.mxu0 0
  %1084 = vmatmul.mubr.bf16.gmra.mxu0 %v1046
  %v1085 = vpop.f32.mrf.mxu0
  %v1086 = vadd.f32 0.0, %v1085
  %v1087 = vpop.f32.mrf.mxu0
  %v1088 = vpop.f32.mrf.mxu0
  %v1089 = vadd.f32 0.0, %v1088
  %v1090 = vpop.f32.mrf.mxu0
  %1091 = vmatprep.mubr.bf16.mxu0 0
  %1092 = vmatmul.mubr.bf16.gmra.mxu0 %v1049
  %v1093 = vpop.f32.mrf.mxu0
  %v1094 = vadd.f32 0.0, %v1093
  %v1095 = vpop.f32.mrf.mxu0
  %v1096 = vpop.f32.mrf.mxu0
  %v1097 = vadd.f32 0.0, %v1096
  %v1098 = vpop.f32.mrf.mxu0
  %1099 = vdwg.mxu0
  %v1100 = vadd.f32 %v824, %v1086
  %v1101 = vadd.f32 %v825, %v1089
  %v1102 = vadd.f32 %v826, %v1094
  %v1103 = vadd.f32 %v827, %v1097
  %v1104 = vlaneseq
  %v1105 = vshrl.u32 %v1104, 7
  %v1106 = vsub.s32 1, %v1105
  %v1107 = vrot.slane %v896, %v1106
  %v1108 = vadd.f32 %v1100, %v1107
  %v1109 = vadd.f32 %v1101, %v1107
  %v1110 = vadd.f32 %v1102, %v1107
  %v1111 = vadd.f32 %v1103, %v1107
  %s1112 = scalar_lea.vmem %s1, 4
  %v1113 = vld [vmem:[%s1112] sm:$0xf]
  %v1114 = vsel %vm44, %v1108, 0.0
  %1115 = vadd.xlane.f32.xlu0 %v1114
  %v1116 = vpop.xlane.xlu0 %1115
  %v1117 = vsel %vm44, %v1109, 0.0
  %1118 = vadd.xlane.f32.xlu0 %v1117
  %v1119 = vpop.xlane.xlu0 %1118
  %v1120 = vsel %vm44, %v1110, 0.0
  %1121 = vadd.xlane.f32.xlu0 %v1120
  %v1122 = vpop.xlane.xlu0 %1121
  %v1123 = vsel %vm44, %v1111, 0.0
  %1124 = vadd.xlane.f32.xlu0 %v1123
  %v1125 = vpop.xlane.xlu0 %1124
  %v1126 = vmul.f32 %v1116, %v57
  %v1127 = vmul.f32 %v1119, %v57
  %v1128 = vmul.f32 %v1122, %v57
  %v1129 = vmul.f32 %v1125, %v57
  %v1130 = vsub.f32 %v1108, %v1126
  %v1131 = vsub.f32 %v1109, %v1127
  %v1132 = vsub.f32 %v1110, %v1128
  %v1133 = vsub.f32 %v1111, %v1129
  %v1134 = vmul.f32 %v1130, %v1130
  %v1135 = vmul.f32 %v1131, %v1131
  %v1136 = vmul.f32 %v1132, %v1132
  %v1137 = vmul.f32 %v1133, %v1133
  %v1138 = vsel %vm44, %v1134, 0.0
  %1139 = vadd.xlane.f32.xlu0 %v1138
  %v1140 = vpop.xlane.xlu0 %1139
  %v1141 = vsel %vm44, %v1135, 0.0
  %1142 = vadd.xlane.f32.xlu0 %v1141
  %v1143 = vpop.xlane.xlu0 %1142
  %v1144 = vsel %vm44, %v1136, 0.0
  %1145 = vadd.xlane.f32.xlu0 %v1144
  %v1146 = vpop.xlane.xlu0 %1145
  %v1147 = vsel %vm44, %v1137, 0.0
  %1148 = vadd.xlane.f32.xlu0 %v1147
  %v1149 = vpop.xlane.xlu0 %1148
  %v1150 = vmul.f32 %v1140, %v57
  %v1151 = vmul.f32 %v1143, %v57
  %v1152 = vmul.f32 %v1146, %v57
  %v1153 = vmul.f32 %v1149, %v57
  %v1154 = vadd.f32 %v1150, 1e-05
  %v1155 = vadd.f32 %v1151, 1e-05
  %v1156 = vadd.f32 %v1152, 1e-05
  %v1157 = vadd.f32 %v1153, 1e-05
  %v1158 = vrsqrt.pop %v1154
  %v1159 = vrsqrt.pop %v1155
  %v1160 = vrsqrt.pop %v1156
  %v1161 = vrsqrt.pop %v1157
  %v1162 = vmul.f32 %v1130, %v1158
  %v1163 = vmul.f32 %v1131, %v1159
  %v1164 = vmul.f32 %v1132, %v1160
  %v1165 = vmul.f32 %v1133, %v1161
  %v1166 = vlaneseq
  %v1167 = vshrl.u32 %v1166, 7
  %v1168 = vsub.s32 0, %v1167
  %v1169 = vrot.slane %v1113, %v1168
  %v1170 = vmul.f32 %v1162, %v1169
  %v1171 = vmul.f32 %v1163, %v1169
  %v1172 = vmul.f32 %v1164, %v1169
  %v1173 = vmul.f32 %v1165, %v1169
  %v1174 = vlaneseq
  %v1175 = vshrl.u32 %v1174, 7
  %v1176 = vsub.s32 1, %v1175
  %v1177 = vrot.slane %v1113, %v1176
  %v1178 = vadd.f32 %v1170, %v1177
  %v1179 = vadd.f32 %v1171, %v1177
  %v1180 = vadd.f32 %v1172, %v1177
  %v1181 = vadd.f32 %v1173, %v1177
  %s1182 = scalar_lea.vmem %s2, 16
  %v1183 = vld [vmem:[%s1182] sm:$0xf]
  %v1184 = vld [vmem:[%s1182 + $0x4] sm:$0xf]
  %v1185 = vld [vmem:[%s1182 + $0x8] sm:$0xf]
  %v1186 = vld [vmem:[%s1182 + $0xc] sm:$0xf]
  %v1187 = vpack.c.bf16 %v1179, %v1178
  %v1188 = vpack.c.bf16 %v1181, %v1180
  %v1193 = vunpack.c.l.b16 %v1183
  %v1194 = vunpack.c.l.b16 %v1184
  %v1195 = vunpack.c.l.b16 %v1185
  %v1196 = vunpack.c.l.b16 %v1186
  %v1197 = vpack.c.b16 %v1194, %v1193
  %v1198 = vpack.c.b16 %v1196, %v1195
  %v1202 = vsel %vm44, %v1187, 0
  %v1205 = vsel %vm44, %v1188, 0
  %1207 = vmatprep.subr.bf16.mxu0 0
  %1208 = vmatpush1.bf16.msra.mxu0 0
  %1209 = vmatprep.subr.bf16.mxu0 0
  %1210 = vmatpush1.bf16.msra.mxu0 0
  %1211 = vmatprep.subr.bf16.mxu0 0
  %1212 = vmatpush1.bf16.msra.mxu0 0
  %1213 = vmatprep.subr.bf16.mxu0 0
  %1214 = vmatpush1.bf16.msra.mxu0 0
  %1215 = vmatprep.subr.bf16.mxu0 0
  %1216 = vmatpush1.bf16.msra.mxu0 0
  %1217 = vmatprep.subr.bf16.mxu0 0
  %1218 = vmatpush1.bf16.msra.mxu0 0
  %1219 = vmatprep.subr.bf16.mxu0 0
  %1220 = vmatpush1.bf16.msra.mxu0 %v1198
  %1221 = vmatprep.subr.bf16.mxu0 0
  %1222 = vmatpush1.bf16.msra.mxu0 %v1197
  %1223 = vmatprep.subr.bf16.mxu0 0
  %1224 = vmatpush2.bf16.msra.mxu0 0
  %1225 = vmatprep.subr.bf16.mxu0 0
  %1226 = vmatpush2.bf16.msra.mxu0 0
  %1227 = vmatprep.subr.bf16.mxu0 0
  %1228 = vmatpush2.bf16.msra.mxu0 0
  %1229 = vmatprep.subr.bf16.mxu0 0
  %1230 = vmatpush2.bf16.msra.mxu0 0
  %1231 = vmatprep.subr.bf16.mxu0 0
  %1232 = vmatpush2.bf16.msra.mxu0 0
  %1233 = vmatprep.subr.bf16.mxu0 0
  %1234 = vmatpush2.bf16.msra.mxu0 0
  %1235 = vmatprep.subr.bf16.mxu0 0
  %1236 = vmatpush2.bf16.msra.mxu0 0
  %1237 = vmatprep.subr.bf16.mxu0 0
  %1238 = vmatpush2.bf16.msra.mxu0 0
  %1239 = vmatprep.mubr.bf16.mxu0 0
  %1240 = vmatmul.mubr.bf16.gmra.mxu0 %v1202
  %v1241 = vpop.f32.mrf.mxu0
  %v1242 = vadd.f32 0.0, %v1241
  %v1243 = vpop.f32.mrf.mxu0
  %v1244 = vpop.f32.mrf.mxu0
  %v1245 = vadd.f32 0.0, %v1244
  %v1246 = vpop.f32.mrf.mxu0
  %1247 = vmatprep.mubr.bf16.mxu0 0
  %1248 = vmatmul.mubr.bf16.gmra.mxu0 %v1205
  %v1249 = vpop.f32.mrf.mxu0
  %v1250 = vadd.f32 0.0, %v1249
  %v1251 = vpop.f32.mrf.mxu0
  %v1252 = vpop.f32.mrf.mxu0
  %v1253 = vadd.f32 0.0, %v1252
  %v1254 = vpop.f32.mrf.mxu0
  %1255 = vdwg.mxu0
  %1260 = vrot.lane.b32.xlu0 %v1242, 120
  %v1261 = vpop.permute.xlu0 %1260
  %1262 = vrot.lane.b32.xlu0 %v1245, 120
  %v1263 = vpop.permute.xlu0 %1262
  %1264 = vrot.lane.b32.xlu0 %v1250, 120
  %v1265 = vpop.permute.xlu0 %1264
  %1266 = vrot.lane.b32.xlu0 %v1253, 120
  %v1267 = vpop.permute.xlu0 %1266
  %v1272 = vmul.f32 %v1242, 0.35355338
  %v1273 = vmul.f32 %v1245, 0.35355338
  %v1274 = vmul.f32 %v1250, 0.35355338
  %v1275 = vmul.f32 %v1253, 0.35355338
  %v1276 = vmul.f32 %v1261, 0.35355338
  %v1277 = vmul.f32 %v1263, 0.35355338
  %v1278 = vmul.f32 %v1265, 0.35355338
  %v1279 = vmul.f32 %v1267, 0.35355338
  %v1280 = vpack.c.bf16 %v1273, %v1272
  %v1281 = vpack.c.bf16 %v1275, %v1274
  %v1282 = vpack.c.bf16 %v1277, %v1276
  %v1283 = vpack.c.bf16 %v1279, %v1278
  %v1284 = vpack.c.bf16 %v1245, %v1242
  %v1285 = vpack.c.bf16 %v1253, %v1250
  %v1286 = vpack.c.bf16 %v1263, %v1261
  %v1287 = vpack.c.bf16 %v1267, %v1265
  %1289 = vrot.lane.b32.xlu0 %v1284, 112
  %v1290 = vpop.permute.xlu0 %1289
  %v1292 = vsel %vm222, %v1280, 0
  %v1295 = vsel %vm222, %v1290, 0
  %1297 = vmatprep.subr.bf16.mxu0 0
  %1298 = vmatpush1.bf16.xpose.msra.mxu0 0
  %1299 = vmatprep.subr.bf16.mxu0 0
  %1300 = vmatpush1.bf16.xpose.msra.mxu0 0
  %1301 = vmatprep.subr.bf16.mxu0 0
  %1302 = vmatpush1.bf16.xpose.msra.mxu0 0
  %1303 = vmatprep.subr.bf16.mxu0 0
  %1304 = vmatpush1.bf16.xpose.msra.mxu0 0
  %1305 = vmatprep.subr.bf16.mxu0 0
  %1306 = vmatpush1.bf16.xpose.msra.mxu0 0
  %1307 = vmatprep.subr.bf16.mxu0 0
  %1308 = vmatpush1.bf16.xpose.msra.mxu0 0
  %1309 = vmatprep.subr.bf16.mxu0 0
  %1310 = vmatpush1.bf16.xpose.msra.mxu0 0
  %1311 = vmatprep.subr.bf16.mxu0 0
  %1312 = vmatpush1.bf16.xpose.msra.mxu0 %v1295
  %1313 = vmatprep.subr.bf16.mxu0 0
  %1314 = vmatpush2.bf16.xpose.msra.mxu0 0
  %1315 = vmatprep.subr.bf16.mxu0 0
  %1316 = vmatpush2.bf16.xpose.msra.mxu0 0
  %1317 = vmatprep.subr.bf16.mxu0 0
  %1318 = vmatpush2.bf16.xpose.msra.mxu0 0
  %1319 = vmatprep.subr.bf16.mxu0 0
  %1320 = vmatpush2.bf16.xpose.msra.mxu0 0
  %1321 = vmatprep.subr.bf16.mxu0 0
  %1322 = vmatpush2.bf16.xpose.msra.mxu0 0
  %1323 = vmatprep.subr.bf16.mxu0 0
  %1324 = vmatpush2.bf16.xpose.msra.mxu0 0
  %1325 = vmatprep.subr.bf16.mxu0 0
  %1326 = vmatpush2.bf16.xpose.msra.mxu0 0
  %1327 = vmatprep.subr.bf16.mxu0 0
  %1328 = vmatpush2.bf16.xpose.msra.mxu0 0
  %1329 = vmatprep.mubr.bf16.mxu0 0
  %1330 = vmatmul.mubr.bf16.gmra.mxu0 %v1292
  %v1331 = vpop.f32.mrf.mxu0
  %v1332 = vadd.f32 0.0, %v1331
  %v1333 = vpop.f32.mrf.mxu0
  %v1334 = vpop.f32.mrf.mxu0
  %v1335 = vadd.f32 0.0, %v1334
  %v1336 = vpop.f32.mrf.mxu0
  %1337 = vdwg.mxu0
  %1339 = vrot.lane.b32.xlu0 %v1285, 112
  %v1340 = vpop.permute.xlu0 %1339
  %v1342 = vsel %vm222, %v1281, 0
  %v1345 = vsel %vm222, %v1340, 0
  %1347 = vmatprep.subr.bf16.mxu0 0
  %1348 = vmatpush1.bf16.xpose.msra.mxu0 0
  %1349 = vmatprep.subr.bf16.mxu0 0
  %1350 = vmatpush1.bf16.xpose.msra.mxu0 0
  %1351 = vmatprep.subr.bf16.mxu0 0
  %1352 = vmatpush1.bf16.xpose.msra.mxu0 0
  %1353 = vmatprep.subr.bf16.mxu0 0
  %1354 = vmatpush1.bf16.xpose.msra.mxu0 0
  %1355 = vmatprep.subr.bf16.mxu0 0
  %1356 = vmatpush1.bf16.xpose.msra.mxu0 0
  %1357 = vmatprep.subr.bf16.mxu0 0
  %1358 = vmatpush1.bf16.xpose.msra.mxu0 0
  %1359 = vmatprep.subr.bf16.mxu0 0
  %1360 = vmatpush1.bf16.xpose.msra.mxu0 0
  %1361 = vmatprep.subr.bf16.mxu0 0
  %1362 = vmatpush1.bf16.xpose.msra.mxu0 %v1345
  %1363 = vmatprep.subr.bf16.mxu0 0
  %1364 = vmatpush2.bf16.xpose.msra.mxu0 0
  %1365 = vmatprep.subr.bf16.mxu0 0
  %1366 = vmatpush2.bf16.xpose.msra.mxu0 0
  %1367 = vmatprep.subr.bf16.mxu0 0
  %1368 = vmatpush2.bf16.xpose.msra.mxu0 0
  %1369 = vmatprep.subr.bf16.mxu0 0
  %1370 = vmatpush2.bf16.xpose.msra.mxu0 0
  %1371 = vmatprep.subr.bf16.mxu0 0
  %1372 = vmatpush2.bf16.xpose.msra.mxu0 0
  %1373 = vmatprep.subr.bf16.mxu0 0
  %1374 = vmatpush2.bf16.xpose.msra.mxu0 0
  %1375 = vmatprep.subr.bf16.mxu0 0
  %1376 = vmatpush2.bf16.xpose.msra.mxu0 0
  %1377 = vmatprep.subr.bf16.mxu0 0
  %1378 = vmatpush2.bf16.xpose.msra.mxu0 0
  %1379 = vmatprep.mubr.bf16.mxu0 0
  %1380 = vmatmul.mubr.bf16.gmra.mxu0 %v1342
  %v1381 = vpop.f32.mrf.mxu0
  %v1382 = vadd.f32 0.0, %v1381
  %v1383 = vpop.f32.mrf.mxu0
  %v1384 = vpop.f32.mrf.mxu0
  %v1385 = vadd.f32 0.0, %v1384
  %v1386 = vpop.f32.mrf.mxu0
  %1387 = vdwg.mxu0
  %1389 = vrot.lane.b32.xlu0 %v1286, 112
  %v1390 = vpop.permute.xlu0 %1389
  %v1392 = vsel %vm222, %v1282, 0
  %v1395 = vsel %vm222, %v1390, 0
  %1397 = vmatprep.subr.bf16.mxu0 0
  %1398 = vmatpush1.bf16.xpose.msra.mxu0 0
  %1399 = vmatprep.subr.bf16.mxu0 0
  %1400 = vmatpush1.bf16.xpose.msra.mxu0 0
  %1401 = vmatprep.subr.bf16.mxu0 0
  %1402 = vmatpush1.bf16.xpose.msra.mxu0 0
  %1403 = vmatprep.subr.bf16.mxu0 0
  %1404 = vmatpush1.bf16.xpose.msra.mxu0 0
  %1405 = vmatprep.subr.bf16.mxu0 0
  %1406 = vmatpush1.bf16.xpose.msra.mxu0 0
  %1407 = vmatprep.subr.bf16.mxu0 0
  %1408 = vmatpush1.bf16.xpose.msra.mxu0 0
  %1409 = vmatprep.subr.bf16.mxu0 0
  %1410 = vmatpush1.bf16.xpose.msra.mxu0 0
  %1411 = vmatprep.subr.bf16.mxu0 0
  %1412 = vmatpush1.bf16.xpose.msra.mxu0 %v1395
  %1413 = vmatprep.subr.bf16.mxu0 0
  %1414 = vmatpush2.bf16.xpose.msra.mxu0 0
  %1415 = vmatprep.subr.bf16.mxu0 0
  %1416 = vmatpush2.bf16.xpose.msra.mxu0 0
  %1417 = vmatprep.subr.bf16.mxu0 0
  %1418 = vmatpush2.bf16.xpose.msra.mxu0 0
  %1419 = vmatprep.subr.bf16.mxu0 0
  %1420 = vmatpush2.bf16.xpose.msra.mxu0 0
  %1421 = vmatprep.subr.bf16.mxu0 0
  %1422 = vmatpush2.bf16.xpose.msra.mxu0 0
  %1423 = vmatprep.subr.bf16.mxu0 0
  %1424 = vmatpush2.bf16.xpose.msra.mxu0 0
  %1425 = vmatprep.subr.bf16.mxu0 0
  %1426 = vmatpush2.bf16.xpose.msra.mxu0 0
  %1427 = vmatprep.subr.bf16.mxu0 0
  %1428 = vmatpush2.bf16.xpose.msra.mxu0 0
  %1429 = vmatprep.mubr.bf16.mxu0 0
  %1430 = vmatmul.mubr.bf16.gmra.mxu0 %v1392
  %v1431 = vpop.f32.mrf.mxu0
  %v1432 = vadd.f32 0.0, %v1431
  %v1433 = vpop.f32.mrf.mxu0
  %v1434 = vpop.f32.mrf.mxu0
  %v1435 = vadd.f32 0.0, %v1434
  %v1436 = vpop.f32.mrf.mxu0
  %1437 = vdwg.mxu0
  %1439 = vrot.lane.b32.xlu0 %v1287, 112
  %v1440 = vpop.permute.xlu0 %1439
  %v1442 = vsel %vm222, %v1283, 0
  %v1445 = vsel %vm222, %v1440, 0
  %1447 = vmatprep.subr.bf16.mxu0 0
  %1448 = vmatpush1.bf16.xpose.msra.mxu0 0
  %1449 = vmatprep.subr.bf16.mxu0 0
  %1450 = vmatpush1.bf16.xpose.msra.mxu0 0
  %1451 = vmatprep.subr.bf16.mxu0 0
  %1452 = vmatpush1.bf16.xpose.msra.mxu0 0
  %1453 = vmatprep.subr.bf16.mxu0 0
  %1454 = vmatpush1.bf16.xpose.msra.mxu0 0
  %1455 = vmatprep.subr.bf16.mxu0 0
  %1456 = vmatpush1.bf16.xpose.msra.mxu0 0
  %1457 = vmatprep.subr.bf16.mxu0 0
  %1458 = vmatpush1.bf16.xpose.msra.mxu0 0
  %1459 = vmatprep.subr.bf16.mxu0 0
  %1460 = vmatpush1.bf16.xpose.msra.mxu0 0
  %1461 = vmatprep.subr.bf16.mxu0 0
  %1462 = vmatpush1.bf16.xpose.msra.mxu0 %v1445
  %1463 = vmatprep.subr.bf16.mxu0 0
  %1464 = vmatpush2.bf16.xpose.msra.mxu0 0
  %1465 = vmatprep.subr.bf16.mxu0 0
  %1466 = vmatpush2.bf16.xpose.msra.mxu0 0
  %1467 = vmatprep.subr.bf16.mxu0 0
  %1468 = vmatpush2.bf16.xpose.msra.mxu0 0
  %1469 = vmatprep.subr.bf16.mxu0 0
  %1470 = vmatpush2.bf16.xpose.msra.mxu0 0
  %1471 = vmatprep.subr.bf16.mxu0 0
  %1472 = vmatpush2.bf16.xpose.msra.mxu0 0
  %1473 = vmatprep.subr.bf16.mxu0 0
  %1474 = vmatpush2.bf16.xpose.msra.mxu0 0
  %1475 = vmatprep.subr.bf16.mxu0 0
  %1476 = vmatpush2.bf16.xpose.msra.mxu0 0
  %1477 = vmatprep.subr.bf16.mxu0 0
  %1478 = vmatpush2.bf16.xpose.msra.mxu0 0
  %1479 = vmatprep.mubr.bf16.mxu0 0
  %1480 = vmatmul.mubr.bf16.gmra.mxu0 %v1442
  %v1481 = vpop.f32.mrf.mxu0
  %v1482 = vadd.f32 0.0, %v1481
  %v1483 = vpop.f32.mrf.mxu0
  %v1484 = vpop.f32.mrf.mxu0
  %v1485 = vadd.f32 0.0, %v1484
  %v1486 = vpop.f32.mrf.mxu0
  %1487 = vdwg.mxu0
  %v1488 = vsel %vm420, %v1332, -inf
  %1489 = vmax.xlane.f32.xlu0 %v1488
  %v1490 = vpop.xlane.xlu0 %1489
  %v1491 = vsel %vm420, %v1335, -inf
  %1492 = vmax.xlane.f32.xlu0 %v1491
  %v1493 = vpop.xlane.xlu0 %1492
  %v1494 = vsel %vm420, %v1382, -inf
  %1495 = vmax.xlane.f32.xlu0 %v1494
  %v1496 = vpop.xlane.xlu0 %1495
  %v1497 = vsel %vm420, %v1385, -inf
  %1498 = vmax.xlane.f32.xlu0 %v1497
  %v1499 = vpop.xlane.xlu0 %1498
  %v1500 = vsel %vm420, %v1432, -inf
  %1501 = vmax.xlane.f32.xlu0 %v1500
  %v1502 = vpop.xlane.xlu0 %1501
  %v1503 = vsel %vm420, %v1435, -inf
  %1504 = vmax.xlane.f32.xlu0 %v1503
  %v1505 = vpop.xlane.xlu0 %1504
  %v1506 = vsel %vm420, %v1482, -inf
  %1507 = vmax.xlane.f32.xlu0 %v1506
  %v1508 = vpop.xlane.xlu0 %1507
  %v1509 = vsel %vm420, %v1485, -inf
  %1510 = vmax.xlane.f32.xlu0 %v1509
  %v1511 = vpop.xlane.xlu0 %1510
  %v1512 = vsub.f32 %v1332, %v1490
  %v1513 = vsub.f32 %v1335, %v1493
  %v1514 = vsub.f32 %v1382, %v1496
  %v1515 = vsub.f32 %v1385, %v1499
  %v1516 = vsub.f32 %v1432, %v1502
  %v1517 = vsub.f32 %v1435, %v1505
  %v1518 = vsub.f32 %v1482, %v1508
  %v1519 = vsub.f32 %v1485, %v1511
  %v1520 = vmul.f32 %v1512, 1.442695
  %v1521 = vpow.pop %v1520
  %v1522 = vmul.f32 %v1513, 1.442695
  %v1523 = vpow.pop %v1522
  %v1524 = vmul.f32 %v1514, 1.442695
  %v1525 = vpow.pop %v1524
  %v1526 = vmul.f32 %v1515, 1.442695
  %v1527 = vpow.pop %v1526
  %v1528 = vmul.f32 %v1516, 1.442695
  %v1529 = vpow.pop %v1528
  %v1530 = vmul.f32 %v1517, 1.442695
  %v1531 = vpow.pop %v1530
  %v1532 = vmul.f32 %v1518, 1.442695
  %v1533 = vpow.pop %v1532
  %v1534 = vmul.f32 %v1519, 1.442695
  %v1535 = vpow.pop %v1534
  %v1536 = vsel %vm420, %v1521, 0.0
  %1537 = vadd.xlane.f32.xlu0 %v1536
  %v1538 = vpop.xlane.xlu0 %1537
  %v1539 = vsel %vm420, %v1523, 0.0
  %1540 = vadd.xlane.f32.xlu0 %v1539
  %v1541 = vpop.xlane.xlu0 %1540
  %v1542 = vsel %vm420, %v1525, 0.0
  %1543 = vadd.xlane.f32.xlu0 %v1542
  %v1544 = vpop.xlane.xlu0 %1543
  %v1545 = vsel %vm420, %v1527, 0.0
  %1546 = vadd.xlane.f32.xlu0 %v1545
  %v1547 = vpop.xlane.xlu0 %1546
  %v1548 = vsel %vm420, %v1529, 0.0
  %1549 = vadd.xlane.f32.xlu0 %v1548
  %v1550 = vpop.xlane.xlu0 %1549
  %v1551 = vsel %vm420, %v1531, 0.0
  %1552 = vadd.xlane.f32.xlu0 %v1551
  %v1553 = vpop.xlane.xlu0 %1552
  %v1554 = vsel %vm420, %v1533, 0.0
  %1555 = vadd.xlane.f32.xlu0 %v1554
  %v1556 = vpop.xlane.xlu0 %1555
  %v1557 = vsel %vm420, %v1535, 0.0
  %1558 = vadd.xlane.f32.xlu0 %v1557
  %v1559 = vpop.xlane.xlu0 %1558
  %v1560 = vrcp.pop %v1538
  %v1561 = vrcp.pop %v1541
  %v1562 = vrcp.pop %v1544
  %v1563 = vrcp.pop %v1547
  %v1564 = vrcp.pop %v1550
  %v1565 = vrcp.pop %v1553
  %v1566 = vrcp.pop %v1556
  %v1567 = vrcp.pop %v1559
  %v1568 = vmul.f32 %v1521, %v1560
  %v1569 = vmul.f32 %v1523, %v1561
  %v1570 = vmul.f32 %v1525, %v1562
  %v1571 = vmul.f32 %v1527, %v1563
  %v1572 = vmul.f32 %v1529, %v1564
  %v1573 = vmul.f32 %v1531, %v1565
  %v1574 = vmul.f32 %v1533, %v1566
  %v1575 = vmul.f32 %v1535, %v1567
  %v1576 = vpack.c.bf16 %v1569, %v1568
  %v1577 = vpack.c.bf16 %v1571, %v1570
  %v1578 = vpack.c.bf16 %v1573, %v1572
  %v1579 = vpack.c.bf16 %v1575, %v1574
  %1580 = vrot.lane.b32.xlu0 %v1284, 96
  %v1581 = vpop.permute.xlu0 %1580
  %v1584 = vsel %vm420, %v1576, 0
  %1586 = vmatprep.subr.bf16.mxu0 0
  %1587 = vmatpush1.bf16.msra.mxu0 0
  %1588 = vmatprep.subr.bf16.mxu0 0
  %1589 = vmatpush1.bf16.msra.mxu0 0
  %1590 = vmatprep.subr.bf16.mxu0 0
  %1591 = vmatpush1.bf16.msra.mxu0 0
  %1592 = vmatprep.subr.bf16.mxu0 0
  %1593 = vmatpush1.bf16.msra.mxu0 0
  %1594 = vmatprep.subr.bf16.mxu0 0
  %1595 = vmatpush1.bf16.msra.mxu0 0
  %1596 = vmatprep.subr.bf16.mxu0 0
  %1597 = vmatpush1.bf16.msra.mxu0 0
  %1598 = vmatprep.subr.bf16.mxu0 0
  %1599 = vmatpush1.bf16.msra.mxu0 0
  %1600 = vmatprep.subr.bf16.mxu0 0
  %1601 = vmatpush1.bf16.msra.mxu0 %v1581
  %1602 = vmatprep.subr.bf16.mxu0 0
  %1603 = vmatpush2.bf16.msra.mxu0 0
  %1604 = vmatprep.subr.bf16.mxu0 0
  %1605 = vmatpush2.bf16.msra.mxu0 0
  %1606 = vmatprep.subr.bf16.mxu0 0
  %1607 = vmatpush2.bf16.msra.mxu0 0
  %1608 = vmatprep.subr.bf16.mxu0 0
  %1609 = vmatpush2.bf16.msra.mxu0 0
  %1610 = vmatprep.subr.bf16.mxu0 0
  %1611 = vmatpush2.bf16.msra.mxu0 0
  %1612 = vmatprep.subr.bf16.mxu0 0
  %1613 = vmatpush2.bf16.msra.mxu0 0
  %1614 = vmatprep.subr.bf16.mxu0 0
  %1615 = vmatpush2.bf16.msra.mxu0 0
  %1616 = vmatprep.subr.bf16.mxu0 0
  %1617 = vmatpush2.bf16.msra.mxu0 0
  %1618 = vmatprep.mubr.bf16.mxu0 0
  %1619 = vmatmul.mubr.bf16.gmra.mxu0 %v1584
  %v1620 = vpop.f32.mrf.mxu0
  %v1621 = vadd.f32 0.0, %v1620
  %v1622 = vpop.f32.mrf.mxu0
  %v1623 = vpop.f32.mrf.mxu0
  %v1624 = vadd.f32 0.0, %v1623
  %v1625 = vpop.f32.mrf.mxu0
  %1626 = vdwg.mxu0
  %1627 = vrot.lane.b32.xlu0 %v1285, 96
  %v1628 = vpop.permute.xlu0 %1627
  %v1631 = vsel %vm420, %v1577, 0
  %1633 = vmatprep.subr.bf16.mxu0 0
  %1634 = vmatpush1.bf16.msra.mxu0 0
  %1635 = vmatprep.subr.bf16.mxu0 0
  %1636 = vmatpush1.bf16.msra.mxu0 0
  %1637 = vmatprep.subr.bf16.mxu0 0
  %1638 = vmatpush1.bf16.msra.mxu0 0
  %1639 = vmatprep.subr.bf16.mxu0 0
  %1640 = vmatpush1.bf16.msra.mxu0 0
  %1641 = vmatprep.subr.bf16.mxu0 0
  %1642 = vmatpush1.bf16.msra.mxu0 0
  %1643 = vmatprep.subr.bf16.mxu0 0
  %1644 = vmatpush1.bf16.msra.mxu0 0
  %1645 = vmatprep.subr.bf16.mxu0 0
  %1646 = vmatpush1.bf16.msra.mxu0 0
  %1647 = vmatprep.subr.bf16.mxu0 0
  %1648 = vmatpush1.bf16.msra.mxu0 %v1628
  %1649 = vmatprep.subr.bf16.mxu0 0
  %1650 = vmatpush2.bf16.msra.mxu0 0
  %1651 = vmatprep.subr.bf16.mxu0 0
  %1652 = vmatpush2.bf16.msra.mxu0 0
  %1653 = vmatprep.subr.bf16.mxu0 0
  %1654 = vmatpush2.bf16.msra.mxu0 0
  %1655 = vmatprep.subr.bf16.mxu0 0
  %1656 = vmatpush2.bf16.msra.mxu0 0
  %1657 = vmatprep.subr.bf16.mxu0 0
  %1658 = vmatpush2.bf16.msra.mxu0 0
  %1659 = vmatprep.subr.bf16.mxu0 0
  %1660 = vmatpush2.bf16.msra.mxu0 0
  %1661 = vmatprep.subr.bf16.mxu0 0
  %1662 = vmatpush2.bf16.msra.mxu0 0
  %1663 = vmatprep.subr.bf16.mxu0 0
  %1664 = vmatpush2.bf16.msra.mxu0 0
  %1665 = vmatprep.mubr.bf16.mxu0 0
  %1666 = vmatmul.mubr.bf16.gmra.mxu0 %v1631
  %v1667 = vpop.f32.mrf.mxu0
  %v1668 = vadd.f32 0.0, %v1667
  %v1669 = vpop.f32.mrf.mxu0
  %v1670 = vpop.f32.mrf.mxu0
  %v1671 = vadd.f32 0.0, %v1670
  %v1672 = vpop.f32.mrf.mxu0
  %1673 = vdwg.mxu0
  %1674 = vrot.lane.b32.xlu0 %v1286, 96
  %v1675 = vpop.permute.xlu0 %1674
  %v1678 = vsel %vm420, %v1578, 0
  %1680 = vmatprep.subr.bf16.mxu0 0
  %1681 = vmatpush1.bf16.msra.mxu0 0
  %1682 = vmatprep.subr.bf16.mxu0 0
  %1683 = vmatpush1.bf16.msra.mxu0 0
  %1684 = vmatprep.subr.bf16.mxu0 0
  %1685 = vmatpush1.bf16.msra.mxu0 0
  %1686 = vmatprep.subr.bf16.mxu0 0
  %1687 = vmatpush1.bf16.msra.mxu0 0
  %1688 = vmatprep.subr.bf16.mxu0 0
  %1689 = vmatpush1.bf16.msra.mxu0 0
  %1690 = vmatprep.subr.bf16.mxu0 0
  %1691 = vmatpush1.bf16.msra.mxu0 0
  %1692 = vmatprep.subr.bf16.mxu0 0
  %1693 = vmatpush1.bf16.msra.mxu0 0
  %1694 = vmatprep.subr.bf16.mxu0 0
  %1695 = vmatpush1.bf16.msra.mxu0 %v1675
  %1696 = vmatprep.subr.bf16.mxu0 0
  %1697 = vmatpush2.bf16.msra.mxu0 0
  %1698 = vmatprep.subr.bf16.mxu0 0
  %1699 = vmatpush2.bf16.msra.mxu0 0
  %1700 = vmatprep.subr.bf16.mxu0 0
  %1701 = vmatpush2.bf16.msra.mxu0 0
  %1702 = vmatprep.subr.bf16.mxu0 0
  %1703 = vmatpush2.bf16.msra.mxu0 0
  %1704 = vmatprep.subr.bf16.mxu0 0
  %1705 = vmatpush2.bf16.msra.mxu0 0
  %1706 = vmatprep.subr.bf16.mxu0 0
  %1707 = vmatpush2.bf16.msra.mxu0 0
  %1708 = vmatprep.subr.bf16.mxu0 0
  %1709 = vmatpush2.bf16.msra.mxu0 0
  %1710 = vmatprep.subr.bf16.mxu0 0
  %1711 = vmatpush2.bf16.msra.mxu0 0
  %1712 = vmatprep.mubr.bf16.mxu0 0
  %1713 = vmatmul.mubr.bf16.gmra.mxu0 %v1678
  %v1714 = vpop.f32.mrf.mxu0
  %v1715 = vadd.f32 0.0, %v1714
  %v1716 = vpop.f32.mrf.mxu0
  %v1717 = vpop.f32.mrf.mxu0
  %v1718 = vadd.f32 0.0, %v1717
  %v1719 = vpop.f32.mrf.mxu0
  %1720 = vdwg.mxu0
  %1721 = vrot.lane.b32.xlu0 %v1287, 96
  %v1722 = vpop.permute.xlu0 %1721
  %v1725 = vsel %vm420, %v1579, 0
  %1727 = vmatprep.subr.bf16.mxu0 0
  %1728 = vmatpush1.bf16.msra.mxu0 0
  %1729 = vmatprep.subr.bf16.mxu0 0
  %1730 = vmatpush1.bf16.msra.mxu0 0
  %1731 = vmatprep.subr.bf16.mxu0 0
  %1732 = vmatpush1.bf16.msra.mxu0 0
  %1733 = vmatprep.subr.bf16.mxu0 0
  %1734 = vmatpush1.bf16.msra.mxu0 0
  %1735 = vmatprep.subr.bf16.mxu0 0
  %1736 = vmatpush1.bf16.msra.mxu0 0
  %1737 = vmatprep.subr.bf16.mxu0 0
  %1738 = vmatpush1.bf16.msra.mxu0 0
  %1739 = vmatprep.subr.bf16.mxu0 0
  %1740 = vmatpush1.bf16.msra.mxu0 0
  %1741 = vmatprep.subr.bf16.mxu0 0
  %1742 = vmatpush1.bf16.msra.mxu0 %v1722
  %1743 = vmatprep.subr.bf16.mxu0 0
  %1744 = vmatpush2.bf16.msra.mxu0 0
  %1745 = vmatprep.subr.bf16.mxu0 0
  %1746 = vmatpush2.bf16.msra.mxu0 0
  %1747 = vmatprep.subr.bf16.mxu0 0
  %1748 = vmatpush2.bf16.msra.mxu0 0
  %1749 = vmatprep.subr.bf16.mxu0 0
  %1750 = vmatpush2.bf16.msra.mxu0 0
  %1751 = vmatprep.subr.bf16.mxu0 0
  %1752 = vmatpush2.bf16.msra.mxu0 0
  %1753 = vmatprep.subr.bf16.mxu0 0
  %1754 = vmatpush2.bf16.msra.mxu0 0
  %1755 = vmatprep.subr.bf16.mxu0 0
  %1756 = vmatpush2.bf16.msra.mxu0 0
  %1757 = vmatprep.subr.bf16.mxu0 0
  %1758 = vmatpush2.bf16.msra.mxu0 0
  %1759 = vmatprep.mubr.bf16.mxu0 0
  %1760 = vmatmul.mubr.bf16.gmra.mxu0 %v1725
  %v1761 = vpop.f32.mrf.mxu0
  %v1762 = vadd.f32 0.0, %v1761
  %v1763 = vpop.f32.mrf.mxu0
  %v1764 = vpop.f32.mrf.mxu0
  %v1765 = vadd.f32 0.0, %v1764
  %v1766 = vpop.f32.mrf.mxu0
  %1767 = vdwg.mxu0
  %s1768 = scalar_lea.vmem %s3, 8
  %v1769 = vld [vmem:[%s1768] sm:$0xf]
  %v1770 = vld [vmem:[%s1768 + $0x4] sm:$0xf]
  %v1771 = vpack.c.bf16 %v1624, %v1621
  %v1772 = vpack.c.bf16 %v1671, %v1668
  %v1773 = vpack.c.bf16 %v1718, %v1715
  %v1774 = vpack.c.bf16 %v1765, %v1762
  %v1776 = vsel %vm222, %v1773, 0
  %v1779 = vsel %vm222, %v1774, 0
  %v1782 = vsel %vm713, %v1770, 0
  %1784 = vmatprep.subr.bf16.mxu0 0
  %1785 = vmatpush1.bf16.msra.mxu0 0
  %1786 = vmatprep.subr.bf16.mxu0 0
  %1787 = vmatpush1.bf16.msra.mxu0 0
  %1788 = vmatprep.subr.bf16.mxu0 0
  %1789 = vmatpush1.bf16.msra.mxu0 0
  %1790 = vmatprep.subr.bf16.mxu0 0
  %1791 = vmatpush1.bf16.msra.mxu0 0
  %1792 = vmatprep.subr.bf16.mxu0 0
  %1793 = vmatpush1.bf16.msra.mxu0 0
  %1794 = vmatprep.subr.bf16.mxu0 0
  %1795 = vmatpush1.bf16.msra.mxu0 0
  %1796 = vmatprep.subr.bf16.mxu0 0
  %1797 = vmatpush1.bf16.msra.mxu0 0
  %1798 = vmatprep.subr.bf16.mxu0 0
  %1799 = vmatpush1.bf16.msra.mxu0 %v1782
  %1800 = vmatprep.subr.bf16.mxu0 0
  %1801 = vmatpush2.bf16.msra.mxu0 0
  %1802 = vmatprep.subr.bf16.mxu0 0
  %1803 = vmatpush2.bf16.msra.mxu0 0
  %1804 = vmatprep.subr.bf16.mxu0 0
  %1805 = vmatpush2.bf16.msra.mxu0 0
  %1806 = vmatprep.subr.bf16.mxu0 0
  %1807 = vmatpush2.bf16.msra.mxu0 0
  %1808 = vmatprep.subr.bf16.mxu0 0
  %1809 = vmatpush2.bf16.msra.mxu0 0
  %1810 = vmatprep.subr.bf16.mxu0 0
  %1811 = vmatpush2.bf16.msra.mxu0 0
  %1812 = vmatprep.subr.bf16.mxu0 0
  %1813 = vmatpush2.bf16.msra.mxu0 0
  %1814 = vmatprep.subr.bf16.mxu0 0
  %1815 = vmatpush2.bf16.msra.mxu0 0
  %1816 = vmatprep.mubr.bf16.mxu0 0
  %1817 = vmatmul.mubr.bf16.gmra.mxu0 %v1776
  %v1818 = vpop.f32.mrf.mxu0
  %v1819 = vadd.f32 0.0, %v1818
  %v1820 = vpop.f32.mrf.mxu0
  %v1821 = vpop.f32.mrf.mxu0
  %v1822 = vadd.f32 0.0, %v1821
  %v1823 = vpop.f32.mrf.mxu0
  %1824 = vmatprep.mubr.bf16.mxu0 0
  %1825 = vmatmul.mubr.bf16.gmra.mxu0 %v1779
  %v1826 = vpop.f32.mrf.mxu0
  %v1827 = vadd.f32 0.0, %v1826
  %v1828 = vpop.f32.mrf.mxu0
  %v1829 = vpop.f32.mrf.mxu0
  %v1830 = vadd.f32 0.0, %v1829
  %v1831 = vpop.f32.mrf.mxu0
  %1832 = vdwg.mxu0
  %v1834 = vsel %vm222, %v1771, 0
  %v1837 = vsel %vm222, %v1772, 0
  %v1840 = vsel %vm713, %v1769, 0
  %1842 = vmatprep.subr.bf16.mxu0 0
  %1843 = vmatpush1.bf16.msra.mxu0 0
  %1844 = vmatprep.subr.bf16.mxu0 0
  %1845 = vmatpush1.bf16.msra.mxu0 0
  %1846 = vmatprep.subr.bf16.mxu0 0
  %1847 = vmatpush1.bf16.msra.mxu0 0
  %1848 = vmatprep.subr.bf16.mxu0 0
  %1849 = vmatpush1.bf16.msra.mxu0 0
  %1850 = vmatprep.subr.bf16.mxu0 0
  %1851 = vmatpush1.bf16.msra.mxu0 0
  %1852 = vmatprep.subr.bf16.mxu0 0
  %1853 = vmatpush1.bf16.msra.mxu0 0
  %1854 = vmatprep.subr.bf16.mxu0 0
  %1855 = vmatpush1.bf16.msra.mxu0 0
  %1856 = vmatprep.subr.bf16.mxu0 0
  %1857 = vmatpush1.bf16.msra.mxu0 %v1840
  %1858 = vmatprep.subr.bf16.mxu0 0
  %1859 = vmatpush2.bf16.msra.mxu0 0
  %1860 = vmatprep.subr.bf16.mxu0 0
  %1861 = vmatpush2.bf16.msra.mxu0 0
  %1862 = vmatprep.subr.bf16.mxu0 0
  %1863 = vmatpush2.bf16.msra.mxu0 0
  %1864 = vmatprep.subr.bf16.mxu0 0
  %1865 = vmatpush2.bf16.msra.mxu0 0
  %1866 = vmatprep.subr.bf16.mxu0 0
  %1867 = vmatpush2.bf16.msra.mxu0 0
  %1868 = vmatprep.subr.bf16.mxu0 0
  %1869 = vmatpush2.bf16.msra.mxu0 0
  %1870 = vmatprep.subr.bf16.mxu0 0
  %1871 = vmatpush2.bf16.msra.mxu0 0
  %1872 = vmatprep.subr.bf16.mxu0 0
  %1873 = vmatpush2.bf16.msra.mxu0 0
  %1874 = vmatprep.mubr.bf16.mxu0 0
  %1875 = vmatmul.mubr.bf16.gmra.mxu0 %v1834
  %v1876 = vpop.f32.mrf.mxu0
  %v1877 = vadd.f32 %v1819, %v1876
  %v1878 = vpop.f32.mrf.mxu0
  %v1879 = vpop.f32.mrf.mxu0
  %v1880 = vadd.f32 %v1822, %v1879
  %v1881 = vpop.f32.mrf.mxu0
  %1882 = vmatprep.mubr.bf16.mxu0 0
  %1883 = vmatmul.mubr.bf16.gmra.mxu0 %v1837
  %v1884 = vpop.f32.mrf.mxu0
  %v1885 = vadd.f32 %v1827, %v1884
  %v1886 = vpop.f32.mrf.mxu0
  %v1887 = vpop.f32.mrf.mxu0
  %v1888 = vadd.f32 %v1830, %v1887
  %v1889 = vpop.f32.mrf.mxu0
  %1890 = vdwg.mxu0
  %v1891 = vadd.f32 %v1108, %v1877
  %v1892 = vadd.f32 %v1109, %v1880
  %v1893 = vadd.f32 %v1110, %v1885
  %v1894 = vadd.f32 %v1111, %v1888
  %v1895 = vsel %vm44, %v1891, 0.0
  %1896 = vadd.xlane.f32.xlu0 %v1895
  %v1897 = vpop.xlane.xlu0 %1896
  %v1898 = vsel %vm44, %v1892, 0.0
  %1899 = vadd.xlane.f32.xlu0 %v1898
  %v1900 = vpop.xlane.xlu0 %1899
  %v1901 = vsel %vm44, %v1893, 0.0
  %1902 = vadd.xlane.f32.xlu0 %v1901
  %v1903 = vpop.xlane.xlu0 %1902
  %v1904 = vsel %vm44, %v1894, 0.0
  %1905 = vadd.xlane.f32.xlu0 %v1904
  %v1906 = vpop.xlane.xlu0 %1905
  %v1907 = vmul.f32 %v1897, %v57
  %v1908 = vmul.f32 %v1900, %v57
  %v1909 = vmul.f32 %v1903, %v57
  %v1910 = vmul.f32 %v1906, %v57
  %v1911 = vsub.f32 %v1891, %v1907
  %v1912 = vsub.f32 %v1892, %v1908
  %v1913 = vsub.f32 %v1893, %v1909
  %v1914 = vsub.f32 %v1894, %v1910
  %v1915 = vmul.f32 %v1911, %v1911
  %v1916 = vmul.f32 %v1912, %v1912
  %v1917 = vmul.f32 %v1913, %v1913
  %v1918 = vmul.f32 %v1914, %v1914
  %v1919 = vsel %vm44, %v1915, 0.0
  %1920 = vadd.xlane.f32.xlu0 %v1919
  %v1921 = vpop.xlane.xlu0 %1920
  %v1922 = vsel %vm44, %v1916, 0.0
  %1923 = vadd.xlane.f32.xlu0 %v1922
  %v1924 = vpop.xlane.xlu0 %1923
  %v1925 = vsel %vm44, %v1917, 0.0
  %1926 = vadd.xlane.f32.xlu0 %v1925
  %v1927 = vpop.xlane.xlu0 %1926
  %v1928 = vsel %vm44, %v1918, 0.0
  %1929 = vadd.xlane.f32.xlu0 %v1928
  %v1930 = vpop.xlane.xlu0 %1929
  %v1931 = vmul.f32 %v1921, %v57
  %v1932 = vmul.f32 %v1924, %v57
  %v1933 = vmul.f32 %v1927, %v57
  %v1934 = vmul.f32 %v1930, %v57
  %v1935 = vadd.f32 %v1931, 1e-05
  %v1936 = vadd.f32 %v1932, 1e-05
  %v1937 = vadd.f32 %v1933, 1e-05
  %v1938 = vadd.f32 %v1934, 1e-05
  %v1939 = vrsqrt.pop %v1935
  %v1940 = vrsqrt.pop %v1936
  %v1941 = vrsqrt.pop %v1937
  %v1942 = vrsqrt.pop %v1938
  %v1943 = vmul.f32 %v1911, %v1939
  %v1944 = vmul.f32 %v1912, %v1940
  %v1945 = vmul.f32 %v1913, %v1941
  %v1946 = vmul.f32 %v1914, %v1942
  %v1947 = vlaneseq
  %v1948 = vshrl.u32 %v1947, 7
  %v1949 = vsub.s32 2, %v1948
  %v1950 = vrot.slane %v1113, %v1949
  %v1951 = vmul.f32 %v1943, %v1950
  %v1952 = vmul.f32 %v1944, %v1950
  %v1953 = vmul.f32 %v1945, %v1950
  %v1954 = vmul.f32 %v1946, %v1950
  %v1955 = vlaneseq
  %v1956 = vshrl.u32 %v1955, 7
  %v1957 = vsub.s32 3, %v1956
  %v1958 = vrot.slane %v1113, %v1957
  %v1959 = vadd.f32 %v1951, %v1958
  %v1960 = vadd.f32 %v1952, %v1958
  %v1961 = vadd.f32 %v1953, %v1958
  %v1962 = vadd.f32 %v1954, %v1958
  %s1963 = scalar_lea.vmem %s6, 2
  %v1964 = vld [vmem:[%s1963] sm:$0x3]
  %s1965 = scalar_lea.vmem %s4, 16
  %v1966 = vld [vmem:[%s1965] sm:$0xf]
  %v1967 = vld [vmem:[%s1965 + $0x4] sm:$0xf]
  %v1968 = vld [vmem:[%s1965 + $0x8] sm:$0xf]
  %v1969 = vld [vmem:[%s1965 + $0xc] sm:$0xf]
  %v1970 = vpack.c.bf16 %v1960, %v1959
  %v1971 = vpack.c.bf16 %v1962, %v1961
  %v1972 = vlaneseq
  %v1973 = vshrl.u32 %v1972, 7
  %v1974 = vsub.s32 0, %v1973
  %v1975 = vrot.slane %v1964, %v1974
  %v1980 = vunpack.c.l.b16 %v1966
  %v1981 = vunpack.c.l.b16 %v1967
  %v1982 = vunpack.c.l.b16 %v1968
  %v1983 = vunpack.c.l.b16 %v1969
  %v1984 = vpack.c.b16 %v1981, %v1980
  %v1985 = vpack.c.b16 %v1983, %v1982
  %v1989 = vsel %vm44, %v1970, 0
  %v1992 = vsel %vm44, %v1971, 0
  %1994 = vmatprep.subr.bf16.mxu0 0
  %1995 = vmatpush1.bf16.msra.mxu0 0
  %1996 = vmatprep.subr.bf16.mxu0 0
  %1997 = vmatpush1.bf16.msra.mxu0 0
  %1998 = vmatprep.subr.bf16.mxu0 0
  %1999 = vmatpush1.bf16.msra.mxu0 0
  %2000 = vmatprep.subr.bf16.mxu0 0
  %2001 = vmatpush1.bf16.msra.mxu0 0
  %2002 = vmatprep.subr.bf16.mxu0 0
  %2003 = vmatpush1.bf16.msra.mxu0 0
  %2004 = vmatprep.subr.bf16.mxu0 0
  %2005 = vmatpush1.bf16.msra.mxu0 0
  %2006 = vmatprep.subr.bf16.mxu0 0
  %2007 = vmatpush1.bf16.msra.mxu0 %v1985
  %2008 = vmatprep.subr.bf16.mxu0 0
  %2009 = vmatpush1.bf16.msra.mxu0 %v1984
  %2010 = vmatprep.subr.bf16.mxu0 0
  %2011 = vmatpush2.bf16.msra.mxu0 0
  %2012 = vmatprep.subr.bf16.mxu0 0
  %2013 = vmatpush2.bf16.msra.mxu0 0
  %2014 = vmatprep.subr.bf16.mxu0 0
  %2015 = vmatpush2.bf16.msra.mxu0 0
  %2016 = vmatprep.subr.bf16.mxu0 0
  %2017 = vmatpush2.bf16.msra.mxu0 0
  %2018 = vmatprep.subr.bf16.mxu0 0
  %2019 = vmatpush2.bf16.msra.mxu0 0
  %2020 = vmatprep.subr.bf16.mxu0 0
  %2021 = vmatpush2.bf16.msra.mxu0 0
  %2022 = vmatprep.subr.bf16.mxu0 0
  %2023 = vmatpush2.bf16.msra.mxu0 0
  %2024 = vmatprep.subr.bf16.mxu0 0
  %2025 = vmatpush2.bf16.msra.mxu0 0
  %2026 = vmatprep.mubr.bf16.mxu0 0
  %2027 = vmatmul.mubr.bf16.gmra.mxu0 %v1989
  %v2028 = vpop.f32.mrf.mxu0
  %v2029 = vadd.f32 %v1975, %v2028
  %v2030 = vpop.f32.mrf.mxu0
  %v2031 = vpop.f32.mrf.mxu0
  %v2032 = vadd.f32 %v1975, %v2031
  %v2033 = vpop.f32.mrf.mxu0
  %2034 = vmatprep.mubr.bf16.mxu0 0
  %2035 = vmatmul.mubr.bf16.gmra.mxu0 %v1992
  %v2036 = vpop.f32.mrf.mxu0
  %v2037 = vadd.f32 %v1975, %v2036
  %v2038 = vpop.f32.mrf.mxu0
  %v2039 = vpop.f32.mrf.mxu0
  %v2040 = vadd.f32 %v1975, %v2039
  %v2041 = vpop.f32.mrf.mxu0
  %2042 = vdwg.mxu0
  %v2043 = vmul.f32 %v2029, 0.5
  %v2044 = vmul.f32 %v2032, 0.5
  %v2045 = vmul.f32 %v2037, 0.5
  %v2046 = vmul.f32 %v2040, 0.5
  %v2047 = vmul.f32 %v2029, 0.044715
  %v2048 = vmul.f32 %v2032, 0.044715
  %v2049 = vmul.f32 %v2037, 0.044715
  %v2050 = vmul.f32 %v2040, 0.044715
  %v2051 = vmul.f32 %v2047, %v2029
  %v2052 = vmul.f32 %v2048, %v2032
  %v2053 = vmul.f32 %v2049, %v2037
  %v2054 = vmul.f32 %v2050, %v2040
  %v2055 = vmul.f32 %v2051, %v2029
  %v2056 = vmul.f32 %v2052, %v2032
  %v2057 = vmul.f32 %v2053, %v2037
  %v2058 = vmul.f32 %v2054, %v2040
  %v2059 = vadd.f32 %v2029, %v2055
  %v2060 = vadd.f32 %v2032, %v2056
  %v2061 = vadd.f32 %v2037, %v2057
  %v2062 = vadd.f32 %v2040, %v2058
  %v2063 = vmul.f32 %v2059, 0.7978846
  %v2064 = vmul.f32 %v2060, 0.7978846
  %v2065 = vmul.f32 %v2061, 0.7978846
  %v2066 = vmul.f32 %v2062, 0.7978846
  %v2067 = vtanh.pop %v2063
  %v2068 = vtanh.pop %v2064
  %v2069 = vtanh.pop %v2065
  %v2070 = vtanh.pop %v2066
  %v2071 = vadd.f32 %v2067, 1.0
  %v2072 = vadd.f32 %v2068, 1.0
  %v2073 = vadd.f32 %v2069, 1.0
  %v2074 = vadd.f32 %v2070, 1.0
  %v2075 = vmul.f32 %v2043, %v2071
  %v2076 = vmul.f32 %v2044, %v2072
  %v2077 = vmul.f32 %v2045, %v2073
  %v2078 = vmul.f32 %v2046, %v2074
  %s2079 = scalar_lea.vmem %s5, 32
  %v2080 = vld [vmem:[%s2079] sm:$0xf]
  %v2081 = vld [vmem:[%s2079 + $0x4] sm:$0xf]
  %v2082 = vld [vmem:[%s2079 + $0x8] sm:$0xf]
  %v2083 = vld [vmem:[%s2079 + $0xc] sm:$0xf]
  %v2084 = vld [vmem:[%s2079 + $0x10] sm:$0xf]
  %v2085 = vld [vmem:[%s2079 + $0x14] sm:$0xf]
  %v2086 = vld [vmem:[%s2079 + $0x18] sm:$0xf]
  %v2087 = vld [vmem:[%s2079 + $0x1c] sm:$0xf]
  %v2088 = vpack.c.bf16 %v2076, %v2075
  %v2089 = vpack.c.bf16 %v2078, %v2077
  %v2098 = vunpack.c.l.b16 %v2080
  %v2099 = vunpack.c.l.b16 %v2081
  %v2100 = vunpack.c.l.b16 %v2082
  %v2101 = vunpack.c.l.b16 %v2083
  %v2102 = vunpack.c.l.b16 %v2084
  %v2103 = vunpack.c.l.b16 %v2085
  %v2104 = vunpack.c.l.b16 %v2086
  %v2105 = vunpack.c.l.b16 %v2087
  %v2106 = vpack.c.b16 %v2099, %v2098
  %v2107 = vpack.c.b16 %v2101, %v2100
  %v2108 = vpack.c.b16 %v2103, %v2102
  %v2109 = vpack.c.b16 %v2105, %v2104
  %v2115 = vsel %vm1044, %v2088, 0
  %v2118 = vsel %vm1044, %v2089, 0
  %2120 = vmatprep.subr.bf16.mxu0 0
  %2121 = vmatpush1.bf16.msra.mxu0 0
  %2122 = vmatprep.subr.bf16.mxu0 0
  %2123 = vmatpush1.bf16.msra.mxu0 0
  %2124 = vmatprep.subr.bf16.mxu0 0
  %2125 = vmatpush1.bf16.msra.mxu0 0
  %2126 = vmatprep.subr.bf16.mxu0 0
  %2127 = vmatpush1.bf16.msra.mxu0 0
  %2128 = vmatprep.subr.bf16.mxu0 0
  %2129 = vmatpush1.bf16.msra.mxu0 %v2109
  %2130 = vmatprep.subr.bf16.mxu0 0
  %2131 = vmatpush1.bf16.msra.mxu0 %v2108
  %2132 = vmatprep.subr.bf16.mxu0 0
  %2133 = vmatpush1.bf16.msra.mxu0 %v2107
  %2134 = vmatprep.subr.bf16.mxu0 0
  %2135 = vmatpush1.bf16.msra.mxu0 %v2106
  %2136 = vmatprep.subr.bf16.mxu0 0
  %2137 = vmatpush2.bf16.msra.mxu0 0
  %2138 = vmatprep.subr.bf16.mxu0 0
  %2139 = vmatpush2.bf16.msra.mxu0 0
  %2140 = vmatprep.subr.bf16.mxu0 0
  %2141 = vmatpush2.bf16.msra.mxu0 0
  %2142 = vmatprep.subr.bf16.mxu0 0
  %2143 = vmatpush2.bf16.msra.mxu0 0
  %2144 = vmatprep.subr.bf16.mxu0 0
  %2145 = vmatpush2.bf16.msra.mxu0 0
  %2146 = vmatprep.subr.bf16.mxu0 0
  %2147 = vmatpush2.bf16.msra.mxu0 0
  %2148 = vmatprep.subr.bf16.mxu0 0
  %2149 = vmatpush2.bf16.msra.mxu0 0
  %2150 = vmatprep.subr.bf16.mxu0 0
  %2151 = vmatpush2.bf16.msra.mxu0 0
  %2152 = vmatprep.mubr.bf16.mxu0 0
  %2153 = vmatmul.mubr.bf16.gmra.mxu0 %v2115
  %v2154 = vpop.f32.mrf.mxu0
  %v2155 = vadd.f32 0.0, %v2154
  %v2156 = vpop.f32.mrf.mxu0
  %v2157 = vpop.f32.mrf.mxu0
  %v2158 = vadd.f32 0.0, %v2157
  %v2159 = vpop.f32.mrf.mxu0
  %2160 = vmatprep.mubr.bf16.mxu0 0
  %2161 = vmatmul.mubr.bf16.gmra.mxu0 %v2118
  %v2162 = vpop.f32.mrf.mxu0
  %v2163 = vadd.f32 0.0, %v2162
  %v2164 = vpop.f32.mrf.mxu0
  %v2165 = vpop.f32.mrf.mxu0
  %v2166 = vadd.f32 0.0, %v2165
  %v2167 = vpop.f32.mrf.mxu0
  %2168 = vdwg.mxu0
  %v2169 = vadd.f32 %v1891, %v2155
  %v2170 = vadd.f32 %v1892, %v2158
  %v2171 = vadd.f32 %v1893, %v2163
  %v2172 = vadd.f32 %v1894, %v2166
  %v2173 = vlaneseq
  %v2174 = vshrl.u32 %v2173, 7
  %v2175 = vsub.s32 1, %v2174
  %v2176 = vrot.slane %v1964, %v2175
  %v2177 = vadd.f32 %v2169, %v2176
  %v2178 = vadd.f32 %v2170, %v2176
  %v2179 = vadd.f32 %v2171, %v2176
  %v2180 = vadd.f32 %v2172, %v2176
  %v2181 = vld [vmem:[%s7] sm:$0x3]
  %v2182 = vsel %vm44, %v2177, 0.0
  %2183 = vadd.xlane.f32.xlu0 %v2182
  %v2184 = vpop.xlane.xlu0 %2183
  %v2185 = vsel %vm44, %v2178, 0.0
  %2186 = vadd.xlane.f32.xlu0 %v2185
  %v2187 = vpop.xlane.xlu0 %2186
  %v2188 = vsel %vm44, %v2179, 0.0
  %2189 = vadd.xlane.f32.xlu0 %v2188
  %v2190 = vpop.xlane.xlu0 %2189
  %v2191 = vsel %vm44, %v2180, 0.0
  %2192 = vadd.xlane.f32.xlu0 %v2191
  %v2193 = vpop.xlane.xlu0 %2192
  %v2194 = vmul.f32 %v2184, %v57
  %v2195 = vmul.f32 %v2187, %v57
  %v2196 = vmul.f32 %v2190, %v57
  %v2197 = vmul.f32 %v2193, %v57
  %v2198 = vsub.f32 %v2177, %v2194
  %v2199 = vsub.f32 %v2178, %v2195
  %v2200 = vsub.f32 %v2179, %v2196
  %v2201 = vsub.f32 %v2180, %v2197
  %v2202 = vmul.f32 %v2198, %v2198
  %v2203 = vmul.f32 %v2199, %v2199
  %v2204 = vmul.f32 %v2200, %v2200
  %v2205 = vmul.f32 %v2201, %v2201
  %v2206 = vsel %vm44, %v2202, 0.0
  %2207 = vadd.xlane.f32.xlu0 %v2206
  %v2208 = vpop.xlane.xlu0 %2207
  %v2209 = vsel %vm44, %v2203, 0.0
  %2210 = vadd.xlane.f32.xlu0 %v2209
  %v2211 = vpop.xlane.xlu0 %2210
  %v2212 = vsel %vm44, %v2204, 0.0
  %2213 = vadd.xlane.f32.xlu0 %v2212
  %v2214 = vpop.xlane.xlu0 %2213
  %v2215 = vsel %vm44, %v2205, 0.0
  %2216 = vadd.xlane.f32.xlu0 %v2215
  %v2217 = vpop.xlane.xlu0 %2216
  %v2218 = vmul.f32 %v2208, %v57
  %v2219 = vmul.f32 %v2211, %v57
  %v2220 = vmul.f32 %v2214, %v57
  %v2221 = vmul.f32 %v2217, %v57
  %v2222 = vadd.f32 %v2218, 1e-05
  %v2223 = vadd.f32 %v2219, 1e-05
  %v2224 = vadd.f32 %v2220, 1e-05
  %v2225 = vadd.f32 %v2221, 1e-05
  %v2226 = vrsqrt.pop %v2222
  %v2227 = vrsqrt.pop %v2223
  %v2228 = vrsqrt.pop %v2224
  %v2229 = vrsqrt.pop %v2225
  %v2230 = vmul.f32 %v2198, %v2226
  %v2231 = vmul.f32 %v2199, %v2227
  %v2232 = vmul.f32 %v2200, %v2228
  %v2233 = vmul.f32 %v2201, %v2229
  %v2234 = vlaneseq
  %v2235 = vshrl.u32 %v2234, 7
  %v2236 = vsub.s32 0, %v2235
  %v2237 = vrot.slane %v2181, %v2236
  %v2238 = vmul.f32 %v2230, %v2237
  %v2239 = vmul.f32 %v2231, %v2237
  %v2240 = vmul.f32 %v2232, %v2237
  %v2241 = vmul.f32 %v2233, %v2237
  %v2242 = vlaneseq
  %v2243 = vshrl.u32 %v2242, 7
  %v2244 = vsub.s32 1, %v2243
  %v2245 = vrot.slane %v2181, %v2244
  %v2246 = vadd.f32 %v2238, %v2245
  %v2247 = vadd.f32 %v2239, %v2245
  %v2248 = vadd.f32 %v2240, %v2245
  %v2249 = vadd.f32 %v2241, %v2245
  %v2250 = vld [vmem:[%s8] sm:$0x3]
  %v2251 = vsel %vm44, %v2246, 0.0
  %2252 = vadd.xlane.f32.xlu0 %v2251
  %v2253 = vpop.xlane.xlu0 %2252
  %v2254 = vsel %vm44, %v2247, 0.0
  %2255 = vadd.xlane.f32.xlu0 %v2254
  %v2256 = vpop.xlane.xlu0 %2255
  %v2257 = vsel %vm44, %v2248, 0.0
  %2258 = vadd.xlane.f32.xlu0 %v2257
  %v2259 = vpop.xlane.xlu0 %2258
  %v2260 = vsel %vm44, %v2249, 0.0
  %2261 = vadd.xlane.f32.xlu0 %v2260
  %v2262 = vpop.xlane.xlu0 %2261
  %v2263 = vmul.f32 %v2253, %v57
  %v2264 = vmul.f32 %v2256, %v57
  %v2265 = vmul.f32 %v2259, %v57
  %v2266 = vmul.f32 %v2262, %v57
  %v2267 = vsub.f32 %v2246, %v2263
  %v2268 = vsub.f32 %v2247, %v2264
  %v2269 = vsub.f32 %v2248, %v2265
  %v2270 = vsub.f32 %v2249, %v2266
  %v2271 = vmul.f32 %v2267, %v2267
  %v2272 = vmul.f32 %v2268, %v2268
  %v2273 = vmul.f32 %v2269, %v2269
  %v2274 = vmul.f32 %v2270, %v2270
  %v2275 = vsel %vm44, %v2271, 0.0
  %2276 = vadd.xlane.f32.xlu0 %v2275
  %v2277 = vpop.xlane.xlu0 %2276
  %v2278 = vsel %vm44, %v2272, 0.0
  %2279 = vadd.xlane.f32.xlu0 %v2278
  %v2280 = vpop.xlane.xlu0 %2279
  %v2281 = vsel %vm44, %v2273, 0.0
  %2282 = vadd.xlane.f32.xlu0 %v2281
  %v2283 = vpop.xlane.xlu0 %2282
  %v2284 = vsel %vm44, %v2274, 0.0
  %2285 = vadd.xlane.f32.xlu0 %v2284
  %v2286 = vpop.xlane.xlu0 %2285
  %v2287 = vmul.f32 %v2277, %v57
  %v2288 = vmul.f32 %v2280, %v57
  %v2289 = vmul.f32 %v2283, %v57
  %v2290 = vmul.f32 %v2286, %v57
  %v2291 = vadd.f32 %v2287, 1e-05
  %v2292 = vadd.f32 %v2288, 1e-05
  %v2293 = vadd.f32 %v2289, 1e-05
  %v2294 = vadd.f32 %v2290, 1e-05
  %v2295 = vrsqrt.pop %v2291
  %v2296 = vrsqrt.pop %v2292
  %v2297 = vrsqrt.pop %v2293
  %v2298 = vrsqrt.pop %v2294
  %v2299 = vmul.f32 %v2267, %v2295
  %v2300 = vmul.f32 %v2268, %v2296
  %v2301 = vmul.f32 %v2269, %v2297
  %v2302 = vmul.f32 %v2270, %v2298
  %v2303 = vlaneseq
  %v2304 = vshrl.u32 %v2303, 7
  %v2305 = vsub.s32 0, %v2304
  %v2306 = vrot.slane %v2250, %v2305
  %v2307 = vmul.f32 %v2299, %v2306
  %v2308 = vmul.f32 %v2300, %v2306
  %v2309 = vmul.f32 %v2301, %v2306
  %v2310 = vmul.f32 %v2302, %v2306
  %v2311 = vlaneseq
  %v2312 = vshrl.u32 %v2311, 7
  %v2313 = vsub.s32 1, %v2312
  %v2314 = vrot.slane %v2250, %v2313
  %v2315 = vadd.f32 %v2307, %v2314
  %v2316 = vadd.f32 %v2308, %v2314
  %v2317 = vadd.f32 %v2309, %v2314
  %v2318 = vadd.f32 %v2310, %v2314
  %v2319 = vld [vmem:[%s10] sm:$0x7]
  %v2320 = vld [vmem:[%s9] sm:$0xf]
  %v2321 = vld [vmem:[%s9 + $0x4] sm:$0xf]
  %v2322 = vld [vmem:[%s9 + $0x8] sm:$0xf]
  %v2323 = vld [vmem:[%s9 + $0xc] sm:$0xf]
  %v2324 = vpack.c.bf16 %v2316, %v2315
  %v2325 = vpack.c.bf16 %v2318, %v2317
  %v2326 = vlaneseq
  %v2327 = vshrl.u32 %v2326, 7
  %v2328 = vsub.s32 0, %v2327
  %v2329 = vrot.slane %v2319, %v2328
  %v2334 = vunpack.c.l.b16 %v2320
  %v2335 = vunpack.c.l.b16 %v2321
  %v2336 = vunpack.c.l.b16 %v2322
  %v2337 = vunpack.c.l.b16 %v2323
  %v2338 = vpack.c.b16 %v2335, %v2334
  %v2339 = vpack.c.b16 %v2337, %v2336
  %v2343 = vsel %vm44, %v2324, 0
  %v2346 = vsel %vm44, %v2325, 0
  %2348 = vmatprep.subr.bf16.mxu0 0
  %2349 = vmatpush1.bf16.msra.mxu0 0
  %2350 = vmatprep.subr.bf16.mxu0 0
  %2351 = vmatpush1.bf16.msra.mxu0 0
  %2352 = vmatprep.subr.bf16.mxu0 0
  %2353 = vmatpush1.bf16.msra.mxu0 0
  %2354 = vmatprep.subr.bf16.mxu0 0
  %2355 = vmatpush1.bf16.msra.mxu0 0
  %2356 = vmatprep.subr.bf16.mxu0 0
  %2357 = vmatpush1.bf16.msra.mxu0 0
  %2358 = vmatprep.subr.bf16.mxu0 0
  %2359 = vmatpush1.bf16.msra.mxu0 0
  %2360 = vmatprep.subr.bf16.mxu0 0
  %2361 = vmatpush1.bf16.msra.mxu0 %v2339
  %2362 = vmatprep.subr.bf16.mxu0 0
  %2363 = vmatpush1.bf16.msra.mxu0 %v2338
  %2364 = vmatprep.subr.bf16.mxu0 0
  %2365 = vmatpush2.bf16.msra.mxu0 0
  %2366 = vmatprep.subr.bf16.mxu0 0
  %2367 = vmatpush2.bf16.msra.mxu0 0
  %2368 = vmatprep.subr.bf16.mxu0 0
  %2369 = vmatpush2.bf16.msra.mxu0 0
  %2370 = vmatprep.subr.bf16.mxu0 0
  %2371 = vmatpush2.bf16.msra.mxu0 0
  %2372 = vmatprep.subr.bf16.mxu0 0
  %2373 = vmatpush2.bf16.msra.mxu0 0
  %2374 = vmatprep.subr.bf16.mxu0 0
  %2375 = vmatpush2.bf16.msra.mxu0 0
  %2376 = vmatprep.subr.bf16.mxu0 0
  %2377 = vmatpush2.bf16.msra.mxu0 0
  %2378 = vmatprep.subr.bf16.mxu0 0
  %2379 = vmatpush2.bf16.msra.mxu0 0
  %2380 = vmatprep.mubr.bf16.mxu0 0
  %2381 = vmatmul.mubr.bf16.gmra.mxu0 %v2343
  %v2382 = vpop.f32.mrf.mxu0
  %v2383 = vadd.f32 %v2329, %v2382
  %v2384 = vpop.f32.mrf.mxu0
  %v2385 = vpop.f32.mrf.mxu0
  %v2386 = vadd.f32 %v2329, %v2385
  %v2387 = vpop.f32.mrf.mxu0
  %2388 = vmatprep.mubr.bf16.mxu0 0
  %2389 = vmatmul.mubr.bf16.gmra.mxu0 %v2346
  %v2390 = vpop.f32.mrf.mxu0
  %v2391 = vadd.f32 %v2329, %v2390
  %v2392 = vpop.f32.mrf.mxu0
  %v2393 = vpop.f32.mrf.mxu0
  %v2394 = vadd.f32 %v2329, %v2393
  %v2395 = vpop.f32.mrf.mxu0
  %2396 = vdwg.mxu0
  %vm2397 = vcmask 392192
  %v2398 = vsel %vm2397, %v2383, 0.0
  %2399 = vadd.xlane.f32.xlu0 %v2398
  %v2400 = vpop.xlane.xlu0 %2399
  %v2401 = vsel %vm2397, %v2386, 0.0
  %2402 = vadd.xlane.f32.xlu0 %v2401
  %v2403 = vpop.xlane.xlu0 %2402
  %v2404 = vsel %vm2397, %v2391, 0.0
  %2405 = vadd.xlane.f32.xlu0 %v2404
  %v2406 = vpop.xlane.xlu0 %2405
  %v2407 = vsel %vm2397, %v2394, 0.0
  %2408 = vadd.xlane.f32.xlu0 %v2407
  %v2409 = vpop.xlane.xlu0 %2408
  %v2410 = vrcp.pop 48.0
  %v2411 = vmul.f32 %v2400, %v2410
  %v2412 = vmul.f32 %v2403, %v2410
  %v2413 = vmul.f32 %v2406, %v2410
  %v2414 = vmul.f32 %v2409, %v2410
  %v2415 = vsub.f32 %v2383, %v2411
  %v2416 = vsub.f32 %v2386, %v2412
  %v2417 = vsub.f32 %v2391, %v2413
  %v2418 = vsub.f32 %v2394, %v2414
  %v2419 = vmul.f32 %v2415, %v2415
  %v2420 = vmul.f32 %v2416, %v2416
  %v2421 = vmul.f32 %v2417, %v2417
  %v2422 = vmul.f32 %v2418, %v2418
  %v2423 = vsel %vm2397, %v2419, 0.0
  %2424 = vadd.xlane.f32.xlu0 %v2423
  %v2425 = vpop.xlane.xlu0 %2424
  %v2426 = vsel %vm2397, %v2420, 0.0
  %2427 = vadd.xlane.f32.xlu0 %v2426
  %v2428 = vpop.xlane.xlu0 %2427
  %v2429 = vsel %vm2397, %v2421, 0.0
  %2430 = vadd.xlane.f32.xlu0 %v2429
  %v2431 = vpop.xlane.xlu0 %2430
  %v2432 = vsel %vm2397, %v2422, 0.0
  %2433 = vadd.xlane.f32.xlu0 %v2432
  %v2434 = vpop.xlane.xlu0 %2433
  %v2435 = vmul.f32 %v2425, %v2410
  %v2436 = vmul.f32 %v2428, %v2410
  %v2437 = vmul.f32 %v2431, %v2410
  %v2438 = vmul.f32 %v2434, %v2410
  %v2439 = vadd.f32 %v2435, 1e-05
  %v2440 = vadd.f32 %v2436, 1e-05
  %v2441 = vadd.f32 %v2437, 1e-05
  %v2442 = vadd.f32 %v2438, 1e-05
  %v2443 = vrsqrt.pop %v2439
  %v2444 = vrsqrt.pop %v2440
  %v2445 = vrsqrt.pop %v2441
  %v2446 = vrsqrt.pop %v2442
  %v2447 = vmul.f32 %v2415, %v2443
  %v2448 = vmul.f32 %v2416, %v2444
  %v2449 = vmul.f32 %v2417, %v2445
  %v2450 = vmul.f32 %v2418, %v2446
  %v2451 = vlaneseq
  %v2452 = vshrl.u32 %v2451, 7
  %v2453 = vsub.s32 1, %v2452
  %v2454 = vrot.slane %v2319, %v2453
  %v2455 = vmul.f32 %v2447, %v2454
  %v2456 = vmul.f32 %v2448, %v2454
  %v2457 = vmul.f32 %v2449, %v2454
  %v2458 = vmul.f32 %v2450, %v2454
  %v2459 = vlaneseq
  %v2460 = vshrl.u32 %v2459, 7
  %v2461 = vsub.s32 2, %v2460
  %v2462 = vrot.slane %v2319, %v2461
  %v2463 = vadd.f32 %v2455, %v2462
  %v2464 = vadd.f32 %v2456, %v2462
  %v2465 = vadd.f32 %v2457, %v2462
  %v2466 = vadd.f32 %v2458, %v2462
  %2467 = vst.msk [vmem:[%s11] sm:$0xff] %vm2397, %v2463
  %2468 = vst.msk [vmem:[%s11 + $0x8] sm:$0xff] %vm2397, %v2464
  %2469 = vst.msk [vmem:[%s11 + $0x10] sm:$0xff] %vm2397, %v2465
  %2470 = vst.msk [vmem:[%s11 + $0x18] sm:$0xff] %vm2397, %v2466
  // Predicated region
  $region46: #{tipae_forward.6} parent=0 // pred_check
    _
  $region47: #{tipae_forward.6} parent=0 // pred_check_branch
    %2472 = sbr.rel (0) target = $region49
  $region48: #{tipae_forward.6} parent=0 // pred_region
    _
  $region49: #{tipae_forward.6} parent=0 // pred_fallthru
    _
  // Predicated region
  $region50: #{tipae_forward.6} parent=0 // pred_check
    _
  $region51: #{tipae_forward.6} parent=0 // pred_check_branch
    %2474 = sbr.rel (0) target = $region53
  $region52: #{tipae_forward.6} parent=0 // pred_region
    _
  $region53: #{tipae_forward.6} parent=0 // pred_fallthru
    _

// kernel: tipae_forward.9
$region0: #{tipae_forward.9}
  #allocation0 [shape = 'u32[]', space=smem, size = 0x4, offset = 0x4, fixed_abs, tag = 'smem constant byte address 0x4 - core index']
  #allocation1 [shape = 'u32[144,128]{1,0:T(1,128)}', space=vmem, size = 0x12000, scoped, tag = 'internal scratch']
  %s0 = inlined_call_operand.vmem [shape: f32[2,8,16], index: 0, kind: input, shape index: {}]
  %s1 = inlined_call_operand.vmem [shape: f32[2,4,16], index: 1, kind: input, shape index: {}]
  %s2 = inlined_call_operand.vmem [shape: bf16[2,16,48], index: 2, kind: input, shape index: {}]
  %s3 = inlined_call_operand.vmem [shape: bf16[2,16,16], index: 3, kind: input, shape index: {}]
  %s4 = inlined_call_operand.vmem [shape: bf16[2,16,64], index: 4, kind: input, shape index: {}]
  %s5 = inlined_call_operand.vmem [shape: bf16[2,64,16], index: 5, kind: input, shape index: {}]
  %s6 = inlined_call_operand.vmem [shape: f32[2,2,64], index: 6, kind: input, shape index: {}]
  %s7 = inlined_call_operand.vmem [shape: f32[2,16], index: 7, kind: input, shape index: {}]
  %s8 = inlined_call_operand.vmem [shape: bf16[32,16], index: 8, kind: input, shape index: {}]
  %s9 = inlined_call_operand.vmem [shape: f32[1,32], index: 9, kind: input, shape index: {}]
  %s10 = inlined_call_operand.hbm [shape: f32[2,8,32], index: 10, kind: output, shape index: {}]
  %s11 = sld [smem:[#allocation0]]
  $region50: #{tipae_forward.9} parent=0
    _
  %s13 = ssub.s32 1, %s11
  %s14 = scalar_select 0, %s13, %s11
  $region1: #{tipae_forward.9} parent=0
    #allocation2 [shape = 'u8[8192]{0}', space=vmem, size = 0x2000, scoped, tag = 'output window, operand 0, single buffered']
    #allocation3 [shape = 's32[1]{0}', space=sflag, size = 0x4, scoped, tag = 'scoped memory for tipae_forward.9']
    %15 = vsyncpa [#allocation3], 0
    // Predicated region
    $region2: #{tipae_forward.9} parent=1 // pred_check
      _
    $region3: #{tipae_forward.9} parent=1 // pred_check_branch
      %17 = sbr.rel (0) target = $region5
    $region4: #{tipae_forward.9} parent=1 // pred_region
      _
    $region5: #{tipae_forward.9} parent=1 // pred_fallthru
      _
    // Predicated region
    $region6: #{tipae_forward.9} parent=1 // pred_check
      _
    $region7: #{tipae_forward.9} parent=1 // pred_check_branch
      %19 = sbr.rel (0) target = $region9
    $region8: #{tipae_forward.9} parent=1 // pred_region
      _
    $region9: #{tipae_forward.9} parent=1 // pred_fallthru
      _
    // Predicated region
    $region10: #{tipae_forward.9} parent=1 // pred_check
      _
    $region11: #{tipae_forward.9} parent=1 // pred_check_branch
      %21 = sbr.rel (0) target = $region13
    $region12: #{tipae_forward.9} parent=1 // pred_region
      _
    $region13: #{tipae_forward.9} parent=1 // pred_fallthru
      _
    // Predicated region
    $region14: #{tipae_forward.9} parent=1 // pred_check
      _
    $region15: #{tipae_forward.9} parent=1 // pred_check_branch
      %23 = sbr.rel (0) target = $region17
    $region16: #{tipae_forward.9} parent=1 // pred_region
      _
    $region17: #{tipae_forward.9} parent=1 // pred_fallthru
      _
    // Predicated region
    $region18: #{tipae_forward.9} parent=1 // pred_check
      _
    $region19: #{tipae_forward.9} parent=1 // pred_check_branch
      %25 = sbr.rel (0) target = $region21
    $region20: #{tipae_forward.9} parent=1 // pred_region
      _
    $region21: #{tipae_forward.9} parent=1 // pred_fallthru
      _
    // Predicated region
    $region22: #{tipae_forward.9} parent=1 // pred_check
      _
    $region23: #{tipae_forward.9} parent=1 // pred_check_branch
      %27 = sbr.rel (0) target = $region25
    $region24: #{tipae_forward.9} parent=1 // pred_region
      _
    $region25: #{tipae_forward.9} parent=1 // pred_fallthru
      _
    // Predicated region
    $region26: #{tipae_forward.9} parent=1 // pred_check
      _
    $region27: #{tipae_forward.9} parent=1 // pred_check_branch
      %29 = sbr.rel (0) target = $region29
    $region28: #{tipae_forward.9} parent=1 // pred_region
      _
    $region29: #{tipae_forward.9} parent=1 // pred_fallthru
      _
    // Predicated region
    $region30: #{tipae_forward.9} parent=1 // pred_check
      _
    $region31: #{tipae_forward.9} parent=1 // pred_check_branch
      %31 = sbr.rel (0) target = $region33
    $region32: #{tipae_forward.9} parent=1 // pred_region
      _
    $region33: #{tipae_forward.9} parent=1 // pred_fallthru
      _
    // Predicated region
    $region34: #{tipae_forward.9} parent=1 // pred_check
      _
    $region35: #{tipae_forward.9} parent=1 // pred_check_branch
      %33 = sbr.rel (0) target = $region37
    $region36: #{tipae_forward.9} parent=1 // pred_region
      _
    $region37: #{tipae_forward.9} parent=1 // pred_fallthru
      _
    // Predicated region
    $region38: #{tipae_forward.9} parent=1 // pred_check
      _
    $region39: #{tipae_forward.9} parent=1 // pred_check_branch
      %35 = sbr.rel (0) target = $region41
    $region40: #{tipae_forward.9} parent=1 // pred_region
      _
    $region41: #{tipae_forward.9} parent=1 // pred_fallthru
      _
    %v37 = vld [vmem:[%s0] sm:$0xff]
    %v38 = vld [vmem:[%s0 + $0x8] sm:$0xff]
    %v39 = vld [vmem:[%s1] sm:$0xf]
    %vm40 = vcmask 130048
    %v41 = vsel %vm40, %v37, 0.0
    %42 = vadd.xlane.f32.xlu0 %v41
    %v43 = vpop.xlane.xlu0 %42
    %v44 = vsel %vm40, %v38, 0.0
    %45 = vadd.xlane.f32.xlu0 %v44
    %v46 = vpop.xlane.xlu0 %45
    %v47 = vrcp.pop 16.0
    %v48 = vmul.f32 %v43, %v47
    %v49 = vmul.f32 %v46, %v47
    %v50 = vsub.f32 %v37, %v48
    %v51 = vsub.f32 %v38, %v49
    %v52 = vmul.f32 %v50, %v50
    %v53 = vmul.f32 %v51, %v51
    %v54 = vsel %vm40, %v52, 0.0
    %55 = vadd.xlane.f32.xlu0 %v54
    %v56 = vpop.xlane.xlu0 %55
    %v57 = vsel %vm40, %v53, 0.0
    %58 = vadd.xlane.f32.xlu0 %v57
    %v59 = vpop.xlane.xlu0 %58
    %v60 = vmul.f32 %v56, %v47
    %v61 = vmul.f32 %v59, %v47
    %v62 = vadd.f32 %v60, 1e-05
    %v63 = vadd.f32 %v61, 1e-05
    %v64 = vrsqrt.pop %v62
    %v65 = vrsqrt.pop %v63
    %v66 = vmul.f32 %v50, %v64
    %v67 = vmul.f32 %v51, %v65
    %v68 = vlaneseq
    %v69 = vshrl.u32 %v68, 7
    %v70 = vsub.s32 0, %v69
    %v71 = vrot.slane %v39, %v70
    %v72 = vmul.f32 %v66, %v71
    %v73 = vmul.f32 %v67, %v71
    %v74 = vlaneseq
    %v75 = vshrl.u32 %v74, 7
    %v76 = vsub.s32 1, %v75
    %v77 = vrot.slane %v39, %v76
    %v78 = vadd.f32 %v72, %v77
    %v79 = vadd.f32 %v73, %v77
    %v80 = vld [vmem:[%s2] sm:$0xf]
    %v81 = vld [vmem:[%s2 + $0x4] sm:$0xf]
    %v82 = vpack.c.bf16 %v79, %v78
    %v85 = vunpack.c.l.b16 %v80
    %v86 = vunpack.c.l.b16 %v81
    %v87 = vpack.c.b16 %v86, %v85
    %v90 = vsel %vm40, %v82, 0
    %92 = vmatprep.subr.bf16.mxu0 0
    %93 = vmatpush1.bf16.msra.mxu0 0
    %94 = vmatprep.subr.bf16.mxu0 0
    %95 = vmatpush1.bf16.msra.mxu0 0
    %96 = vmatprep.subr.bf16.mxu0 0
    %97 = vmatpush1.bf16.msra.mxu0 0
    %98 = vmatprep.subr.bf16.mxu0 0
    %99 = vmatpush1.bf16.msra.mxu0 0
    %100 = vmatprep.subr.bf16.mxu0 0
    %101 = vmatpush1.bf16.msra.mxu0 0
    %102 = vmatprep.subr.bf16.mxu0 0
    %103 = vmatpush1.bf16.msra.mxu0 0
    %104 = vmatprep.subr.bf16.mxu0 0
    %105 = vmatpush1.bf16.msra.mxu0 0
    %106 = vmatprep.subr.bf16.mxu0 0
    %107 = vmatpush1.bf16.msra.mxu0 %v87
    %108 = vmatprep.subr.bf16.mxu0 0
    %109 = vmatpush2.bf16.msra.mxu0 0
    %110 = vmatprep.subr.bf16.mxu0 0
    %111 = vmatpush2.bf16.msra.mxu0 0
    %112 = vmatprep.subr.bf16.mxu0 0
    %113 = vmatpush2.bf16.msra.mxu0 0
    %114 = vmatprep.subr.bf16.mxu0 0
    %115 = vmatpush2.bf16.msra.mxu0 0
    %116 = vmatprep.subr.bf16.mxu0 0
    %117 = vmatpush2.bf16.msra.mxu0 0
    %118 = vmatprep.subr.bf16.mxu0 0
    %119 = vmatpush2.bf16.msra.mxu0 0
    %120 = vmatprep.subr.bf16.mxu0 0
    %121 = vmatpush2.bf16.msra.mxu0 0
    %122 = vmatprep.subr.bf16.mxu0 0
    %123 = vmatpush2.bf16.msra.mxu0 0
    %124 = vmatprep.mubr.bf16.mxu0 0
    %125 = vmatmul.mubr.bf16.gmra.mxu0 %v90
    %v126 = vpop.f32.mrf.mxu0
    %v127 = vadd.f32 0.0, %v126
    %v128 = vpop.f32.mrf.mxu0
    %v129 = vpop.f32.mrf.mxu0
    %v130 = vadd.f32 0.0, %v129
    %v131 = vpop.f32.mrf.mxu0
    %132 = vdwg.mxu0
    %135 = vrot.lane.b32.xlu0 %v127, 120
    %v136 = vpop.permute.xlu0 %135
    %137 = vrot.lane.b32.xlu0 %v130, 120
    %v138 = vpop.permute.xlu0 %137
    %v141 = vmul.f32 %v127, 0.35355338
    %v142 = vmul.f32 %v130, 0.35355338
    %v143 = vmul.f32 %v136, 0.35355338
    %v144 = vmul.f32 %v138, 0.35355338
    %v145 = vpack.c.bf16 %v141, %v141
    %v146 = vpack.c.bf16 %v142, %v142
    %v147 = vpack.c.bf16 %v143, %v143
    %v148 = vpack.c.bf16 %v144, %v144
    %v149 = vpack.c.bf16 %v127, %v127
    %v150 = vpack.c.bf16 %v130, %v130
    %v151 = vpack.c.bf16 %v136, %v136
    %v152 = vpack.c.bf16 %v138, %v138
    %154 = vrot.lane.b32.xlu0 %v149, 112
    %v155 = vpop.permute.xlu0 %154
    %vm156 = vcmask 64512
    %v158 = vsel %vm156, %v145, 0
    %v161 = vsel %vm156, %v155, 0
    %163 = vmatprep.subr.bf16.mxu0 0
    %164 = vmatpush1.bf16.xpose.msra.mxu0 0
    %165 = vmatprep.subr.bf16.mxu0 0
    %166 = vmatpush1.bf16.xpose.msra.mxu0 0
    %167 = vmatprep.subr.bf16.mxu0 0
    %168 = vmatpush1.bf16.xpose.msra.mxu0 0
    %169 = vmatprep.subr.bf16.mxu0 0
    %170 = vmatpush1.bf16.xpose.msra.mxu0 0
    %171 = vmatprep.subr.bf16.mxu0 0
    %172 = vmatpush1.bf16.xpose.msra.mxu0 0
    %173 = vmatprep.subr.bf16.mxu0 0
    %174 = vmatpush1.bf16.xpose.msra.mxu0 0
    %175 = vmatprep.subr.bf16.mxu0 0
    %176 = vmatpush1.bf16.xpose.msra.mxu0 0
    %177 = vmatprep.subr.bf16.mxu0 0
    %178 = vmatpush1.bf16.xpose.msra.mxu0 %v161
    %179 = vmatprep.subr.bf16.mxu0 0
    %180 = vmatpush2.bf16.xpose.msra.mxu0 0
    %181 = vmatprep.subr.bf16.mxu0 0
    %182 = vmatpush2.bf16.xpose.msra.mxu0 0
    %183 = vmatprep.subr.bf16.mxu0 0
    %184 = vmatpush2.bf16.xpose.msra.mxu0 0
    %185 = vmatprep.subr.bf16.mxu0 0
    %186 = vmatpush2.bf16.xpose.msra.mxu0 0
    %187 = vmatprep.subr.bf16.mxu0 0
    %188 = vmatpush2.bf16.xpose.msra.mxu0 0
    %189 = vmatprep.subr.bf16.mxu0 0
    %190 = vmatpush2.bf16.xpose.msra.mxu0 0
    %191 = vmatprep.subr.bf16.mxu0 0
    %192 = vmatpush2.bf16.xpose.msra.mxu0 0
    %193 = vmatprep.subr.bf16.mxu0 0
    %194 = vmatpush2.bf16.xpose.msra.mxu0 0
    %195 = vmatprep.mubr.bf16.mxu0 0
    %196 = vmatmul.mubr.bf16.gmra.mxu0 %v158
    %v197 = vpop.f32.mrf.mxu0
    %v198 = vadd.f32 0.0, %v197
    %v199 = vpop.f32.mrf.mxu0
    %v200 = vpop.f32.mrf.mxu0
    %v201 = vpop.f32.mrf.mxu0
    %202 = vdwg.mxu0
    %204 = vrot.lane.b32.xlu0 %v150, 112
    %v205 = vpop.permute.xlu0 %204
    %v207 = vsel %vm156, %v146, 0
    %v210 = vsel %vm156, %v205, 0
    %212 = vmatprep.subr.bf16.mxu0 0
    %213 = vmatpush1.bf16.xpose.msra.mxu0 0
    %214 = vmatprep.subr.bf16.mxu0 0
    %215 = vmatpush1.bf16.xpose.msra.mxu0 0
    %216 = vmatprep.subr.bf16.mxu0 0
    %217 = vmatpush1.bf16.xpose.msra.mxu0 0
    %218 = vmatprep.subr.bf16.mxu0 0
    %219 = vmatpush1.bf16.xpose.msra.mxu0 0
    %220 = vmatprep.subr.bf16.mxu0 0
    %221 = vmatpush1.bf16.xpose.msra.mxu0 0
    %222 = vmatprep.subr.bf16.mxu0 0
    %223 = vmatpush1.bf16.xpose.msra.mxu0 0
    %224 = vmatprep.subr.bf16.mxu0 0
    %225 = vmatpush1.bf16.xpose.msra.mxu0 0
    %226 = vmatprep.subr.bf16.mxu0 0
    %227 = vmatpush1.bf16.xpose.msra.mxu0 %v210
    %228 = vmatprep.subr.bf16.mxu0 0
    %229 = vmatpush2.bf16.xpose.msra.mxu0 0
    %230 = vmatprep.subr.bf16.mxu0 0
    %231 = vmatpush2.bf16.xpose.msra.mxu0 0
    %232 = vmatprep.subr.bf16.mxu0 0
    %233 = vmatpush2.bf16.xpose.msra.mxu0 0
    %234 = vmatprep.subr.bf16.mxu0 0
    %235 = vmatpush2.bf16.xpose.msra.mxu0 0
    %236 = vmatprep.subr.bf16.mxu0 0
    %237 = vmatpush2.bf16.xpose.msra.mxu0 0
    %238 = vmatprep.subr.bf16.mxu0 0
    %239 = vmatpush2.bf16.xpose.msra.mxu0 0
    %240 = vmatprep.subr.bf16.mxu0 0
    %241 = vmatpush2.bf16.xpose.msra.mxu0 0
    %242 = vmatprep.subr.bf16.mxu0 0
    %243 = vmatpush2.bf16.xpose.msra.mxu0 0
    %244 = vmatprep.mubr.bf16.mxu0 0
    %245 = vmatmul.mubr.bf16.gmra.mxu0 %v207
    %v246 = vpop.f32.mrf.mxu0
    %v247 = vadd.f32 0.0, %v246
    %v248 = vpop.f32.mrf.mxu0
    %v249 = vpop.f32.mrf.mxu0
    %v250 = vpop.f32.mrf.mxu0
    %251 = vdwg.mxu0
    %253 = vrot.lane.b32.xlu0 %v151, 112
    %v254 = vpop.permute.xlu0 %253
    %v256 = vsel %vm156, %v147, 0
    %v259 = vsel %vm156, %v254, 0
    %261 = vmatprep.subr.bf16.mxu0 0
    %262 = vmatpush1.bf16.xpose.msra.mxu0 0
    %263 = vmatprep.subr.bf16.mxu0 0
    %264 = vmatpush1.bf16.xpose.msra.mxu0 0
    %265 = vmatprep.subr.bf16.mxu0 0
    %266 = vmatpush1.bf16.xpose.msra.mxu0 0
    %267 = vmatprep.subr.bf16.mxu0 0
    %268 = vmatpush1.bf16.xpose.msra.mxu0 0
    %269 = vmatprep.subr.bf16.mxu0 0
    %270 = vmatpush1.bf16.xpose.msra.mxu0 0
    %271 = vmatprep.subr.bf16.mxu0 0
    %272 = vmatpush1.bf16.xpose.msra.mxu0 0
    %273 = vmatprep.subr.bf16.mxu0 0
    %274 = vmatpush1.bf16.xpose.msra.mxu0 0
    %275 = vmatprep.subr.bf16.mxu0 0
    %276 = vmatpush1.bf16.xpose.msra.mxu0 %v259
    %277 = vmatprep.subr.bf16.mxu0 0
    %278 = vmatpush2.bf16.xpose.msra.mxu0 0
    %279 = vmatprep.subr.bf16.mxu0 0
    %280 = vmatpush2.bf16.xpose.msra.mxu0 0
    %281 = vmatprep.subr.bf16.mxu0 0
    %282 = vmatpush2.bf16.xpose.msra.mxu0 0
    %283 = vmatprep.subr.bf16.mxu0 0
    %284 = vmatpush2.bf16.xpose.msra.mxu0 0
    %285 = vmatprep.subr.bf16.mxu0 0
    %286 = vmatpush2.bf16.xpose.msra.mxu0 0
    %287 = vmatprep.subr.bf16.mxu0 0
    %288 = vmatpush2.bf16.xpose.msra.mxu0 0
    %289 = vmatprep.subr.bf16.mxu0 0
    %290 = vmatpush2.bf16.xpose.msra.mxu0 0
    %291 = vmatprep.subr.bf16.mxu0 0
    %292 = vmatpush2.bf16.xpose.msra.mxu0 0
    %293 = vmatprep.mubr.bf16.mxu0 0
    %294 = vmatmul.mubr.bf16.gmra.mxu0 %v256
    %v295 = vpop.f32.mrf.mxu0
    %v296 = vadd.f32 0.0, %v295
    %v297 = vpop.f32.mrf.mxu0
    %v298 = vpop.f32.mrf.mxu0
    %v299 = vpop.f32.mrf.mxu0
    %300 = vdwg.mxu0
    %302 = vrot.lane.b32.xlu0 %v152, 112
    %v303 = vpop.permute.xlu0 %302
    %v305 = vsel %vm156, %v148, 0
    %v308 = vsel %vm156, %v303, 0
    %310 = vmatprep.subr.bf16.mxu0 0
    %311 = vmatpush1.bf16.xpose.msra.mxu0 0
    %312 = vmatprep.subr.bf16.mxu0 0
    %313 = vmatpush1.bf16.xpose.msra.mxu0 0
    %314 = vmatprep.subr.bf16.mxu0 0
    %315 = vmatpush1.bf16.xpose.msra.mxu0 0
    %316 = vmatprep.subr.bf16.mxu0 0
    %317 = vmatpush1.bf16.xpose.msra.mxu0 0
    %318 = vmatprep.subr.bf16.mxu0 0
    %319 = vmatpush1.bf16.xpose.msra.mxu0 0
    %320 = vmatprep.subr.bf16.mxu0 0
    %321 = vmatpush1.bf16.xpose.msra.mxu0 0
    %322 = vmatprep.subr.bf16.mxu0 0
    %323 = vmatpush1.bf16.xpose.msra.mxu0 0
    %324 = vmatprep.subr.bf16.mxu0 0
    %325 = vmatpush1.bf16.xpose.msra.mxu0 %v308
    %326 = vmatprep.subr.bf16.mxu0 0
    %327 = vmatpush2.bf16.xpose.msra.mxu0 0
    %328 = vmatprep.subr.bf16.mxu0 0
    %329 = vmatpush2.bf16.xpose.msra.mxu0 0
    %330 = vmatprep.subr.bf16.mxu0 0
    %331 = vmatpush2.bf16.xpose.msra.mxu0 0
    %332 = vmatprep.subr.bf16.mxu0 0
    %333 = vmatpush2.bf16.xpose.msra.mxu0 0
    %334 = vmatprep.subr.bf16.mxu0 0
    %335 = vmatpush2.bf16.xpose.msra.mxu0 0
    %336 = vmatprep.subr.bf16.mxu0 0
    %337 = vmatpush2.bf16.xpose.msra.mxu0 0
    %338 = vmatprep.subr.bf16.mxu0 0
    %339 = vmatpush2.bf16.xpose.msra.mxu0 0
    %340 = vmatprep.subr.bf16.mxu0 0
    %341 = vmatpush2.bf16.xpose.msra.mxu0 0
    %342 = vmatprep.mubr.bf16.mxu0 0
    %343 = vmatmul.mubr.bf16.gmra.mxu0 %v305
    %v344 = vpop.f32.mrf.mxu0
    %v345 = vadd.f32 0.0, %v344
    %v346 = vpop.f32.mrf.mxu0
    %v347 = vpop.f32.mrf.mxu0
    %v348 = vpop.f32.mrf.mxu0
    %349 = vdwg.mxu0
    %v350 = vsel %vm156, %v198, -inf
    %351 = vmax.xlane.f32.xlu0 %v350
    %v352 = vpop.xlane.xlu0 %351
    %v353 = vsel %vm156, %v247, -inf
    %354 = vmax.xlane.f32.xlu0 %v353
    %v355 = vpop.xlane.xlu0 %354
    %v356 = vsel %vm156, %v296, -inf
    %357 = vmax.xlane.f32.xlu0 %v356
    %v358 = vpop.xlane.xlu0 %357
    %v359 = vsel %vm156, %v345, -inf
    %360 = vmax.xlane.f32.xlu0 %v359
    %v361 = vpop.xlane.xlu0 %360
    %v362 = vsub.f32 %v198, %v352
    %v363 = vsub.f32 %v247, %v355
    %v364 = vsub.f32 %v296, %v358
    %v365 = vsub.f32 %v345, %v361
    %v366 = vmul.f32 %v362, 1.442695
    %v367 = vpow.pop %v366
    %v368 = vmul.f32 %v363, 1.442695
    %v369 = vpow.pop %v368
    %v370 = vmul.f32 %v364, 1.442695
    %v371 = vpow.pop %v370
    %v372 = vmul.f32 %v365, 1.442695
    %v373 = vpow.pop %v372
    %v374 = vsel %vm156, %v367, 0.0
    %375 = vadd.xlane.f32.xlu0 %v374
    %v376 = vpop.xlane.xlu0 %375
    %v377 = vsel %vm156, %v369, 0.0
    %378 = vadd.xlane.f32.xlu0 %v377
    %v379 = vpop.xlane.xlu0 %378
    %v380 = vsel %vm156, %v371, 0.0
    %381 = vadd.xlane.f32.xlu0 %v380
    %v382 = vpop.xlane.xlu0 %381
    %v383 = vsel %vm156, %v373, 0.0
    %384 = vadd.xlane.f32.xlu0 %v383
    %v385 = vpop.xlane.xlu0 %384
    %v386 = vrcp.pop %v376
    %v387 = vrcp.pop %v379
    %v388 = vrcp.pop %v382
    %v389 = vrcp.pop %v385
    %v390 = vmul.f32 %v367, %v386
    %v391 = vmul.f32 %v369, %v387
    %v392 = vmul.f32 %v371, %v388
    %v393 = vmul.f32 %v373, %v389
    %v394 = vpack.c.bf16 %v390, %v390
    %v395 = vpack.c.bf16 %v391, %v391
    %v396 = vpack.c.bf16 %v392, %v392
    %v397 = vpack.c.bf16 %v393, %v393
    %398 = vrot.lane.b32.xlu0 %v149, 96
    %v399 = vpop.permute.xlu0 %398
    %v401 = vsel %vm156, %v394, 0
    %vm403 = vcmask 1043456
    %v405 = vsel %vm403, %v399, 0
    %407 = vmatprep.subr.bf16.mxu0 0
    %408 = vmatpush1.bf16.msra.mxu0 0
    %409 = vmatprep.subr.bf16.mxu0 0
    %410 = vmatpush1.bf16.msra.mxu0 0
    %411 = vmatprep.subr.bf16.mxu0 0
    %412 = vmatpush1.bf16.msra.mxu0 0
    %413 = vmatprep.subr.bf16.mxu0 0
    %414 = vmatpush1.bf16.msra.mxu0 0
    %415 = vmatprep.subr.bf16.mxu0 0
    %416 = vmatpush1.bf16.msra.mxu0 0
    %417 = vmatprep.subr.bf16.mxu0 0
    %418 = vmatpush1.bf16.msra.mxu0 0
    %419 = vmatprep.subr.bf16.mxu0 0
    %420 = vmatpush1.bf16.msra.mxu0 0
    %421 = vmatprep.subr.bf16.mxu0 0
    %422 = vmatpush1.bf16.msra.mxu0 %v405
    %423 = vmatprep.subr.bf16.mxu0 0
    %424 = vmatpush2.bf16.msra.mxu0 0
    %425 = vmatprep.subr.bf16.mxu0 0
    %426 = vmatpush2.bf16.msra.mxu0 0
    %427 = vmatprep.subr.bf16.mxu0 0
    %428 = vmatpush2.bf16.msra.mxu0 0
    %429 = vmatprep.subr.bf16.mxu0 0
    %430 = vmatpush2.bf16.msra.mxu0 0
    %431 = vmatprep.subr.bf16.mxu0 0
    %432 = vmatpush2.bf16.msra.mxu0 0
    %433 = vmatprep.subr.bf16.mxu0 0
    %434 = vmatpush2.bf16.msra.mxu0 0
    %435 = vmatprep.subr.bf16.mxu0 0
    %436 = vmatpush2.bf16.msra.mxu0 0
    %437 = vmatprep.subr.bf16.mxu0 0
    %438 = vmatpush2.bf16.msra.mxu0 0
    %439 = vmatprep.mubr.bf16.mxu0 0
    %440 = vmatmul.mubr.bf16.gmra.mxu0 %v401
    %v441 = vpop.f32.mrf.mxu0
    %v442 = vadd.f32 0.0, %v441
    %v443 = vpop.f32.mrf.mxu0
    %v444 = vpop.f32.mrf.mxu0
    %v445 = vpop.f32.mrf.mxu0
    %446 = vdwg.mxu0
    %447 = vrot.lane.b32.xlu0 %v150, 96
    %v448 = vpop.permute.xlu0 %447
    %v450 = vsel %vm156, %v395, 0
    %v453 = vsel %vm403, %v448, 0
    %455 = vmatprep.subr.bf16.mxu0 0
    %456 = vmatpush1.bf16.msra.mxu0 0
    %457 = vmatprep.subr.bf16.mxu0 0
    %458 = vmatpush1.bf16.msra.mxu0 0
    %459 = vmatprep.subr.bf16.mxu0 0
    %460 = vmatpush1.bf16.msra.mxu0 0
    %461 = vmatprep.subr.bf16.mxu0 0
    %462 = vmatpush1.bf16.msra.mxu0 0
    %463 = vmatprep.subr.bf16.mxu0 0
    %464 = vmatpush1.bf16.msra.mxu0 0
    %465 = vmatprep.subr.bf16.mxu0 0
    %466 = vmatpush1.bf16.msra.mxu0 0
    %467 = vmatprep.subr.bf16.mxu0 0
    %468 = vmatpush1.bf16.msra.mxu0 0
    %469 = vmatprep.subr.bf16.mxu0 0
    %470 = vmatpush1.bf16.msra.mxu0 %v453
    %471 = vmatprep.subr.bf16.mxu0 0
    %472 = vmatpush2.bf16.msra.mxu0 0
    %473 = vmatprep.subr.bf16.mxu0 0
    %474 = vmatpush2.bf16.msra.mxu0 0
    %475 = vmatprep.subr.bf16.mxu0 0
    %476 = vmatpush2.bf16.msra.mxu0 0
    %477 = vmatprep.subr.bf16.mxu0 0
    %478 = vmatpush2.bf16.msra.mxu0 0
    %479 = vmatprep.subr.bf16.mxu0 0
    %480 = vmatpush2.bf16.msra.mxu0 0
    %481 = vmatprep.subr.bf16.mxu0 0
    %482 = vmatpush2.bf16.msra.mxu0 0
    %483 = vmatprep.subr.bf16.mxu0 0
    %484 = vmatpush2.bf16.msra.mxu0 0
    %485 = vmatprep.subr.bf16.mxu0 0
    %486 = vmatpush2.bf16.msra.mxu0 0
    %487 = vmatprep.mubr.bf16.mxu0 0
    %488 = vmatmul.mubr.bf16.gmra.mxu0 %v450
    %v489 = vpop.f32.mrf.mxu0
    %v490 = vadd.f32 0.0, %v489
    %v491 = vpop.f32.mrf.mxu0
    %v492 = vpop.f32.mrf.mxu0
    %v493 = vpop.f32.mrf.mxu0
    %494 = vdwg.mxu0
    %495 = vrot.lane.b32.xlu0 %v151, 96
    %v496 = vpop.permute.xlu0 %495
    %v498 = vsel %vm156, %v396, 0
    %v501 = vsel %vm403, %v496, 0
    %503 = vmatprep.subr.bf16.mxu0 0
    %504 = vmatpush1.bf16.msra.mxu0 0
    %505 = vmatprep.subr.bf16.mxu0 0
    %506 = vmatpush1.bf16.msra.mxu0 0
    %507 = vmatprep.subr.bf16.mxu0 0
    %508 = vmatpush1.bf16.msra.mxu0 0
    %509 = vmatprep.subr.bf16.mxu0 0
    %510 = vmatpush1.bf16.msra.mxu0 0
    %511 = vmatprep.subr.bf16.mxu0 0
    %512 = vmatpush1.bf16.msra.mxu0 0
    %513 = vmatprep.subr.bf16.mxu0 0
    %514 = vmatpush1.bf16.msra.mxu0 0
    %515 = vmatprep.subr.bf16.mxu0 0
    %516 = vmatpush1.bf16.msra.mxu0 0
    %517 = vmatprep.subr.bf16.mxu0 0
    %518 = vmatpush1.bf16.msra.mxu0 %v501
    %519 = vmatprep.subr.bf16.mxu0 0
    %520 = vmatpush2.bf16.msra.mxu0 0
    %521 = vmatprep.subr.bf16.mxu0 0
    %522 = vmatpush2.bf16.msra.mxu0 0
    %523 = vmatprep.subr.bf16.mxu0 0
    %524 = vmatpush2.bf16.msra.mxu0 0
    %525 = vmatprep.subr.bf16.mxu0 0
    %526 = vmatpush2.bf16.msra.mxu0 0
    %527 = vmatprep.subr.bf16.mxu0 0
    %528 = vmatpush2.bf16.msra.mxu0 0
    %529 = vmatprep.subr.bf16.mxu0 0
    %530 = vmatpush2.bf16.msra.mxu0 0
    %531 = vmatprep.subr.bf16.mxu0 0
    %532 = vmatpush2.bf16.msra.mxu0 0
    %533 = vmatprep.subr.bf16.mxu0 0
    %534 = vmatpush2.bf16.msra.mxu0 0
    %535 = vmatprep.mubr.bf16.mxu0 0
    %536 = vmatmul.mubr.bf16.gmra.mxu0 %v498
    %v537 = vpop.f32.mrf.mxu0
    %v538 = vadd.f32 0.0, %v537
    %v539 = vpop.f32.mrf.mxu0
    %v540 = vpop.f32.mrf.mxu0
    %v541 = vpop.f32.mrf.mxu0
    %542 = vdwg.mxu0
    %543 = vrot.lane.b32.xlu0 %v152, 96
    %v544 = vpop.permute.xlu0 %543
    %v546 = vsel %vm156, %v397, 0
    %v549 = vsel %vm403, %v544, 0
    %551 = vmatprep.subr.bf16.mxu0 0
    %552 = vmatpush1.bf16.msra.mxu0 0
    %553 = vmatprep.subr.bf16.mxu0 0
    %554 = vmatpush1.bf16.msra.mxu0 0
    %555 = vmatprep.subr.bf16.mxu0 0
    %556 = vmatpush1.bf16.msra.mxu0 0
    %557 = vmatprep.subr.bf16.mxu0 0
    %558 = vmatpush1.bf16.msra.mxu0 0
    %559 = vmatprep.subr.bf16.mxu0 0
    %560 = vmatpush1.bf16.msra.mxu0 0
    %561 = vmatprep.subr.bf16.mxu0 0
    %562 = vmatpush1.bf16.msra.mxu0 0
    %563 = vmatprep.subr.bf16.mxu0 0
    %564 = vmatpush1.bf16.msra.mxu0 0
    %565 = vmatprep.subr.bf16.mxu0 0
    %566 = vmatpush1.bf16.msra.mxu0 %v549
    %567 = vmatprep.subr.bf16.mxu0 0
    %568 = vmatpush2.bf16.msra.mxu0 0
    %569 = vmatprep.subr.bf16.mxu0 0
    %570 = vmatpush2.bf16.msra.mxu0 0
    %571 = vmatprep.subr.bf16.mxu0 0
    %572 = vmatpush2.bf16.msra.mxu0 0
    %573 = vmatprep.subr.bf16.mxu0 0
    %574 = vmatpush2.bf16.msra.mxu0 0
    %575 = vmatprep.subr.bf16.mxu0 0
    %576 = vmatpush2.bf16.msra.mxu0 0
    %577 = vmatprep.subr.bf16.mxu0 0
    %578 = vmatpush2.bf16.msra.mxu0 0
    %579 = vmatprep.subr.bf16.mxu0 0
    %580 = vmatpush2.bf16.msra.mxu0 0
    %581 = vmatprep.subr.bf16.mxu0 0
    %582 = vmatpush2.bf16.msra.mxu0 0
    %583 = vmatprep.mubr.bf16.mxu0 0
    %584 = vmatmul.mubr.bf16.gmra.mxu0 %v546
    %v585 = vpop.f32.mrf.mxu0
    %v586 = vadd.f32 0.0, %v585
    %v587 = vpop.f32.mrf.mxu0
    %v588 = vpop.f32.mrf.mxu0
    %v589 = vpop.f32.mrf.mxu0
    %590 = vdwg.mxu0
    %v591 = vld [vmem:[%s3] sm:$0xf]
    %v592 = vld [vmem:[%s3 + $0x4] sm:$0xf]
    %v593 = vpack.c.bf16 %v490, %v442
    %v594 = vpack.c.bf16 %v586, %v538
    %v596 = vsel %vm156, %v594, 0
    %v599 = vsel %vm403, %v592, 0
    %601 = vmatprep.subr.bf16.mxu0 0
    %602 = vmatpush1.bf16.msra.mxu0 0
    %603 = vmatprep.subr.bf16.mxu0 0
    %604 = vmatpush1.bf16.msra.mxu0 0
    %605 = vmatprep.subr.bf16.mxu0 0
    %606 = vmatpush1.bf16.msra.mxu0 0
    %607 = vmatprep.subr.bf16.mxu0 0
    %608 = vmatpush1.bf16.msra.mxu0 0
    %609 = vmatprep.subr.bf16.mxu0 0
    %610 = vmatpush1.bf16.msra.mxu0 0
    %611 = vmatprep.subr.bf16.mxu0 0
    %612 = vmatpush1.bf16.msra.mxu0 0
    %613 = vmatprep.subr.bf16.mxu0 0
    %614 = vmatpush1.bf16.msra.mxu0 0
    %615 = vmatprep.subr.bf16.mxu0 0
    %616 = vmatpush1.bf16.msra.mxu0 %v599
    %617 = vmatprep.subr.bf16.mxu0 0
    %618 = vmatpush2.bf16.msra.mxu0 0
    %619 = vmatprep.subr.bf16.mxu0 0
    %620 = vmatpush2.bf16.msra.mxu0 0
    %621 = vmatprep.subr.bf16.mxu0 0
    %622 = vmatpush2.bf16.msra.mxu0 0
    %623 = vmatprep.subr.bf16.mxu0 0
    %624 = vmatpush2.bf16.msra.mxu0 0
    %625 = vmatprep.subr.bf16.mxu0 0
    %626 = vmatpush2.bf16.msra.mxu0 0
    %627 = vmatprep.subr.bf16.mxu0 0
    %628 = vmatpush2.bf16.msra.mxu0 0
    %629 = vmatprep.subr.bf16.mxu0 0
    %630 = vmatpush2.bf16.msra.mxu0 0
    %631 = vmatprep.subr.bf16.mxu0 0
    %632 = vmatpush2.bf16.msra.mxu0 0
    %633 = vmatprep.mubr.bf16.mxu0 0
    %634 = vmatmul.mubr.bf16.gmra.mxu0 %v596
    %v635 = vpop.f32.mrf.mxu0
    %v636 = vadd.f32 0.0, %v635
    %v637 = vpop.f32.mrf.mxu0
    %v638 = vpop.f32.mrf.mxu0
    %v639 = vadd.f32 0.0, %v638
    %v640 = vpop.f32.mrf.mxu0
    %641 = vdwg.mxu0
    %v643 = vsel %vm156, %v593, 0
    %v646 = vsel %vm403, %v591, 0
    %648 = vmatprep.subr.bf16.mxu0 0
    %649 = vmatpush1.bf16.msra.mxu0 0
    %650 = vmatprep.subr.bf16.mxu0 0
    %651 = vmatpush1.bf16.msra.mxu0 0
    %652 = vmatprep.subr.bf16.mxu0 0
    %653 = vmatpush1.bf16.msra.mxu0 0
    %654 = vmatprep.subr.bf16.mxu0 0
    %655 = vmatpush1.bf16.msra.mxu0 0
    %656 = vmatprep.subr.bf16.mxu0 0
    %657 = vmatpush1.bf16.msra.mxu0 0
    %658 = vmatprep.subr.bf16.mxu0 0
    %659 = vmatpush1.bf16.msra.mxu0 0
    %660 = vmatprep.subr.bf16.mxu0 0
    %661 = vmatpush1.bf16.msra.mxu0 0
    %662 = vmatprep.subr.bf16.mxu0 0
    %663 = vmatpush1.bf16.msra.mxu0 %v646
    %664 = vmatprep.subr.bf16.mxu0 0
    %665 = vmatpush2.bf16.msra.mxu0 0
    %666 = vmatprep.subr.bf16.mxu0 0
    %667 = vmatpush2.bf16.msra.mxu0 0
    %668 = vmatprep.subr.bf16.mxu0 0
    %669 = vmatpush2.bf16.msra.mxu0 0
    %670 = vmatprep.subr.bf16.mxu0 0
    %671 = vmatpush2.bf16.msra.mxu0 0
    %672 = vmatprep.subr.bf16.mxu0 0
    %673 = vmatpush2.bf16.msra.mxu0 0
    %674 = vmatprep.subr.bf16.mxu0 0
    %675 = vmatpush2.bf16.msra.mxu0 0
    %676 = vmatprep.subr.bf16.mxu0 0
    %677 = vmatpush2.bf16.msra.mxu0 0
    %678 = vmatprep.subr.bf16.mxu0 0
    %679 = vmatpush2.bf16.msra.mxu0 0
    %680 = vmatprep.mubr.bf16.mxu0 0
    %681 = vmatmul.mubr.bf16.gmra.mxu0 %v643
    %v682 = vpop.f32.mrf.mxu0
    %v683 = vadd.f32 %v636, %v682
    %v684 = vpop.f32.mrf.mxu0
    %v685 = vpop.f32.mrf.mxu0
    %v686 = vadd.f32 %v639, %v685
    %v687 = vpop.f32.mrf.mxu0
    %688 = vdwg.mxu0
    %v689 = vadd.f32 %v37, %v683
    %v690 = vadd.f32 %v38, %v686
    %v691 = vsel %vm40, %v689, 0.0
    %692 = vadd.xlane.f32.xlu0 %v691
    %v693 = vpop.xlane.xlu0 %692
    %v694 = vsel %vm40, %v690, 0.0
    %695 = vadd.xlane.f32.xlu0 %v694
    %v696 = vpop.xlane.xlu0 %695
    %v697 = vmul.f32 %v693, %v47
    %v698 = vmul.f32 %v696, %v47
    %v699 = vsub.f32 %v689, %v697
    %v700 = vsub.f32 %v690, %v698
    %v701 = vmul.f32 %v699, %v699
    %v702 = vmul.f32 %v700, %v700
    %v703 = vsel %vm40, %v701, 0.0
    %704 = vadd.xlane.f32.xlu0 %v703
    %v705 = vpop.xlane.xlu0 %704
    %v706 = vsel %vm40, %v702, 0.0
    %707 = vadd.xlane.f32.xlu0 %v706
    %v708 = vpop.xlane.xlu0 %707
    %v709 = vmul.f32 %v705, %v47
    %v710 = vmul.f32 %v708, %v47
    %v711 = vadd.f32 %v709, 1e-05
    %v712 = vadd.f32 %v710, 1e-05
    %v713 = vrsqrt.pop %v711
    %v714 = vrsqrt.pop %v712
    %v715 = vmul.f32 %v699, %v713
    %v716 = vmul.f32 %v700, %v714
    %v717 = vlaneseq
    %v718 = vshrl.u32 %v717, 7
    %v719 = vsub.s32 2, %v718
    %v720 = vrot.slane %v39, %v719
    %v721 = vmul.f32 %v715, %v720
    %v722 = vmul.f32 %v716, %v720
    %v723 = vlaneseq
    %v724 = vshrl.u32 %v723, 7
    %v725 = vsub.s32 3, %v724
    %v726 = vrot.slane %v39, %v725
    %v727 = vadd.f32 %v721, %v726
    %v728 = vadd.f32 %v722, %v726
    %v729 = vld [vmem:[%s6] sm:$0x3]
    %v730 = vld [vmem:[%s4] sm:$0xf]
    %v731 = vld [vmem:[%s4 + $0x4] sm:$0xf]
    %v732 = vpack.c.bf16 %v728, %v727
    %v733 = vlaneseq
    %v734 = vshrl.u32 %v733, 7
    %v735 = vsub.s32 0, %v734
    %v736 = vrot.slane %v729, %v735
    %v739 = vunpack.c.l.b16 %v730
    %v740 = vunpack.c.l.b16 %v731
    %v741 = vpack.c.b16 %v740, %v739
    %v744 = vsel %vm40, %v732, 0
    %746 = vmatprep.subr.bf16.mxu0 0
    %747 = vmatpush1.bf16.msra.mxu0 0
    %748 = vmatprep.subr.bf16.mxu0 0
    %749 = vmatpush1.bf16.msra.mxu0 0
    %750 = vmatprep.subr.bf16.mxu0 0
    %751 = vmatpush1.bf16.msra.mxu0 0
    %752 = vmatprep.subr.bf16.mxu0 0
    %753 = vmatpush1.bf16.msra.mxu0 0
    %754 = vmatprep.subr.bf16.mxu0 0
    %755 = vmatpush1.bf16.msra.mxu0 0
    %756 = vmatprep.subr.bf16.mxu0 0
    %757 = vmatpush1.bf16.msra.mxu0 0
    %758 = vmatprep.subr.bf16.mxu0 0
    %759 = vmatpush1.bf16.msra.mxu0 0
    %760 = vmatprep.subr.bf16.mxu0 0
    %761 = vmatpush1.bf16.msra.mxu0 %v741
    %762 = vmatprep.subr.bf16.mxu0 0
    %763 = vmatpush2.bf16.msra.mxu0 0
    %764 = vmatprep.subr.bf16.mxu0 0
    %765 = vmatpush2.bf16.msra.mxu0 0
    %766 = vmatprep.subr.bf16.mxu0 0
    %767 = vmatpush2.bf16.msra.mxu0 0
    %768 = vmatprep.subr.bf16.mxu0 0
    %769 = vmatpush2.bf16.msra.mxu0 0
    %770 = vmatprep.subr.bf16.mxu0 0
    %771 = vmatpush2.bf16.msra.mxu0 0
    %772 = vmatprep.subr.bf16.mxu0 0
    %773 = vmatpush2.bf16.msra.mxu0 0
    %774 = vmatprep.subr.bf16.mxu0 0
    %775 = vmatpush2.bf16.msra.mxu0 0
    %776 = vmatprep.subr.bf16.mxu0 0
    %777 = vmatpush2.bf16.msra.mxu0 0
    %778 = vmatprep.mubr.bf16.mxu0 0
    %779 = vmatmul.mubr.bf16.gmra.mxu0 %v744
    %v780 = vpop.f32.mrf.mxu0
    %v781 = vadd.f32 %v736, %v780
    %v782 = vpop.f32.mrf.mxu0
    %v783 = vpop.f32.mrf.mxu0
    %v784 = vadd.f32 %v736, %v783
    %v785 = vpop.f32.mrf.mxu0
    %786 = vdwg.mxu0
    %v787 = vmul.f32 %v781, 0.5
    %v788 = vmul.f32 %v784, 0.5
    %v789 = vmul.f32 %v781, 0.044715
    %v790 = vmul.f32 %v784, 0.044715
    %v791 = vmul.f32 %v789, %v781
    %v792 = vmul.f32 %v790, %v784
    %v793 = vmul.f32 %v791, %v781
    %v794 = vmul.f32 %v792, %v784
    %v795 = vadd.f32 %v781, %v793
    %v796 = vadd.f32 %v784, %v794
    %v797 = vmul.f32 %v795, 0.7978846
    %v798 = vmul.f32 %v796, 0.7978846
    %v799 = vtanh.pop %v797
    %v800 = vtanh.pop %v798
    %v801 = vadd.f32 %v799, 1.0
    %v802 = vadd.f32 %v800, 1.0
    %v803 = vmul.f32 %v787, %v801
    %v804 = vmul.f32 %v788, %v802
    %v805 = vld [vmem:[%s5] sm:$0xf]
    %v806 = vld [vmem:[%s5 + $0x4] sm:$0xf]
    %v807 = vld [vmem:[%s5 + $0x8] sm:$0xf]
    %v808 = vld [vmem:[%s5 + $0xc] sm:$0xf]
    %v809 = vld [vmem:[%s5 + $0x10] sm:$0xf]
    %v810 = vld [vmem:[%s5 + $0x14] sm:$0xf]
    %v811 = vld [vmem:[%s5 + $0x18] sm:$0xf]
    %v812 = vld [vmem:[%s5 + $0x1c] sm:$0xf]
    %v813 = vpack.c.bf16 %v804, %v803
    %v822 = vunpack.c.l.b16 %v805
    %v823 = vunpack.c.l.b16 %v806
    %v824 = vunpack.c.l.b16 %v807
    %v825 = vunpack.c.l.b16 %v808
    %v826 = vunpack.c.l.b16 %v809
    %v827 = vunpack.c.l.b16 %v810
    %v828 = vunpack.c.l.b16 %v811
    %v829 = vunpack.c.l.b16 %v812
    %v830 = vpack.c.b16 %v823, %v822
    %v831 = vpack.c.b16 %v825, %v824
    %v832 = vpack.c.b16 %v827, %v826
    %v833 = vpack.c.b16 %v829, %v828
    %vm838 = vcmask 523264
    %v840 = vsel %vm838, %v813, 0
    %842 = vmatprep.subr.bf16.mxu0 0
    %843 = vmatpush1.bf16.msra.mxu0 0
    %844 = vmatprep.subr.bf16.mxu0 0
    %845 = vmatpush1.bf16.msra.mxu0 0
    %846 = vmatprep.subr.bf16.mxu0 0
    %847 = vmatpush1.bf16.msra.mxu0 0
    %848 = vmatprep.subr.bf16.mxu0 0
    %849 = vmatpush1.bf16.msra.mxu0 0
    %850 = vmatprep.subr.bf16.mxu0 0
    %851 = vmatpush1.bf16.msra.mxu0 %v833
    %852 = vmatprep.subr.bf16.mxu0 0
    %853 = vmatpush1.bf16.msra.mxu0 %v832
    %854 = vmatprep.subr.bf16.mxu0 0
    %855 = vmatpush1.bf16.msra.mxu0 %v831
    %856 = vmatprep.subr.bf16.mxu0 0
    %857 = vmatpush1.bf16.msra.mxu0 %v830
    %858 = vmatprep.subr.bf16.mxu0 0
    %859 = vmatpush2.bf16.msra.mxu0 0
    %860 = vmatprep.subr.bf16.mxu0 0
    %861 = vmatpush2.bf16.msra.mxu0 0
    %862 = vmatprep.subr.bf16.mxu0 0
    %863 = vmatpush2.bf16.msra.mxu0 0
    %864 = vmatprep.subr.bf16.mxu0 0
    %865 = vmatpush2.bf16.msra.mxu0 0
    %866 = vmatprep.subr.bf16.mxu0 0
    %867 = vmatpush2.bf16.msra.mxu0 0
    %868 = vmatprep.subr.bf16.mxu0 0
    %869 = vmatpush2.bf16.msra.mxu0 0
    %870 = vmatprep.subr.bf16.mxu0 0
    %871 = vmatpush2.bf16.msra.mxu0 0
    %872 = vmatprep.subr.bf16.mxu0 0
    %873 = vmatpush2.bf16.msra.mxu0 0
    %874 = vmatprep.mubr.bf16.mxu0 0
    %875 = vmatmul.mubr.bf16.gmra.mxu0 %v840
    %v876 = vpop.f32.mrf.mxu0
    %v877 = vadd.f32 0.0, %v876
    %v878 = vpop.f32.mrf.mxu0
    %v879 = vpop.f32.mrf.mxu0
    %v880 = vadd.f32 0.0, %v879
    %v881 = vpop.f32.mrf.mxu0
    %882 = vdwg.mxu0
    %v883 = vadd.f32 %v689, %v877
    %v884 = vadd.f32 %v690, %v880
    %v885 = vlaneseq
    %v886 = vshrl.u32 %v885, 7
    %v887 = vsub.s32 1, %v886
    %v888 = vrot.slane %v729, %v887
    %v889 = vadd.f32 %v883, %v888
    %v890 = vadd.f32 %v884, %v888
    %s891 = scalar_lea.vmem %s1, 4
    %v892 = vld [vmem:[%s891] sm:$0xf]
    %v893 = vsel %vm40, %v889, 0.0
    %894 = vadd.xlane.f32.xlu0 %v893
    %v895 = vpop.xlane.xlu0 %894
    %v896 = vsel %vm40, %v890, 0.0
    %897 = vadd.xlane.f32.xlu0 %v896
    %v898 = vpop.xlane.xlu0 %897
    %v899 = vmul.f32 %v895, %v47
    %v900 = vmul.f32 %v898, %v47
    %v901 = vsub.f32 %v889, %v899
    %v902 = vsub.f32 %v890, %v900
    %v903 = vmul.f32 %v901, %v901
    %v904 = vmul.f32 %v902, %v902
    %v905 = vsel %vm40, %v903, 0.0
    %906 = vadd.xlane.f32.xlu0 %v905
    %v907 = vpop.xlane.xlu0 %906
    %v908 = vsel %vm40, %v904, 0.0
    %909 = vadd.xlane.f32.xlu0 %v908
    %v910 = vpop.xlane.xlu0 %909
    %v911 = vmul.f32 %v907, %v47
    %v912 = vmul.f32 %v910, %v47
    %v913 = vadd.f32 %v911, 1e-05
    %v914 = vadd.f32 %v912, 1e-05
    %v915 = vrsqrt.pop %v913
    %v916 = vrsqrt.pop %v914
    %v917 = vmul.f32 %v901, %v915
    %v918 = vmul.f32 %v902, %v916
    %v919 = vlaneseq
    %v920 = vshrl.u32 %v919, 7
    %v921 = vsub.s32 0, %v920
    %v922 = vrot.slane %v892, %v921
    %v923 = vmul.f32 %v917, %v922
    %v924 = vmul.f32 %v918, %v922
    %v925 = vlaneseq
    %v926 = vshrl.u32 %v925, 7
    %v927 = vsub.s32 1, %v926
    %v928 = vrot.slane %v892, %v927
    %v929 = vadd.f32 %v923, %v928
    %v930 = vadd.f32 %v924, %v928
    %s931 = scalar_lea.vmem %s2, 8
    %v932 = vld [vmem:[%s931] sm:$0xf]
    %v933 = vld [vmem:[%s931 + $0x4] sm:$0xf]
    %v934 = vpack.c.bf16 %v930, %v929
    %v937 = vunpack.c.l.b16 %v932
    %v938 = vunpack.c.l.b16 %v933
    %v939 = vpack.c.b16 %v938, %v937
    %v942 = vsel %vm40, %v934, 0
    %944 = vmatprep.subr.bf16.mxu0 0
    %945 = vmatpush1.bf16.msra.mxu0 0
    %946 = vmatprep.subr.bf16.mxu0 0
    %947 = vmatpush1.bf16.msra.mxu0 0
    %948 = vmatprep.subr.bf16.mxu0 0
    %949 = vmatpush1.bf16.msra.mxu0 0
    %950 = vmatprep.subr.bf16.mxu0 0
    %951 = vmatpush1.bf16.msra.mxu0 0
    %952 = vmatprep.subr.bf16.mxu0 0
    %953 = vmatpush1.bf16.msra.mxu0 0
    %954 = vmatprep.subr.bf16.mxu0 0
    %955 = vmatpush1.bf16.msra.mxu0 0
    %956 = vmatprep.subr.bf16.mxu0 0
    %957 = vmatpush1.bf16.msra.mxu0 0
    %958 = vmatprep.subr.bf16.mxu0 0
    %959 = vmatpush1.bf16.msra.mxu0 %v939
    %960 = vmatprep.subr.bf16.mxu0 0
    %961 = vmatpush2.bf16.msra.mxu0 0
    %962 = vmatprep.subr.bf16.mxu0 0
    %963 = vmatpush2.bf16.msra.mxu0 0
    %964 = vmatprep.subr.bf16.mxu0 0
    %965 = vmatpush2.bf16.msra.mxu0 0
    %966 = vmatprep.subr.bf16.mxu0 0
    %967 = vmatpush2.bf16.msra.mxu0 0
    %968 = vmatprep.subr.bf16.mxu0 0
    %969 = vmatpush2.bf16.msra.mxu0 0
    %970 = vmatprep.subr.bf16.mxu0 0
    %971 = vmatpush2.bf16.msra.mxu0 0
    %972 = vmatprep.subr.bf16.mxu0 0
    %973 = vmatpush2.bf16.msra.mxu0 0
    %974 = vmatprep.subr.bf16.mxu0 0
    %975 = vmatpush2.bf16.msra.mxu0 0
    %976 = vmatprep.mubr.bf16.mxu0 0
    %977 = vmatmul.mubr.bf16.gmra.mxu0 %v942
    %v978 = vpop.f32.mrf.mxu0
    %v979 = vadd.f32 0.0, %v978
    %v980 = vpop.f32.mrf.mxu0
    %v981 = vpop.f32.mrf.mxu0
    %v982 = vadd.f32 0.0, %v981
    %v983 = vpop.f32.mrf.mxu0
    %984 = vdwg.mxu0
    %987 = vrot.lane.b32.xlu0 %v979, 120
    %v988 = vpop.permute.xlu0 %987
    %989 = vrot.lane.b32.xlu0 %v982, 120
    %v990 = vpop.permute.xlu0 %989
    %v993 = vmul.f32 %v979, 0.35355338
    %v994 = vmul.f32 %v982, 0.35355338
    %v995 = vmul.f32 %v988, 0.35355338
    %v996 = vmul.f32 %v990, 0.35355338
    %v997 = vpack.c.bf16 %v993, %v993
    %v998 = vpack.c.bf16 %v994, %v994
    %v999 = vpack.c.bf16 %v995, %v995
    %v1000 = vpack.c.bf16 %v996, %v996
    %v1001 = vpack.c.bf16 %v979, %v979
    %v1002 = vpack.c.bf16 %v982, %v982
    %v1003 = vpack.c.bf16 %v988, %v988
    %v1004 = vpack.c.bf16 %v990, %v990
    %1006 = vrot.lane.b32.xlu0 %v1001, 112
    %v1007 = vpop.permute.xlu0 %1006
    %v1009 = vsel %vm156, %v997, 0
    %v1012 = vsel %vm156, %v1007, 0
    %1014 = vmatprep.subr.bf16.mxu0 0
    %1015 = vmatpush1.bf16.xpose.msra.mxu0 0
    %1016 = vmatprep.subr.bf16.mxu0 0
    %1017 = vmatpush1.bf16.xpose.msra.mxu0 0
    %1018 = vmatprep.subr.bf16.mxu0 0
    %1019 = vmatpush1.bf16.xpose.msra.mxu0 0
    %1020 = vmatprep.subr.bf16.mxu0 0
    %1021 = vmatpush1.bf16.xpose.msra.mxu0 0
    %1022 = vmatprep.subr.bf16.mxu0 0
    %1023 = vmatpush1.bf16.xpose.msra.mxu0 0
    %1024 = vmatprep.subr.bf16.mxu0 0
    %1025 = vmatpush1.bf16.xpose.msra.mxu0 0
    %1026 = vmatprep.subr.bf16.mxu0 0
    %1027 = vmatpush1.bf16.xpose.msra.mxu0 0
    %1028 = vmatprep.subr.bf16.mxu0 0
    %1029 = vmatpush1.bf16.xpose.msra.mxu0 %v1012
    %1030 = vmatprep.subr.bf16.mxu0 0
    %1031 = vmatpush2.bf16.xpose.msra.mxu0 0
    %1032 = vmatprep.subr.bf16.mxu0 0
    %1033 = vmatpush2.bf16.xpose.msra.mxu0 0
    %1034 = vmatprep.subr.bf16.mxu0 0
    %1035 = vmatpush2.bf16.xpose.msra.mxu0 0
    %1036 = vmatprep.subr.bf16.mxu0 0
    %1037 = vmatpush2.bf16.xpose.msra.mxu0 0
    %1038 = vmatprep.subr.bf16.mxu0 0
    %1039 = vmatpush2.bf16.xpose.msra.mxu0 0
    %1040 = vmatprep.subr.bf16.mxu0 0
    %1041 = vmatpush2.bf16.xpose.msra.mxu0 0
    %1042 = vmatprep.subr.bf16.mxu0 0
    %1043 = vmatpush2.bf16.xpose.msra.mxu0 0
    %1044 = vmatprep.subr.bf16.mxu0 0
    %1045 = vmatpush2.bf16.xpose.msra.mxu0 0
    %1046 = vmatprep.mubr.bf16.mxu0 0
    %1047 = vmatmul.mubr.bf16.gmra.mxu0 %v1009
    %v1048 = vpop.f32.mrf.mxu0
    %v1049 = vadd.f32 0.0, %v1048
    %v1050 = vpop.f32.mrf.mxu0
    %v1051 = vpop.f32.mrf.mxu0
    %v1052 = vpop.f32.mrf.mxu0
    %1053 = vdwg.mxu0
    %1055 = vrot.lane.b32.xlu0 %v1002, 112
    %v1056 = vpop.permute.xlu0 %1055
    %v1058 = vsel %vm156, %v998, 0
    %v1061 = vsel %vm156, %v1056, 0
    %1063 = vmatprep.subr.bf16.mxu0 0
    %1064 = vmatpush1.bf16.xpose.msra.mxu0 0
    %1065 = vmatprep.subr.bf16.mxu0 0
    %1066 = vmatpush1.bf16.xpose.msra.mxu0 0
    %1067 = vmatprep.subr.bf16.mxu0 0
    %1068 = vmatpush1.bf16.xpose.msra.mxu0 0
    %1069 = vmatprep.subr.bf16.mxu0 0
    %1070 = vmatpush1.bf16.xpose.msra.mxu0 0
    %1071 = vmatprep.subr.bf16.mxu0 0
    %1072 = vmatpush1.bf16.xpose.msra.mxu0 0
    %1073 = vmatprep.subr.bf16.mxu0 0
    %1074 = vmatpush1.bf16.xpose.msra.mxu0 0
    %1075 = vmatprep.subr.bf16.mxu0 0
    %1076 = vmatpush1.bf16.xpose.msra.mxu0 0
    %1077 = vmatprep.subr.bf16.mxu0 0
    %1078 = vmatpush1.bf16.xpose.msra.mxu0 %v1061
    %1079 = vmatprep.subr.bf16.mxu0 0
    %1080 = vmatpush2.bf16.xpose.msra.mxu0 0
    %1081 = vmatprep.subr.bf16.mxu0 0
    %1082 = vmatpush2.bf16.xpose.msra.mxu0 0
    %1083 = vmatprep.subr.bf16.mxu0 0
    %1084 = vmatpush2.bf16.xpose.msra.mxu0 0
    %1085 = vmatprep.subr.bf16.mxu0 0
    %1086 = vmatpush2.bf16.xpose.msra.mxu0 0
    %1087 = vmatprep.subr.bf16.mxu0 0
    %1088 = vmatpush2.bf16.xpose.msra.mxu0 0
    %1089 = vmatprep.subr.bf16.mxu0 0
    %1090 = vmatpush2.bf16.xpose.msra.mxu0 0
    %1091 = vmatprep.subr.bf16.mxu0 0
    %1092 = vmatpush2.bf16.xpose.msra.mxu0 0
    %1093 = vmatprep.subr.bf16.mxu0 0
    %1094 = vmatpush2.bf16.xpose.msra.mxu0 0
    %1095 = vmatprep.mubr.bf16.mxu0 0
    %1096 = vmatmul.mubr.bf16.gmra.mxu0 %v1058
    %v1097 = vpop.f32.mrf.mxu0
    %v1098 = vadd.f32 0.0, %v1097
    %v1099 = vpop.f32.mrf.mxu0
    %v1100 = vpop.f32.mrf.mxu0
    %v1101 = vpop.f32.mrf.mxu0
    %1102 = vdwg.mxu0
    %1104 = vrot.lane.b32.xlu0 %v1003, 112
    %v1105 = vpop.permute.xlu0 %1104
    %v1107 = vsel %vm156, %v999, 0
    %v1110 = vsel %vm156, %v1105, 0
    %1112 = vmatprep.subr.bf16.mxu0 0
    %1113 = vmatpush1.bf16.xpose.msra.mxu0 0
    %1114 = vmatprep.subr.bf16.mxu0 0
    %1115 = vmatpush1.bf16.xpose.msra.mxu0 0
    %1116 = vmatprep.subr.bf16.mxu0 0
    %1117 = vmatpush1.bf16.xpose.msra.mxu0 0
    %1118 = vmatprep.subr.bf16.mxu0 0
    %1119 = vmatpush1.bf16.xpose.msra.mxu0 0
    %1120 = vmatprep.subr.bf16.mxu0 0
    %1121 = vmatpush1.bf16.xpose.msra.mxu0 0
    %1122 = vmatprep.subr.bf16.mxu0 0
    %1123 = vmatpush1.bf16.xpose.msra.mxu0 0
    %1124 = vmatprep.subr.bf16.mxu0 0
    %1125 = vmatpush1.bf16.xpose.msra.mxu0 0
    %1126 = vmatprep.subr.bf16.mxu0 0
    %1127 = vmatpush1.bf16.xpose.msra.mxu0 %v1110
    %1128 = vmatprep.subr.bf16.mxu0 0
    %1129 = vmatpush2.bf16.xpose.msra.mxu0 0
    %1130 = vmatprep.subr.bf16.mxu0 0
    %1131 = vmatpush2.bf16.xpose.msra.mxu0 0
    %1132 = vmatprep.subr.bf16.mxu0 0
    %1133 = vmatpush2.bf16.xpose.msra.mxu0 0
    %1134 = vmatprep.subr.bf16.mxu0 0
    %1135 = vmatpush2.bf16.xpose.msra.mxu0 0
    %1136 = vmatprep.subr.bf16.mxu0 0
    %1137 = vmatpush2.bf16.xpose.msra.mxu0 0
    %1138 = vmatprep.subr.bf16.mxu0 0
    %1139 = vmatpush2.bf16.xpose.msra.mxu0 0
    %1140 = vmatprep.subr.bf16.mxu0 0
    %1141 = vmatpush2.bf16.xpose.msra.mxu0 0
    %1142 = vmatprep.subr.bf16.mxu0 0
    %1143 = vmatpush2.bf16.xpose.msra.mxu0 0
    %1144 = vmatprep.mubr.bf16.mxu0 0
    %1145 = vmatmul.mubr.bf16.gmra.mxu0 %v1107
    %v1146 = vpop.f32.mrf.mxu0
    %v1147 = vadd.f32 0.0, %v1146
    %v1148 = vpop.f32.mrf.mxu0
    %v1149 = vpop.f32.mrf.mxu0
    %v1150 = vpop.f32.mrf.mxu0
    %1151 = vdwg.mxu0
    %1153 = vrot.lane.b32.xlu0 %v1004, 112
    %v1154 = vpop.permute.xlu0 %1153
    %v1156 = vsel %vm156, %v1000, 0
    %v1159 = vsel %vm156, %v1154, 0
    %1161 = vmatprep.subr.bf16.mxu0 0
    %1162 = vmatpush1.bf16.xpose.msra.mxu0 0
    %1163 = vmatprep.subr.bf16.mxu0 0
    %1164 = vmatpush1.bf16.xpose.msra.mxu0 0
    %1165 = vmatprep.subr.bf16.mxu0 0
    %1166 = vmatpush1.bf16.xpose.msra.mxu0 0
    %1167 = vmatprep.subr.bf16.mxu0 0
    %1168 = vmatpush1.bf16.xpose.msra.mxu0 0
    %1169 = vmatprep.subr.bf16.mxu0 0
    %1170 = vmatpush1.bf16.xpose.msra.mxu0 0
    %1171 = vmatprep.subr.bf16.mxu0 0
    %1172 = vmatpush1.bf16.xpose.msra.mxu0 0
    %1173 = vmatprep.subr.bf16.mxu0 0
    %1174 = vmatpush1.bf16.xpose.msra.mxu0 0
    %1175 = vmatprep.subr.bf16.mxu0 0
    %1176 = vmatpush1.bf16.xpose.msra.mxu0 %v1159
    %1177 = vmatprep.subr.bf16.mxu0 0
    %1178 = vmatpush2.bf16.xpose.msra.mxu0 0
    %1179 = vmatprep.subr.bf16.mxu0 0
    %1180 = vmatpush2.bf16.xpose.msra.mxu0 0
    %1181 = vmatprep.subr.bf16.mxu0 0
    %1182 = vmatpush2.bf16.xpose.msra.mxu0 0
    %1183 = vmatprep.subr.bf16.mxu0 0
    %1184 = vmatpush2.bf16.xpose.msra.mxu0 0
    %1185 = vmatprep.subr.bf16.mxu0 0
    %1186 = vmatpush2.bf16.xpose.msra.mxu0 0
    %1187 = vmatprep.subr.bf16.mxu0 0
    %1188 = vmatpush2.bf16.xpose.msra.mxu0 0
    %1189 = vmatprep.subr.bf16.mxu0 0
    %1190 = vmatpush2.bf16.xpose.msra.mxu0 0
    %1191 = vmatprep.subr.bf16.mxu0 0
    %1192 = vmatpush2.bf16.xpose.msra.mxu0 0
    %1193 = vmatprep.mubr.bf16.mxu0 0
    %1194 = vmatmul.mubr.bf16.gmra.mxu0 %v1156
    %v1195 = vpop.f32.mrf.mxu0
    %v1196 = vadd.f32 0.0, %v1195
    %v1197 = vpop.f32.mrf.mxu0
    %v1198 = vpop.f32.mrf.mxu0
    %v1199 = vpop.f32.mrf.mxu0
    %1200 = vdwg.mxu0
    %v1201 = vsel %vm156, %v1049, -inf
    %1202 = vmax.xlane.f32.xlu0 %v1201
    %v1203 = vpop.xlane.xlu0 %1202
    %v1204 = vsel %vm156, %v1098, -inf
    %1205 = vmax.xlane.f32.xlu0 %v1204
    %v1206 = vpop.xlane.xlu0 %1205
    %v1207 = vsel %vm156, %v1147, -inf
    %1208 = vmax.xlane.f32.xlu0 %v1207
    %v1209 = vpop.xlane.xlu0 %1208
    %v1210 = vsel %vm156, %v1196, -inf
    %1211 = vmax.xlane.f32.xlu0 %v1210
    %v1212 = vpop.xlane.xlu0 %1211
    %v1213 = vsub.f32 %v1049, %v1203
    %v1214 = vsub.f32 %v1098, %v1206
    %v1215 = vsub.f32 %v1147, %v1209
    %v1216 = vsub.f32 %v1196, %v1212
    %v1217 = vmul.f32 %v1213, 1.442695
    %v1218 = vpow.pop %v1217
    %v1219 = vmul.f32 %v1214, 1.442695
    %v1220 = vpow.pop %v1219
    %v1221 = vmul.f32 %v1215, 1.442695
    %v1222 = vpow.pop %v1221
    %v1223 = vmul.f32 %v1216, 1.442695
    %v1224 = vpow.pop %v1223
    %v1225 = vsel %vm156, %v1218, 0.0
    %1226 = vadd.xlane.f32.xlu0 %v1225
    %v1227 = vpop.xlane.xlu0 %1226
    %v1228 = vsel %vm156, %v1220, 0.0
    %1229 = vadd.xlane.f32.xlu0 %v1228
    %v1230 = vpop.xlane.xlu0 %1229
    %v1231 = vsel %vm156, %v1222, 0.0
    %1232 = vadd.xlane.f32.xlu0 %v1231
    %v1233 = vpop.xlane.xlu0 %1232
    %v1234 = vsel %vm156, %v1224, 0.0
    %1235 = vadd.xlane.f32.xlu0 %v1234
    %v1236 = vpop.xlane.xlu0 %1235
    %v1237 = vrcp.pop %v1227
    %v1238 = vrcp.pop %v1230
    %v1239 = vrcp.pop %v1233
    %v1240 = vrcp.pop %v1236
    %v1241 = vmul.f32 %v1218, %v1237
    %v1242 = vmul.f32 %v1220, %v1238
    %v1243 = vmul.f32 %v1222, %v1239
    %v1244 = vmul.f32 %v1224, %v1240
    %v1245 = vpack.c.bf16 %v1241, %v1241
    %v1246 = vpack.c.bf16 %v1242, %v1242
    %v1247 = vpack.c.bf16 %v1243, %v1243
    %v1248 = vpack.c.bf16 %v1244, %v1244
    %1249 = vrot.lane.b32.xlu0 %v1001, 96
    %v1250 = vpop.permute.xlu0 %1249
    %v1252 = vsel %vm156, %v1245, 0
    %v1255 = vsel %vm403, %v1250, 0
    %1257 = vmatprep.subr.bf16.mxu0 0
    %1258 = vmatpush1.bf16.msra.mxu0 0
    %1259 = vmatprep.subr.bf16.mxu0 0
    %1260 = vmatpush1.bf16.msra.mxu0 0
    %1261 = vmatprep.subr.bf16.mxu0 0
    %1262 = vmatpush1.bf16.msra.mxu0 0
    %1263 = vmatprep.subr.bf16.mxu0 0
    %1264 = vmatpush1.bf16.msra.mxu0 0
    %1265 = vmatprep.subr.bf16.mxu0 0
    %1266 = vmatpush1.bf16.msra.mxu0 0
    %1267 = vmatprep.subr.bf16.mxu0 0
    %1268 = vmatpush1.bf16.msra.mxu0 0
    %1269 = vmatprep.subr.bf16.mxu0 0
    %1270 = vmatpush1.bf16.msra.mxu0 0
    %1271 = vmatprep.subr.bf16.mxu0 0
    %1272 = vmatpush1.bf16.msra.mxu0 %v1255
    %1273 = vmatprep.subr.bf16.mxu0 0
    %1274 = vmatpush2.bf16.msra.mxu0 0
    %1275 = vmatprep.subr.bf16.mxu0 0
    %1276 = vmatpush2.bf16.msra.mxu0 0
    %1277 = vmatprep.subr.bf16.mxu0 0
    %1278 = vmatpush2.bf16.msra.mxu0 0
    %1279 = vmatprep.subr.bf16.mxu0 0
    %1280 = vmatpush2.bf16.msra.mxu0 0
    %1281 = vmatprep.subr.bf16.mxu0 0
    %1282 = vmatpush2.bf16.msra.mxu0 0
    %1283 = vmatprep.subr.bf16.mxu0 0
    %1284 = vmatpush2.bf16.msra.mxu0 0
    %1285 = vmatprep.subr.bf16.mxu0 0
    %1286 = vmatpush2.bf16.msra.mxu0 0
    %1287 = vmatprep.subr.bf16.mxu0 0
    %1288 = vmatpush2.bf16.msra.mxu0 0
    %1289 = vmatprep.mubr.bf16.mxu0 0
    %1290 = vmatmul.mubr.bf16.gmra.mxu0 %v1252
    %v1291 = vpop.f32.mrf.mxu0
    %v1292 = vadd.f32 0.0, %v1291
    %v1293 = vpop.f32.mrf.mxu0
    %v1294 = vpop.f32.mrf.mxu0
    %v1295 = vpop.f32.mrf.mxu0
    %1296 = vdwg.mxu0
    %1297 = vrot.lane.b32.xlu0 %v1002, 96
    %v1298 = vpop.permute.xlu0 %1297
    %v1300 = vsel %vm156, %v1246, 0
    %v1303 = vsel %vm403, %v1298, 0
    %1305 = vmatprep.subr.bf16.mxu0 0
    %1306 = vmatpush1.bf16.msra.mxu0 0
    %1307 = vmatprep.subr.bf16.mxu0 0
    %1308 = vmatpush1.bf16.msra.mxu0 0
    %1309 = vmatprep.subr.bf16.mxu0 0
    %1310 = vmatpush1.bf16.msra.mxu0 0
    %1311 = vmatprep.subr.bf16.mxu0 0
    %1312 = vmatpush1.bf16.msra.mxu0 0
    %1313 = vmatprep.subr.bf16.mxu0 0
    %1314 = vmatpush1.bf16.msra.mxu0 0
    %1315 = vmatprep.subr.bf16.mxu0 0
    %1316 = vmatpush1.bf16.msra.mxu0 0
    %1317 = vmatprep.subr.bf16.mxu0 0
    %1318 = vmatpush1.bf16.msra.mxu0 0
    %1319 = vmatprep.subr.bf16.mxu0 0
    %1320 = vmatpush1.bf16.msra.mxu0 %v1303
    %1321 = vmatprep.subr.bf16.mxu0 0
    %1322 = vmatpush2.bf16.msra.mxu0 0
    %1323 = vmatprep.subr.bf16.mxu0 0
    %1324 = vmatpush2.bf16.msra.mxu0 0
    %1325 = vmatprep.subr.bf16.mxu0 0
    %1326 = vmatpush2.bf16.msra.mxu0 0
    %1327 = vmatprep.subr.bf16.mxu0 0
    %1328 = vmatpush2.bf16.msra.mxu0 0
    %1329 = vmatprep.subr.bf16.mxu0 0
    %1330 = vmatpush2.bf16.msra.mxu0 0
    %1331 = vmatprep.subr.bf16.mxu0 0
    %1332 = vmatpush2.bf16.msra.mxu0 0
    %1333 = vmatprep.subr.bf16.mxu0 0
    %1334 = vmatpush2.bf16.msra.mxu0 0
    %1335 = vmatprep.subr.bf16.mxu0 0
    %1336 = vmatpush2.bf16.msra.mxu0 0
    %1337 = vmatprep.mubr.bf16.mxu0 0
    %1338 = vmatmul.mubr.bf16.gmra.mxu0 %v1300
    %v1339 = vpop.f32.mrf.mxu0
    %v1340 = vadd.f32 0.0, %v1339
    %v1341 = vpop.f32.mrf.mxu0
    %v1342 = vpop.f32.mrf.mxu0
    %v1343 = vpop.f32.mrf.mxu0
    %1344 = vdwg.mxu0
    %1345 = vrot.lane.b32.xlu0 %v1003, 96
    %v1346 = vpop.permute.xlu0 %1345
    %v1348 = vsel %vm156, %v1247, 0
    %v1351 = vsel %vm403, %v1346, 0
    %1353 = vmatprep.subr.bf16.mxu0 0
    %1354 = vmatpush1.bf16.msra.mxu0 0
    %1355 = vmatprep.subr.bf16.mxu0 0
    %1356 = vmatpush1.bf16.msra.mxu0 0
    %1357 = vmatprep.subr.bf16.mxu0 0
    %1358 = vmatpush1.bf16.msra.mxu0 0
    %1359 = vmatprep.subr.bf16.mxu0 0
    %1360 = vmatpush1.bf16.msra.mxu0 0
    %1361 = vmatprep.subr.bf16.mxu0 0
    %1362 = vmatpush1.bf16.msra.mxu0 0
    %1363 = vmatprep.subr.bf16.mxu0 0
    %1364 = vmatpush1.bf16.msra.mxu0 0
    %1365 = vmatprep.subr.bf16.mxu0 0
    %1366 = vmatpush1.bf16.msra.mxu0 0
    %1367 = vmatprep.subr.bf16.mxu0 0
    %1368 = vmatpush1.bf16.msra.mxu0 %v1351
    %1369 = vmatprep.subr.bf16.mxu0 0
    %1370 = vmatpush2.bf16.msra.mxu0 0
    %1371 = vmatprep.subr.bf16.mxu0 0
    %1372 = vmatpush2.bf16.msra.mxu0 0
    %1373 = vmatprep.subr.bf16.mxu0 0
    %1374 = vmatpush2.bf16.msra.mxu0 0
    %1375 = vmatprep.subr.bf16.mxu0 0
    %1376 = vmatpush2.bf16.msra.mxu0 0
    %1377 = vmatprep.subr.bf16.mxu0 0
    %1378 = vmatpush2.bf16.msra.mxu0 0
    %1379 = vmatprep.subr.bf16.mxu0 0
    %1380 = vmatpush2.bf16.msra.mxu0 0
    %1381 = vmatprep.subr.bf16.mxu0 0
    %1382 = vmatpush2.bf16.msra.mxu0 0
    %1383 = vmatprep.subr.bf16.mxu0 0
    %1384 = vmatpush2.bf16.msra.mxu0 0
    %1385 = vmatprep.mubr.bf16.mxu0 0
    %1386 = vmatmul.mubr.bf16.gmra.mxu0 %v1348
    %v1387 = vpop.f32.mrf.mxu0
    %v1388 = vadd.f32 0.0, %v1387
    %v1389 = vpop.f32.mrf.mxu0
    %v1390 = vpop.f32.mrf.mxu0
    %v1391 = vpop.f32.mrf.mxu0
    %1392 = vdwg.mxu0
    %1393 = vrot.lane.b32.xlu0 %v1004, 96
    %v1394 = vpop.permute.xlu0 %1393
    %v1396 = vsel %vm156, %v1248, 0
    %v1399 = vsel %vm403, %v1394, 0
    %1401 = vmatprep.subr.bf16.mxu0 0
    %1402 = vmatpush1.bf16.msra.mxu0 0
    %1403 = vmatprep.subr.bf16.mxu0 0
    %1404 = vmatpush1.bf16.msra.mxu0 0
    %1405 = vmatprep.subr.bf16.mxu0 0
    %1406 = vmatpush1.bf16.msra.mxu0 0
    %1407 = vmatprep.subr.bf16.mxu0 0
    %1408 = vmatpush1.bf16.msra.mxu0 0
    %1409 = vmatprep.subr.bf16.mxu0 0
    %1410 = vmatpush1.bf16.msra.mxu0 0
    %1411 = vmatprep.subr.bf16.mxu0 0
    %1412 = vmatpush1.bf16.msra.mxu0 0
    %1413 = vmatprep.subr.bf16.mxu0 0
    %1414 = vmatpush1.bf16.msra.mxu0 0
    %1415 = vmatprep.subr.bf16.mxu0 0
    %1416 = vmatpush1.bf16.msra.mxu0 %v1399
    %1417 = vmatprep.subr.bf16.mxu0 0
    %1418 = vmatpush2.bf16.msra.mxu0 0
    %1419 = vmatprep.subr.bf16.mxu0 0
    %1420 = vmatpush2.bf16.msra.mxu0 0
    %1421 = vmatprep.subr.bf16.mxu0 0
    %1422 = vmatpush2.bf16.msra.mxu0 0
    %1423 = vmatprep.subr.bf16.mxu0 0
    %1424 = vmatpush2.bf16.msra.mxu0 0
    %1425 = vmatprep.subr.bf16.mxu0 0
    %1426 = vmatpush2.bf16.msra.mxu0 0
    %1427 = vmatprep.subr.bf16.mxu0 0
    %1428 = vmatpush2.bf16.msra.mxu0 0
    %1429 = vmatprep.subr.bf16.mxu0 0
    %1430 = vmatpush2.bf16.msra.mxu0 0
    %1431 = vmatprep.subr.bf16.mxu0 0
    %1432 = vmatpush2.bf16.msra.mxu0 0
    %1433 = vmatprep.mubr.bf16.mxu0 0
    %1434 = vmatmul.mubr.bf16.gmra.mxu0 %v1396
    %v1435 = vpop.f32.mrf.mxu0
    %v1436 = vadd.f32 0.0, %v1435
    %v1437 = vpop.f32.mrf.mxu0
    %v1438 = vpop.f32.mrf.mxu0
    %v1439 = vpop.f32.mrf.mxu0
    %1440 = vdwg.mxu0
    %s1441 = scalar_lea.vmem %s3, 8
    %v1442 = vld [vmem:[%s1441] sm:$0xf]
    %v1443 = vld [vmem:[%s1441 + $0x4] sm:$0xf]
    %v1444 = vpack.c.bf16 %v1340, %v1292
    %v1445 = vpack.c.bf16 %v1436, %v1388
    %v1447 = vsel %vm156, %v1445, 0
    %v1450 = vsel %vm403, %v1443, 0
    %1452 = vmatprep.subr.bf16.mxu0 0
    %1453 = vmatpush1.bf16.msra.mxu0 0
    %1454 = vmatprep.subr.bf16.mxu0 0
    %1455 = vmatpush1.bf16.msra.mxu0 0
    %1456 = vmatprep.subr.bf16.mxu0 0
    %1457 = vmatpush1.bf16.msra.mxu0 0
    %1458 = vmatprep.subr.bf16.mxu0 0
    %1459 = vmatpush1.bf16.msra.mxu0 0
    %1460 = vmatprep.subr.bf16.mxu0 0
    %1461 = vmatpush1.bf16.msra.mxu0 0
    %1462 = vmatprep.subr.bf16.mxu0 0
    %1463 = vmatpush1.bf16.msra.mxu0 0
    %1464 = vmatprep.subr.bf16.mxu0 0
    %1465 = vmatpush1.bf16.msra.mxu0 0
    %1466 = vmatprep.subr.bf16.mxu0 0
    %1467 = vmatpush1.bf16.msra.mxu0 %v1450
    %1468 = vmatprep.subr.bf16.mxu0 0
    %1469 = vmatpush2.bf16.msra.mxu0 0
    %1470 = vmatprep.subr.bf16.mxu0 0
    %1471 = vmatpush2.bf16.msra.mxu0 0
    %1472 = vmatprep.subr.bf16.mxu0 0
    %1473 = vmatpush2.bf16.msra.mxu0 0
    %1474 = vmatprep.subr.bf16.mxu0 0
    %1475 = vmatpush2.bf16.msra.mxu0 0
    %1476 = vmatprep.subr.bf16.mxu0 0
    %1477 = vmatpush2.bf16.msra.mxu0 0
    %1478 = vmatprep.subr.bf16.mxu0 0
    %1479 = vmatpush2.bf16.msra.mxu0 0
    %1480 = vmatprep.subr.bf16.mxu0 0
    %1481 = vmatpush2.bf16.msra.mxu0 0
    %1482 = vmatprep.subr.bf16.mxu0 0
    %1483 = vmatpush2.bf16.msra.mxu0 0
    %1484 = vmatprep.mubr.bf16.mxu0 0
    %1485 = vmatmul.mubr.bf16.gmra.mxu0 %v1447
    %v1486 = vpop.f32.mrf.mxu0
    %v1487 = vadd.f32 0.0, %v1486
    %v1488 = vpop.f32.mrf.mxu0
    %v1489 = vpop.f32.mrf.mxu0
    %v1490 = vadd.f32 0.0, %v1489
    %v1491 = vpop.f32.mrf.mxu0
    %1492 = vdwg.mxu0
    %v1494 = vsel %vm156, %v1444, 0
    %v1497 = vsel %vm403, %v1442, 0
    %1499 = vmatprep.subr.bf16.mxu0 0
    %1500 = vmatpush1.bf16.msra.mxu0 0
    %1501 = vmatprep.subr.bf16.mxu0 0
    %1502 = vmatpush1.bf16.msra.mxu0 0
    %1503 = vmatprep.subr.bf16.mxu0 0
    %1504 = vmatpush1.bf16.msra.mxu0 0
    %1505 = vmatprep.subr.bf16.mxu0 0
    %1506 = vmatpush1.bf16.msra.mxu0 0
    %1507 = vmatprep.subr.bf16.mxu0 0
    %1508 = vmatpush1.bf16.msra.mxu0 0
    %1509 = vmatprep.subr.bf16.mxu0 0
    %1510 = vmatpush1.bf16.msra.mxu0 0
    %1511 = vmatprep.subr.bf16.mxu0 0
    %1512 = vmatpush1.bf16.msra.mxu0 0
    %1513 = vmatprep.subr.bf16.mxu0 0
    %1514 = vmatpush1.bf16.msra.mxu0 %v1497
    %1515 = vmatprep.subr.bf16.mxu0 0
    %1516 = vmatpush2.bf16.msra.mxu0 0
    %1517 = vmatprep.subr.bf16.mxu0 0
    %1518 = vmatpush2.bf16.msra.mxu0 0
    %1519 = vmatprep.subr.bf16.mxu0 0
    %1520 = vmatpush2.bf16.msra.mxu0 0
    %1521 = vmatprep.subr.bf16.mxu0 0
    %1522 = vmatpush2.bf16.msra.mxu0 0
    %1523 = vmatprep.subr.bf16.mxu0 0
    %1524 = vmatpush2.bf16.msra.mxu0 0
    %1525 = vmatprep.subr.bf16.mxu0 0
    %1526 = vmatpush2.bf16.msra.mxu0 0
    %1527 = vmatprep.subr.bf16.mxu0 0
    %1528 = vmatpush2.bf16.msra.mxu0 0
    %1529 = vmatprep.subr.bf16.mxu0 0
    %1530 = vmatpush2.bf16.msra.mxu0 0
    %1531 = vmatprep.mubr.bf16.mxu0 0
    %1532 = vmatmul.mubr.bf16.gmra.mxu0 %v1494
    %v1533 = vpop.f32.mrf.mxu0
    %v1534 = vadd.f32 %v1487, %v1533
    %v1535 = vpop.f32.mrf.mxu0
    %v1536 = vpop.f32.mrf.mxu0
    %v1537 = vadd.f32 %v1490, %v1536
    %v1538 = vpop.f32.mrf.mxu0
    %1539 = vdwg.mxu0
    %v1540 = vadd.f32 %v889, %v1534
    %v1541 = vadd.f32 %v890, %v1537
    %v1542 = vsel %vm40, %v1540, 0.0
    %1543 = vadd.xlane.f32.xlu0 %v1542
    %v1544 = vpop.xlane.xlu0 %1543
    %v1545 = vsel %vm40, %v1541, 0.0
    %1546 = vadd.xlane.f32.xlu0 %v1545
    %v1547 = vpop.xlane.xlu0 %1546
    %v1548 = vmul.f32 %v1544, %v47
    %v1549 = vmul.f32 %v1547, %v47
    %v1550 = vsub.f32 %v1540, %v1548
    %v1551 = vsub.f32 %v1541, %v1549
    %v1552 = vmul.f32 %v1550, %v1550
    %v1553 = vmul.f32 %v1551, %v1551
    %v1554 = vsel %vm40, %v1552, 0.0
    %1555 = vadd.xlane.f32.xlu0 %v1554
    %v1556 = vpop.xlane.xlu0 %1555
    %v1557 = vsel %vm40, %v1553, 0.0
    %1558 = vadd.xlane.f32.xlu0 %v1557
    %v1559 = vpop.xlane.xlu0 %1558
    %v1560 = vmul.f32 %v1556, %v47
    %v1561 = vmul.f32 %v1559, %v47
    %v1562 = vadd.f32 %v1560, 1e-05
    %v1563 = vadd.f32 %v1561, 1e-05
    %v1564 = vrsqrt.pop %v1562
    %v1565 = vrsqrt.pop %v1563
    %v1566 = vmul.f32 %v1550, %v1564
    %v1567 = vmul.f32 %v1551, %v1565
    %v1568 = vlaneseq
    %v1569 = vshrl.u32 %v1568, 7
    %v1570 = vsub.s32 2, %v1569
    %v1571 = vrot.slane %v892, %v1570
    %v1572 = vmul.f32 %v1566, %v1571
    %v1573 = vmul.f32 %v1567, %v1571
    %v1574 = vlaneseq
    %v1575 = vshrl.u32 %v1574, 7
    %v1576 = vsub.s32 3, %v1575
    %v1577 = vrot.slane %v892, %v1576
    %v1578 = vadd.f32 %v1572, %v1577
    %v1579 = vadd.f32 %v1573, %v1577
    %s1580 = scalar_lea.vmem %s6, 2
    %v1581 = vld [vmem:[%s1580] sm:$0x3]
    %s1582 = scalar_lea.vmem %s4, 8
    %v1583 = vld [vmem:[%s1582] sm:$0xf]
    %v1584 = vld [vmem:[%s1582 + $0x4] sm:$0xf]
    %v1585 = vpack.c.bf16 %v1579, %v1578
    %v1586 = vlaneseq
    %v1587 = vshrl.u32 %v1586, 7
    %v1588 = vsub.s32 0, %v1587
    %v1589 = vrot.slane %v1581, %v1588
    %v1592 = vunpack.c.l.b16 %v1583
    %v1593 = vunpack.c.l.b16 %v1584
    %v1594 = vpack.c.b16 %v1593, %v1592
    %v1597 = vsel %vm40, %v1585, 0
    %1599 = vmatprep.subr.bf16.mxu0 0
    %1600 = vmatpush1.bf16.msra.mxu0 0
    %1601 = vmatprep.subr.bf16.mxu0 0
    %1602 = vmatpush1.bf16.msra.mxu0 0
    %1603 = vmatprep.subr.bf16.mxu0 0
    %1604 = vmatpush1.bf16.msra.mxu0 0
    %1605 = vmatprep.subr.bf16.mxu0 0
    %1606 = vmatpush1.bf16.msra.mxu0 0
    %1607 = vmatprep.subr.bf16.mxu0 0
    %1608 = vmatpush1.bf16.msra.mxu0 0
    %1609 = vmatprep.subr.bf16.mxu0 0
    %1610 = vmatpush1.bf16.msra.mxu0 0
    %1611 = vmatprep.subr.bf16.mxu0 0
    %1612 = vmatpush1.bf16.msra.mxu0 0
    %1613 = vmatprep.subr.bf16.mxu0 0
    %1614 = vmatpush1.bf16.msra.mxu0 %v1594
    %1615 = vmatprep.subr.bf16.mxu0 0
    %1616 = vmatpush2.bf16.msra.mxu0 0
    %1617 = vmatprep.subr.bf16.mxu0 0
    %1618 = vmatpush2.bf16.msra.mxu0 0
    %1619 = vmatprep.subr.bf16.mxu0 0
    %1620 = vmatpush2.bf16.msra.mxu0 0
    %1621 = vmatprep.subr.bf16.mxu0 0
    %1622 = vmatpush2.bf16.msra.mxu0 0
    %1623 = vmatprep.subr.bf16.mxu0 0
    %1624 = vmatpush2.bf16.msra.mxu0 0
    %1625 = vmatprep.subr.bf16.mxu0 0
    %1626 = vmatpush2.bf16.msra.mxu0 0
    %1627 = vmatprep.subr.bf16.mxu0 0
    %1628 = vmatpush2.bf16.msra.mxu0 0
    %1629 = vmatprep.subr.bf16.mxu0 0
    %1630 = vmatpush2.bf16.msra.mxu0 0
    %1631 = vmatprep.mubr.bf16.mxu0 0
    %1632 = vmatmul.mubr.bf16.gmra.mxu0 %v1597
    %v1633 = vpop.f32.mrf.mxu0
    %v1634 = vadd.f32 %v1589, %v1633
    %v1635 = vpop.f32.mrf.mxu0
    %v1636 = vpop.f32.mrf.mxu0
    %v1637 = vadd.f32 %v1589, %v1636
    %v1638 = vpop.f32.mrf.mxu0
    %1639 = vdwg.mxu0
    %v1640 = vmul.f32 %v1634, 0.5
    %v1641 = vmul.f32 %v1637, 0.5
    %v1642 = vmul.f32 %v1634, 0.044715
    %v1643 = vmul.f32 %v1637, 0.044715
    %v1644 = vmul.f32 %v1642, %v1634
    %v1645 = vmul.f32 %v1643, %v1637
    %v1646 = vmul.f32 %v1644, %v1634
    %v1647 = vmul.f32 %v1645, %v1637
    %v1648 = vadd.f32 %v1634, %v1646
    %v1649 = vadd.f32 %v1637, %v1647
    %v1650 = vmul.f32 %v1648, 0.7978846
    %v1651 = vmul.f32 %v1649, 0.7978846
    %v1652 = vtanh.pop %v1650
    %v1653 = vtanh.pop %v1651
    %v1654 = vadd.f32 %v1652, 1.0
    %v1655 = vadd.f32 %v1653, 1.0
    %v1656 = vmul.f32 %v1640, %v1654
    %v1657 = vmul.f32 %v1641, %v1655
    %s1658 = scalar_lea.vmem %s5, 32
    %v1659 = vld [vmem:[%s1658] sm:$0xf]
    %v1660 = vld [vmem:[%s1658 + $0x4] sm:$0xf]
    %v1661 = vld [vmem:[%s1658 + $0x8] sm:$0xf]
    %v1662 = vld [vmem:[%s1658 + $0xc] sm:$0xf]
    %v1663 = vld [vmem:[%s1658 + $0x10] sm:$0xf]
    %v1664 = vld [vmem:[%s1658 + $0x14] sm:$0xf]
    %v1665 = vld [vmem:[%s1658 + $0x18] sm:$0xf]
    %v1666 = vld [vmem:[%s1658 + $0x1c] sm:$0xf]
    %v1667 = vpack.c.bf16 %v1657, %v1656
    %v1676 = vunpack.c.l.b16 %v1659
    %v1677 = vunpack.c.l.b16 %v1660
    %v1678 = vunpack.c.l.b16 %v1661
    %v1679 = vunpack.c.l.b16 %v1662
    %v1680 = vunpack.c.l.b16 %v1663
    %v1681 = vunpack.c.l.b16 %v1664
    %v1682 = vunpack.c.l.b16 %v1665
    %v1683 = vunpack.c.l.b16 %v1666
    %v1684 = vpack.c.b16 %v1677, %v1676
    %v1685 = vpack.c.b16 %v1679, %v1678
    %v1686 = vpack.c.b16 %v1681, %v1680
    %v1687 = vpack.c.b16 %v1683, %v1682
    %v1693 = vsel %vm838, %v1667, 0
    %1695 = vmatprep.subr.bf16.mxu0 0
    %1696 = vmatpush1.bf16.msra.mxu0 0
    %1697 = vmatprep.subr.bf16.mxu0 0
    %1698 = vmatpush1.bf16.msra.mxu0 0
    %1699 = vmatprep.subr.bf16.mxu0 0
    %1700 = vmatpush1.bf16.msra.mxu0 0
    %1701 = vmatprep.subr.bf16.mxu0 0
    %1702 = vmatpush1.bf16.msra.mxu0 0
    %1703 = vmatprep.subr.bf16.mxu0 0
    %1704 = vmatpush1.bf16.msra.mxu0 %v1687
    %1705 = vmatprep.subr.bf16.mxu0 0
    %1706 = vmatpush1.bf16.msra.mxu0 %v1686
    %1707 = vmatprep.subr.bf16.mxu0 0
    %1708 = vmatpush1.bf16.msra.mxu0 %v1685
    %1709 = vmatprep.subr.bf16.mxu0 0
    %1710 = vmatpush1.bf16.msra.mxu0 %v1684
    %1711 = vmatprep.subr.bf16.mxu0 0
    %1712 = vmatpush2.bf16.msra.mxu0 0
    %1713 = vmatprep.subr.bf16.mxu0 0
    %1714 = vmatpush2.bf16.msra.mxu0 0
    %1715 = vmatprep.subr.bf16.mxu0 0
    %1716 = vmatpush2.bf16.msra.mxu0 0
    %1717 = vmatprep.subr.bf16.mxu0 0
    %1718 = vmatpush2.bf16.msra.mxu0 0
    %1719 = vmatprep.subr.bf16.mxu0 0
    %1720 = vmatpush2.bf16.msra.mxu0 0
    %1721 = vmatprep.subr.bf16.mxu0 0
    %1722 = vmatpush2.bf16.msra.mxu0 0
    %1723 = vmatprep.subr.bf16.mxu0 0
    %1724 = vmatpush2.bf16.msra.mxu0 0
    %1725 = vmatprep.subr.bf16.mxu0 0
    %1726 = vmatpush2.bf16.msra.mxu0 0
    %1727 = vmatprep.mubr.bf16.mxu0 0
    %1728 = vmatmul.mubr.bf16.gmra.mxu0 %v1693
    %v1729 = vpop.f32.mrf.mxu0
    %v1730 = vadd.f32 0.0, %v1729
    %v1731 = vpop.f32.mrf.mxu0
    %v1732 = vpop.f32.mrf.mxu0
    %v1733 = vadd.f32 0.0, %v1732
    %v1734 = vpop.f32.mrf.mxu0
    %1735 = vdwg.mxu0
    %v1736 = vadd.f32 %v1540, %v1730
    %v1737 = vadd.f32 %v1541, %v1733
    %v1738 = vlaneseq
    %v1739 = vshrl.u32 %v1738, 7
    %v1740 = vsub.s32 1, %v1739
    %v1741 = vrot.slane %v1581, %v1740
    %v1742 = vadd.f32 %v1736, %v1741
    %v1743 = vadd.f32 %v1737, %v1741
    %v1744 = vld [vmem:[%s7] sm:$0x3]
    %v1745 = vsel %vm40, %v1742, 0.0
    %1746 = vadd.xlane.f32.xlu0 %v1745
    %v1747 = vpop.xlane.xlu0 %1746
    %v1748 = vsel %vm40, %v1743, 0.0
    %1749 = vadd.xlane.f32.xlu0 %v1748
    %v1750 = vpop.xlane.xlu0 %1749
    %v1751 = vmul.f32 %v1747, %v47
    %v1752 = vmul.f32 %v1750, %v47
    %v1753 = vsub.f32 %v1742, %v1751
    %v1754 = vsub.f32 %v1743, %v1752
    %v1755 = vmul.f32 %v1753, %v1753
    %v1756 = vmul.f32 %v1754, %v1754
    %v1757 = vsel %vm40, %v1755, 0.0
    %1758 = vadd.xlane.f32.xlu0 %v1757
    %v1759 = vpop.xlane.xlu0 %1758
    %v1760 = vsel %vm40, %v1756, 0.0
    %1761 = vadd.xlane.f32.xlu0 %v1760
    %v1762 = vpop.xlane.xlu0 %1761
    %v1763 = vmul.f32 %v1759, %v47
    %v1764 = vmul.f32 %v1762, %v47
    %v1765 = vadd.f32 %v1763, 1e-05
    %v1766 = vadd.f32 %v1764, 1e-05
    %v1767 = vrsqrt.pop %v1765
    %v1768 = vrsqrt.pop %v1766
    %v1769 = vmul.f32 %v1753, %v1767
    %v1770 = vmul.f32 %v1754, %v1768
    %v1771 = vlaneseq
    %v1772 = vshrl.u32 %v1771, 7
    %v1773 = vsub.s32 0, %v1772
    %v1774 = vrot.slane %v1744, %v1773
    %v1775 = vmul.f32 %v1769, %v1774
    %v1776 = vmul.f32 %v1770, %v1774
    %v1777 = vlaneseq
    %v1778 = vshrl.u32 %v1777, 7
    %v1779 = vsub.s32 1, %v1778
    %v1780 = vrot.slane %v1744, %v1779
    %v1781 = vadd.f32 %v1775, %v1780
    %v1782 = vadd.f32 %v1776, %v1780
    %v1783 = vld [vmem:[%s8] sm:$0xf]
    %v1784 = vld [vmem:[%s8 + $0x4] sm:$0xf]
    %v1785 = vld [vmem:[%s8 + $0x8] sm:$0xf]
    %v1786 = vld [vmem:[%s8 + $0xc] sm:$0xf]
    %v1787 = vpack.c.bf16 %v1782, %v1781
    %v1788 = vld [vmem:[%s9] sm:$0x1]
    %v1790 = vlaneseq
    %v1791 = vshrl.u32 %v1790, 7
    %v1792 = vsub.s32 0, %v1791
    %v1793 = vrot.slane %v1788, %v1792
    %v1799 = vunpack.c.l.b16 %v1783
    %v1800 = vunpack.c.l.b16 %v1784
    %v1801 = vunpack.c.l.b16 %v1785
    %v1802 = vunpack.c.l.b16 %v1786
    %v1803 = vpack.c.b16 %v1800, %v1799
    %v1804 = vpack.c.b16 %v1802, %v1801
    %v1806 = vsel %vm40, %v1787, 0
    %v1809 = vsel %vm40, %v1803, 0
    %v1812 = vsel %vm40, %v1804, 0
    %1814 = vmatprep.subr.bf16.mxu0 0
    %1815 = vmatpush1.bf16.xpose.msra.mxu0 0
    %1816 = vmatprep.subr.bf16.mxu0 0
    %1817 = vmatpush1.bf16.xpose.msra.mxu0 0
    %1818 = vmatprep.subr.bf16.mxu0 0
    %1819 = vmatpush1.bf16.xpose.msra.mxu0 0
    %1820 = vmatprep.subr.bf16.mxu0 0
    %1821 = vmatpush1.bf16.xpose.msra.mxu0 0
    %1822 = vmatprep.subr.bf16.mxu0 0
    %1823 = vmatpush1.bf16.xpose.msra.mxu0 0
    %1824 = vmatprep.subr.bf16.mxu0 0
    %1825 = vmatpush1.bf16.xpose.msra.mxu0 0
    %1826 = vmatprep.subr.bf16.mxu0 0
    %1827 = vmatpush1.bf16.xpose.msra.mxu0 %v1812
    %1828 = vmatprep.subr.bf16.mxu0 0
    %1829 = vmatpush1.bf16.xpose.msra.mxu0 %v1809
    %1830 = vmatprep.subr.bf16.mxu0 0
    %1831 = vmatpush2.bf16.xpose.msra.mxu0 0
    %1832 = vmatprep.subr.bf16.mxu0 0
    %1833 = vmatpush2.bf16.xpose.msra.mxu0 0
    %1834 = vmatprep.subr.bf16.mxu0 0
    %1835 = vmatpush2.bf16.xpose.msra.mxu0 0
    %1836 = vmatprep.subr.bf16.mxu0 0
    %1837 = vmatpush2.bf16.xpose.msra.mxu0 0
    %1838 = vmatprep.subr.bf16.mxu0 0
    %1839 = vmatpush2.bf16.xpose.msra.mxu0 0
    %1840 = vmatprep.subr.bf16.mxu0 0
    %1841 = vmatpush2.bf16.xpose.msra.mxu0 0
    %1842 = vmatprep.subr.bf16.mxu0 0
    %1843 = vmatpush2.bf16.xpose.msra.mxu0 0
    %1844 = vmatprep.subr.bf16.mxu0 0
    %1845 = vmatpush2.bf16.xpose.msra.mxu0 0
    %1846 = vmatprep.mubr.bf16.mxu0 0
    %1847 = vmatmul.mubr.bf16.gmra.mxu0 %v1806
    %v1848 = vpop.f32.mrf.mxu0
    %v1849 = vadd.f32 %v1793, %v1848
    %v1850 = vpop.f32.mrf.mxu0
    %v1851 = vpop.f32.mrf.mxu0
    %v1852 = vadd.f32 %v1793, %v1851
    %v1853 = vpop.f32.mrf.mxu0
    %1854 = vdwg.mxu0
    %vm1855 = vcmask 261120
    %1856 = vst.msk [vmem:[#allocation2] sm:$0xff] %vm1855, %v1849
    %1857 = vst.msk [vmem:[#allocation2 + $0x8] sm:$0xff] %vm1855, %v1852
    // Predicated region
    $region42: #{tipae_forward.9} parent=1 // pred_check
      _
    $region43: #{tipae_forward.9} parent=1 // pred_check_branch
      %1859 = sbr.rel (0) target = $region45
    $region44: #{tipae_forward.9} parent=1 // pred_region
      %s1861 = ssub.s32 256, 256
      %1862 = vsyncadd [#allocation3], %s1861
      %s1863 = sshll.u32 [#allocation2], 4
      %s1864 = int_to_ptr.vmem [resolvable:$true] %s1863
      %1869 = dma.vmem_to_hbm [thread:$0]  %s1864, 256, %s10, [#allocation3], 128, 128, 8
    $region45: #{tipae_forward.9} parent=1 // pred_fallthru
      _
    // Predicated region
    $region46: #{tipae_forward.9} parent=1 // pred_check
      _
    $region47: #{tipae_forward.9} parent=1 // pred_check_branch
      %1871 = sbr.rel (0) target = $region49
    $region48: #{tipae_forward.9} parent=1 // pred_region
      %1872 = dma.done [#allocation3], 256
    $region49: #{tipae_forward.9} parent=1 // pred_fallthru
      _
    %1873 = vsyncpa [#allocation3], 1

// kernel: tipae_forward.7
$region0: #{tipae_forward.7}
  #allocation0 [shape = 'u32[]', space=smem, size = 0x4, offset = 0x4, fixed_abs, tag = 'smem constant byte address 0x4 - core index']
  #allocation1 [shape = 'u32[144,128]{1,0:T(1,128)}', space=vmem, size = 0x12000, scoped, tag = 'internal scratch']
  %s0 = inlined_call_operand.vmem [shape: f32[27,512], index: 0, kind: input, shape index: {}]
  %s1 = inlined_call_operand.vmem [shape: f32[3,27], index: 1, kind: input, shape index: {}]
  %s2 = inlined_call_operand.vmem [shape: f32[3,1], index: 2, kind: input, shape index: {}]
  %s3 = inlined_call_operand.vmem [shape: f32[3,512], index: 3, kind: output, shape index: {}]
  %s4 = sld [smem:[#allocation0]]
  $region22: #{tipae_forward.7} parent=0
    _
  %s6 = ssub.s32 1, %s4
  %s7 = scalar_select 0, %s6, %s4
  // Predicated region
  $region2: #{tipae_forward.7} parent=0 // pred_check
    _
  $region3: #{tipae_forward.7} parent=0 // pred_check_branch
    %9 = sbr.rel (0) target = $region5
  $region4: #{tipae_forward.7} parent=0 // pred_region
    _
  $region5: #{tipae_forward.7} parent=0 // pred_fallthru
    _
  // Predicated region
  $region6: #{tipae_forward.7} parent=0 // pred_check
    _
  $region7: #{tipae_forward.7} parent=0 // pred_check_branch
    %11 = sbr.rel (0) target = $region9
  $region8: #{tipae_forward.7} parent=0 // pred_region
    _
  $region9: #{tipae_forward.7} parent=0 // pred_fallthru
    _
  // Predicated region
  $region10: #{tipae_forward.7} parent=0 // pred_check
    _
  $region11: #{tipae_forward.7} parent=0 // pred_check_branch
    %13 = sbr.rel (0) target = $region13
  $region12: #{tipae_forward.7} parent=0 // pred_region
    _
  $region13: #{tipae_forward.7} parent=0 // pred_fallthru
    _
  %v15 = vld [vmem:[%s1] sm:$0x7]
  %v16 = vld [vmem:[%s0] sm:$0xff]
  %v17 = vld [vmem:[%s0 + $0x8] sm:$0xff]
  %v18 = vld [vmem:[%s0 + $0x10] sm:$0xff]
  %v19 = vld [vmem:[%s0 + $0x18] sm:$0xff]
  %v20 = vld [vmem:[%s0 + $0x20] sm:$0xff]
  %v21 = vld [vmem:[%s0 + $0x28] sm:$0xff]
  %v22 = vld [vmem:[%s0 + $0x30] sm:$0xff]
  %v23 = vld [vmem:[%s0 + $0x38] sm:$0xff]
  %v24 = vld [vmem:[%s0 + $0x40] sm:$0xff]
  %v25 = vld [vmem:[%s0 + $0x48] sm:$0xff]
  %v26 = vld [vmem:[%s0 + $0x50] sm:$0xff]
  %v27 = vld [vmem:[%s0 + $0x58] sm:$0xff]
  %v28 = vld [vmem:[%s0 + $0x60] sm:$0x7]
  %v29 = vld [vmem:[%s0 + $0x68] sm:$0x7]
  %v30 = vld [vmem:[%s0 + $0x70] sm:$0x7]
  %v31 = vld [vmem:[%s0 + $0x78] sm:$0x7]
  %v32 = vpack.c.bf16 %v15, %v15
  %v33 = vpack.c.bf16 %v20, %v16
  %v34 = vpack.c.bf16 %v21, %v17
  %v35 = vpack.c.bf16 %v22, %v18
  %v36 = vpack.c.bf16 %v23, %v19
  %v37 = vpack.c.bf16 %v28, %v24
  %v38 = vpack.c.bf16 %v29, %v25
  %v39 = vpack.c.bf16 %v30, %v26
  %v40 = vpack.c.bf16 %v31, %v27
  %v41 = vld [vmem:[%s2] sm:$0x7]
  %43 = vset.pattern.permute.xlu0 0
  %44 = vperm.xlu0 %43, %v41
  %v45 = vpop.permute.xlu0 %44
  %vm47 = vcmask 220160
  %v49 = vsel %vm47, %v32, 0
  %vm51 = vcmask 1044480
  %vm52 = vcmask 1045504
  %v53 = vsel %vm51, 4294967295, 65535
  %v54 = vsel %vm52, %v53, 0
  %v56 = vand.u32 %v37, %v54
  %v59 = vand.u32 %v38, %v54
  %v62 = vand.u32 %v39, %v54
  %v65 = vand.u32 %v40, %v54
  %67 = vmatprep.subr.bf16.mxu0 0
  %68 = vmatpush1.bf16.msra.mxu0 0
  %69 = vmatprep.subr.bf16.mxu0 0
  %70 = vmatpush1.bf16.msra.mxu0 0
  %71 = vmatprep.subr.bf16.mxu0 0
  %72 = vmatpush1.bf16.msra.mxu0 0
  %73 = vmatprep.subr.bf16.mxu0 0
  %74 = vmatpush1.bf16.msra.mxu0 0
  %75 = vmatprep.subr.bf16.mxu0 0
  %76 = vmatpush1.bf16.msra.mxu0 0
  %77 = vmatprep.subr.bf16.mxu0 0
  %78 = vmatpush1.bf16.msra.mxu0 0
  %79 = vmatprep.subr.bf16.mxu0 %v59
  %80 = vmatpush1.bf16.msra.mxu0 %v56
  %81 = vmatprep.subr.bf16.mxu0 %v34
  %82 = vmatpush1.bf16.msra.mxu0 %v33
  %83 = vmatprep.subr.bf16.mxu0 0
  %84 = vmatpush2.bf16.msra.mxu0 0
  %85 = vmatprep.subr.bf16.mxu0 0
  %86 = vmatpush2.bf16.msra.mxu0 0
  %87 = vmatprep.subr.bf16.mxu0 0
  %88 = vmatpush2.bf16.msra.mxu0 0
  %89 = vmatprep.subr.bf16.mxu0 0
  %90 = vmatpush2.bf16.msra.mxu0 0
  %91 = vmatprep.subr.bf16.mxu0 0
  %92 = vmatpush2.bf16.msra.mxu0 0
  %93 = vmatprep.subr.bf16.mxu0 0
  %94 = vmatpush2.bf16.msra.mxu0 0
  %95 = vmatprep.subr.bf16.mxu0 0
  %96 = vmatpush2.bf16.msra.mxu0 0
  %97 = vmatprep.subr.bf16.mxu0 0
  %98 = vmatpush2.bf16.msra.mxu0 0
  %99 = vmatprep.mubr.bf16.mxu0 0
  %100 = vmatmul.mubr.bf16.gmra.mxu0 %v49
  %v101 = vpop.f32.mrf.mxu0
  %v102 = vadd.f32 %v45, %v101
  %v103 = vpop.f32.mrf.mxu0
  %v104 = vadd.f32 %v45, %v103
  %v105 = vpop.f32.mrf.mxu0
  %v106 = vpop.f32.mrf.mxu0
  %107 = vdwg.mxu0
  %108 = vmatprep.subr.bf16.mxu0 0
  %109 = vmatpush1.bf16.msra.mxu0 0
  %110 = vmatprep.subr.bf16.mxu0 0
  %111 = vmatpush1.bf16.msra.mxu0 0
  %112 = vmatprep.subr.bf16.mxu0 0
  %113 = vmatpush1.bf16.msra.mxu0 0
  %114 = vmatprep.subr.bf16.mxu0 0
  %115 = vmatpush1.bf16.msra.mxu0 0
  %116 = vmatprep.subr.bf16.mxu0 0
  %117 = vmatpush1.bf16.msra.mxu0 0
  %118 = vmatprep.subr.bf16.mxu0 0
  %119 = vmatpush1.bf16.msra.mxu0 0
  %120 = vmatprep.subr.bf16.mxu0 %v65
  %121 = vmatpush1.bf16.msra.mxu0 %v62
  %122 = vmatprep.subr.bf16.mxu0 %v36
  %123 = vmatpush1.bf16.msra.mxu0 %v35
  %124 = vmatprep.subr.bf16.mxu0 0
  %125 = vmatpush2.bf16.msra.mxu0 0
  %126 = vmatprep.subr.bf16.mxu0 0
  %127 = vmatpush2.bf16.msra.mxu0 0
  %128 = vmatprep.subr.bf16.mxu0 0
  %129 = vmatpush2.bf16.msra.mxu0 0
  %130 = vmatprep.subr.bf16.mxu0 0
  %131 = vmatpush2.bf16.msra.mxu0 0
  %132 = vmatprep.subr.bf16.mxu0 0
  %133 = vmatpush2.bf16.msra.mxu0 0
  %134 = vmatprep.subr.bf16.mxu0 0
  %135 = vmatpush2.bf16.msra.mxu0 0
  %136 = vmatprep.subr.bf16.mxu0 0
  %137 = vmatpush2.bf16.msra.mxu0 0
  %138 = vmatprep.subr.bf16.mxu0 0
  %139 = vmatpush2.bf16.msra.mxu0 0
  %140 = vmatprep.mubr.bf16.mxu0 0
  %141 = vmatmul.mubr.bf16.gmra.mxu0 %v49
  %v142 = vpop.f32.mrf.mxu0
  %v143 = vadd.f32 %v45, %v142
  %v144 = vpop.f32.mrf.mxu0
  %v145 = vadd.f32 %v45, %v144
  %v146 = vpop.f32.mrf.mxu0
  %v147 = vpop.f32.mrf.mxu0
  %148 = vdwg.mxu0
  %v149 = vsub.f32 0.0, %v102
  %v150 = vsub.f32 0.0, %v104
  %v151 = vsub.f32 0.0, %v143
  %v152 = vsub.f32 0.0, %v145
  %v153 = vmul.f32 %v149, 1.442695
  %v154 = vpow.pop %v153
  %v155 = vmul.f32 %v150, 1.442695
  %v156 = vpow.pop %v155
  %v157 = vmul.f32 %v151, 1.442695
  %v158 = vpow.pop %v157
  %v159 = vmul.f32 %v152, 1.442695
  %v160 = vpow.pop %v159
  %v161 = vadd.f32 %v154, 1.0
  %v162 = vadd.f32 %v156, 1.0
  %v163 = vadd.f32 %v158, 1.0
  %v164 = vadd.f32 %v160, 1.0
  %v165 = vrcp.pop %v161
  %v166 = vmul.f32 1.0, %v165
  %v167 = vrcp.pop %v162
  %v168 = vmul.f32 1.0, %v167
  %v169 = vrcp.pop %v163
  %v170 = vmul.f32 1.0, %v169
  %v171 = vrcp.pop %v164
  %v172 = vmul.f32 1.0, %v171
  %v177 = vcombine.low %v166, %v168
  %v178 = vcombine.low %v170, %v172
  %181 = vst [vmem:[%s3] sm:$0x77] %v177
  %182 = vst [vmem:[%s3 + $0x8] sm:$0x77] %v178
  // Predicated region
  $region14: #{tipae_forward.7} parent=0 // pred_check
    _
  $region15: #{tipae_forward.7} parent=0 // pred_check_branch
    %184 = sbr.rel (0) target = $region17
  $region16: #{tipae_forward.7} parent=0 // pred_region
    _
  $region17: #{tipae_forward.7} parent=0 // pred_fallthru
    _
  // Predicated region
  $region18: #{tipae_forward.7} parent=0 // pred_check
    _
  $region19: #{tipae_forward.7} parent=0 // pred_check_branch
    %186 = sbr.rel (0) target = $region21
  $region20: #{tipae_forward.7} parent=0 // pred_region
    _
  $region21: #{tipae_forward.7} parent=0 // pred_fallthru
    _

</llo_original>
